<compile_context>
chip_gen: v7x
topology: tpu7x:2x2x1
jax: 0.10.0
libtpu: 0.0.40
codegen_flags: <defaults>
</compile_context>

<pallas_src>
import functools

import jax
import jax.numpy as jnp
from jax import lax
from jax.experimental import pallas as pl
from jax.experimental.pallas import tpu as pltpu


def _round_up(x, m):
    return ((x + m - 1) // m) * m


def _fused_classifier_kernel(x_ref, w_ref, b_ref, o_ref, buf_a, buf_b, *,
                             H, W, Cp, n_layers, TH, PAD_L):
    """Fused conv stack for one batch element.

    x_ref : (1, H, W, Cp)        channel-padded input feature map (f32)
    w_ref : (L, 9*Cp, Cp)        im2col-packed, channel-padded weights (bf16)
    b_ref : (L, 1, Cp)           channel-padded biases (f32)
    o_ref : (1, H, W, Cp)        lane-dense output (real channels in [:out_ch])
    buf_a, buf_b : (H+2, W+2*PAD_L, Cp) bf16 padded activation scratch
    """
    n_chunks = H // TH
    f32 = jnp.float32

    # Zero both padded scratch buffers once; halos and padded channels stay 0.
    buf_a[...] = jnp.zeros_like(buf_a)
    buf_b[...] = jnp.zeros_like(buf_b)

    # Stage the input into the interior of buf_a (lane dense, sublane aligned).
    buf_a[1:1 + H, PAD_L:PAD_L + W, :] = x_ref[0].astype(buf_a.dtype)

    bufs = (buf_a, buf_b)
    for l in range(n_layers):
        src = bufs[l % 2]
        dst = bufs[(l + 1) % 2]
        is_last = l == n_layers - 1

        def chunk_body(t, carry, src=src, dst=dst, l=l, is_last=is_last):
            h0 = t * TH
            # im2col: 9 shifted (TH, W, Cp) taps concatenated along lanes.
            taps = [
                src[pl.ds(h0 + kh, TH), PAD_L - 1 + kw:PAD_L - 1 + kw + W, :]
                for kh in range(3)
                for kw in range(3)
            ]
            patch = jnp.concatenate(taps, axis=-1).reshape(TH * W, 9 * Cp)
            # Single MXU matmul with K = 9*Cp, bf16 operands, f32 accumulation.
            acc = jnp.dot(patch, w_ref[l], preferred_element_type=f32)
            acc = acc + b_ref[l].astype(f32)
            if not is_last:
                acc = jnp.maximum(acc, 0.0)
            tile = acc.reshape(TH, W, Cp)
            if is_last:
                o_ref[0, pl.ds(h0, TH), :, :] = tile.astype(o_ref.dtype)
            else:
                dst[pl.ds(1 + h0, TH), PAD_L:PAD_L + W, :] = tile.astype(dst.dtype)
            return carry

        lax.fori_loop(0, n_chunks, chunk_body, 0, unroll=True)


def fused_classifier_stack(x_nhwc_padded, w_packed, b_packed, *, TH):
    """Runs the whole conv stack in a single pallas_call (grid over batch)."""
    B, H, W, Cp = x_nhwc_padded.shape
    L = w_packed.shape[0]
    PAD_L = 16  # left column pad: keeps interior bf16 stores sublane aligned

    kernel = functools.partial(
        _fused_classifier_kernel,
        H=H, W=W, Cp=Cp, n_layers=L, TH=TH, PAD_L=PAD_L)

    return pl.pallas_call(
        kernel,
        out_shape=jax.ShapeDtypeStruct((B, H, W, Cp), x_nhwc_padded.dtype),
        grid=(B,),
        in_specs=[
            pl.BlockSpec((1, H, W, Cp), lambda b: (b, 0, 0, 0)),
            pl.BlockSpec((L, 9 * Cp, Cp), lambda b: (0, 0, 0)),
            pl.BlockSpec((L, 1, Cp), lambda b: (0, 0, 0)),
        ],
        out_specs=pl.BlockSpec((1, H, W, Cp), lambda b: (b, 0, 0, 0)),
        scratch_shapes=[
            pltpu.VMEM((H + 2, W + 2 * PAD_L, Cp), jnp.bfloat16),
            pltpu.VMEM((H + 2, W + 2 * PAD_L, Cp), jnp.bfloat16),
        ],
        compiler_params=pltpu.CompilerParams(
            dimension_semantics=("parallel",),
            vmem_limit_bytes=32 * 1024 * 1024,
        ),
    )(x_nhwc_padded, w_packed, b_packed)


def init_classifier_params(key, in_channels, hidden_layers, n_anchors, n_classes):
    """Deterministic synthetic params. Weights are HWIO (3,3,Cin,Cout), f32."""
    params = []
    for _ in range(hidden_layers):
        key, kw, kb = jax.random.split(key, 3)
        w = 0.1 * jax.random.normal(kw, (3, 3, in_channels, in_channels), jnp.float32)
        b = 0.1 * jax.random.normal(kb, (in_channels,), jnp.float32)
        params.append((w, b))
    out_ch = n_anchors * n_classes
    key, kw, kb = jax.random.split(key, 3)
    w = 0.1 * jax.random.normal(kw, (3, 3, in_channels, out_ch), jnp.float32)
    b = 0.1 * jax.random.normal(kb, (out_ch,), jnp.float32)
    params.append((w, b))
    return params


def classifier_forward(x_nchw, params, n_anchors, n_classes):
    """Mirrors Classifier.forward: fused conv stack -> permute -> reshape."""
    # NCHW (PyTorch) -> NHWC once (channels map to TPU lanes).
    x = jnp.transpose(x_nchw, (0, 2, 3, 1))
    B, H, W, Cin = x.shape
    out_ch = n_anchors * n_classes

    # Lane-dense channel width shared by all layers.
    max_ch = max([Cin] + [w.shape[3] for w, _ in params])
    Cp = _round_up(max_ch, 128)

    # Pack each layer's weights as an im2col slab: rows ordered (kh, kw, cin),
    # zero-padded to Cp on both channel axes, cast to bf16 for the MXU.
    ws, bs = [], []
    for w, b in params:
        ci, co = w.shape[2], w.shape[3]
        wp = jnp.zeros((3, 3, Cp, Cp), jnp.float32).at[:, :, :ci, :co].set(w)
        ws.append(wp.reshape(9 * Cp, Cp).astype(jnp.bfloat16))
        bs.append(jnp.zeros((1, Cp), jnp.float32).at[0, :co].set(b))
    w_packed = jnp.stack(ws)   # (L, 9*Cp, Cp) bf16
    b_packed = jnp.stack(bs)   # (L, 1, Cp)    f32

    # One-time channel pad of the network input so all in-kernel stores are
    # lane dense (spatial halo padding happens inside the kernel).
    x_p = jnp.pad(x, ((0, 0), (0, 0), (0, 0), (0, Cp - Cin)))

    # Row-chunk size for the M (=H*W) tiling inside the kernel.
    TH = 8 if (H % 8 == 0 and H > 8) else H

    y = fused_classifier_stack(x_p, w_packed, b_packed, TH=TH)   # (B, H, W, Cp)
    y = y[..., :out_ch]
    # PyTorch: permute(0,2,3,1).view(B,H,W,A,K).view(B,-1,K) == this reshape.
    return y.reshape(B, H * W * n_anchors, n_classes)


def classifier_reference(x_nchw, params, n_anchors, n_classes):
    """Pure-JAX f32 reference using lax.conv_general_dilated (validation)."""
    x = jnp.transpose(x_nchw, (0, 2, 3, 1))
    dn = ("NHWC", "HWIO", "NHWC")
    for i, (w, b) in enumerate(params):
        x = lax.conv_general_dilated(
            x, w, window_strides=(1, 1), padding="SAME", dimension_numbers=dn
        ) + b[None, None, None, :]
        if i < len(params) - 1:
            x = jnp.maximum(x, 0.0)
    B, H, W, _ = x.shape
    return x.reshape(B, H * W * n_anchors, n_classes)


if __name__ == "__main__":
    # Small, module-consistent shapes.
    batch = 2
    in_channels = 8
    H = W = 16
    hidden_layers = 2
    n_anchors = 3
    n_classes = 5

    key = jax.random.PRNGKey(0)
    key, kx, kp = jax.random.split(key, 3)

    x = jax.random.normal(kx, (batch, in_channels, H, W), jnp.float32)  # NCHW
    params = init_classifier_params(kp, in_channels, hidden_layers,
                                    n_anchors, n_classes)

    out = classifier_forward(x, params, n_anchors, n_classes)
    out = jax.block_until_ready(out)

    ref = classifier_reference(x, params, n_anchors, n_classes)
    assert out.shape == (batch, H * W * n_anchors, n_classes), out.shape
    # bf16 MXU operands + bf16 intermediate activations -> relaxed tolerance
    # vs the f32 reference (errors observed are ~1e-2 absolute at these scales).
    assert jnp.allclose(out, ref, rtol=5e-2, atol=5e-2), "mismatch vs reference"

    print("KERNEL_OK")
</pallas_src>

<mosaic_0001>
module attributes {stable_mosaic.version = 11 : i64} {
  func.func @_fused_classifier_kernel(%arg0: i32, %arg1: memref<1x16x16x128xf32, #tpu.memory_space<vmem>>, %arg2: memref<3x1152x128xbf16, #tpu.memory_space<vmem>>, %arg3: memref<3x1x128xf32, #tpu.memory_space<vmem>>, %arg4: memref<1x16x16x128xf32, #tpu.memory_space<vmem>>, %arg5: memref<18x48x128xbf16, #tpu.memory_space<vmem>>, %arg6: memref<18x48x128xbf16, #tpu.memory_space<vmem>>) attributes {dimension_semantics = [#tpu.dimension_semantics<parallel>], iteration_bounds = array<i64: 2>, scalar_prefetch = 0 : i64, scratch_operands = 2 : i64, tpu.core_type = #tpu.core_type<tc>, window_params = [{transform_indices = @transform_0, window_bounds = array<i64: 1, 16, 16, 128>}, {pipeline_mode = #tpu.pipeline_mode<synchronous>, transform_indices = @transform_1, window_bounds = array<i64: 3, 1152, 128>}, {pipeline_mode = #tpu.pipeline_mode<synchronous>, transform_indices = @transform_2, window_bounds = array<i64: 3, 1, 128>}, {transform_indices = @transform_3, window_bounds = array<i64: 1, 16, 16, 128>}]} {
    %cst = arith.constant 0.000000e+00 : bf16
    %0 = vector.broadcast %cst : bf16 to vector<18x48x128xbf16>
    %c0 = arith.constant 0 : index
    %c0_0 = arith.constant 0 : index
    %c0_1 = arith.constant 0 : index
    %1 = vector.load %arg5[%c0, %c0_0, %c0_1] : memref<18x48x128xbf16, #tpu.memory_space<vmem>>, vector<18x48x128xbf16>
    tpu.vector_store %arg5[%c0, %c0_0, %c0_1], %0 {strides = array<i32>} : memref<18x48x128xbf16, #tpu.memory_space<vmem>>, vector<18x48x128xbf16>,
    %cst_2 = arith.constant 0.000000e+00 : bf16
    %2 = vector.broadcast %cst_2 : bf16 to vector<18x48x128xbf16>
    %c0_3 = arith.constant 0 : index
    %c0_4 = arith.constant 0 : index
    %c0_5 = arith.constant 0 : index
    %3 = vector.load %arg6[%c0_3, %c0_4, %c0_5] : memref<18x48x128xbf16, #tpu.memory_space<vmem>>, vector<18x48x128xbf16>
    tpu.vector_store %arg6[%c0_3, %c0_4, %c0_5], %2 {strides = array<i32>} : memref<18x48x128xbf16, #tpu.memory_space<vmem>>, vector<18x48x128xbf16>,
    %c0_6 = arith.constant 0 : index
    %c0_7 = arith.constant 0 : index
    %c0_8 = arith.constant 0 : index
    %c0_9 = arith.constant 0 : index
    %4 = vector.load %arg1[%c0_6, %c0_7, %c0_8, %c0_9] : memref<1x16x16x128xf32, #tpu.memory_space<vmem>>, vector<1x16x16x128xf32>
    %5 = vector.shape_cast %4 : vector<1x16x16x128xf32> to vector<16x16x128xf32>
    %6 = arith.truncf %5 : vector<16x16x128xf32> to vector<16x16x128xbf16>
    %c1 = arith.constant 1 : index
    %c16 = arith.constant 16 : index
    %c0_10 = arith.constant 0 : index
    %7 = vector.load %arg5[%c1, %c16, %c0_10] : memref<18x48x128xbf16, #tpu.memory_space<vmem>>, vector<16x16x128xbf16>
    tpu.vector_store %arg5[%c1, %c16, %c0_10], %6 {strides = array<i32>} : memref<18x48x128xbf16, #tpu.memory_space<vmem>>, vector<16x16x128xbf16>,
    %c0_i32 = arith.constant 0 : i32
    %c8_i32 = arith.constant 8 : i32
    %8 = arith.muli %c0_i32, %c8_i32 : i32
    %c0_i32_11 = arith.constant 0 : i32
    %9 = arith.addi %8, %c0_i32_11 : i32
    %10 = arith.index_cast %9 : i32 to index
    %c15 = arith.constant 15 : index
    %c0_12 = arith.constant 0 : index
    %11 = vector.load %arg5[%10, %c15, %c0_12] : memref<18x48x128xbf16, #tpu.memory_space<vmem>>, vector<8x16x128xbf16>
    %c0_i32_13 = arith.constant 0 : i32
    %12 = arith.addi %8, %c0_i32_13 : i32
    %13 = arith.index_cast %12 : i32 to index
    %c16_14 = arith.constant 16 : index
    %c0_15 = arith.constant 0 : index
    %14 = vector.load %arg5[%13, %c16_14, %c0_15] : memref<18x48x128xbf16, #tpu.memory_space<vmem>>, vector<8x16x128xbf16>
    %c0_i32_16 = arith.constant 0 : i32
    %15 = arith.addi %8, %c0_i32_16 : i32
    %16 = arith.index_cast %15 : i32 to index
    %c17 = arith.constant 17 : index
    %c0_17 = arith.constant 0 : index
    %17 = vector.load %arg5[%16, %c17, %c0_17] : memref<18x48x128xbf16, #tpu.memory_space<vmem>>, vector<8x16x128xbf16>
    %c1_i32 = arith.constant 1 : i32
    %18 = arith.addi %8, %c1_i32 : i32
    %19 = arith.index_cast %18 : i32 to index
    %c15_18 = arith.constant 15 : index
    %c0_19 = arith.constant 0 : index
    %20 = vector.load %arg5[%19, %c15_18, %c0_19] : memref<18x48x128xbf16, #tpu.memory_space<vmem>>, vector<8x16x128xbf16>
    %c1_i32_20 = arith.constant 1 : i32
    %21 = arith.addi %8, %c1_i32_20 : i32
    %22 = arith.index_cast %21 : i32 to index
    %c16_21 = arith.constant 16 : index
    %c0_22 = arith.constant 0 : index
    %23 = vector.load %arg5[%22, %c16_21, %c0_22] : memref<18x48x128xbf16, #tpu.memory_space<vmem>>, vector<8x16x128xbf16>
    %c1_i32_23 = arith.constant 1 : i32
    %24 = arith.addi %8, %c1_i32_23 : i32
    %25 = arith.index_cast %24 : i32 to index
    %c17_24 = arith.constant 17 : index
    %c0_25 = arith.constant 0 : index
    %26 = vector.load %arg5[%25, %c17_24, %c0_25] : memref<18x48x128xbf16, #tpu.memory_space<vmem>>, vector<8x16x128xbf16>
    %c2_i32 = arith.constant 2 : i32
    %27 = arith.addi %8, %c2_i32 : i32
    %28 = arith.index_cast %27 : i32 to index
    %c15_26 = arith.constant 15 : index
    %c0_27 = arith.constant 0 : index
    %29 = vector.load %arg5[%28, %c15_26, %c0_27] : memref<18x48x128xbf16, #tpu.memory_space<vmem>>, vector<8x16x128xbf16>
    %c2_i32_28 = arith.constant 2 : i32
    %30 = arith.addi %8, %c2_i32_28 : i32
    %31 = arith.index_cast %30 : i32 to index
    %c16_29 = arith.constant 16 : index
    %c0_30 = arith.constant 0 : index
    %32 = vector.load %arg5[%31, %c16_29, %c0_30] : memref<18x48x128xbf16, #tpu.memory_space<vmem>>, vector<8x16x128xbf16>
    %c2_i32_31 = arith.constant 2 : i32
    %33 = arith.addi %8, %c2_i32_31 : i32
    %34 = arith.index_cast %33 : i32 to index
    %c17_32 = arith.constant 17 : index
    %c0_33 = arith.constant 0 : index
    %35 = vector.load %arg5[%34, %c17_32, %c0_33] : memref<18x48x128xbf16, #tpu.memory_space<vmem>>, vector<8x16x128xbf16>
    %36 = tpu.concatenate %11, %14, %17, %20, %23, %26, %29, %32, %35 in 2 : vector<8x16x128xbf16>, vector<8x16x128xbf16>, vector<8x16x128xbf16>, vector<8x16x128xbf16>, vector<8x16x128xbf16>, vector<8x16x128xbf16>, vector<8x16x128xbf16>, vector<8x16x128xbf16>, vector<8x16x128xbf16> -> vector<8x16x1152xbf16>
    %37 = vector.shape_cast %36 : vector<8x16x1152xbf16> to vector<128x1152xbf16>
    %c0_34 = arith.constant 0 : index
    %c0_35 = arith.constant 0 : index
    %c0_36 = arith.constant 0 : index
    %38 = vector.load %arg2[%c0_34, %c0_35, %c0_36] : memref<3x1152x128xbf16, #tpu.memory_space<vmem>>, vector<1x1152x128xbf16>
    %39 = vector.shape_cast %38 : vector<1x1152x128xbf16> to vector<1152x128xbf16>
    %cst_37 = arith.constant dense<0.000000e+00> : vector<128x128xf32>
    %40 = tpu.matmul %37, %39, %cst_37 {dimension_numbers = #tpu.dot_dimension_numbers<[1], [0], [0], [1], [0, 0, 1, 1], [], []>} : vector<128x1152xbf16>, vector<1152x128xbf16>, vector<128x128xf32> -> vector<128x128xf32>
    %c0_38 = arith.constant 0 : index
    %c0_39 = arith.constant 0 : index
    %c0_40 = arith.constant 0 : index
    %41 = vector.load %arg3[%c0_38, %c0_39, %c0_40] : memref<3x1x128xf32, #tpu.memory_space<vmem>>, vector<1x1x128xf32>
    %42 = vector.shape_cast %41 : vector<1x1x128xf32> to vector<1x128xf32>
    %43 = vector.broadcast %42 : vector<1x128xf32> to vector<128x128xf32>
    %44 = arith.addf %40, %43 : vector<128x128xf32>
    %cst_41 = arith.constant 0.000000e+00 : f32
    %45 = vector.broadcast %cst_41 : f32 to vector<128x128xf32>
    %46 = arith.maximumf %44, %45 : vector<128x128xf32>
    %47 = vector.shape_cast %46 : vector<128x128xf32> to vector<8x16x128xf32>
    %48 = arith.truncf %47 : vector<8x16x128xf32> to vector<8x16x128xbf16>
    %c1_i32_42 = arith.constant 1 : i32
    %49 = arith.addi %c1_i32_42, %8 : i32
    %50 = arith.index_cast %49 : i32 to index
    %c16_43 = arith.constant 16 : index
    %c0_44 = arith.constant 0 : index
    %51 = vector.load %arg6[%50, %c16_43, %c0_44] : memref<18x48x128xbf16, #tpu.memory_space<vmem>>, vector<8x16x128xbf16>
    tpu.vector_store %arg6[%50, %c16_43, %c0_44], %48 {strides = array<i32>} : memref<18x48x128xbf16, #tpu.memory_space<vmem>>, vector<8x16x128xbf16>,
    %c1_i32_45 = arith.constant 1 : i32
    %c8_i32_46 = arith.constant 8 : i32
    %52 = arith.muli %c1_i32_45, %c8_i32_46 : i32
    %c0_i32_47 = arith.constant 0 : i32
    %53 = arith.addi %52, %c0_i32_47 : i32
    %54 = arith.index_cast %53 : i32 to index
    %c15_48 = arith.constant 15 : index
    %c0_49 = arith.constant 0 : index
    %55 = vector.load %arg5[%54, %c15_48, %c0_49] : memref<18x48x128xbf16, #tpu.memory_space<vmem>>, vector<8x16x128xbf16>
    %c0_i32_50 = arith.constant 0 : i32
    %56 = arith.addi %52, %c0_i32_50 : i32
    %57 = arith.index_cast %56 : i32 to index
    %c16_51 = arith.constant 16 : index
    %c0_52 = arith.constant 0 : index
    %58 = vector.load %arg5[%57, %c16_51, %c0_52] : memref<18x48x128xbf16, #tpu.memory_space<vmem>>, vector<8x16x128xbf16>
    %c0_i32_53 = arith.constant 0 : i32
    %59 = arith.addi %52, %c0_i32_53 : i32
    %60 = arith.index_cast %59 : i32 to index
    %c17_54 = arith.constant 17 : index
    %c0_55 = arith.constant 0 : index
    %61 = vector.load %arg5[%60, %c17_54, %c0_55] : memref<18x48x128xbf16, #tpu.memory_space<vmem>>, vector<8x16x128xbf16>
    %c1_i32_56 = arith.constant 1 : i32
    %62 = arith.addi %52, %c1_i32_56 : i32
    %63 = arith.index_cast %62 : i32 to index
    %c15_57 = arith.constant 15 : index
    %c0_58 = arith.constant 0 : index
    %64 = vector.load %arg5[%63, %c15_57, %c0_58] : memref<18x48x128xbf16, #tpu.memory_space<vmem>>, vector<8x16x128xbf16>
    %c1_i32_59 = arith.constant 1 : i32
    %65 = arith.addi %52, %c1_i32_59 : i32
    %66 = arith.index_cast %65 : i32 to index
    %c16_60 = arith.constant 16 : index
    %c0_61 = arith.constant 0 : index
    %67 = vector.load %arg5[%66, %c16_60, %c0_61] : memref<18x48x128xbf16, #tpu.memory_space<vmem>>, vector<8x16x128xbf16>
    %c1_i32_62 = arith.constant 1 : i32
    %68 = arith.addi %52, %c1_i32_62 : i32
    %69 = arith.index_cast %68 : i32 to index
    %c17_63 = arith.constant 17 : index
    %c0_64 = arith.constant 0 : index
    %70 = vector.load %arg5[%69, %c17_63, %c0_64] : memref<18x48x128xbf16, #tpu.memory_space<vmem>>, vector<8x16x128xbf16>
    %c2_i32_65 = arith.constant 2 : i32
    %71 = arith.addi %52, %c2_i32_65 : i32
    %72 = arith.index_cast %71 : i32 to index
    %c15_66 = arith.constant 15 : index
    %c0_67 = arith.constant 0 : index
    %73 = vector.load %arg5[%72, %c15_66, %c0_67] : memref<18x48x128xbf16, #tpu.memory_space<vmem>>, vector<8x16x128xbf16>
    %c2_i32_68 = arith.constant 2 : i32
    %74 = arith.addi %52, %c2_i32_68 : i32
    %75 = arith.index_cast %74 : i32 to index
    %c16_69 = arith.constant 16 : index
    %c0_70 = arith.constant 0 : index
    %76 = vector.load %arg5[%75, %c16_69, %c0_70] : memref<18x48x128xbf16, #tpu.memory_space<vmem>>, vector<8x16x128xbf16>
    %c2_i32_71 = arith.constant 2 : i32
    %77 = arith.addi %52, %c2_i32_71 : i32
    %78 = arith.index_cast %77 : i32 to index
    %c17_72 = arith.constant 17 : index
    %c0_73 = arith.constant 0 : index
    %79 = vector.load %arg5[%78, %c17_72, %c0_73] : memref<18x48x128xbf16, #tpu.memory_space<vmem>>, vector<8x16x128xbf16>
    %80 = tpu.concatenate %55, %58, %61, %64, %67, %70, %73, %76, %79 in 2 : vector<8x16x128xbf16>, vector<8x16x128xbf16>, vector<8x16x128xbf16>, vector<8x16x128xbf16>, vector<8x16x128xbf16>, vector<8x16x128xbf16>, vector<8x16x128xbf16>, vector<8x16x128xbf16>, vector<8x16x128xbf16> -> vector<8x16x1152xbf16>
    %81 = vector.shape_cast %80 : vector<8x16x1152xbf16> to vector<128x1152xbf16>
    %c0_74 = arith.constant 0 : index
    %c0_75 = arith.constant 0 : index
    %c0_76 = arith.constant 0 : index
    %82 = vector.load %arg2[%c0_74, %c0_75, %c0_76] : memref<3x1152x128xbf16, #tpu.memory_space<vmem>>, vector<1x1152x128xbf16>
    %83 = vector.shape_cast %82 : vector<1x1152x128xbf16> to vector<1152x128xbf16>
    %cst_77 = arith.constant dense<0.000000e+00> : vector<128x128xf32>
    %84 = tpu.matmul %81, %83, %cst_77 {dimension_numbers = #tpu.dot_dimension_numbers<[1], [0], [0], [1], [0, 0, 1, 1], [], []>} : vector<128x1152xbf16>, vector<1152x128xbf16>, vector<128x128xf32> -> vector<128x128xf32>
    %c0_78 = arith.constant 0 : index
    %c0_79 = arith.constant 0 : index
    %c0_80 = arith.constant 0 : index
    %85 = vector.load %arg3[%c0_78, %c0_79, %c0_80] : memref<3x1x128xf32, #tpu.memory_space<vmem>>, vector<1x1x128xf32>
    %86 = vector.shape_cast %85 : vector<1x1x128xf32> to vector<1x128xf32>
    %87 = vector.broadcast %86 : vector<1x128xf32> to vector<128x128xf32>
    %88 = arith.addf %84, %87 : vector<128x128xf32>
    %cst_81 = arith.constant 0.000000e+00 : f32
    %89 = vector.broadcast %cst_81 : f32 to vector<128x128xf32>
    %90 = arith.maximumf %88, %89 : vector<128x128xf32>
    %91 = vector.shape_cast %90 : vector<128x128xf32> to vector<8x16x128xf32>
    %92 = arith.truncf %91 : vector<8x16x128xf32> to vector<8x16x128xbf16>
    %c1_i32_82 = arith.constant 1 : i32
    %93 = arith.addi %c1_i32_82, %52 : i32
    %94 = arith.index_cast %93 : i32 to index
    %c16_83 = arith.constant 16 : index
    %c0_84 = arith.constant 0 : index
    %95 = vector.load %arg6[%94, %c16_83, %c0_84] : memref<18x48x128xbf16, #tpu.memory_space<vmem>>, vector<8x16x128xbf16>
    tpu.vector_store %arg6[%94, %c16_83, %c0_84], %92 {strides = array<i32>} : memref<18x48x128xbf16, #tpu.memory_space<vmem>>, vector<8x16x128xbf16>,
    %c2_i32_85 = arith.constant 2 : i32
    %c0_i32_86 = arith.constant 0 : i32
    %c8_i32_87 = arith.constant 8 : i32
    %96 = arith.muli %c0_i32_86, %c8_i32_87 : i32
    %c0_i32_88 = arith.constant 0 : i32
    %97 = arith.addi %96, %c0_i32_88 : i32
    %98 = arith.index_cast %97 : i32 to index
    %c15_89 = arith.constant 15 : index
    %c0_90 = arith.constant 0 : index
    %99 = vector.load %arg6[%98, %c15_89, %c0_90] : memref<18x48x128xbf16, #tpu.memory_space<vmem>>, vector<8x16x128xbf16>
    %c0_i32_91 = arith.constant 0 : i32
    %100 = arith.addi %96, %c0_i32_91 : i32
    %101 = arith.index_cast %100 : i32 to index
    %c16_92 = arith.constant 16 : index
    %c0_93 = arith.constant 0 : index
    %102 = vector.load %arg6[%101, %c16_92, %c0_93] : memref<18x48x128xbf16, #tpu.memory_space<vmem>>, vector<8x16x128xbf16>
    %c0_i32_94 = arith.constant 0 : i32
    %103 = arith.addi %96, %c0_i32_94 : i32
    %104 = arith.index_cast %103 : i32 to index
    %c17_95 = arith.constant 17 : index
    %c0_96 = arith.constant 0 : index
    %105 = vector.load %arg6[%104, %c17_95, %c0_96] : memref<18x48x128xbf16, #tpu.memory_space<vmem>>, vector<8x16x128xbf16>
    %c1_i32_97 = arith.constant 1 : i32
    %106 = arith.addi %96, %c1_i32_97 : i32
    %107 = arith.index_cast %106 : i32 to index
    %c15_98 = arith.constant 15 : index
    %c0_99 = arith.constant 0 : index
    %108 = vector.load %arg6[%107, %c15_98, %c0_99] : memref<18x48x128xbf16, #tpu.memory_space<vmem>>, vector<8x16x128xbf16>
    %c1_i32_100 = arith.constant 1 : i32
    %109 = arith.addi %96, %c1_i32_100 : i32
    %110 = arith.index_cast %109 : i32 to index
    %c16_101 = arith.constant 16 : index
    %c0_102 = arith.constant 0 : index
    %111 = vector.load %arg6[%110, %c16_101, %c0_102] : memref<18x48x128xbf16, #tpu.memory_space<vmem>>, vector<8x16x128xbf16>
    %c1_i32_103 = arith.constant 1 : i32
    %112 = arith.addi %96, %c1_i32_103 : i32
    %113 = arith.index_cast %112 : i32 to index
    %c17_104 = arith.constant 17 : index
    %c0_105 = arith.constant 0 : index
    %114 = vector.load %arg6[%113, %c17_104, %c0_105] : memref<18x48x128xbf16, #tpu.memory_space<vmem>>, vector<8x16x128xbf16>
    %c2_i32_106 = arith.constant 2 : i32
    %115 = arith.addi %96, %c2_i32_106 : i32
    %116 = arith.index_cast %115 : i32 to index
    %c15_107 = arith.constant 15 : index
    %c0_108 = arith.constant 0 : index
    %117 = vector.load %arg6[%116, %c15_107, %c0_108] : memref<18x48x128xbf16, #tpu.memory_space<vmem>>, vector<8x16x128xbf16>
    %c2_i32_109 = arith.constant 2 : i32
    %118 = arith.addi %96, %c2_i32_109 : i32
    %119 = arith.index_cast %118 : i32 to index
    %c16_110 = arith.constant 16 : index
    %c0_111 = arith.constant 0 : index
    %120 = vector.load %arg6[%119, %c16_110, %c0_111] : memref<18x48x128xbf16, #tpu.memory_space<vmem>>, vector<8x16x128xbf16>
    %c2_i32_112 = arith.constant 2 : i32
    %121 = arith.addi %96, %c2_i32_112 : i32
    %122 = arith.index_cast %121 : i32 to index
    %c17_113 = arith.constant 17 : index
    %c0_114 = arith.constant 0 : index
    %123 = vector.load %arg6[%122, %c17_113, %c0_114] : memref<18x48x128xbf16, #tpu.memory_space<vmem>>, vector<8x16x128xbf16>
    %124 = tpu.concatenate %99, %102, %105, %108, %111, %114, %117, %120, %123 in 2 : vector<8x16x128xbf16>, vector<8x16x128xbf16>, vector<8x16x128xbf16>, vector<8x16x128xbf16>, vector<8x16x128xbf16>, vector<8x16x128xbf16>, vector<8x16x128xbf16>, vector<8x16x128xbf16>, vector<8x16x128xbf16> -> vector<8x16x1152xbf16>
    %125 = vector.shape_cast %124 : vector<8x16x1152xbf16> to vector<128x1152xbf16>
    %c1_115 = arith.constant 1 : index
    %c0_116 = arith.constant 0 : index
    %c0_117 = arith.constant 0 : index
    %126 = vector.load %arg2[%c1_115, %c0_116, %c0_117] : memref<3x1152x128xbf16, #tpu.memory_space<vmem>>, vector<1x1152x128xbf16>
    %127 = vector.shape_cast %126 : vector<1x1152x128xbf16> to vector<1152x128xbf16>
    %cst_118 = arith.constant dense<0.000000e+00> : vector<128x128xf32>
    %128 = tpu.matmul %125, %127, %cst_118 {dimension_numbers = #tpu.dot_dimension_numbers<[1], [0], [0], [1], [0, 0, 1, 1], [], []>} : vector<128x1152xbf16>, vector<1152x128xbf16>, vector<128x128xf32> -> vector<128x128xf32>
    %c1_119 = arith.constant 1 : index
    %c0_120 = arith.constant 0 : index
    %c0_121 = arith.constant 0 : index
    %129 = vector.load %arg3[%c1_119, %c0_120, %c0_121] : memref<3x1x128xf32, #tpu.memory_space<vmem>>, vector<1x1x128xf32>
    %130 = vector.shape_cast %129 : vector<1x1x128xf32> to vector<1x128xf32>
    %131 = vector.broadcast %130 : vector<1x128xf32> to vector<128x128xf32>
    %132 = arith.addf %128, %131 : vector<128x128xf32>
    %cst_122 = arith.constant 0.000000e+00 : f32
    %133 = vector.broadcast %cst_122 : f32 to vector<128x128xf32>
    %134 = arith.maximumf %132, %133 : vector<128x128xf32>
    %135 = vector.shape_cast %134 : vector<128x128xf32> to vector<8x16x128xf32>
    %136 = arith.truncf %135 : vector<8x16x128xf32> to vector<8x16x128xbf16>
    %c1_i32_123 = arith.constant 1 : i32
    %137 = arith.addi %c1_i32_123, %96 : i32
    %138 = arith.index_cast %137 : i32 to index
    %c16_124 = arith.constant 16 : index
    %c0_125 = arith.constant 0 : index
    %139 = vector.load %arg5[%138, %c16_124, %c0_125] : memref<18x48x128xbf16, #tpu.memory_space<vmem>>, vector<8x16x128xbf16>
    tpu.vector_store %arg5[%138, %c16_124, %c0_125], %136 {strides = array<i32>} : memref<18x48x128xbf16, #tpu.memory_space<vmem>>, vector<8x16x128xbf16>,
    %c1_i32_126 = arith.constant 1 : i32
    %c8_i32_127 = arith.constant 8 : i32
    %140 = arith.muli %c1_i32_126, %c8_i32_127 : i32
    %c0_i32_128 = arith.constant 0 : i32
    %141 = arith.addi %140, %c0_i32_128 : i32
    %142 = arith.index_cast %141 : i32 to index
    %c15_129 = arith.constant 15 : index
    %c0_130 = arith.constant 0 : index
    %143 = vector.load %arg6[%142, %c15_129, %c0_130] : memref<18x48x128xbf16, #tpu.memory_space<vmem>>, vector<8x16x128xbf16>
    %c0_i32_131 = arith.constant 0 : i32
    %144 = arith.addi %140, %c0_i32_131 : i32
    %145 = arith.index_cast %144 : i32 to index
    %c16_132 = arith.constant 16 : index
    %c0_133 = arith.constant 0 : index
    %146 = vector.load %arg6[%145, %c16_132, %c0_133] : memref<18x48x128xbf16, #tpu.memory_space<vmem>>, vector<8x16x128xbf16>
    %c0_i32_134 = arith.constant 0 : i32
    %147 = arith.addi %140, %c0_i32_134 : i32
    %148 = arith.index_cast %147 : i32 to index
    %c17_135 = arith.constant 17 : index
    %c0_136 = arith.constant 0 : index
    %149 = vector.load %arg6[%148, %c17_135, %c0_136] : memref<18x48x128xbf16, #tpu.memory_space<vmem>>, vector<8x16x128xbf16>
    %c1_i32_137 = arith.constant 1 : i32
    %150 = arith.addi %140, %c1_i32_137 : i32
    %151 = arith.index_cast %150 : i32 to index
    %c15_138 = arith.constant 15 : index
    %c0_139 = arith.constant 0 : index
    %152 = vector.load %arg6[%151, %c15_138, %c0_139] : memref<18x48x128xbf16, #tpu.memory_space<vmem>>, vector<8x16x128xbf16>
    %c1_i32_140 = arith.constant 1 : i32
    %153 = arith.addi %140, %c1_i32_140 : i32
    %154 = arith.index_cast %153 : i32 to index
    %c16_141 = arith.constant 16 : index
    %c0_142 = arith.constant 0 : index
    %155 = vector.load %arg6[%154, %c16_141, %c0_142] : memref<18x48x128xbf16, #tpu.memory_space<vmem>>, vector<8x16x128xbf16>
    %c1_i32_143 = arith.constant 1 : i32
    %156 = arith.addi %140, %c1_i32_143 : i32
    %157 = arith.index_cast %156 : i32 to index
    %c17_144 = arith.constant 17 : index
    %c0_145 = arith.constant 0 : index
    %158 = vector.load %arg6[%157, %c17_144, %c0_145] : memref<18x48x128xbf16, #tpu.memory_space<vmem>>, vector<8x16x128xbf16>
    %c2_i32_146 = arith.constant 2 : i32
    %159 = arith.addi %140, %c2_i32_146 : i32
    %160 = arith.index_cast %159 : i32 to index
    %c15_147 = arith.constant 15 : index
    %c0_148 = arith.constant 0 : index
    %161 = vector.load %arg6[%160, %c15_147, %c0_148] : memref<18x48x128xbf16, #tpu.memory_space<vmem>>, vector<8x16x128xbf16>
    %c2_i32_149 = arith.constant 2 : i32
    %162 = arith.addi %140, %c2_i32_149 : i32
    %163 = arith.index_cast %162 : i32 to index
    %c16_150 = arith.constant 16 : index
    %c0_151 = arith.constant 0 : index
    %164 = vector.load %arg6[%163, %c16_150, %c0_151] : memref<18x48x128xbf16, #tpu.memory_space<vmem>>, vector<8x16x128xbf16>
    %c2_i32_152 = arith.constant 2 : i32
    %165 = arith.addi %140, %c2_i32_152 : i32
    %166 = arith.index_cast %165 : i32 to index
    %c17_153 = arith.constant 17 : index
    %c0_154 = arith.constant 0 : index
    %167 = vector.load %arg6[%166, %c17_153, %c0_154] : memref<18x48x128xbf16, #tpu.memory_space<vmem>>, vector<8x16x128xbf16>
    %168 = tpu.concatenate %143, %146, %149, %152, %155, %158, %161, %164, %167 in 2 : vector<8x16x128xbf16>, vector<8x16x128xbf16>, vector<8x16x128xbf16>, vector<8x16x128xbf16>, vector<8x16x128xbf16>, vector<8x16x128xbf16>, vector<8x16x128xbf16>, vector<8x16x128xbf16>, vector<8x16x128xbf16> -> vector<8x16x1152xbf16>
    %169 = vector.shape_cast %168 : vector<8x16x1152xbf16> to vector<128x1152xbf16>
    %c1_155 = arith.constant 1 : index
    %c0_156 = arith.constant 0 : index
    %c0_157 = arith.constant 0 : index
    %170 = vector.load %arg2[%c1_155, %c0_156, %c0_157] : memref<3x1152x128xbf16, #tpu.memory_space<vmem>>, vector<1x1152x128xbf16>
    %171 = vector.shape_cast %170 : vector<1x1152x128xbf16> to vector<1152x128xbf16>
    %cst_158 = arith.constant dense<0.000000e+00> : vector<128x128xf32>
    %172 = tpu.matmul %169, %171, %cst_158 {dimension_numbers = #tpu.dot_dimension_numbers<[1], [0], [0], [1], [0, 0, 1, 1], [], []>} : vector<128x1152xbf16>, vector<1152x128xbf16>, vector<128x128xf32> -> vector<128x128xf32>
    %c1_159 = arith.constant 1 : index
    %c0_160 = arith.constant 0 : index
    %c0_161 = arith.constant 0 : index
    %173 = vector.load %arg3[%c1_159, %c0_160, %c0_161] : memref<3x1x128xf32, #tpu.memory_space<vmem>>, vector<1x1x128xf32>
    %174 = vector.shape_cast %173 : vector<1x1x128xf32> to vector<1x128xf32>
    %175 = vector.broadcast %174 : vector<1x128xf32> to vector<128x128xf32>
    %176 = arith.addf %172, %175 : vector<128x128xf32>
    %cst_162 = arith.constant 0.000000e+00 : f32
    %177 = vector.broadcast %cst_162 : f32 to vector<128x128xf32>
    %178 = arith.maximumf %176, %177 : vector<128x128xf32>
    %179 = vector.shape_cast %178 : vector<128x128xf32> to vector<8x16x128xf32>
    %180 = arith.truncf %179 : vector<8x16x128xf32> to vector<8x16x128xbf16>
    %c1_i32_163 = arith.constant 1 : i32
    %181 = arith.addi %c1_i32_163, %140 : i32
    %182 = arith.index_cast %181 : i32 to index
    %c16_164 = arith.constant 16 : index
    %c0_165 = arith.constant 0 : index
    %183 = vector.load %arg5[%182, %c16_164, %c0_165] : memref<18x48x128xbf16, #tpu.memory_space<vmem>>, vector<8x16x128xbf16>
    tpu.vector_store %arg5[%182, %c16_164, %c0_165], %180 {strides = array<i32>} : memref<18x48x128xbf16, #tpu.memory_space<vmem>>, vector<8x16x128xbf16>,
    %c2_i32_166 = arith.constant 2 : i32
    %c0_i32_167 = arith.constant 0 : i32
    %c8_i32_168 = arith.constant 8 : i32
    %184 = arith.muli %c0_i32_167, %c8_i32_168 : i32
    %c0_i32_169 = arith.constant 0 : i32
    %185 = arith.addi %184, %c0_i32_169 : i32
    %186 = arith.index_cast %185 : i32 to index
    %c15_170 = arith.constant 15 : index
    %c0_171 = arith.constant 0 : index
    %187 = vector.load %arg5[%186, %c15_170, %c0_171] : memref<18x48x128xbf16, #tpu.memory_space<vmem>>, vector<8x16x128xbf16>
    %c0_i32_172 = arith.constant 0 : i32
    %188 = arith.addi %184, %c0_i32_172 : i32
    %189 = arith.index_cast %188 : i32 to index
    %c16_173 = arith.constant 16 : index
    %c0_174 = arith.constant 0 : index
    %190 = vector.load %arg5[%189, %c16_173, %c0_174] : memref<18x48x128xbf16, #tpu.memory_space<vmem>>, vector<8x16x128xbf16>
    %c0_i32_175 = arith.constant 0 : i32
    %191 = arith.addi %184, %c0_i32_175 : i32
    %192 = arith.index_cast %191 : i32 to index
    %c17_176 = arith.constant 17 : index
    %c0_177 = arith.constant 0 : index
    %193 = vector.load %arg5[%192, %c17_176, %c0_177] : memref<18x48x128xbf16, #tpu.memory_space<vmem>>, vector<8x16x128xbf16>
    %c1_i32_178 = arith.constant 1 : i32
    %194 = arith.addi %184, %c1_i32_178 : i32
    %195 = arith.index_cast %194 : i32 to index
    %c15_179 = arith.constant 15 : index
    %c0_180 = arith.constant 0 : index
    %196 = vector.load %arg5[%195, %c15_179, %c0_180] : memref<18x48x128xbf16, #tpu.memory_space<vmem>>, vector<8x16x128xbf16>
    %c1_i32_181 = arith.constant 1 : i32
    %197 = arith.addi %184, %c1_i32_181 : i32
    %198 = arith.index_cast %197 : i32 to index
    %c16_182 = arith.constant 16 : index
    %c0_183 = arith.constant 0 : index
    %199 = vector.load %arg5[%198, %c16_182, %c0_183] : memref<18x48x128xbf16, #tpu.memory_space<vmem>>, vector<8x16x128xbf16>
    %c1_i32_184 = arith.constant 1 : i32
    %200 = arith.addi %184, %c1_i32_184 : i32
    %201 = arith.index_cast %200 : i32 to index
    %c17_185 = arith.constant 17 : index
    %c0_186 = arith.constant 0 : index
    %202 = vector.load %arg5[%201, %c17_185, %c0_186] : memref<18x48x128xbf16, #tpu.memory_space<vmem>>, vector<8x16x128xbf16>
    %c2_i32_187 = arith.constant 2 : i32
    %203 = arith.addi %184, %c2_i32_187 : i32
    %204 = arith.index_cast %203 : i32 to index
    %c15_188 = arith.constant 15 : index
    %c0_189 = arith.constant 0 : index
    %205 = vector.load %arg5[%204, %c15_188, %c0_189] : memref<18x48x128xbf16, #tpu.memory_space<vmem>>, vector<8x16x128xbf16>
    %c2_i32_190 = arith.constant 2 : i32
    %206 = arith.addi %184, %c2_i32_190 : i32
    %207 = arith.index_cast %206 : i32 to index
    %c16_191 = arith.constant 16 : index
    %c0_192 = arith.constant 0 : index
    %208 = vector.load %arg5[%207, %c16_191, %c0_192] : memref<18x48x128xbf16, #tpu.memory_space<vmem>>, vector<8x16x128xbf16>
    %c2_i32_193 = arith.constant 2 : i32
    %209 = arith.addi %184, %c2_i32_193 : i32
    %210 = arith.index_cast %209 : i32 to index
    %c17_194 = arith.constant 17 : index
    %c0_195 = arith.constant 0 : index
    %211 = vector.load %arg5[%210, %c17_194, %c0_195] : memref<18x48x128xbf16, #tpu.memory_space<vmem>>, vector<8x16x128xbf16>
    %212 = tpu.concatenate %187, %190, %193, %196, %199, %202, %205, %208, %211 in 2 : vector<8x16x128xbf16>, vector<8x16x128xbf16>, vector<8x16x128xbf16>, vector<8x16x128xbf16>, vector<8x16x128xbf16>, vector<8x16x128xbf16>, vector<8x16x128xbf16>, vector<8x16x128xbf16>, vector<8x16x128xbf16> -> vector<8x16x1152xbf16>
    %213 = vector.shape_cast %212 : vector<8x16x1152xbf16> to vector<128x1152xbf16>
    %c2 = arith.constant 2 : index
    %c0_196 = arith.constant 0 : index
    %c0_197 = arith.constant 0 : index
    %214 = vector.load %arg2[%c2, %c0_196, %c0_197] : memref<3x1152x128xbf16, #tpu.memory_space<vmem>>, vector<1x1152x128xbf16>
    %215 = vector.shape_cast %214 : vector<1x1152x128xbf16> to vector<1152x128xbf16>
    %cst_198 = arith.constant dense<0.000000e+00> : vector<128x128xf32>
    %216 = tpu.matmul %213, %215, %cst_198 {dimension_numbers = #tpu.dot_dimension_numbers<[1], [0], [0], [1], [0, 0, 1, 1], [], []>} : vector<128x1152xbf16>, vector<1152x128xbf16>, vector<128x128xf32> -> vector<128x128xf32>
    %c2_199 = arith.constant 2 : index
    %c0_200 = arith.constant 0 : index
    %c0_201 = arith.constant 0 : index
    %217 = vector.load %arg3[%c2_199, %c0_200, %c0_201] : memref<3x1x128xf32, #tpu.memory_space<vmem>>, vector<1x1x128xf32>
    %218 = vector.shape_cast %217 : vector<1x1x128xf32> to vector<1x128xf32>
    %219 = vector.broadcast %218 : vector<1x128xf32> to vector<128x128xf32>
    %220 = arith.addf %216, %219 : vector<128x128xf32>
    %221 = vector.shape_cast %220 : vector<128x128xf32> to vector<8x16x128xf32>
    %c0_202 = arith.constant 0 : index
    %222 = arith.index_cast %184 : i32 to index
    %c0_203 = arith.constant 0 : index
    %c0_204 = arith.constant 0 : index
    %223 = vector.load %arg4[%c0_202, %222, %c0_203, %c0_204] : memref<1x16x16x128xf32, #tpu.memory_space<vmem>>, vector<1x8x16x128xf32>
    %224 = vector.shape_cast %223 : vector<1x8x16x128xf32> to vector<8x16x128xf32>
    %225 = vector.shape_cast %221 : vector<8x16x128xf32> to vector<1x8x16x128xf32>
    tpu.vector_store %arg4[%c0_202, %222, %c0_203, %c0_204], %225 {strides = array<i32>} : memref<1x16x16x128xf32, #tpu.memory_space<vmem>>, vector<1x8x16x128xf32>,
    %c1_i32_205 = arith.constant 1 : i32
    %c8_i32_206 = arith.constant 8 : i32
    %226 = arith.muli %c1_i32_205, %c8_i32_206 : i32
    %c0_i32_207 = arith.constant 0 : i32
    %227 = arith.addi %226, %c0_i32_207 : i32
    %228 = arith.index_cast %227 : i32 to index
    %c15_208 = arith.constant 15 : index
    %c0_209 = arith.constant 0 : index
    %229 = vector.load %arg5[%228, %c15_208, %c0_209] : memref<18x48x128xbf16, #tpu.memory_space<vmem>>, vector<8x16x128xbf16>
    %c0_i32_210 = arith.constant 0 : i32
    %230 = arith.addi %226, %c0_i32_210 : i32
    %231 = arith.index_cast %230 : i32 to index
    %c16_211 = arith.constant 16 : index
    %c0_212 = arith.constant 0 : index
    %232 = vector.load %arg5[%231, %c16_211, %c0_212] : memref<18x48x128xbf16, #tpu.memory_space<vmem>>, vector<8x16x128xbf16>
    %c0_i32_213 = arith.constant 0 : i32
    %233 = arith.addi %226, %c0_i32_213 : i32
    %234 = arith.index_cast %233 : i32 to index
    %c17_214 = arith.constant 17 : index
    %c0_215 = arith.constant 0 : index
    %235 = vector.load %arg5[%234, %c17_214, %c0_215] : memref<18x48x128xbf16, #tpu.memory_space<vmem>>, vector<8x16x128xbf16>
    %c1_i32_216 = arith.constant 1 : i32
    %236 = arith.addi %226, %c1_i32_216 : i32
    %237 = arith.index_cast %236 : i32 to index
    %c15_217 = arith.constant 15 : index
    %c0_218 = arith.constant 0 : index
    %238 = vector.load %arg5[%237, %c15_217, %c0_218] : memref<18x48x128xbf16, #tpu.memory_space<vmem>>, vector<8x16x128xbf16>
    %c1_i32_219 = arith.constant 1 : i32
    %239 = arith.addi %226, %c1_i32_219 : i32
    %240 = arith.index_cast %239 : i32 to index
    %c16_220 = arith.constant 16 : index
    %c0_221 = arith.constant 0 : index
    %241 = vector.load %arg5[%240, %c16_220, %c0_221] : memref<18x48x128xbf16, #tpu.memory_space<vmem>>, vector<8x16x128xbf16>
    %c1_i32_222 = arith.constant 1 : i32
    %242 = arith.addi %226, %c1_i32_222 : i32
    %243 = arith.index_cast %242 : i32 to index
    %c17_223 = arith.constant 17 : index
    %c0_224 = arith.constant 0 : index
    %244 = vector.load %arg5[%243, %c17_223, %c0_224] : memref<18x48x128xbf16, #tpu.memory_space<vmem>>, vector<8x16x128xbf16>
    %c2_i32_225 = arith.constant 2 : i32
    %245 = arith.addi %226, %c2_i32_225 : i32
    %246 = arith.index_cast %245 : i32 to index
    %c15_226 = arith.constant 15 : index
    %c0_227 = arith.constant 0 : index
    %247 = vector.load %arg5[%246, %c15_226, %c0_227] : memref<18x48x128xbf16, #tpu.memory_space<vmem>>, vector<8x16x128xbf16>
    %c2_i32_228 = arith.constant 2 : i32
    %248 = arith.addi %226, %c2_i32_228 : i32
    %249 = arith.index_cast %248 : i32 to index
    %c16_229 = arith.constant 16 : index
    %c0_230 = arith.constant 0 : index
    %250 = vector.load %arg5[%249, %c16_229, %c0_230] : memref<18x48x128xbf16, #tpu.memory_space<vmem>>, vector<8x16x128xbf16>
    %c2_i32_231 = arith.constant 2 : i32
    %251 = arith.addi %226, %c2_i32_231 : i32
    %252 = arith.index_cast %251 : i32 to index
    %c17_232 = arith.constant 17 : index
    %c0_233 = arith.constant 0 : index
    %253 = vector.load %arg5[%252, %c17_232, %c0_233] : memref<18x48x128xbf16, #tpu.memory_space<vmem>>, vector<8x16x128xbf16>
    %254 = tpu.concatenate %229, %232, %235, %238, %241, %244, %247, %250, %253 in 2 : vector<8x16x128xbf16>, vector<8x16x128xbf16>, vector<8x16x128xbf16>, vector<8x16x128xbf16>, vector<8x16x128xbf16>, vector<8x16x128xbf16>, vector<8x16x128xbf16>, vector<8x16x128xbf16>, vector<8x16x128xbf16> -> vector<8x16x1152xbf16>
    %255 = vector.shape_cast %254 : vector<8x16x1152xbf16> to vector<128x1152xbf16>
    %c2_234 = arith.constant 2 : index
    %c0_235 = arith.constant 0 : index
    %c0_236 = arith.constant 0 : index
    %256 = vector.load %arg2[%c2_234, %c0_235, %c0_236] : memref<3x1152x128xbf16, #tpu.memory_space<vmem>>, vector<1x1152x128xbf16>
    %257 = vector.shape_cast %256 : vector<1x1152x128xbf16> to vector<1152x128xbf16>
    %cst_237 = arith.constant dense<0.000000e+00> : vector<128x128xf32>
    %258 = tpu.matmul %255, %257, %cst_237 {dimension_numbers = #tpu.dot_dimension_numbers<[1], [0], [0], [1], [0, 0, 1, 1], [], []>} : vector<128x1152xbf16>, vector<1152x128xbf16>, vector<128x128xf32> -> vector<128x128xf32>
    %c2_238 = arith.constant 2 : index
    %c0_239 = arith.constant 0 : index
    %c0_240 = arith.constant 0 : index
    %259 = vector.load %arg3[%c2_238, %c0_239, %c0_240] : memref<3x1x128xf32, #tpu.memory_space<vmem>>, vector<1x1x128xf32>
    %260 = vector.shape_cast %259 : vector<1x1x128xf32> to vector<1x128xf32>
    %261 = vector.broadcast %260 : vector<1x128xf32> to vector<128x128xf32>
    %262 = arith.addf %258, %261 : vector<128x128xf32>
    %263 = vector.shape_cast %262 : vector<128x128xf32> to vector<8x16x128xf32>
    %c0_241 = arith.constant 0 : index
    %264 = arith.index_cast %226 : i32 to index
    %c0_242 = arith.constant 0 : index
    %c0_243 = arith.constant 0 : index
    %265 = vector.load %arg4[%c0_241, %264, %c0_242, %c0_243] : memref<1x16x16x128xf32, #tpu.memory_space<vmem>>, vector<1x8x16x128xf32>
    %266 = vector.shape_cast %265 : vector<1x8x16x128xf32> to vector<8x16x128xf32>
    %267 = vector.shape_cast %263 : vector<8x16x128xf32> to vector<1x8x16x128xf32>
    tpu.vector_store %arg4[%c0_241, %264, %c0_242, %c0_243], %267 {strides = array<i32>} : memref<1x16x16x128xf32, #tpu.memory_space<vmem>>, vector<1x8x16x128xf32>,
    %c2_i32_244 = arith.constant 2 : i32
    return
  }
  func.func @transform_0(%arg0: i32) -> (i32, i32, i32, i32) {
    %c0_i32 = arith.constant 0 : i32
    %c0_i32_0 = arith.constant 0 : i32
    %c0_i32_1 = arith.constant 0 : i32
    %c0_i32_2 = arith.constant 0 : i32
    return %arg0, %c0_i32, %c0_i32_0, %c0_i32_1 : i32, i32, i32, i32
  }
  func.func @transform_1(%arg0: i32) -> (i32, i32, i32) {
    %c0_i32 = arith.constant 0 : i32
    %c0_i32_0 = arith.constant 0 : i32
    %c0_i32_1 = arith.constant 0 : i32
    %c0_i32_2 = arith.constant 0 : i32
    return %c0_i32, %c0_i32_0, %c0_i32_1 : i32, i32, i32
  }
  func.func @transform_2(%arg0: i32) -> (i32, i32, i32) {
    %c0_i32 = arith.constant 0 : i32
    %c0_i32_0 = arith.constant 0 : i32
    %c0_i32_1 = arith.constant 0 : i32
    %c0_i32_2 = arith.constant 0 : i32
    return %c0_i32, %c0_i32_0, %c0_i32_1 : i32, i32, i32
  }
  func.func @transform_3(%arg0: i32) -> (i32, i32, i32, i32) {
    %c0_i32 = arith.constant 0 : i32
    %c0_i32_0 = arith.constant 0 : i32
    %c0_i32_1 = arith.constant 0 : i32
    %c0_i32_2 = arith.constant 0 : i32
    return %arg0, %c0_i32, %c0_i32_0, %c0_i32_1 : i32, i32, i32, i32
  }
}

</mosaic_0001>

<llo_original>
// kernel: tpu_custom_call.1
$region0: #{tpu_custom_call.1}
  #allocation0 [shape = 'u32[]', space=smem, size = 0x4, offset = 0x4, fixed_abs, tag = 'smem constant byte address 0x4 - core index']
  #allocation1 [shape = 'u32[144,128]{1,0:T(1,128)}', space=vmem, size = 0x12000, scoped, tag = 'internal scratch']
  #allocation2 [shape = 'bf16[18,48,128]{2,1,0:T(16,128)(2,1)}', space=vmem, size = 0x36000, scoped, tag = 'scratch operand']
  #allocation3 [shape = 'bf16[18,48,128]{2,1,0:T(16,128)(2,1)}', space=vmem, size = 0x36000, scoped, tag = 'scratch operand']
  %s0 = inlined_call_operand.hbm [shape: f32[2,16,16,128], index: 0, kind: input, shape index: {}]
  %s1 = inlined_call_operand.hbm [shape: bf16[3,1152,128], index: 1, kind: input, shape index: {}]
  %s2 = inlined_call_operand.vmem [shape: f32[3,1,128], index: 2, kind: input, shape index: {}]
  %s3 = inlined_call_operand.hbm [shape: f32[2,16,16,128], index: 3, kind: output, shape index: {}]
  %s4 = sld [smem:[#allocation0]]
  $region53: #{tpu_custom_call.1} parent=0
    _
  %s6 = ssub.s32 1, %s4
  %s7 = scalar_select 0, %s6, %s4
  $region1: #{tpu_custom_call.1} parent=0
    #allocation4 [shape = 'u8[262144]{0}', space=vmem, size = 0x40000, scoped, tag = 'input window, operand 0']
    #allocation5 [shape = 's32[2]{0}', space=sflag, size = 0x8, scoped, tag = 'scoped memory for tpu_custom_call.1']
    #allocation6 [shape = 's32[2]{0}', space=sflag, size = 0x8, scoped, tag = 'scoped memory for tpu_custom_call.1']
    #allocation7 [shape = 'u8[884736]{0}', space=vmem, size = 0xd8000, scoped, tag = 'input window, operand 1, single buffered']
    #allocation8 [shape = 's32[1]{0}', space=sflag, size = 0x4, scoped, tag = 'scoped memory for tpu_custom_call.1']
    #allocation9 [shape = 'u8[262144]{0}', space=vmem, size = 0x40000, scoped, tag = 'output window, operand 0']
    %8 = vsyncpa [#allocation5], 0
    %s9 = scalar_lea.sflag [#allocation5], 1
    %10 = vsyncpa %s9, 0
    %11 = vsyncpa [#allocation8], 0
    %12 = vsyncpa [#allocation6], 0
    %s13 = scalar_lea.sflag [#allocation6], 1
    %14 = vsyncpa %s13, 0
    loop: start=0, step=1, limit=4
    $region2: #{tpu_custom_call.1} parent=1 // loop_pre_header
      _
    $region3: #{tpu_custom_call.1} parent=1 // loop_header
      %s16 = sphi 0, %s20
      %p17 = scmp.ge.s32.totalorder %s16, 4
      %s26 = sphi 0, %s28
      %s29 = sphi 0, %s26
      %s30 = sphi 0, %s29
      %s46 = sphi 0, %s30
      %s50 = sphi 0, %s50
      %s52 = sphi 0, %s50
      %s53 = sphi 0, %s52
      %s67 = sphi 0, %s53
      %s71 = sphi 0, %s71
      %s73 = sphi 0, %s71
      %s74 = sphi 0, %s73
      %s88 = sphi 0, %s74
      %s94 = sphi 0, %s96
      %s97 = sphi 0, %s94
      %s98 = sphi 0, %s97
      %s114 = sphi 0, %s98
    $region4: #{tpu_custom_call.1} parent=1 // loop_header_branch
      %19 = sbr.rel (%p17) target = $region8
    $region5: #{tpu_custom_call.1} parent=1 // loop_body
      %s21 = ssub.s32 %s16, 1
      %s22 = ssub.s32 %s16, 2
      %s23 = sadd.s32 %s16, 1
      %s24 = ssub.s32 %s16, %s23
      %p25 = scmp.eq.s32.totalorder %s24, 0
      %s27 = sadd.s32 %s26, 1
      %s28 = scalar_select %p25, %s26, %s27
      %p31 = pneg %p25
      %p32 = scmp.eq.s32.totalorder %s16, 1
      %p33 = por %p31, %p32
      %p34 = scmp.ne.s32.totalorder %s26, %s29
      %p35 = scmp.eq.s32.totalorder %s16, 0
      %p36 = por %p34, %p35
      %p37 = scmp.ne.s32.totalorder %s26, %s29
      %p38 = scmp.eq.s32.totalorder %s21, 1
      %p39 = por %p37, %p38
      %p40 = scmp.ne.s32.totalorder %s29, %s30
      %p41 = scmp.eq.s32.totalorder %s21, 0
      %p42 = por %p40, %p41
      %p43 = scmp.ne.s32.totalorder %s29, %s30
      %p44 = scmp.eq.s32.totalorder %s22, 1
      %p45 = por %p43, %p44
      %p47 = scmp.ne.s32.totalorder %s30, %s46
      %p48 = scmp.eq.s32.totalorder %s22, 0
      %p49 = por %p47, %p48
      %s51 = sadd.s32 %s50, 1
      %p54 = scmp.eq.s32.totalorder %s16, 1
      %p55 = scmp.ne.s32.totalorder %s50, %s52
      %p56 = scmp.eq.s32.totalorder %s16, 0
      %p57 = por %p55, %p56
      %p58 = scmp.ne.s32.totalorder %s50, %s52
      %p59 = scmp.eq.s32.totalorder %s21, 1
      %p60 = por %p58, %p59
      %p61 = scmp.ne.s32.totalorder %s52, %s53
      %p62 = scmp.eq.s32.totalorder %s21, 0
      %p63 = por %p61, %p62
      %p64 = scmp.ne.s32.totalorder %s52, %s53
      %p65 = scmp.eq.s32.totalorder %s22, 1
      %p66 = por %p64, %p65
      %p68 = scmp.ne.s32.totalorder %s53, %s67
      %p69 = scmp.eq.s32.totalorder %s22, 0
      %p70 = por %p68, %p69
      %s72 = sadd.s32 %s71, 1
      %p75 = scmp.eq.s32.totalorder %s16, 1
      %p76 = scmp.ne.s32.totalorder %s71, %s73
      %p77 = scmp.eq.s32.totalorder %s16, 0
      %p78 = por %p76, %p77
      %p79 = scmp.ne.s32.totalorder %s71, %s73
      %p80 = scmp.eq.s32.totalorder %s21, 1
      %p81 = por %p79, %p80
      %p82 = scmp.ne.s32.totalorder %s73, %s74
      %p83 = scmp.eq.s32.totalorder %s21, 0
      %p84 = por %p82, %p83
      %p85 = scmp.ne.s32.totalorder %s73, %s74
      %p86 = scmp.eq.s32.totalorder %s22, 1
      %p87 = por %p85, %p86
      %p89 = scmp.ne.s32.totalorder %s74, %s88
      %p90 = scmp.eq.s32.totalorder %s22, 0
      %p91 = por %p89, %p90
      %s92 = ssub.s32 %s16, %s23
      %p93 = scmp.eq.s32.totalorder %s92, 0
      %s95 = sadd.s32 %s94, 1
      %s96 = scalar_select %p93, %s94, %s95
      %p99 = pneg %p93
      %p100 = scmp.eq.s32.totalorder %s16, 1
      %p101 = por %p99, %p100
      %p102 = scmp.ne.s32.totalorder %s94, %s97
      %p103 = scmp.eq.s32.totalorder %s16, 0
      %p104 = por %p102, %p103
      %p105 = scmp.ne.s32.totalorder %s94, %s97
      %p106 = scmp.eq.s32.totalorder %s21, 1
      %p107 = por %p105, %p106
      %p108 = scmp.ne.s32.totalorder %s97, %s98
      %p109 = scmp.eq.s32.totalorder %s21, 0
      %p110 = por %p108, %p109
      %p111 = scmp.ne.s32.totalorder %s97, %s98
      %p112 = scmp.eq.s32.totalorder %s22, 1
      %p113 = por %p111, %p112
      %p115 = scmp.ne.s32.totalorder %s98, %s114
      %p116 = scmp.eq.s32.totalorder %s22, 0
      %p117 = por %p115, %p116
      %p118 = scmp.le.s32.totalorder 1, %s16
      %p119 = scmp.lt.s32.totalorder %s16, 3
      %p120 = pnand %p118, %p119
      %p121 = pneg %p120
      // Predicated region
      $region9: #{tpu_custom_call.1} parent=5 // pred_check
        _
      $region10: #{tpu_custom_call.1} parent=5 // pred_check_branch
        %123 = sbr.rel (%p120) target = $region12
      $region11: #{tpu_custom_call.1} parent=5 // pred_region
        %s124 = ssub.s32 %s16, 1
        // Predicated region
        $region13: #{tpu_custom_call.1} parent=11 // pred_check
          %p125 = pneg %p63
        $region14: #{tpu_custom_call.1} parent=11 // pred_check_branch
          %127 = sbr.rel (%p125) target = $region16
        $region15: #{tpu_custom_call.1} parent=11 // pred_region
          %s129 = ssub.s32 27648, 27648
          %130 = vsyncadd [#allocation8], %s129
          %s131 = sshll.u32 [#allocation7], 4
          %s132 = int_to_ptr.vmem [resolvable:$true] %s131
          %137 = dma.hbm_to_vmem [thread:$0]  %s1, 27648, %s132, [#allocation8], 64, 64, 4
        $region16: #{tpu_custom_call.1} parent=11 // pred_fallthru
          _
        // Predicated region
        $region17: #{tpu_custom_call.1} parent=11 // pred_check
          %p138 = pneg %p84
        $region18: #{tpu_custom_call.1} parent=11 // pred_check_branch
          %140 = sbr.rel (%p138) target = $region20
        $region19: #{tpu_custom_call.1} parent=11 // pred_region
          _
        $region20: #{tpu_custom_call.1} parent=11 // pred_fallthru
          _
      $region12: #{tpu_custom_call.1} parent=5 // pred_fallthru
        _
      %p141 = scmp.lt.s32.totalorder %s16, 2
      // Predicated region
      $region21: #{tpu_custom_call.1} parent=5 // pred_check
        %p142 = pneg %p141
      $region22: #{tpu_custom_call.1} parent=5 // pred_check_branch
        %144 = sbr.rel (%p142) target = $region24
      $region23: #{tpu_custom_call.1} parent=5 // pred_region
        // Predicated region
        $region25: #{tpu_custom_call.1} parent=23 // pred_check
          %p145 = pneg %p36
        $region26: #{tpu_custom_call.1} parent=23 // pred_check_branch
          %147 = sbr.rel (%p145) target = $region28
        $region27: #{tpu_custom_call.1} parent=23 // pred_region
          %s148 = sand.u32 %s26, 1
          %s149 = scalar_lea.sflag [#allocation5], %s148
          %s150 = sand.u32 %s26, 1
          %s151 = smul.addr %s150, 256
          %s152 = scalar_lea.vmem [#allocation4], %s151
          %s154 = ssub.s32 4096, 4096
          %155 = vsyncadd %s149, %s154
          %s156 = smul.addr %s16, 32
          %s157 = smul.addr %s156, 128
          %s158 = scalar_lea.hbm %s0, %s157
          %s159 = sshll.u32 %s152, 4
          %s160 = int_to_ptr.vmem [resolvable:$true] %s159
          %165 = dma.hbm_to_vmem [thread:$0]  %s158, 4096, %s160, %s149, 128, 128, 8
        $region28: #{tpu_custom_call.1} parent=23 // pred_fallthru
          _
      $region24: #{tpu_custom_call.1} parent=5 // pred_fallthru
        _
      %p166 = scmp.le.s32.totalorder 1, %s16
      %p167 = scmp.lt.s32.totalorder %s16, 3
      %p168 = pnand %p166, %p167
      %p169 = pneg %p168
      // Predicated region
      $region29: #{tpu_custom_call.1} parent=5 // pred_check
        _
      $region30: #{tpu_custom_call.1} parent=5 // pred_check_branch
        %171 = sbr.rel (%p168) target = $region32
      $region31: #{tpu_custom_call.1} parent=5 // pred_region
        %s172 = ssub.s32 %s16, 1
        %s173 = sand.u32 %s29, 1
        %s174 = scalar_lea.sflag [#allocation5], %s173
        %s175 = sand.u32 %s29, 1
        %s176 = smul.addr %s175, 256
        %s177 = scalar_lea.vmem [#allocation4], %s176
        // Predicated region
        $region33: #{tpu_custom_call.1} parent=31 // pred_check
          %p178 = pneg %p42
        $region34: #{tpu_custom_call.1} parent=31 // pred_check_branch
          %180 = sbr.rel (%p178) target = $region36
        $region35: #{tpu_custom_call.1} parent=31 // pred_region
          %181 = dma.done %s174, 4096
        $region36: #{tpu_custom_call.1} parent=31 // pred_fallthru
          _
        // Predicated region
        $region37: #{tpu_custom_call.1} parent=31 // pred_check
          %p182 = pneg %p63
        $region38: #{tpu_custom_call.1} parent=31 // pred_check_branch
          %184 = sbr.rel (%p182) target = $region40
        $region39: #{tpu_custom_call.1} parent=31 // pred_region
          %185 = dma.done [#allocation8], 27648
        $region40: #{tpu_custom_call.1} parent=31 // pred_fallthru
          _
        %s186 = sand.u32 %s29, 1
        %s187 = scalar_lea.sflag [#allocation5], %s186
        %s188 = sand.u32 %s29, 1
        %s189 = smul.addr %s188, 256
        %s190 = scalar_lea.vmem [#allocation4], %s189
        %p191 = pneg %p42
        %p192 = pneg %p39
        %p193 = pneg %p63
        %p194 = pneg %p60
        %p195 = pneg %p84
        %p196 = pneg %p81
        %p197 = pneg %p110
        %p198 = pneg %p107
        %s199 = sand.u32 %s97, 1
        %s200 = scalar_lea.sflag [#allocation6], %s199
        %s201 = sand.u32 %s97, 1
        %s202 = smul.addr %s201, 256
        %s203 = scalar_lea.vmem [#allocation9], %s202
        %205 = vst [vmem:[#allocation2] sm:$0xff] 0
        %206 = vst [vmem:[#allocation2 + $0x8] sm:$0xff] 0
        %207 = vst [vmem:[#allocation2 + $0x10] sm:$0xff] 0
        %208 = vst [vmem:[#allocation2 + $0x18] sm:$0xff] 0
        %209 = vst [vmem:[#allocation2 + $0x20] sm:$0xff] 0
        %210 = vst [vmem:[#allocation2 + $0x28] sm:$0xff] 0
        %211 = vst [vmem:[#allocation2 + $0x30] sm:$0xff] 0
        %212 = vst [vmem:[#allocation2 + $0x38] sm:$0xff] 0
        %213 = vst [vmem:[#allocation2 + $0x40] sm:$0xff] 0
        %214 = vst [vmem:[#allocation2 + $0x48] sm:$0xff] 0
        %215 = vst [vmem:[#allocation2 + $0x50] sm:$0xff] 0
        %216 = vst [vmem:[#allocation2 + $0x58] sm:$0xff] 0
        %217 = vst [vmem:[#allocation2 + $0x60] sm:$0xff] 0
        %218 = vst [vmem:[#allocation2 + $0x68] sm:$0xff] 0
        %219 = vst [vmem:[#allocation2 + $0x70] sm:$0xff] 0
        %220 = vst [vmem:[#allocation2 + $0x78] sm:$0xff] 0
        %221 = vst [vmem:[#allocation2 + $0x80] sm:$0xff] 0
        %222 = vst [vmem:[#allocation2 + $0x88] sm:$0xff] 0
        %223 = vst [vmem:[#allocation2 + $0x90] sm:$0xff] 0
        %224 = vst [vmem:[#allocation2 + $0x98] sm:$0xff] 0
        %225 = vst [vmem:[#allocation2 + $0xa0] sm:$0xff] 0
        %226 = vst [vmem:[#allocation2 + $0xa8] sm:$0xff] 0
        %227 = vst [vmem:[#allocation2 + $0xb0] sm:$0xff] 0
        %228 = vst [vmem:[#allocation2 + $0xb8] sm:$0xff] 0
        %229 = vst [vmem:[#allocation2 + $0xc0] sm:$0xff] 0
        %230 = vst [vmem:[#allocation2 + $0xc8] sm:$0xff] 0
        %231 = vst [vmem:[#allocation2 + $0xd0] sm:$0xff] 0
        %232 = vst [vmem:[#allocation2 + $0xd8] sm:$0xff] 0
        %233 = vst [vmem:[#allocation2 + $0xe0] sm:$0xff] 0
        %234 = vst [vmem:[#allocation2 + $0xe8] sm:$0xff] 0
        %235 = vst [vmem:[#allocation2 + $0xf0] sm:$0xff] 0
        %236 = vst [vmem:[#allocation2 + $0xf8] sm:$0xff] 0
        %237 = vst [vmem:[#allocation2 + $0x100] sm:$0xff] 0
        %238 = vst [vmem:[#allocation2 + $0x108] sm:$0xff] 0
        %239 = vst [vmem:[#allocation2 + $0x110] sm:$0xff] 0
        %240 = vst [vmem:[#allocation2 + $0x118] sm:$0xff] 0
        %241 = vst [vmem:[#allocation2 + $0x120] sm:$0xff] 0
        %242 = vst [vmem:[#allocation2 + $0x128] sm:$0xff] 0
        %243 = vst [vmem:[#allocation2 + $0x130] sm:$0xff] 0
        %244 = vst [vmem:[#allocation2 + $0x138] sm:$0xff] 0
        %245 = vst [vmem:[#allocation2 + $0x140] sm:$0xff] 0
        %246 = vst [vmem:[#allocation2 + $0x148] sm:$0xff] 0
        %247 = vst [vmem:[#allocation2 + $0x150] sm:$0xff] 0
        %248 = vst [vmem:[#allocation2 + $0x158] sm:$0xff] 0
        %249 = vst [vmem:[#allocation2 + $0x160] sm:$0xff] 0
        %250 = vst [vmem:[#allocation2 + $0x168] sm:$0xff] 0
        %251 = vst [vmem:[#allocation2 + $0x170] sm:$0xff] 0
        %252 = vst [vmem:[#allocation2 + $0x178] sm:$0xff] 0
        %253 = vst [vmem:[#allocation2 + $0x180] sm:$0xff] 0
        %254 = vst [vmem:[#allocation2 + $0x188] sm:$0xff] 0
        %255 = vst [vmem:[#allocation2 + $0x190] sm:$0xff] 0
        %256 = vst [vmem:[#allocation2 + $0x198] sm:$0xff] 0
        %257 = vst [vmem:[#allocation2 + $0x1a0] sm:$0xff] 0
        %258 = vst [vmem:[#allocation2 + $0x1a8] sm:$0xff] 0
        %259 = vst [vmem:[#allocation3] sm:$0xff] 0
        %260 = vst [vmem:[#allocation3 + $0x8] sm:$0xff] 0
        %261 = vst [vmem:[#allocation3 + $0x10] sm:$0xff] 0
        %262 = vst [vmem:[#allocation3 + $0x18] sm:$0xff] 0
        %263 = vst [vmem:[#allocation3 + $0x20] sm:$0xff] 0
        %264 = vst [vmem:[#allocation3 + $0x28] sm:$0xff] 0
        %265 = vst [vmem:[#allocation3 + $0x30] sm:$0xff] 0
        %266 = vst [vmem:[#allocation3 + $0x38] sm:$0xff] 0
        %267 = vst [vmem:[#allocation3 + $0x40] sm:$0xff] 0
        %268 = vst [vmem:[#allocation3 + $0x48] sm:$0xff] 0
        %269 = vst [vmem:[#allocation3 + $0x50] sm:$0xff] 0
        %270 = vst [vmem:[#allocation3 + $0x58] sm:$0xff] 0
        %271 = vst [vmem:[#allocation3 + $0x60] sm:$0xff] 0
        %272 = vst [vmem:[#allocation3 + $0x68] sm:$0xff] 0
        %273 = vst [vmem:[#allocation3 + $0x70] sm:$0xff] 0
        %274 = vst [vmem:[#allocation3 + $0x78] sm:$0xff] 0
        %275 = vst [vmem:[#allocation3 + $0x80] sm:$0xff] 0
        %276 = vst [vmem:[#allocation3 + $0x88] sm:$0xff] 0
        %277 = vst [vmem:[#allocation3 + $0x90] sm:$0xff] 0
        %278 = vst [vmem:[#allocation3 + $0x98] sm:$0xff] 0
        %279 = vst [vmem:[#allocation3 + $0xa0] sm:$0xff] 0
        %280 = vst [vmem:[#allocation3 + $0xa8] sm:$0xff] 0
        %281 = vst [vmem:[#allocation3 + $0xb0] sm:$0xff] 0
        %282 = vst [vmem:[#allocation3 + $0xb8] sm:$0xff] 0
        %283 = vst [vmem:[#allocation3 + $0xc0] sm:$0xff] 0
        %284 = vst [vmem:[#allocation3 + $0xc8] sm:$0xff] 0
        %285 = vst [vmem:[#allocation3 + $0xd0] sm:$0xff] 0
        %286 = vst [vmem:[#allocation3 + $0xd8] sm:$0xff] 0
        %287 = vst [vmem:[#allocation3 + $0xe0] sm:$0xff] 0
        %288 = vst [vmem:[#allocation3 + $0xe8] sm:$0xff] 0
        %289 = vst [vmem:[#allocation3 + $0xf0] sm:$0xff] 0
        %290 = vst [vmem:[#allocation3 + $0xf8] sm:$0xff] 0
        %291 = vst [vmem:[#allocation3 + $0x100] sm:$0xff] 0
        %292 = vst [vmem:[#allocation3 + $0x108] sm:$0xff] 0
        %293 = vst [vmem:[#allocation3 + $0x110] sm:$0xff] 0
        %294 = vst [vmem:[#allocation3 + $0x118] sm:$0xff] 0
        %295 = vst [vmem:[#allocation3 + $0x120] sm:$0xff] 0
        %296 = vst [vmem:[#allocation3 + $0x128] sm:$0xff] 0
        %297 = vst [vmem:[#allocation3 + $0x130] sm:$0xff] 0
        %298 = vst [vmem:[#allocation3 + $0x138] sm:$0xff] 0
        %299 = vst [vmem:[#allocation3 + $0x140] sm:$0xff] 0
        %300 = vst [vmem:[#allocation3 + $0x148] sm:$0xff] 0
        %301 = vst [vmem:[#allocation3 + $0x150] sm:$0xff] 0
        %302 = vst [vmem:[#allocation3 + $0x158] sm:$0xff] 0
        %303 = vst [vmem:[#allocation3 + $0x160] sm:$0xff] 0
        %304 = vst [vmem:[#allocation3 + $0x168] sm:$0xff] 0
        %305 = vst [vmem:[#allocation3 + $0x170] sm:$0xff] 0
        %306 = vst [vmem:[#allocation3 + $0x178] sm:$0xff] 0
        %307 = vst [vmem:[#allocation3 + $0x180] sm:$0xff] 0
        %308 = vst [vmem:[#allocation3 + $0x188] sm:$0xff] 0
        %309 = vst [vmem:[#allocation3 + $0x190] sm:$0xff] 0
        %310 = vst [vmem:[#allocation3 + $0x198] sm:$0xff] 0
        %311 = vst [vmem:[#allocation3 + $0x1a0] sm:$0xff] 0
        %312 = vst [vmem:[#allocation3 + $0x1a8] sm:$0xff] 0
        %v313 = vld [vmem:[%s177] sm:$0xff]
        %v314 = vld [vmem:[%s177 + $0x8] sm:$0xff]
        %v315 = vld [vmem:[%s177 + $0x10] sm:$0xff]
        %v316 = vld [vmem:[%s177 + $0x18] sm:$0xff]
        %v317 = vld [vmem:[%s177 + $0x20] sm:$0xff]
        %v318 = vld [vmem:[%s177 + $0x28] sm:$0xff]
        %v319 = vld [vmem:[%s177 + $0x30] sm:$0xff]
        %v320 = vld [vmem:[%s177 + $0x38] sm:$0xff]
        %v321 = vld [vmem:[%s177 + $0x40] sm:$0xff]
        %v322 = vld [vmem:[%s177 + $0x48] sm:$0xff]
        %v323 = vld [vmem:[%s177 + $0x50] sm:$0xff]
        %v324 = vld [vmem:[%s177 + $0x58] sm:$0xff]
        %v325 = vld [vmem:[%s177 + $0x60] sm:$0xff]
        %v326 = vld [vmem:[%s177 + $0x68] sm:$0xff]
        %v327 = vld [vmem:[%s177 + $0x70] sm:$0xff]
        %v328 = vld [vmem:[%s177 + $0x78] sm:$0xff]
        %v329 = vld [vmem:[%s177 + $0x80] sm:$0xff]
        %v330 = vld [vmem:[%s177 + $0x88] sm:$0xff]
        %v331 = vld [vmem:[%s177 + $0x90] sm:$0xff]
        %v332 = vld [vmem:[%s177 + $0x98] sm:$0xff]
        %v333 = vld [vmem:[%s177 + $0xa0] sm:$0xff]
        %v334 = vld [vmem:[%s177 + $0xa8] sm:$0xff]
        %v335 = vld [vmem:[%s177 + $0xb0] sm:$0xff]
        %v336 = vld [vmem:[%s177 + $0xb8] sm:$0xff]
        %v337 = vld [vmem:[%s177 + $0xc0] sm:$0xff]
        %v338 = vld [vmem:[%s177 + $0xc8] sm:$0xff]
        %v339 = vld [vmem:[%s177 + $0xd0] sm:$0xff]
        %v340 = vld [vmem:[%s177 + $0xd8] sm:$0xff]
        %v341 = vld [vmem:[%s177 + $0xe0] sm:$0xff]
        %v342 = vld [vmem:[%s177 + $0xe8] sm:$0xff]
        %v343 = vld [vmem:[%s177 + $0xf0] sm:$0xff]
        %v344 = vld [vmem:[%s177 + $0xf8] sm:$0xff]
        %v345 = vpack.c.bf16 %v314, %v313
        %v346 = vpack.c.bf16 %v316, %v315
        %v347 = vpack.c.bf16 %v318, %v317
        %v348 = vpack.c.bf16 %v320, %v319
        %v349 = vpack.c.bf16 %v322, %v321
        %v350 = vpack.c.bf16 %v324, %v323
        %v351 = vpack.c.bf16 %v326, %v325
        %v352 = vpack.c.bf16 %v328, %v327
        %v353 = vpack.c.bf16 %v330, %v329
        %v354 = vpack.c.bf16 %v332, %v331
        %v355 = vpack.c.bf16 %v334, %v333
        %v356 = vpack.c.bf16 %v336, %v335
        %v357 = vpack.c.bf16 %v338, %v337
        %v358 = vpack.c.bf16 %v340, %v339
        %v359 = vpack.c.bf16 %v342, %v341
        %v360 = vpack.c.bf16 %v344, %v343
        %s361 = scalar_lea.vmem [#allocation2], 24
        %362 = vst [vmem:[%s361 + $0x8] sm:$0xff] %v345
        %363 = vst [vmem:[%s361 + $0x20] sm:$0xff] %v346
        %364 = vst [vmem:[%s361 + $0x38] sm:$0xff] %v347
        %365 = vst [vmem:[%s361 + $0x50] sm:$0xff] %v348
        %366 = vst [vmem:[%s361 + $0x68] sm:$0xff] %v349
        %367 = vst [vmem:[%s361 + $0x80] sm:$0xff] %v350
        %368 = vst [vmem:[%s361 + $0x98] sm:$0xff] %v351
        %369 = vst [vmem:[%s361 + $0xb0] sm:$0xff] %v352
        %370 = vst [vmem:[%s361 + $0xc8] sm:$0xff] %v353
        %371 = vst [vmem:[%s361 + $0xe0] sm:$0xff] %v354
        %372 = vst [vmem:[%s361 + $0xf8] sm:$0xff] %v355
        %373 = vst [vmem:[%s361 + $0x110] sm:$0xff] %v356
        %374 = vst [vmem:[%s361 + $0x128] sm:$0xff] %v357
        %375 = vst [vmem:[%s361 + $0x140] sm:$0xff] %v358
        %376 = vst [vmem:[%s361 + $0x158] sm:$0xff] %v359
        %377 = vst [vmem:[%s361 + $0x170] sm:$0xff] %v360
        %v378 = vld [vmem:[#allocation2] sm:$0x80]
        %v379 = vld [vmem:[#allocation2 + $0x8] sm:$0xff]
        %v380 = vld [vmem:[#allocation2 + $0x18] sm:$0x80]
        %v381 = vld [vmem:[#allocation2 + $0x20] sm:$0xff]
        %v382 = vld [vmem:[#allocation2 + $0x30] sm:$0x80]
        %v383 = vld [vmem:[#allocation2 + $0x38] sm:$0xff]
        %v384 = vld [vmem:[#allocation2 + $0x48] sm:$0x80]
        %v385 = vld [vmem:[#allocation2 + $0x50] sm:$0xff]
        %v386 = vld [vmem:[#allocation2 + $0x60] sm:$0x80]
        %v387 = vld [vmem:[#allocation2 + $0x68] sm:$0xff]
        %v388 = vld [vmem:[#allocation2 + $0x78] sm:$0x80]
        %v389 = vld [vmem:[#allocation2 + $0x80] sm:$0xff]
        %v390 = vld [vmem:[#allocation2 + $0x90] sm:$0x80]
        %v391 = vld [vmem:[#allocation2 + $0x98] sm:$0xff]
        %v392 = vld [vmem:[#allocation2 + $0xa8] sm:$0x80]
        %v393 = vld [vmem:[#allocation2 + $0xb0] sm:$0xff]
        %v394 = vld [vmem:[#allocation2 + $0x10] sm:$0x1]
        %v395 = vld [vmem:[#allocation2 + $0x28] sm:$0x1]
        %v396 = vld [vmem:[#allocation2 + $0x40] sm:$0x1]
        %v397 = vld [vmem:[#allocation2 + $0x58] sm:$0x1]
        %v398 = vld [vmem:[#allocation2 + $0x70] sm:$0x1]
        %v399 = vld [vmem:[#allocation2 + $0x88] sm:$0x1]
        %v400 = vld [vmem:[#allocation2 + $0xa0] sm:$0x1]
        %v401 = vld [vmem:[#allocation2 + $0xb8] sm:$0x1]
        %v402 = vld [vmem:[%s361] sm:$0x80]
        %v403 = vld [vmem:[%s361 + $0x8] sm:$0xff]
        %v404 = vld [vmem:[%s361 + $0x18] sm:$0x80]
        %v405 = vld [vmem:[%s361 + $0x20] sm:$0xff]
        %v406 = vld [vmem:[%s361 + $0x30] sm:$0x80]
        %v407 = vld [vmem:[%s361 + $0x38] sm:$0xff]
        %v408 = vld [vmem:[%s361 + $0x48] sm:$0x80]
        %v409 = vld [vmem:[%s361 + $0x50] sm:$0xff]
        %v410 = vld [vmem:[%s361 + $0x60] sm:$0x80]
        %v411 = vld [vmem:[%s361 + $0x68] sm:$0xff]
        %v412 = vld [vmem:[%s361 + $0x78] sm:$0x80]
        %v413 = vld [vmem:[%s361 + $0x80] sm:$0xff]
        %v414 = vld [vmem:[%s361 + $0x90] sm:$0x80]
        %v415 = vld [vmem:[%s361 + $0x98] sm:$0xff]
        %v416 = vld [vmem:[%s361 + $0xa8] sm:$0x80]
        %v417 = vld [vmem:[%s361 + $0xb0] sm:$0xff]
        %v418 = vld [vmem:[%s361 + $0x10] sm:$0x1]
        %v419 = vld [vmem:[%s361 + $0x28] sm:$0x1]
        %v420 = vld [vmem:[%s361 + $0x40] sm:$0x1]
        %v421 = vld [vmem:[%s361 + $0x58] sm:$0x1]
        %v422 = vld [vmem:[%s361 + $0x70] sm:$0x1]
        %v423 = vld [vmem:[%s361 + $0x88] sm:$0x1]
        %v424 = vld [vmem:[%s361 + $0xa0] sm:$0x1]
        %v425 = vld [vmem:[%s361 + $0xb8] sm:$0x1]
        %s426 = scalar_lea.vmem [#allocation2], 48
        %v427 = vld [vmem:[%s426] sm:$0x80]
        %v428 = vld [vmem:[%s426 + $0x8] sm:$0xff]
        %v429 = vld [vmem:[%s426 + $0x18] sm:$0x80]
        %v430 = vld [vmem:[%s426 + $0x20] sm:$0xff]
        %v431 = vld [vmem:[%s426 + $0x30] sm:$0x80]
        %v432 = vld [vmem:[%s426 + $0x38] sm:$0xff]
        %v433 = vld [vmem:[%s426 + $0x48] sm:$0x80]
        %v434 = vld [vmem:[%s426 + $0x50] sm:$0xff]
        %v435 = vld [vmem:[%s426 + $0x60] sm:$0x80]
        %v436 = vld [vmem:[%s426 + $0x68] sm:$0xff]
        %v437 = vld [vmem:[%s426 + $0x78] sm:$0x80]
        %v438 = vld [vmem:[%s426 + $0x80] sm:$0xff]
        %v439 = vld [vmem:[%s426 + $0x90] sm:$0x80]
        %v440 = vld [vmem:[%s426 + $0x98] sm:$0xff]
        %v441 = vld [vmem:[%s426 + $0xa8] sm:$0x80]
        %v442 = vld [vmem:[%s426 + $0xb0] sm:$0xff]
        %v443 = vld [vmem:[%s426 + $0x10] sm:$0x1]
        %v444 = vld [vmem:[%s426 + $0x28] sm:$0x1]
        %v445 = vld [vmem:[%s426 + $0x40] sm:$0x1]
        %v446 = vld [vmem:[%s426 + $0x58] sm:$0x1]
        %v447 = vld [vmem:[%s426 + $0x70] sm:$0x1]
        %v448 = vld [vmem:[%s426 + $0x88] sm:$0x1]
        %v449 = vld [vmem:[%s426 + $0xa0] sm:$0x1]
        %v450 = vld [vmem:[%s426 + $0xb8] sm:$0x1]
        %v452 = vshll.u32 %v379, 16
        %v454 = vrot.slane %v452, 1
        %v455 = vshrl.u32 %v379, 16
        %v457 = vor.u32 %v455, %v454
        %v459 = vshll.u32 %v381, 16
        %v461 = vrot.slane %v459, 1
        %v462 = vshrl.u32 %v381, 16
        %v464 = vor.u32 %v462, %v461
        %v466 = vshll.u32 %v383, 16
        %v468 = vrot.slane %v466, 1
        %v469 = vshrl.u32 %v383, 16
        %v471 = vor.u32 %v469, %v468
        %v473 = vshll.u32 %v385, 16
        %v475 = vrot.slane %v473, 1
        %v476 = vshrl.u32 %v385, 16
        %v478 = vor.u32 %v476, %v475
        %v480 = vshll.u32 %v387, 16
        %v482 = vrot.slane %v480, 1
        %v483 = vshrl.u32 %v387, 16
        %v485 = vor.u32 %v483, %v482
        %v487 = vshll.u32 %v389, 16
        %v489 = vrot.slane %v487, 1
        %v490 = vshrl.u32 %v389, 16
        %v492 = vor.u32 %v490, %v489
        %v494 = vshll.u32 %v391, 16
        %v496 = vrot.slane %v494, 1
        %v497 = vshrl.u32 %v391, 16
        %v499 = vor.u32 %v497, %v496
        %v501 = vshll.u32 %v393, 16
        %v503 = vrot.slane %v501, 1
        %v504 = vshrl.u32 %v393, 16
        %v506 = vor.u32 %v504, %v503
        %vm523 = vcmask 1046528
        %v524 = vrot.slane %v379, 1
        %v525 = vrot.slane %v394, 1
        %v526 = vsel %vm523, %v524, %v525
        %v527 = vrot.slane %v381, 1
        %v528 = vrot.slane %v395, 1
        %v529 = vsel %vm523, %v527, %v528
        %v530 = vrot.slane %v383, 1
        %v531 = vrot.slane %v396, 1
        %v532 = vsel %vm523, %v530, %v531
        %v533 = vrot.slane %v385, 1
        %v534 = vrot.slane %v397, 1
        %v535 = vsel %vm523, %v533, %v534
        %v536 = vrot.slane %v387, 1
        %v537 = vrot.slane %v398, 1
        %v538 = vsel %vm523, %v536, %v537
        %v539 = vrot.slane %v389, 1
        %v540 = vrot.slane %v399, 1
        %v541 = vsel %vm523, %v539, %v540
        %v542 = vrot.slane %v391, 1
        %v543 = vrot.slane %v400, 1
        %v544 = vsel %vm523, %v542, %v543
        %v545 = vrot.slane %v393, 1
        %v546 = vrot.slane %v401, 1
        %v547 = vsel %vm523, %v545, %v546
        %v549 = vshll.u32 %v403, 16
        %v551 = vrot.slane %v549, 1
        %v552 = vshrl.u32 %v403, 16
        %v554 = vor.u32 %v552, %v551
        %v556 = vshll.u32 %v405, 16
        %v558 = vrot.slane %v556, 1
        %v559 = vshrl.u32 %v405, 16
        %v561 = vor.u32 %v559, %v558
        %v563 = vshll.u32 %v407, 16
        %v565 = vrot.slane %v563, 1
        %v566 = vshrl.u32 %v407, 16
        %v568 = vor.u32 %v566, %v565
        %v570 = vshll.u32 %v409, 16
        %v572 = vrot.slane %v570, 1
        %v573 = vshrl.u32 %v409, 16
        %v575 = vor.u32 %v573, %v572
        %v577 = vshll.u32 %v411, 16
        %v579 = vrot.slane %v577, 1
        %v580 = vshrl.u32 %v411, 16
        %v582 = vor.u32 %v580, %v579
        %v584 = vshll.u32 %v413, 16
        %v586 = vrot.slane %v584, 1
        %v587 = vshrl.u32 %v413, 16
        %v589 = vor.u32 %v587, %v586
        %v591 = vshll.u32 %v415, 16
        %v593 = vrot.slane %v591, 1
        %v594 = vshrl.u32 %v415, 16
        %v596 = vor.u32 %v594, %v593
        %v598 = vshll.u32 %v417, 16
        %v600 = vrot.slane %v598, 1
        %v601 = vshrl.u32 %v417, 16
        %v603 = vor.u32 %v601, %v600
        %v620 = vrot.slane %v403, 1
        %v621 = vrot.slane %v418, 1
        %v622 = vsel %vm523, %v620, %v621
        %v623 = vrot.slane %v405, 1
        %v624 = vrot.slane %v419, 1
        %v625 = vsel %vm523, %v623, %v624
        %v626 = vrot.slane %v407, 1
        %v627 = vrot.slane %v420, 1
        %v628 = vsel %vm523, %v626, %v627
        %v629 = vrot.slane %v409, 1
        %v630 = vrot.slane %v421, 1
        %v631 = vsel %vm523, %v629, %v630
        %v632 = vrot.slane %v411, 1
        %v633 = vrot.slane %v422, 1
        %v634 = vsel %vm523, %v632, %v633
        %v635 = vrot.slane %v413, 1
        %v636 = vrot.slane %v423, 1
        %v637 = vsel %vm523, %v635, %v636
        %v638 = vrot.slane %v415, 1
        %v639 = vrot.slane %v424, 1
        %v640 = vsel %vm523, %v638, %v639
        %v641 = vrot.slane %v417, 1
        %v642 = vrot.slane %v425, 1
        %v643 = vsel %vm523, %v641, %v642
        %v645 = vshll.u32 %v428, 16
        %v647 = vrot.slane %v645, 1
        %v648 = vshrl.u32 %v428, 16
        %v650 = vor.u32 %v648, %v647
        %v652 = vshll.u32 %v430, 16
        %v654 = vrot.slane %v652, 1
        %v655 = vshrl.u32 %v430, 16
        %v657 = vor.u32 %v655, %v654
        %v659 = vshll.u32 %v432, 16
        %v661 = vrot.slane %v659, 1
        %v662 = vshrl.u32 %v432, 16
        %v664 = vor.u32 %v662, %v661
        %v666 = vshll.u32 %v434, 16
        %v668 = vrot.slane %v666, 1
        %v669 = vshrl.u32 %v434, 16
        %v671 = vor.u32 %v669, %v668
        %v673 = vshll.u32 %v436, 16
        %v675 = vrot.slane %v673, 1
        %v676 = vshrl.u32 %v436, 16
        %v678 = vor.u32 %v676, %v675
        %v680 = vshll.u32 %v438, 16
        %v682 = vrot.slane %v680, 1
        %v683 = vshrl.u32 %v438, 16
        %v685 = vor.u32 %v683, %v682
        %v687 = vshll.u32 %v440, 16
        %v689 = vrot.slane %v687, 1
        %v690 = vshrl.u32 %v440, 16
        %v692 = vor.u32 %v690, %v689
        %v694 = vshll.u32 %v442, 16
        %v696 = vrot.slane %v694, 1
        %v697 = vshrl.u32 %v442, 16
        %v699 = vor.u32 %v697, %v696
        %v716 = vrot.slane %v428, 1
        %v717 = vrot.slane %v443, 1
        %v718 = vsel %vm523, %v716, %v717
        %v719 = vrot.slane %v430, 1
        %v720 = vrot.slane %v444, 1
        %v721 = vsel %vm523, %v719, %v720
        %v722 = vrot.slane %v432, 1
        %v723 = vrot.slane %v445, 1
        %v724 = vsel %vm523, %v722, %v723
        %v725 = vrot.slane %v434, 1
        %v726 = vrot.slane %v446, 1
        %v727 = vsel %vm523, %v725, %v726
        %v728 = vrot.slane %v436, 1
        %v729 = vrot.slane %v447, 1
        %v730 = vsel %vm523, %v728, %v729
        %v731 = vrot.slane %v438, 1
        %v732 = vrot.slane %v448, 1
        %v733 = vsel %vm523, %v731, %v732
        %v734 = vrot.slane %v440, 1
        %v735 = vrot.slane %v449, 1
        %v736 = vsel %vm523, %v734, %v735
        %v737 = vrot.slane %v442, 1
        %v738 = vrot.slane %v450, 1
        %v739 = vsel %vm523, %v737, %v738
        %vm740 = vsmask.f32 256
        %v742 = vshrl.u32 %v378, 16
        %v744 = vrot.slane %v742, 7
        %v745 = vrot.slane %v455, 7
        %v746 = vor.u32 %v745, %v452
        %v747 = vsel %vm740, %v744, %v746
        %v749 = vshrl.u32 %v454, 16
        %v751 = vrot.slane %v749, 7
        %v753 = vshrl.u32 %v457, 16
        %v755 = vrot.slane %v753, 7
        %v756 = vshll.u32 %v457, 16
        %v758 = vor.u32 %v755, %v756
        %v759 = vsel %vm740, %v751, %v758
        %v761 = vshrl.u32 %v524, 16
        %v763 = vrot.slane %v761, 7
        %v765 = vshrl.u32 %v526, 16
        %v767 = vrot.slane %v765, 7
        %v768 = vshll.u32 %v526, 16
        %v770 = vor.u32 %v767, %v768
        %v771 = vsel %vm740, %v763, %v770
        %v773 = vshrl.u32 %v402, 16
        %v775 = vrot.slane %v773, 7
        %v776 = vrot.slane %v552, 7
        %v777 = vor.u32 %v776, %v549
        %v778 = vsel %vm740, %v775, %v777
        %v780 = vshrl.u32 %v551, 16
        %v782 = vrot.slane %v780, 7
        %v784 = vshrl.u32 %v554, 16
        %v786 = vrot.slane %v784, 7
        %v787 = vshll.u32 %v554, 16
        %v789 = vor.u32 %v786, %v787
        %v790 = vsel %vm740, %v782, %v789
        %v792 = vshrl.u32 %v620, 16
        %v794 = vrot.slane %v792, 7
        %v796 = vshrl.u32 %v622, 16
        %v798 = vrot.slane %v796, 7
        %v799 = vshll.u32 %v622, 16
        %v801 = vor.u32 %v798, %v799
        %v802 = vsel %vm740, %v794, %v801
        %v804 = vshrl.u32 %v427, 16
        %v806 = vrot.slane %v804, 7
        %v807 = vrot.slane %v648, 7
        %v808 = vor.u32 %v807, %v645
        %v809 = vsel %vm740, %v806, %v808
        %v811 = vshrl.u32 %v647, 16
        %v813 = vrot.slane %v811, 7
        %v815 = vshrl.u32 %v650, 16
        %v817 = vrot.slane %v815, 7
        %v818 = vshll.u32 %v650, 16
        %v820 = vor.u32 %v817, %v818
        %v821 = vsel %vm740, %v813, %v820
        %v823 = vshrl.u32 %v716, 16
        %v825 = vrot.slane %v823, 7
        %v827 = vshrl.u32 %v718, 16
        %v829 = vrot.slane %v827, 7
        %v830 = vshll.u32 %v718, 16
        %v832 = vor.u32 %v829, %v830
        %v833 = vsel %vm740, %v825, %v832
        %v835 = vshrl.u32 %v380, 16
        %v837 = vrot.slane %v835, 7
        %v838 = vrot.slane %v462, 7
        %v839 = vor.u32 %v838, %v459
        %v840 = vsel %vm740, %v837, %v839
        %v842 = vshrl.u32 %v461, 16
        %v844 = vrot.slane %v842, 7
        %v846 = vshrl.u32 %v464, 16
        %v848 = vrot.slane %v846, 7
        %v849 = vshll.u32 %v464, 16
        %v851 = vor.u32 %v848, %v849
        %v852 = vsel %vm740, %v844, %v851
        %v854 = vshrl.u32 %v527, 16
        %v856 = vrot.slane %v854, 7
        %v858 = vshrl.u32 %v529, 16
        %v860 = vrot.slane %v858, 7
        %v861 = vshll.u32 %v529, 16
        %v863 = vor.u32 %v860, %v861
        %v864 = vsel %vm740, %v856, %v863
        %v866 = vshrl.u32 %v404, 16
        %v868 = vrot.slane %v866, 7
        %v869 = vrot.slane %v559, 7
        %v870 = vor.u32 %v869, %v556
        %v871 = vsel %vm740, %v868, %v870
        %v873 = vshrl.u32 %v558, 16
        %v875 = vrot.slane %v873, 7
        %v877 = vshrl.u32 %v561, 16
        %v879 = vrot.slane %v877, 7
        %v880 = vshll.u32 %v561, 16
        %v882 = vor.u32 %v879, %v880
        %v883 = vsel %vm740, %v875, %v882
        %v885 = vshrl.u32 %v623, 16
        %v887 = vrot.slane %v885, 7
        %v889 = vshrl.u32 %v625, 16
        %v891 = vrot.slane %v889, 7
        %v892 = vshll.u32 %v625, 16
        %v894 = vor.u32 %v891, %v892
        %v895 = vsel %vm740, %v887, %v894
        %v897 = vshrl.u32 %v429, 16
        %v899 = vrot.slane %v897, 7
        %v900 = vrot.slane %v655, 7
        %v901 = vor.u32 %v900, %v652
        %v902 = vsel %vm740, %v899, %v901
        %v904 = vshrl.u32 %v654, 16
        %v906 = vrot.slane %v904, 7
        %v908 = vshrl.u32 %v657, 16
        %v910 = vrot.slane %v908, 7
        %v911 = vshll.u32 %v657, 16
        %v913 = vor.u32 %v910, %v911
        %v914 = vsel %vm740, %v906, %v913
        %v916 = vshrl.u32 %v719, 16
        %v918 = vrot.slane %v916, 7
        %v920 = vshrl.u32 %v721, 16
        %v922 = vrot.slane %v920, 7
        %v923 = vshll.u32 %v721, 16
        %v925 = vor.u32 %v922, %v923
        %v926 = vsel %vm740, %v918, %v925
        %v928 = vshrl.u32 %v382, 16
        %v930 = vrot.slane %v928, 7
        %v931 = vrot.slane %v469, 7
        %v932 = vor.u32 %v931, %v466
        %v933 = vsel %vm740, %v930, %v932
        %v935 = vshrl.u32 %v468, 16
        %v937 = vrot.slane %v935, 7
        %v939 = vshrl.u32 %v471, 16
        %v941 = vrot.slane %v939, 7
        %v942 = vshll.u32 %v471, 16
        %v944 = vor.u32 %v941, %v942
        %v945 = vsel %vm740, %v937, %v944
        %v947 = vshrl.u32 %v530, 16
        %v949 = vrot.slane %v947, 7
        %v951 = vshrl.u32 %v532, 16
        %v953 = vrot.slane %v951, 7
        %v954 = vshll.u32 %v532, 16
        %v956 = vor.u32 %v953, %v954
        %v957 = vsel %vm740, %v949, %v956
        %v959 = vshrl.u32 %v406, 16
        %v961 = vrot.slane %v959, 7
        %v962 = vrot.slane %v566, 7
        %v963 = vor.u32 %v962, %v563
        %v964 = vsel %vm740, %v961, %v963
        %v966 = vshrl.u32 %v565, 16
        %v968 = vrot.slane %v966, 7
        %v970 = vshrl.u32 %v568, 16
        %v972 = vrot.slane %v970, 7
        %v973 = vshll.u32 %v568, 16
        %v975 = vor.u32 %v972, %v973
        %v976 = vsel %vm740, %v968, %v975
        %v978 = vshrl.u32 %v626, 16
        %v980 = vrot.slane %v978, 7
        %v982 = vshrl.u32 %v628, 16
        %v984 = vrot.slane %v982, 7
        %v985 = vshll.u32 %v628, 16
        %v987 = vor.u32 %v984, %v985
        %v988 = vsel %vm740, %v980, %v987
        %v990 = vshrl.u32 %v431, 16
        %v992 = vrot.slane %v990, 7
        %v993 = vrot.slane %v662, 7
        %v994 = vor.u32 %v993, %v659
        %v995 = vsel %vm740, %v992, %v994
        %v997 = vshrl.u32 %v661, 16
        %v999 = vrot.slane %v997, 7
        %v1001 = vshrl.u32 %v664, 16
        %v1003 = vrot.slane %v1001, 7
        %v1004 = vshll.u32 %v664, 16
        %v1006 = vor.u32 %v1003, %v1004
        %v1007 = vsel %vm740, %v999, %v1006
        %v1009 = vshrl.u32 %v722, 16
        %v1011 = vrot.slane %v1009, 7
        %v1013 = vshrl.u32 %v724, 16
        %v1015 = vrot.slane %v1013, 7
        %v1016 = vshll.u32 %v724, 16
        %v1018 = vor.u32 %v1015, %v1016
        %v1019 = vsel %vm740, %v1011, %v1018
        %v1021 = vshrl.u32 %v384, 16
        %v1023 = vrot.slane %v1021, 7
        %v1024 = vrot.slane %v476, 7
        %v1025 = vor.u32 %v1024, %v473
        %v1026 = vsel %vm740, %v1023, %v1025
        %v1028 = vshrl.u32 %v475, 16
        %v1030 = vrot.slane %v1028, 7
        %v1032 = vshrl.u32 %v478, 16
        %v1034 = vrot.slane %v1032, 7
        %v1035 = vshll.u32 %v478, 16
        %v1037 = vor.u32 %v1034, %v1035
        %v1038 = vsel %vm740, %v1030, %v1037
        %v1040 = vshrl.u32 %v533, 16
        %v1042 = vrot.slane %v1040, 7
        %v1044 = vshrl.u32 %v535, 16
        %v1046 = vrot.slane %v1044, 7
        %v1047 = vshll.u32 %v535, 16
        %v1049 = vor.u32 %v1046, %v1047
        %v1050 = vsel %vm740, %v1042, %v1049
        %v1052 = vshrl.u32 %v408, 16
        %v1054 = vrot.slane %v1052, 7
        %v1055 = vrot.slane %v573, 7
        %v1056 = vor.u32 %v1055, %v570
        %v1057 = vsel %vm740, %v1054, %v1056
        %v1059 = vshrl.u32 %v572, 16
        %v1061 = vrot.slane %v1059, 7
        %v1063 = vshrl.u32 %v575, 16
        %v1065 = vrot.slane %v1063, 7
        %v1066 = vshll.u32 %v575, 16
        %v1068 = vor.u32 %v1065, %v1066
        %v1069 = vsel %vm740, %v1061, %v1068
        %v1071 = vshrl.u32 %v629, 16
        %v1073 = vrot.slane %v1071, 7
        %v1075 = vshrl.u32 %v631, 16
        %v1077 = vrot.slane %v1075, 7
        %v1078 = vshll.u32 %v631, 16
        %v1080 = vor.u32 %v1077, %v1078
        %v1081 = vsel %vm740, %v1073, %v1080
        %v1083 = vshrl.u32 %v433, 16
        %v1085 = vrot.slane %v1083, 7
        %v1086 = vrot.slane %v669, 7
        %v1087 = vor.u32 %v1086, %v666
        %v1088 = vsel %vm740, %v1085, %v1087
        %v1090 = vshrl.u32 %v668, 16
        %v1092 = vrot.slane %v1090, 7
        %v1094 = vshrl.u32 %v671, 16
        %v1096 = vrot.slane %v1094, 7
        %v1097 = vshll.u32 %v671, 16
        %v1099 = vor.u32 %v1096, %v1097
        %v1100 = vsel %vm740, %v1092, %v1099
        %v1102 = vshrl.u32 %v725, 16
        %v1104 = vrot.slane %v1102, 7
        %v1106 = vshrl.u32 %v727, 16
        %v1108 = vrot.slane %v1106, 7
        %v1109 = vshll.u32 %v727, 16
        %v1111 = vor.u32 %v1108, %v1109
        %v1112 = vsel %vm740, %v1104, %v1111
        %v1114 = vshrl.u32 %v386, 16
        %v1116 = vrot.slane %v1114, 7
        %v1117 = vrot.slane %v483, 7
        %v1118 = vor.u32 %v1117, %v480
        %v1119 = vsel %vm740, %v1116, %v1118
        %v1121 = vshrl.u32 %v482, 16
        %v1123 = vrot.slane %v1121, 7
        %v1125 = vshrl.u32 %v485, 16
        %v1127 = vrot.slane %v1125, 7
        %v1128 = vshll.u32 %v485, 16
        %v1130 = vor.u32 %v1127, %v1128
        %v1131 = vsel %vm740, %v1123, %v1130
        %v1133 = vshrl.u32 %v536, 16
        %v1135 = vrot.slane %v1133, 7
        %v1137 = vshrl.u32 %v538, 16
        %v1139 = vrot.slane %v1137, 7
        %v1140 = vshll.u32 %v538, 16
        %v1142 = vor.u32 %v1139, %v1140
        %v1143 = vsel %vm740, %v1135, %v1142
        %v1145 = vshrl.u32 %v410, 16
        %v1147 = vrot.slane %v1145, 7
        %v1148 = vrot.slane %v580, 7
        %v1149 = vor.u32 %v1148, %v577
        %v1150 = vsel %vm740, %v1147, %v1149
        %v1152 = vshrl.u32 %v579, 16
        %v1154 = vrot.slane %v1152, 7
        %v1156 = vshrl.u32 %v582, 16
        %v1158 = vrot.slane %v1156, 7
        %v1159 = vshll.u32 %v582, 16
        %v1161 = vor.u32 %v1158, %v1159
        %v1162 = vsel %vm740, %v1154, %v1161
        %v1164 = vshrl.u32 %v632, 16
        %v1166 = vrot.slane %v1164, 7
        %v1168 = vshrl.u32 %v634, 16
        %v1170 = vrot.slane %v1168, 7
        %v1171 = vshll.u32 %v634, 16
        %v1173 = vor.u32 %v1170, %v1171
        %v1174 = vsel %vm740, %v1166, %v1173
        %v1176 = vshrl.u32 %v435, 16
        %v1178 = vrot.slane %v1176, 7
        %v1179 = vrot.slane %v676, 7
        %v1180 = vor.u32 %v1179, %v673
        %v1181 = vsel %vm740, %v1178, %v1180
        %v1183 = vshrl.u32 %v675, 16
        %v1185 = vrot.slane %v1183, 7
        %v1187 = vshrl.u32 %v678, 16
        %v1189 = vrot.slane %v1187, 7
        %v1190 = vshll.u32 %v678, 16
        %v1192 = vor.u32 %v1189, %v1190
        %v1193 = vsel %vm740, %v1185, %v1192
        %v1195 = vshrl.u32 %v728, 16
        %v1197 = vrot.slane %v1195, 7
        %v1199 = vshrl.u32 %v730, 16
        %v1201 = vrot.slane %v1199, 7
        %v1202 = vshll.u32 %v730, 16
        %v1204 = vor.u32 %v1201, %v1202
        %v1205 = vsel %vm740, %v1197, %v1204
        %v1207 = vshrl.u32 %v388, 16
        %v1209 = vrot.slane %v1207, 7
        %v1210 = vrot.slane %v490, 7
        %v1211 = vor.u32 %v1210, %v487
        %v1212 = vsel %vm740, %v1209, %v1211
        %v1214 = vshrl.u32 %v489, 16
        %v1216 = vrot.slane %v1214, 7
        %v1218 = vshrl.u32 %v492, 16
        %v1220 = vrot.slane %v1218, 7
        %v1221 = vshll.u32 %v492, 16
        %v1223 = vor.u32 %v1220, %v1221
        %v1224 = vsel %vm740, %v1216, %v1223
        %v1226 = vshrl.u32 %v539, 16
        %v1228 = vrot.slane %v1226, 7
        %v1230 = vshrl.u32 %v541, 16
        %v1232 = vrot.slane %v1230, 7
        %v1233 = vshll.u32 %v541, 16
        %v1235 = vor.u32 %v1232, %v1233
        %v1236 = vsel %vm740, %v1228, %v1235
        %v1238 = vshrl.u32 %v412, 16
        %v1240 = vrot.slane %v1238, 7
        %v1241 = vrot.slane %v587, 7
        %v1242 = vor.u32 %v1241, %v584
        %v1243 = vsel %vm740, %v1240, %v1242
        %v1245 = vshrl.u32 %v586, 16
        %v1247 = vrot.slane %v1245, 7
        %v1249 = vshrl.u32 %v589, 16
        %v1251 = vrot.slane %v1249, 7
        %v1252 = vshll.u32 %v589, 16
        %v1254 = vor.u32 %v1251, %v1252
        %v1255 = vsel %vm740, %v1247, %v1254
        %v1257 = vshrl.u32 %v635, 16
        %v1259 = vrot.slane %v1257, 7
        %v1261 = vshrl.u32 %v637, 16
        %v1263 = vrot.slane %v1261, 7
        %v1264 = vshll.u32 %v637, 16
        %v1266 = vor.u32 %v1263, %v1264
        %v1267 = vsel %vm740, %v1259, %v1266
        %v1269 = vshrl.u32 %v437, 16
        %v1271 = vrot.slane %v1269, 7
        %v1272 = vrot.slane %v683, 7
        %v1273 = vor.u32 %v1272, %v680
        %v1274 = vsel %vm740, %v1271, %v1273
        %v1276 = vshrl.u32 %v682, 16
        %v1278 = vrot.slane %v1276, 7
        %v1280 = vshrl.u32 %v685, 16
        %v1282 = vrot.slane %v1280, 7
        %v1283 = vshll.u32 %v685, 16
        %v1285 = vor.u32 %v1282, %v1283
        %v1286 = vsel %vm740, %v1278, %v1285
        %v1288 = vshrl.u32 %v731, 16
        %v1290 = vrot.slane %v1288, 7
        %v1292 = vshrl.u32 %v733, 16
        %v1294 = vrot.slane %v1292, 7
        %v1295 = vshll.u32 %v733, 16
        %v1297 = vor.u32 %v1294, %v1295
        %v1298 = vsel %vm740, %v1290, %v1297
        %v1300 = vshrl.u32 %v390, 16
        %v1302 = vrot.slane %v1300, 7
        %v1303 = vrot.slane %v497, 7
        %v1304 = vor.u32 %v1303, %v494
        %v1305 = vsel %vm740, %v1302, %v1304
        %v1307 = vshrl.u32 %v496, 16
        %v1309 = vrot.slane %v1307, 7
        %v1311 = vshrl.u32 %v499, 16
        %v1313 = vrot.slane %v1311, 7
        %v1314 = vshll.u32 %v499, 16
        %v1316 = vor.u32 %v1313, %v1314
        %v1317 = vsel %vm740, %v1309, %v1316
        %v1319 = vshrl.u32 %v542, 16
        %v1321 = vrot.slane %v1319, 7
        %v1323 = vshrl.u32 %v544, 16
        %v1325 = vrot.slane %v1323, 7
        %v1326 = vshll.u32 %v544, 16
        %v1328 = vor.u32 %v1325, %v1326
        %v1329 = vsel %vm740, %v1321, %v1328
        %v1331 = vshrl.u32 %v414, 16
        %v1333 = vrot.slane %v1331, 7
        %v1334 = vrot.slane %v594, 7
        %v1335 = vor.u32 %v1334, %v591
        %v1336 = vsel %vm740, %v1333, %v1335
        %v1338 = vshrl.u32 %v593, 16
        %v1340 = vrot.slane %v1338, 7
        %v1342 = vshrl.u32 %v596, 16
        %v1344 = vrot.slane %v1342, 7
        %v1345 = vshll.u32 %v596, 16
        %v1347 = vor.u32 %v1344, %v1345
        %v1348 = vsel %vm740, %v1340, %v1347
        %v1350 = vshrl.u32 %v638, 16
        %v1352 = vrot.slane %v1350, 7
        %v1354 = vshrl.u32 %v640, 16
        %v1356 = vrot.slane %v1354, 7
        %v1357 = vshll.u32 %v640, 16
        %v1359 = vor.u32 %v1356, %v1357
        %v1360 = vsel %vm740, %v1352, %v1359
        %v1362 = vshrl.u32 %v439, 16
        %v1364 = vrot.slane %v1362, 7
        %v1365 = vrot.slane %v690, 7
        %v1366 = vor.u32 %v1365, %v687
        %v1367 = vsel %vm740, %v1364, %v1366
        %v1369 = vshrl.u32 %v689, 16
        %v1371 = vrot.slane %v1369, 7
        %v1373 = vshrl.u32 %v692, 16
        %v1375 = vrot.slane %v1373, 7
        %v1376 = vshll.u32 %v692, 16
        %v1378 = vor.u32 %v1375, %v1376
        %v1379 = vsel %vm740, %v1371, %v1378
        %v1381 = vshrl.u32 %v734, 16
        %v1383 = vrot.slane %v1381, 7
        %v1385 = vshrl.u32 %v736, 16
        %v1387 = vrot.slane %v1385, 7
        %v1388 = vshll.u32 %v736, 16
        %v1390 = vor.u32 %v1387, %v1388
        %v1391 = vsel %vm740, %v1383, %v1390
        %v1393 = vshrl.u32 %v392, 16
        %v1395 = vrot.slane %v1393, 7
        %v1396 = vrot.slane %v504, 7
        %v1397 = vor.u32 %v1396, %v501
        %v1398 = vsel %vm740, %v1395, %v1397
        %v1400 = vshrl.u32 %v503, 16
        %v1402 = vrot.slane %v1400, 7
        %v1404 = vshrl.u32 %v506, 16
        %v1406 = vrot.slane %v1404, 7
        %v1407 = vshll.u32 %v506, 16
        %v1409 = vor.u32 %v1406, %v1407
        %v1410 = vsel %vm740, %v1402, %v1409
        %v1412 = vshrl.u32 %v545, 16
        %v1414 = vrot.slane %v1412, 7
        %v1416 = vshrl.u32 %v547, 16
        %v1418 = vrot.slane %v1416, 7
        %v1419 = vshll.u32 %v547, 16
        %v1421 = vor.u32 %v1418, %v1419
        %v1422 = vsel %vm740, %v1414, %v1421
        %v1424 = vshrl.u32 %v416, 16
        %v1426 = vrot.slane %v1424, 7
        %v1427 = vrot.slane %v601, 7
        %v1428 = vor.u32 %v1427, %v598
        %v1429 = vsel %vm740, %v1426, %v1428
        %v1431 = vshrl.u32 %v600, 16
        %v1433 = vrot.slane %v1431, 7
        %v1435 = vshrl.u32 %v603, 16
        %v1437 = vrot.slane %v1435, 7
        %v1438 = vshll.u32 %v603, 16
        %v1440 = vor.u32 %v1437, %v1438
        %v1441 = vsel %vm740, %v1433, %v1440
        %v1443 = vshrl.u32 %v641, 16
        %v1445 = vrot.slane %v1443, 7
        %v1447 = vshrl.u32 %v643, 16
        %v1449 = vrot.slane %v1447, 7
        %v1450 = vshll.u32 %v643, 16
        %v1452 = vor.u32 %v1449, %v1450
        %v1453 = vsel %vm740, %v1445, %v1452
        %v1455 = vshrl.u32 %v441, 16
        %v1457 = vrot.slane %v1455, 7
        %v1458 = vrot.slane %v697, 7
        %v1459 = vor.u32 %v1458, %v694
        %v1460 = vsel %vm740, %v1457, %v1459
        %v1462 = vshrl.u32 %v696, 16
        %v1464 = vrot.slane %v1462, 7
        %v1466 = vshrl.u32 %v699, 16
        %v1468 = vrot.slane %v1466, 7
        %v1469 = vshll.u32 %v699, 16
        %v1471 = vor.u32 %v1468, %v1469
        %v1472 = vsel %vm740, %v1464, %v1471
        %v1474 = vshrl.u32 %v737, 16
        %v1476 = vrot.slane %v1474, 7
        %v1478 = vshrl.u32 %v739, 16
        %v1480 = vrot.slane %v1478, 7
        %v1481 = vshll.u32 %v739, 16
        %v1483 = vor.u32 %v1480, %v1481
        %v1484 = vsel %vm740, %v1476, %v1483
        %v1557 = vld [vmem:[#allocation7] sm:$0xf]
        %v1558 = vld [vmem:[#allocation7 + $0x4] sm:$0xf]
        %v1559 = vld [vmem:[#allocation7 + $0x8] sm:$0xf]
        %v1560 = vld [vmem:[#allocation7 + $0xc] sm:$0xf]
        %v1561 = vld [vmem:[#allocation7 + $0x10] sm:$0xf]
        %v1562 = vld [vmem:[#allocation7 + $0x14] sm:$0xf]
        %v1563 = vld [vmem:[#allocation7 + $0x18] sm:$0xf]
        %v1564 = vld [vmem:[#allocation7 + $0x1c] sm:$0xf]
        %v1565 = vld [vmem:[#allocation7 + $0x20] sm:$0xf]
        %v1566 = vld [vmem:[#allocation7 + $0x24] sm:$0xf]
        %v1567 = vld [vmem:[#allocation7 + $0x28] sm:$0xf]
        %v1568 = vld [vmem:[#allocation7 + $0x2c] sm:$0xf]
        %v1569 = vld [vmem:[#allocation7 + $0x30] sm:$0xf]
        %v1570 = vld [vmem:[#allocation7 + $0x34] sm:$0xf]
        %v1571 = vld [vmem:[#allocation7 + $0x38] sm:$0xf]
        %v1572 = vld [vmem:[#allocation7 + $0x3c] sm:$0xf]
        %v1573 = vld [vmem:[#allocation7 + $0x40] sm:$0xf]
        %v1574 = vld [vmem:[#allocation7 + $0x44] sm:$0xf]
        %v1575 = vld [vmem:[#allocation7 + $0x48] sm:$0xf]
        %v1576 = vld [vmem:[#allocation7 + $0x4c] sm:$0xf]
        %v1577 = vld [vmem:[#allocation7 + $0x50] sm:$0xf]
        %v1578 = vld [vmem:[#allocation7 + $0x54] sm:$0xf]
        %v1579 = vld [vmem:[#allocation7 + $0x58] sm:$0xf]
        %v1580 = vld [vmem:[#allocation7 + $0x5c] sm:$0xf]
        %v1581 = vld [vmem:[#allocation7 + $0x60] sm:$0xf]
        %v1582 = vld [vmem:[#allocation7 + $0x64] sm:$0xf]
        %v1583 = vld [vmem:[#allocation7 + $0x68] sm:$0xf]
        %v1584 = vld [vmem:[#allocation7 + $0x6c] sm:$0xf]
        %v1585 = vld [vmem:[#allocation7 + $0x70] sm:$0xf]
        %v1586 = vld [vmem:[#allocation7 + $0x74] sm:$0xf]
        %v1587 = vld [vmem:[#allocation7 + $0x78] sm:$0xf]
        %v1588 = vld [vmem:[#allocation7 + $0x7c] sm:$0xf]
        %v1589 = vld [vmem:[#allocation7 + $0x80] sm:$0xf]
        %v1590 = vld [vmem:[#allocation7 + $0x84] sm:$0xf]
        %v1591 = vld [vmem:[#allocation7 + $0x88] sm:$0xf]
        %v1592 = vld [vmem:[#allocation7 + $0x8c] sm:$0xf]
        %v1593 = vld [vmem:[#allocation7 + $0x90] sm:$0xf]
        %v1594 = vld [vmem:[#allocation7 + $0x94] sm:$0xf]
        %v1595 = vld [vmem:[#allocation7 + $0x98] sm:$0xf]
        %v1596 = vld [vmem:[#allocation7 + $0x9c] sm:$0xf]
        %v1597 = vld [vmem:[#allocation7 + $0xa0] sm:$0xf]
        %v1598 = vld [vmem:[#allocation7 + $0xa4] sm:$0xf]
        %v1599 = vld [vmem:[#allocation7 + $0xa8] sm:$0xf]
        %v1600 = vld [vmem:[#allocation7 + $0xac] sm:$0xf]
        %v1601 = vld [vmem:[#allocation7 + $0xb0] sm:$0xf]
        %v1602 = vld [vmem:[#allocation7 + $0xb4] sm:$0xf]
        %v1603 = vld [vmem:[#allocation7 + $0xb8] sm:$0xf]
        %v1604 = vld [vmem:[#allocation7 + $0xbc] sm:$0xf]
        %v1605 = vld [vmem:[#allocation7 + $0xc0] sm:$0xf]
        %v1606 = vld [vmem:[#allocation7 + $0xc4] sm:$0xf]
        %v1607 = vld [vmem:[#allocation7 + $0xc8] sm:$0xf]
        %v1608 = vld [vmem:[#allocation7 + $0xcc] sm:$0xf]
        %v1609 = vld [vmem:[#allocation7 + $0xd0] sm:$0xf]
        %v1610 = vld [vmem:[#allocation7 + $0xd4] sm:$0xf]
        %v1611 = vld [vmem:[#allocation7 + $0xd8] sm:$0xf]
        %v1612 = vld [vmem:[#allocation7 + $0xdc] sm:$0xf]
        %v1613 = vld [vmem:[#allocation7 + $0xe0] sm:$0xf]
        %v1614 = vld [vmem:[#allocation7 + $0xe4] sm:$0xf]
        %v1615 = vld [vmem:[#allocation7 + $0xe8] sm:$0xf]
        %v1616 = vld [vmem:[#allocation7 + $0xec] sm:$0xf]
        %v1617 = vld [vmem:[#allocation7 + $0xf0] sm:$0xf]
        %v1618 = vld [vmem:[#allocation7 + $0xf4] sm:$0xf]
        %v1619 = vld [vmem:[#allocation7 + $0xf8] sm:$0xf]
        %v1620 = vld [vmem:[#allocation7 + $0xfc] sm:$0xf]
        %v1621 = vld [vmem:[#allocation7 + $0x100] sm:$0xf]
        %v1622 = vld [vmem:[#allocation7 + $0x104] sm:$0xf]
        %v1623 = vld [vmem:[#allocation7 + $0x108] sm:$0xf]
        %v1624 = vld [vmem:[#allocation7 + $0x10c] sm:$0xf]
        %v1625 = vld [vmem:[#allocation7 + $0x110] sm:$0xf]
        %v1626 = vld [vmem:[#allocation7 + $0x114] sm:$0xf]
        %v1627 = vld [vmem:[#allocation7 + $0x118] sm:$0xf]
        %v1628 = vld [vmem:[#allocation7 + $0x11c] sm:$0xf]
        %v1629 = vld [vmem:[#allocation7 + $0x120] sm:$0xf]
        %v1630 = vld [vmem:[#allocation7 + $0x124] sm:$0xf]
        %v1631 = vld [vmem:[#allocation7 + $0x128] sm:$0xf]
        %v1632 = vld [vmem:[#allocation7 + $0x12c] sm:$0xf]
        %v1633 = vld [vmem:[#allocation7 + $0x130] sm:$0xf]
        %v1634 = vld [vmem:[#allocation7 + $0x134] sm:$0xf]
        %v1635 = vld [vmem:[#allocation7 + $0x138] sm:$0xf]
        %v1636 = vld [vmem:[#allocation7 + $0x13c] sm:$0xf]
        %v1637 = vld [vmem:[#allocation7 + $0x140] sm:$0xf]
        %v1638 = vld [vmem:[#allocation7 + $0x144] sm:$0xf]
        %v1639 = vld [vmem:[#allocation7 + $0x148] sm:$0xf]
        %v1640 = vld [vmem:[#allocation7 + $0x14c] sm:$0xf]
        %v1641 = vld [vmem:[#allocation7 + $0x150] sm:$0xf]
        %v1642 = vld [vmem:[#allocation7 + $0x154] sm:$0xf]
        %v1643 = vld [vmem:[#allocation7 + $0x158] sm:$0xf]
        %v1644 = vld [vmem:[#allocation7 + $0x15c] sm:$0xf]
        %v1645 = vld [vmem:[#allocation7 + $0x160] sm:$0xf]
        %v1646 = vld [vmem:[#allocation7 + $0x164] sm:$0xf]
        %v1647 = vld [vmem:[#allocation7 + $0x168] sm:$0xf]
        %v1648 = vld [vmem:[#allocation7 + $0x16c] sm:$0xf]
        %v1649 = vld [vmem:[#allocation7 + $0x170] sm:$0xf]
        %v1650 = vld [vmem:[#allocation7 + $0x174] sm:$0xf]
        %v1651 = vld [vmem:[#allocation7 + $0x178] sm:$0xf]
        %v1652 = vld [vmem:[#allocation7 + $0x17c] sm:$0xf]
        %v1653 = vld [vmem:[#allocation7 + $0x180] sm:$0xf]
        %v1654 = vld [vmem:[#allocation7 + $0x184] sm:$0xf]
        %v1655 = vld [vmem:[#allocation7 + $0x188] sm:$0xf]
        %v1656 = vld [vmem:[#allocation7 + $0x18c] sm:$0xf]
        %v1657 = vld [vmem:[#allocation7 + $0x190] sm:$0xf]
        %v1658 = vld [vmem:[#allocation7 + $0x194] sm:$0xf]
        %v1659 = vld [vmem:[#allocation7 + $0x198] sm:$0xf]
        %v1660 = vld [vmem:[#allocation7 + $0x19c] sm:$0xf]
        %v1661 = vld [vmem:[#allocation7 + $0x1a0] sm:$0xf]
        %v1662 = vld [vmem:[#allocation7 + $0x1a4] sm:$0xf]
        %v1663 = vld [vmem:[#allocation7 + $0x1a8] sm:$0xf]
        %v1664 = vld [vmem:[#allocation7 + $0x1ac] sm:$0xf]
        %v1665 = vld [vmem:[#allocation7 + $0x1b0] sm:$0xf]
        %v1666 = vld [vmem:[#allocation7 + $0x1b4] sm:$0xf]
        %v1667 = vld [vmem:[#allocation7 + $0x1b8] sm:$0xf]
        %v1668 = vld [vmem:[#allocation7 + $0x1bc] sm:$0xf]
        %v1669 = vld [vmem:[#allocation7 + $0x1c0] sm:$0xf]
        %v1670 = vld [vmem:[#allocation7 + $0x1c4] sm:$0xf]
        %v1671 = vld [vmem:[#allocation7 + $0x1c8] sm:$0xf]
        %v1672 = vld [vmem:[#allocation7 + $0x1cc] sm:$0xf]
        %v1673 = vld [vmem:[#allocation7 + $0x1d0] sm:$0xf]
        %v1674 = vld [vmem:[#allocation7 + $0x1d4] sm:$0xf]
        %v1675 = vld [vmem:[#allocation7 + $0x1d8] sm:$0xf]
        %v1676 = vld [vmem:[#allocation7 + $0x1dc] sm:$0xf]
        %v1677 = vld [vmem:[#allocation7 + $0x1e0] sm:$0xf]
        %v1678 = vld [vmem:[#allocation7 + $0x1e4] sm:$0xf]
        %v1679 = vld [vmem:[#allocation7 + $0x1e8] sm:$0xf]
        %v1680 = vld [vmem:[#allocation7 + $0x1ec] sm:$0xf]
        %v1681 = vld [vmem:[#allocation7 + $0x1f0] sm:$0xf]
        %v1682 = vld [vmem:[#allocation7 + $0x1f4] sm:$0xf]
        %v1683 = vld [vmem:[#allocation7 + $0x1f8] sm:$0xf]
        %v1684 = vld [vmem:[#allocation7 + $0x1fc] sm:$0xf]
        %v1685 = vld [vmem:[#allocation7 + $0x200] sm:$0xf]
        %v1686 = vld [vmem:[#allocation7 + $0x204] sm:$0xf]
        %v1687 = vld [vmem:[#allocation7 + $0x208] sm:$0xf]
        %v1688 = vld [vmem:[#allocation7 + $0x20c] sm:$0xf]
        %v1689 = vld [vmem:[#allocation7 + $0x210] sm:$0xf]
        %v1690 = vld [vmem:[#allocation7 + $0x214] sm:$0xf]
        %v1691 = vld [vmem:[#allocation7 + $0x218] sm:$0xf]
        %v1692 = vld [vmem:[#allocation7 + $0x21c] sm:$0xf]
        %v1693 = vld [vmem:[#allocation7 + $0x220] sm:$0xf]
        %v1694 = vld [vmem:[#allocation7 + $0x224] sm:$0xf]
        %v1695 = vld [vmem:[#allocation7 + $0x228] sm:$0xf]
        %v1696 = vld [vmem:[#allocation7 + $0x22c] sm:$0xf]
        %v1697 = vld [vmem:[#allocation7 + $0x230] sm:$0xf]
        %v1698 = vld [vmem:[#allocation7 + $0x234] sm:$0xf]
        %v1699 = vld [vmem:[#allocation7 + $0x238] sm:$0xf]
        %v1700 = vld [vmem:[#allocation7 + $0x23c] sm:$0xf]
        %v1701 = vld [vmem:[%s2] sm:$0x1]
        %v1703 = vlaneseq
        %v1704 = vshrl.u32 %v1703, 7
        %v1705 = vsub.s32 0, %v1704
        %v1706 = vrot.slane %v1701, %v1705
        %v1852 = vunpack.c.l.b16 %v1557
        %v1853 = vunpack.c.l.b16 %v1558
        %v1854 = vunpack.c.l.b16 %v1559
        %v1855 = vunpack.c.l.b16 %v1560
        %v1856 = vunpack.c.l.b16 %v1561
        %v1857 = vunpack.c.l.b16 %v1562
        %v1858 = vunpack.c.l.b16 %v1563
        %v1859 = vunpack.c.l.b16 %v1564
        %v1860 = vunpack.c.l.b16 %v1565
        %v1861 = vunpack.c.l.b16 %v1566
        %v1862 = vunpack.c.l.b16 %v1567
        %v1863 = vunpack.c.l.b16 %v1568
        %v1864 = vunpack.c.l.b16 %v1569
        %v1865 = vunpack.c.l.b16 %v1570
        %v1866 = vunpack.c.l.b16 %v1571
        %v1867 = vunpack.c.l.b16 %v1572
        %v1868 = vunpack.c.l.b16 %v1573
        %v1869 = vunpack.c.l.b16 %v1574
        %v1870 = vunpack.c.l.b16 %v1575
        %v1871 = vunpack.c.l.b16 %v1576
        %v1872 = vunpack.c.l.b16 %v1577
        %v1873 = vunpack.c.l.b16 %v1578
        %v1874 = vunpack.c.l.b16 %v1579
        %v1875 = vunpack.c.l.b16 %v1580
        %v1876 = vunpack.c.l.b16 %v1581
        %v1877 = vunpack.c.l.b16 %v1582
        %v1878 = vunpack.c.l.b16 %v1583
        %v1879 = vunpack.c.l.b16 %v1584
        %v1880 = vunpack.c.l.b16 %v1585
        %v1881 = vunpack.c.l.b16 %v1586
        %v1882 = vunpack.c.l.b16 %v1587
        %v1883 = vunpack.c.l.b16 %v1588
        %v1884 = vunpack.c.l.b16 %v1589
        %v1885 = vunpack.c.l.b16 %v1590
        %v1886 = vunpack.c.l.b16 %v1591
        %v1887 = vunpack.c.l.b16 %v1592
        %v1888 = vunpack.c.l.b16 %v1593
        %v1889 = vunpack.c.l.b16 %v1594
        %v1890 = vunpack.c.l.b16 %v1595
        %v1891 = vunpack.c.l.b16 %v1596
        %v1892 = vunpack.c.l.b16 %v1597
        %v1893 = vunpack.c.l.b16 %v1598
        %v1894 = vunpack.c.l.b16 %v1599
        %v1895 = vunpack.c.l.b16 %v1600
        %v1896 = vunpack.c.l.b16 %v1601
        %v1897 = vunpack.c.l.b16 %v1602
        %v1898 = vunpack.c.l.b16 %v1603
        %v1899 = vunpack.c.l.b16 %v1604
        %v1900 = vunpack.c.l.b16 %v1605
        %v1901 = vunpack.c.l.b16 %v1606
        %v1902 = vunpack.c.l.b16 %v1607
        %v1903 = vunpack.c.l.b16 %v1608
        %v1904 = vunpack.c.l.b16 %v1609
        %v1905 = vunpack.c.l.b16 %v1610
        %v1906 = vunpack.c.l.b16 %v1611
        %v1907 = vunpack.c.l.b16 %v1612
        %v1908 = vunpack.c.l.b16 %v1613
        %v1909 = vunpack.c.l.b16 %v1614
        %v1910 = vunpack.c.l.b16 %v1615
        %v1911 = vunpack.c.l.b16 %v1616
        %v1912 = vunpack.c.l.b16 %v1617
        %v1913 = vunpack.c.l.b16 %v1618
        %v1914 = vunpack.c.l.b16 %v1619
        %v1915 = vunpack.c.l.b16 %v1620
        %v1916 = vunpack.c.l.b16 %v1621
        %v1917 = vunpack.c.l.b16 %v1622
        %v1918 = vunpack.c.l.b16 %v1623
        %v1919 = vunpack.c.l.b16 %v1624
        %v1920 = vunpack.c.l.b16 %v1625
        %v1921 = vunpack.c.l.b16 %v1626
        %v1922 = vunpack.c.l.b16 %v1627
        %v1923 = vunpack.c.l.b16 %v1628
        %v1924 = vunpack.c.l.b16 %v1629
        %v1925 = vunpack.c.l.b16 %v1630
        %v1926 = vunpack.c.l.b16 %v1631
        %v1927 = vunpack.c.l.b16 %v1632
        %v1928 = vunpack.c.l.b16 %v1633
        %v1929 = vunpack.c.l.b16 %v1634
        %v1930 = vunpack.c.l.b16 %v1635
        %v1931 = vunpack.c.l.b16 %v1636
        %v1932 = vunpack.c.l.b16 %v1637
        %v1933 = vunpack.c.l.b16 %v1638
        %v1934 = vunpack.c.l.b16 %v1639
        %v1935 = vunpack.c.l.b16 %v1640
        %v1936 = vunpack.c.l.b16 %v1641
        %v1937 = vunpack.c.l.b16 %v1642
        %v1938 = vunpack.c.l.b16 %v1643
        %v1939 = vunpack.c.l.b16 %v1644
        %v1940 = vunpack.c.l.b16 %v1645
        %v1941 = vunpack.c.l.b16 %v1646
        %v1942 = vunpack.c.l.b16 %v1647
        %v1943 = vunpack.c.l.b16 %v1648
        %v1944 = vunpack.c.l.b16 %v1649
        %v1945 = vunpack.c.l.b16 %v1650
        %v1946 = vunpack.c.l.b16 %v1651
        %v1947 = vunpack.c.l.b16 %v1652
        %v1948 = vunpack.c.l.b16 %v1653
        %v1949 = vunpack.c.l.b16 %v1654
        %v1950 = vunpack.c.l.b16 %v1655
        %v1951 = vunpack.c.l.b16 %v1656
        %v1952 = vunpack.c.l.b16 %v1657
        %v1953 = vunpack.c.l.b16 %v1658
        %v1954 = vunpack.c.l.b16 %v1659
        %v1955 = vunpack.c.l.b16 %v1660
        %v1956 = vunpack.c.l.b16 %v1661
        %v1957 = vunpack.c.l.b16 %v1662
        %v1958 = vunpack.c.l.b16 %v1663
        %v1959 = vunpack.c.l.b16 %v1664
        %v1960 = vunpack.c.l.b16 %v1665
        %v1961 = vunpack.c.l.b16 %v1666
        %v1962 = vunpack.c.l.b16 %v1667
        %v1963 = vunpack.c.l.b16 %v1668
        %v1964 = vunpack.c.l.b16 %v1669
        %v1965 = vunpack.c.l.b16 %v1670
        %v1966 = vunpack.c.l.b16 %v1671
        %v1967 = vunpack.c.l.b16 %v1672
        %v1968 = vunpack.c.l.b16 %v1673
        %v1969 = vunpack.c.l.b16 %v1674
        %v1970 = vunpack.c.l.b16 %v1675
        %v1971 = vunpack.c.l.b16 %v1676
        %v1972 = vunpack.c.l.b16 %v1677
        %v1973 = vunpack.c.l.b16 %v1678
        %v1974 = vunpack.c.l.b16 %v1679
        %v1975 = vunpack.c.l.b16 %v1680
        %v1976 = vunpack.c.l.b16 %v1681
        %v1977 = vunpack.c.l.b16 %v1682
        %v1978 = vunpack.c.l.b16 %v1683
        %v1979 = vunpack.c.l.b16 %v1684
        %v1980 = vunpack.c.l.b16 %v1685
        %v1981 = vunpack.c.l.b16 %v1686
        %v1982 = vunpack.c.l.b16 %v1687
        %v1983 = vunpack.c.l.b16 %v1688
        %v1984 = vunpack.c.l.b16 %v1689
        %v1985 = vunpack.c.l.b16 %v1690
        %v1986 = vunpack.c.l.b16 %v1691
        %v1987 = vunpack.c.l.b16 %v1692
        %v1988 = vunpack.c.l.b16 %v1693
        %v1989 = vunpack.c.l.b16 %v1694
        %v1990 = vunpack.c.l.b16 %v1695
        %v1991 = vunpack.c.l.b16 %v1696
        %v1992 = vunpack.c.l.b16 %v1697
        %v1993 = vunpack.c.l.b16 %v1698
        %v1994 = vunpack.c.l.b16 %v1699
        %v1995 = vunpack.c.l.b16 %v1700
        %v1996 = vpack.c.b16 %v1853, %v1852
        %v1997 = vpack.c.b16 %v1855, %v1854
        %v1998 = vpack.c.b16 %v1857, %v1856
        %v1999 = vpack.c.b16 %v1859, %v1858
        %v2000 = vpack.c.b16 %v1861, %v1860
        %v2001 = vpack.c.b16 %v1863, %v1862
        %v2002 = vpack.c.b16 %v1865, %v1864
        %v2003 = vpack.c.b16 %v1867, %v1866
        %v2004 = vpack.c.b16 %v1869, %v1868
        %v2005 = vpack.c.b16 %v1871, %v1870
        %v2006 = vpack.c.b16 %v1873, %v1872
        %v2007 = vpack.c.b16 %v1875, %v1874
        %v2008 = vpack.c.b16 %v1877, %v1876
        %v2009 = vpack.c.b16 %v1879, %v1878
        %v2010 = vpack.c.b16 %v1881, %v1880
        %v2011 = vpack.c.b16 %v1883, %v1882
        %v2012 = vpack.c.b16 %v1885, %v1884
        %v2013 = vpack.c.b16 %v1887, %v1886
        %v2014 = vpack.c.b16 %v1889, %v1888
        %v2015 = vpack.c.b16 %v1891, %v1890
        %v2016 = vpack.c.b16 %v1893, %v1892
        %v2017 = vpack.c.b16 %v1895, %v1894
        %v2018 = vpack.c.b16 %v1897, %v1896
        %v2019 = vpack.c.b16 %v1899, %v1898
        %v2020 = vpack.c.b16 %v1901, %v1900
        %v2021 = vpack.c.b16 %v1903, %v1902
        %v2022 = vpack.c.b16 %v1905, %v1904
        %v2023 = vpack.c.b16 %v1907, %v1906
        %v2024 = vpack.c.b16 %v1909, %v1908
        %v2025 = vpack.c.b16 %v1911, %v1910
        %v2026 = vpack.c.b16 %v1913, %v1912
        %v2027 = vpack.c.b16 %v1915, %v1914
        %v2028 = vpack.c.b16 %v1917, %v1916
        %v2029 = vpack.c.b16 %v1919, %v1918
        %v2030 = vpack.c.b16 %v1921, %v1920
        %v2031 = vpack.c.b16 %v1923, %v1922
        %v2032 = vpack.c.b16 %v1925, %v1924
        %v2033 = vpack.c.b16 %v1927, %v1926
        %v2034 = vpack.c.b16 %v1929, %v1928
        %v2035 = vpack.c.b16 %v1931, %v1930
        %v2036 = vpack.c.b16 %v1933, %v1932
        %v2037 = vpack.c.b16 %v1935, %v1934
        %v2038 = vpack.c.b16 %v1937, %v1936
        %v2039 = vpack.c.b16 %v1939, %v1938
        %v2040 = vpack.c.b16 %v1941, %v1940
        %v2041 = vpack.c.b16 %v1943, %v1942
        %v2042 = vpack.c.b16 %v1945, %v1944
        %v2043 = vpack.c.b16 %v1947, %v1946
        %v2044 = vpack.c.b16 %v1949, %v1948
        %v2045 = vpack.c.b16 %v1951, %v1950
        %v2046 = vpack.c.b16 %v1953, %v1952
        %v2047 = vpack.c.b16 %v1955, %v1954
        %v2048 = vpack.c.b16 %v1957, %v1956
        %v2049 = vpack.c.b16 %v1959, %v1958
        %v2050 = vpack.c.b16 %v1961, %v1960
        %v2051 = vpack.c.b16 %v1963, %v1962
        %v2052 = vpack.c.b16 %v1965, %v1964
        %v2053 = vpack.c.b16 %v1967, %v1966
        %v2054 = vpack.c.b16 %v1969, %v1968
        %v2055 = vpack.c.b16 %v1971, %v1970
        %v2056 = vpack.c.b16 %v1973, %v1972
        %v2057 = vpack.c.b16 %v1975, %v1974
        %v2058 = vpack.c.b16 %v1977, %v1976
        %v2059 = vpack.c.b16 %v1979, %v1978
        %v2060 = vpack.c.b16 %v1981, %v1980
        %v2061 = vpack.c.b16 %v1983, %v1982
        %v2062 = vpack.c.b16 %v1985, %v1984
        %v2063 = vpack.c.b16 %v1987, %v1986
        %v2064 = vpack.c.b16 %v1989, %v1988
        %v2065 = vpack.c.b16 %v1991, %v1990
        %v2066 = vpack.c.b16 %v1993, %v1992
        %v2067 = vpack.c.b16 %v1995, %v1994
        %2140 = vmatprep.subr.bf16.mxu0 0
        %2141 = vmatpush1.bf16.msra.mxu0 %v1996
        %2142 = vmatprep.subr.bf16.mxu0 0
        %2143 = vmatpush1.bf16.msra.mxu0 %v1997
        %2144 = vmatprep.subr.bf16.mxu0 0
        %2145 = vmatpush1.bf16.msra.mxu0 %v1998
        %2146 = vmatprep.subr.bf16.mxu0 0
        %2147 = vmatpush1.bf16.msra.mxu0 %v1999
        %2148 = vmatprep.subr.bf16.mxu0 0
        %2149 = vmatpush1.bf16.msra.mxu0 %v2000
        %2150 = vmatprep.subr.bf16.mxu0 0
        %2151 = vmatpush1.bf16.msra.mxu0 %v2001
        %2152 = vmatprep.subr.bf16.mxu0 0
        %2153 = vmatpush1.bf16.msra.mxu0 %v2002
        %2154 = vmatprep.subr.bf16.mxu0 0
        %2155 = vmatpush1.bf16.msra.mxu0 %v2003
        %2156 = vmatprep.subr.bf16.mxu0 0
        %2157 = vmatpush1.bf16.msra.mxu0 %v2004
        %2158 = vmatprep.subr.bf16.mxu0 0
        %2159 = vmatpush1.bf16.msra.mxu0 %v2005
        %2160 = vmatprep.subr.bf16.mxu0 0
        %2161 = vmatpush1.bf16.msra.mxu0 %v2006
        %2162 = vmatprep.subr.bf16.mxu0 0
        %2163 = vmatpush1.bf16.msra.mxu0 %v2007
        %2164 = vmatprep.subr.bf16.mxu0 0
        %2165 = vmatpush1.bf16.msra.mxu0 %v2008
        %2166 = vmatprep.subr.bf16.mxu0 0
        %2167 = vmatpush1.bf16.msra.mxu0 %v2009
        %2168 = vmatprep.subr.bf16.mxu0 0
        %2169 = vmatpush1.bf16.msra.mxu0 %v2010
        %2170 = vmatprep.subr.bf16.mxu0 0
        %2171 = vmatpush1.bf16.msra.mxu0 %v2011
        %2172 = vmatprep.mubr.bf16.mxu0 %v759
        %2173 = vmatmul.mubr.bf16.gmra.mrb[0].mxu0 %v747
        %v2174 = vpop.f32.mrb[0].mxu0
        %v2175 = vadd.f32 %v1706, %v2174
        %v2176 = vpop.f32.mrb[0].mxu0
        %v2177 = vpop.f32.mrb[0].mxu0
        %v2178 = vadd.f32 %v1706, %v2177
        %v2179 = vpop.f32.mrb[0].mxu0
        %2180 = vmatprep.mubr.bf16.mxu0 %v852
        %2181 = vmatmul.mubr.bf16.gmra.mrb[0].mxu0 %v840
        %v2182 = vpop.f32.mrb[0].mxu0
        %v2183 = vadd.f32 %v1706, %v2182
        %v2184 = vpop.f32.mrb[0].mxu0
        %v2185 = vpop.f32.mrb[0].mxu0
        %v2186 = vadd.f32 %v1706, %v2185
        %v2187 = vpop.f32.mrb[0].mxu0
        %2188 = vmatprep.mubr.bf16.mxu0 %v945
        %2189 = vmatmul.mubr.bf16.gmra.mrb[0].mxu0 %v933
        %v2190 = vpop.f32.mrb[0].mxu0
        %v2191 = vadd.f32 %v1706, %v2190
        %v2192 = vpop.f32.mrb[0].mxu0
        %v2193 = vpop.f32.mrb[0].mxu0
        %v2194 = vadd.f32 %v1706, %v2193
        %v2195 = vpop.f32.mrb[0].mxu0
        %2196 = vmatprep.mubr.bf16.mxu0 %v1038
        %2197 = vmatmul.mubr.bf16.gmra.mrb[0].mxu0 %v1026
        %v2198 = vpop.f32.mrb[0].mxu0
        %v2199 = vadd.f32 %v1706, %v2198
        %v2200 = vpop.f32.mrb[0].mxu0
        %v2201 = vpop.f32.mrb[0].mxu0
        %v2202 = vadd.f32 %v1706, %v2201
        %v2203 = vpop.f32.mrb[0].mxu0
        %2204 = vmatprep.mubr.bf16.mxu0 %v1131
        %2205 = vmatmul.mubr.bf16.gmra.mrb[0].mxu0 %v1119
        %v2206 = vpop.f32.mrb[0].mxu0
        %v2207 = vadd.f32 %v1706, %v2206
        %v2208 = vpop.f32.mrb[0].mxu0
        %v2209 = vpop.f32.mrb[0].mxu0
        %v2210 = vadd.f32 %v1706, %v2209
        %v2211 = vpop.f32.mrb[0].mxu0
        %2212 = vmatprep.mubr.bf16.mxu0 %v1224
        %2213 = vmatmul.mubr.bf16.gmra.mrb[0].mxu0 %v1212
        %v2214 = vpop.f32.mrb[0].mxu0
        %v2215 = vadd.f32 %v1706, %v2214
        %v2216 = vpop.f32.mrb[0].mxu0
        %v2217 = vpop.f32.mrb[0].mxu0
        %v2218 = vadd.f32 %v1706, %v2217
        %v2219 = vpop.f32.mrb[0].mxu0
        %2220 = vmatprep.mubr.bf16.mxu0 %v1317
        %2221 = vmatmul.mubr.bf16.gmra.mrb[0].mxu0 %v1305
        %v2222 = vpop.f32.mrb[0].mxu0
        %v2223 = vadd.f32 %v1706, %v2222
        %v2224 = vpop.f32.mrb[0].mxu0
        %v2225 = vpop.f32.mrb[0].mxu0
        %v2226 = vadd.f32 %v1706, %v2225
        %v2227 = vpop.f32.mrb[0].mxu0
        %2228 = vmatprep.mubr.bf16.mxu0 %v1410
        %2229 = vmatmul.mubr.bf16.gmra.mrb[0].mxu0 %v1398
        %v2230 = vpop.f32.mrb[0].mxu0
        %v2231 = vadd.f32 %v1706, %v2230
        %v2232 = vpop.f32.mrb[0].mxu0
        %v2233 = vpop.f32.mrb[0].mxu0
        %v2234 = vadd.f32 %v1706, %v2233
        %v2235 = vpop.f32.mrb[0].mxu0
        %2236 = vdwg.mxu0
        %2237 = vmatprep.subr.bf16.mxu0 0
        %2238 = vmatpush1.bf16.msra.mxu0 %v2012
        %2239 = vmatprep.subr.bf16.mxu0 0
        %2240 = vmatpush1.bf16.msra.mxu0 %v2013
        %2241 = vmatprep.subr.bf16.mxu0 0
        %2242 = vmatpush1.bf16.msra.mxu0 %v2014
        %2243 = vmatprep.subr.bf16.mxu0 0
        %2244 = vmatpush1.bf16.msra.mxu0 %v2015
        %2245 = vmatprep.subr.bf16.mxu0 0
        %2246 = vmatpush1.bf16.msra.mxu0 %v2016
        %2247 = vmatprep.subr.bf16.mxu0 0
        %2248 = vmatpush1.bf16.msra.mxu0 %v2017
        %2249 = vmatprep.subr.bf16.mxu0 0
        %2250 = vmatpush1.bf16.msra.mxu0 %v2018
        %2251 = vmatprep.subr.bf16.mxu0 0
        %2252 = vmatpush1.bf16.msra.mxu0 %v2019
        %2253 = vmatprep.subr.bf16.mxu0 0
        %2254 = vmatpush1.bf16.msra.mxu0 %v2020
        %2255 = vmatprep.subr.bf16.mxu0 0
        %2256 = vmatpush1.bf16.msra.mxu0 %v2021
        %2257 = vmatprep.subr.bf16.mxu0 0
        %2258 = vmatpush1.bf16.msra.mxu0 %v2022
        %2259 = vmatprep.subr.bf16.mxu0 0
        %2260 = vmatpush1.bf16.msra.mxu0 %v2023
        %2261 = vmatprep.subr.bf16.mxu0 0
        %2262 = vmatpush1.bf16.msra.mxu0 %v2024
        %2263 = vmatprep.subr.bf16.mxu0 0
        %2264 = vmatpush1.bf16.msra.mxu0 %v2025
        %2265 = vmatprep.subr.bf16.mxu0 0
        %2266 = vmatpush1.bf16.msra.mxu0 %v2026
        %2267 = vmatprep.subr.bf16.mxu0 0
        %2268 = vmatpush1.bf16.msra.mxu0 %v2027
        %2269 = vmatprep.mubr.bf16.mxu0 %v778
        %2270 = vmatmul.mubr.bf16.gmra.mrb[0].mxu0 %v771
        %v2271 = vpop.f32.mrb[0].mxu0
        %v2272 = vadd.f32 %v2175, %v2271
        %v2273 = vpop.f32.mrb[0].mxu0
        %v2274 = vpop.f32.mrb[0].mxu0
        %v2275 = vadd.f32 %v2178, %v2274
        %v2276 = vpop.f32.mrb[0].mxu0
        %2277 = vmatprep.mubr.bf16.mxu0 %v871
        %2278 = vmatmul.mubr.bf16.gmra.mrb[0].mxu0 %v864
        %v2279 = vpop.f32.mrb[0].mxu0
        %v2280 = vadd.f32 %v2183, %v2279
        %v2281 = vpop.f32.mrb[0].mxu0
        %v2282 = vpop.f32.mrb[0].mxu0
        %v2283 = vadd.f32 %v2186, %v2282
        %v2284 = vpop.f32.mrb[0].mxu0
        %2285 = vmatprep.mubr.bf16.mxu0 %v964
        %2286 = vmatmul.mubr.bf16.gmra.mrb[0].mxu0 %v957
        %v2287 = vpop.f32.mrb[0].mxu0
        %v2288 = vadd.f32 %v2191, %v2287
        %v2289 = vpop.f32.mrb[0].mxu0
        %v2290 = vpop.f32.mrb[0].mxu0
        %v2291 = vadd.f32 %v2194, %v2290
        %v2292 = vpop.f32.mrb[0].mxu0
        %2293 = vmatprep.mubr.bf16.mxu0 %v1057
        %2294 = vmatmul.mubr.bf16.gmra.mrb[0].mxu0 %v1050
        %v2295 = vpop.f32.mrb[0].mxu0
        %v2296 = vadd.f32 %v2199, %v2295
        %v2297 = vpop.f32.mrb[0].mxu0
        %v2298 = vpop.f32.mrb[0].mxu0
        %v2299 = vadd.f32 %v2202, %v2298
        %v2300 = vpop.f32.mrb[0].mxu0
        %2301 = vmatprep.mubr.bf16.mxu0 %v1150
        %2302 = vmatmul.mubr.bf16.gmra.mrb[0].mxu0 %v1143
        %v2303 = vpop.f32.mrb[0].mxu0
        %v2304 = vadd.f32 %v2207, %v2303
        %v2305 = vpop.f32.mrb[0].mxu0
        %v2306 = vpop.f32.mrb[0].mxu0
        %v2307 = vadd.f32 %v2210, %v2306
        %v2308 = vpop.f32.mrb[0].mxu0
        %2309 = vmatprep.mubr.bf16.mxu0 %v1243
        %2310 = vmatmul.mubr.bf16.gmra.mrb[0].mxu0 %v1236
        %v2311 = vpop.f32.mrb[0].mxu0
        %v2312 = vadd.f32 %v2215, %v2311
        %v2313 = vpop.f32.mrb[0].mxu0
        %v2314 = vpop.f32.mrb[0].mxu0
        %v2315 = vadd.f32 %v2218, %v2314
        %v2316 = vpop.f32.mrb[0].mxu0
        %2317 = vmatprep.mubr.bf16.mxu0 %v1336
        %2318 = vmatmul.mubr.bf16.gmra.mrb[0].mxu0 %v1329
        %v2319 = vpop.f32.mrb[0].mxu0
        %v2320 = vadd.f32 %v2223, %v2319
        %v2321 = vpop.f32.mrb[0].mxu0
        %v2322 = vpop.f32.mrb[0].mxu0
        %v2323 = vadd.f32 %v2226, %v2322
        %v2324 = vpop.f32.mrb[0].mxu0
        %2325 = vmatprep.mubr.bf16.mxu0 %v1429
        %2326 = vmatmul.mubr.bf16.gmra.mrb[0].mxu0 %v1422
        %v2327 = vpop.f32.mrb[0].mxu0
        %v2328 = vadd.f32 %v2231, %v2327
        %v2329 = vpop.f32.mrb[0].mxu0
        %v2330 = vpop.f32.mrb[0].mxu0
        %v2331 = vadd.f32 %v2234, %v2330
        %v2332 = vpop.f32.mrb[0].mxu0
        %2333 = vdwg.mxu0
        %2334 = vmatprep.subr.bf16.mxu0 0
        %2335 = vmatpush1.bf16.msra.mxu0 %v2028
        %2336 = vmatprep.subr.bf16.mxu0 0
        %2337 = vmatpush1.bf16.msra.mxu0 %v2029
        %2338 = vmatprep.subr.bf16.mxu0 0
        %2339 = vmatpush1.bf16.msra.mxu0 %v2030
        %2340 = vmatprep.subr.bf16.mxu0 0
        %2341 = vmatpush1.bf16.msra.mxu0 %v2031
        %2342 = vmatprep.subr.bf16.mxu0 0
        %2343 = vmatpush1.bf16.msra.mxu0 %v2032
        %2344 = vmatprep.subr.bf16.mxu0 0
        %2345 = vmatpush1.bf16.msra.mxu0 %v2033
        %2346 = vmatprep.subr.bf16.mxu0 0
        %2347 = vmatpush1.bf16.msra.mxu0 %v2034
        %2348 = vmatprep.subr.bf16.mxu0 0
        %2349 = vmatpush1.bf16.msra.mxu0 %v2035
        %2350 = vmatprep.subr.bf16.mxu0 0
        %2351 = vmatpush1.bf16.msra.mxu0 %v2036
        %2352 = vmatprep.subr.bf16.mxu0 0
        %2353 = vmatpush1.bf16.msra.mxu0 %v2037
        %2354 = vmatprep.subr.bf16.mxu0 0
        %2355 = vmatpush1.bf16.msra.mxu0 %v2038
        %2356 = vmatprep.subr.bf16.mxu0 0
        %2357 = vmatpush1.bf16.msra.mxu0 %v2039
        %2358 = vmatprep.subr.bf16.mxu0 0
        %2359 = vmatpush1.bf16.msra.mxu0 %v2040
        %2360 = vmatprep.subr.bf16.mxu0 0
        %2361 = vmatpush1.bf16.msra.mxu0 %v2041
        %2362 = vmatprep.subr.bf16.mxu0 0
        %2363 = vmatpush1.bf16.msra.mxu0 %v2042
        %2364 = vmatprep.subr.bf16.mxu0 0
        %2365 = vmatpush1.bf16.msra.mxu0 %v2043
        %2366 = vmatprep.mubr.bf16.mxu0 %v802
        %2367 = vmatmul.mubr.bf16.gmra.mrb[0].mxu0 %v790
        %v2368 = vpop.f32.mrb[0].mxu0
        %v2369 = vadd.f32 %v2272, %v2368
        %v2370 = vpop.f32.mrb[0].mxu0
        %v2371 = vpop.f32.mrb[0].mxu0
        %v2372 = vadd.f32 %v2275, %v2371
        %v2373 = vpop.f32.mrb[0].mxu0
        %2374 = vmatprep.mubr.bf16.mxu0 %v895
        %2375 = vmatmul.mubr.bf16.gmra.mrb[0].mxu0 %v883
        %v2376 = vpop.f32.mrb[0].mxu0
        %v2377 = vadd.f32 %v2280, %v2376
        %v2378 = vpop.f32.mrb[0].mxu0
        %v2379 = vpop.f32.mrb[0].mxu0
        %v2380 = vadd.f32 %v2283, %v2379
        %v2381 = vpop.f32.mrb[0].mxu0
        %2382 = vmatprep.mubr.bf16.mxu0 %v988
        %2383 = vmatmul.mubr.bf16.gmra.mrb[0].mxu0 %v976
        %v2384 = vpop.f32.mrb[0].mxu0
        %v2385 = vadd.f32 %v2288, %v2384
        %v2386 = vpop.f32.mrb[0].mxu0
        %v2387 = vpop.f32.mrb[0].mxu0
        %v2388 = vadd.f32 %v2291, %v2387
        %v2389 = vpop.f32.mrb[0].mxu0
        %2390 = vmatprep.mubr.bf16.mxu0 %v1081
        %2391 = vmatmul.mubr.bf16.gmra.mrb[0].mxu0 %v1069
        %v2392 = vpop.f32.mrb[0].mxu0
        %v2393 = vadd.f32 %v2296, %v2392
        %v2394 = vpop.f32.mrb[0].mxu0
        %v2395 = vpop.f32.mrb[0].mxu0
        %v2396 = vadd.f32 %v2299, %v2395
        %v2397 = vpop.f32.mrb[0].mxu0
        %2398 = vmatprep.mubr.bf16.mxu0 %v1174
        %2399 = vmatmul.mubr.bf16.gmra.mrb[0].mxu0 %v1162
        %v2400 = vpop.f32.mrb[0].mxu0
        %v2401 = vadd.f32 %v2304, %v2400
        %v2402 = vpop.f32.mrb[0].mxu0
        %v2403 = vpop.f32.mrb[0].mxu0
        %v2404 = vadd.f32 %v2307, %v2403
        %v2405 = vpop.f32.mrb[0].mxu0
        %2406 = vmatprep.mubr.bf16.mxu0 %v1267
        %2407 = vmatmul.mubr.bf16.gmra.mrb[0].mxu0 %v1255
        %v2408 = vpop.f32.mrb[0].mxu0
        %v2409 = vadd.f32 %v2312, %v2408
        %v2410 = vpop.f32.mrb[0].mxu0
        %v2411 = vpop.f32.mrb[0].mxu0
        %v2412 = vadd.f32 %v2315, %v2411
        %v2413 = vpop.f32.mrb[0].mxu0
        %2414 = vmatprep.mubr.bf16.mxu0 %v1360
        %2415 = vmatmul.mubr.bf16.gmra.mrb[0].mxu0 %v1348
        %v2416 = vpop.f32.mrb[0].mxu0
        %v2417 = vadd.f32 %v2320, %v2416
        %v2418 = vpop.f32.mrb[0].mxu0
        %v2419 = vpop.f32.mrb[0].mxu0
        %v2420 = vadd.f32 %v2323, %v2419
        %v2421 = vpop.f32.mrb[0].mxu0
        %2422 = vmatprep.mubr.bf16.mxu0 %v1453
        %2423 = vmatmul.mubr.bf16.gmra.mrb[0].mxu0 %v1441
        %v2424 = vpop.f32.mrb[0].mxu0
        %v2425 = vadd.f32 %v2328, %v2424
        %v2426 = vpop.f32.mrb[0].mxu0
        %v2427 = vpop.f32.mrb[0].mxu0
        %v2428 = vadd.f32 %v2331, %v2427
        %v2429 = vpop.f32.mrb[0].mxu0
        %2430 = vdwg.mxu0
        %2431 = vmatprep.subr.bf16.mxu0 0
        %2432 = vmatpush1.bf16.msra.mxu0 %v2044
        %2433 = vmatprep.subr.bf16.mxu0 0
        %2434 = vmatpush1.bf16.msra.mxu0 %v2045
        %2435 = vmatprep.subr.bf16.mxu0 0
        %2436 = vmatpush1.bf16.msra.mxu0 %v2046
        %2437 = vmatprep.subr.bf16.mxu0 0
        %2438 = vmatpush1.bf16.msra.mxu0 %v2047
        %2439 = vmatprep.subr.bf16.mxu0 0
        %2440 = vmatpush1.bf16.msra.mxu0 %v2048
        %2441 = vmatprep.subr.bf16.mxu0 0
        %2442 = vmatpush1.bf16.msra.mxu0 %v2049
        %2443 = vmatprep.subr.bf16.mxu0 0
        %2444 = vmatpush1.bf16.msra.mxu0 %v2050
        %2445 = vmatprep.subr.bf16.mxu0 0
        %2446 = vmatpush1.bf16.msra.mxu0 %v2051
        %2447 = vmatprep.subr.bf16.mxu0 0
        %2448 = vmatpush1.bf16.msra.mxu0 %v2052
        %2449 = vmatprep.subr.bf16.mxu0 0
        %2450 = vmatpush1.bf16.msra.mxu0 %v2053
        %2451 = vmatprep.subr.bf16.mxu0 0
        %2452 = vmatpush1.bf16.msra.mxu0 %v2054
        %2453 = vmatprep.subr.bf16.mxu0 0
        %2454 = vmatpush1.bf16.msra.mxu0 %v2055
        %2455 = vmatprep.subr.bf16.mxu0 0
        %2456 = vmatpush1.bf16.msra.mxu0 %v2056
        %2457 = vmatprep.subr.bf16.mxu0 0
        %2458 = vmatpush1.bf16.msra.mxu0 %v2057
        %2459 = vmatprep.subr.bf16.mxu0 0
        %2460 = vmatpush1.bf16.msra.mxu0 %v2058
        %2461 = vmatprep.subr.bf16.mxu0 0
        %2462 = vmatpush1.bf16.msra.mxu0 %v2059
        %2463 = vmatprep.mubr.bf16.mxu0 %v821
        %2464 = vmatmul.mubr.bf16.gmra.mrb[0].mxu0 %v809
        %v2465 = vpop.f32.mrb[0].mxu0
        %v2466 = vadd.f32 %v2369, %v2465
        %v2467 = vpop.f32.mrb[0].mxu0
        %v2468 = vpop.f32.mrb[0].mxu0
        %v2469 = vadd.f32 %v2372, %v2468
        %v2470 = vpop.f32.mrb[0].mxu0
        %2471 = vmatprep.mubr.bf16.mxu0 %v914
        %2472 = vmatmul.mubr.bf16.gmra.mrb[0].mxu0 %v902
        %v2473 = vpop.f32.mrb[0].mxu0
        %v2474 = vadd.f32 %v2377, %v2473
        %v2475 = vpop.f32.mrb[0].mxu0
        %v2476 = vpop.f32.mrb[0].mxu0
        %v2477 = vadd.f32 %v2380, %v2476
        %v2478 = vpop.f32.mrb[0].mxu0
        %2479 = vmatprep.mubr.bf16.mxu0 %v1007
        %2480 = vmatmul.mubr.bf16.gmra.mrb[0].mxu0 %v995
        %v2481 = vpop.f32.mrb[0].mxu0
        %v2482 = vadd.f32 %v2385, %v2481
        %v2483 = vpop.f32.mrb[0].mxu0
        %v2484 = vpop.f32.mrb[0].mxu0
        %v2485 = vadd.f32 %v2388, %v2484
        %v2486 = vpop.f32.mrb[0].mxu0
        %2487 = vmatprep.mubr.bf16.mxu0 %v1100
        %2488 = vmatmul.mubr.bf16.gmra.mrb[0].mxu0 %v1088
        %v2489 = vpop.f32.mrb[0].mxu0
        %v2490 = vadd.f32 %v2393, %v2489
        %v2491 = vpop.f32.mrb[0].mxu0
        %v2492 = vpop.f32.mrb[0].mxu0
        %v2493 = vadd.f32 %v2396, %v2492
        %v2494 = vpop.f32.mrb[0].mxu0
        %2495 = vmatprep.mubr.bf16.mxu0 %v1193
        %2496 = vmatmul.mubr.bf16.gmra.mrb[0].mxu0 %v1181
        %v2497 = vpop.f32.mrb[0].mxu0
        %v2498 = vadd.f32 %v2401, %v2497
        %v2499 = vpop.f32.mrb[0].mxu0
        %v2500 = vpop.f32.mrb[0].mxu0
        %v2501 = vadd.f32 %v2404, %v2500
        %v2502 = vpop.f32.mrb[0].mxu0
        %2503 = vmatprep.mubr.bf16.mxu0 %v1286
        %2504 = vmatmul.mubr.bf16.gmra.mrb[0].mxu0 %v1274
        %v2505 = vpop.f32.mrb[0].mxu0
        %v2506 = vadd.f32 %v2409, %v2505
        %v2507 = vpop.f32.mrb[0].mxu0
        %v2508 = vpop.f32.mrb[0].mxu0
        %v2509 = vadd.f32 %v2412, %v2508
        %v2510 = vpop.f32.mrb[0].mxu0
        %2511 = vmatprep.mubr.bf16.mxu0 %v1379
        %2512 = vmatmul.mubr.bf16.gmra.mrb[0].mxu0 %v1367
        %v2513 = vpop.f32.mrb[0].mxu0
        %v2514 = vadd.f32 %v2417, %v2513
        %v2515 = vpop.f32.mrb[0].mxu0
        %v2516 = vpop.f32.mrb[0].mxu0
        %v2517 = vadd.f32 %v2420, %v2516
        %v2518 = vpop.f32.mrb[0].mxu0
        %2519 = vmatprep.mubr.bf16.mxu0 %v1472
        %2520 = vmatmul.mubr.bf16.gmra.mrb[0].mxu0 %v1460
        %v2521 = vpop.f32.mrb[0].mxu0
        %v2522 = vadd.f32 %v2425, %v2521
        %v2523 = vpop.f32.mrb[0].mxu0
        %v2524 = vpop.f32.mrb[0].mxu0
        %v2525 = vadd.f32 %v2428, %v2524
        %v2526 = vpop.f32.mrb[0].mxu0
        %2527 = vdwg.mxu0
        %2528 = vmatprep.subr.bf16.mxu0 0
        %2529 = vmatpush1.bf16.msra.mxu0 %v2060
        %2530 = vmatprep.subr.bf16.mxu0 0
        %2531 = vmatpush1.bf16.msra.mxu0 %v2061
        %2532 = vmatprep.subr.bf16.mxu0 0
        %2533 = vmatpush1.bf16.msra.mxu0 %v2062
        %2534 = vmatprep.subr.bf16.mxu0 0
        %2535 = vmatpush1.bf16.msra.mxu0 %v2063
        %2536 = vmatprep.subr.bf16.mxu0 0
        %2537 = vmatpush1.bf16.msra.mxu0 %v2064
        %2538 = vmatprep.subr.bf16.mxu0 0
        %2539 = vmatpush1.bf16.msra.mxu0 %v2065
        %2540 = vmatprep.subr.bf16.mxu0 0
        %2541 = vmatpush1.bf16.msra.mxu0 %v2066
        %2542 = vmatprep.subr.bf16.mxu0 0
        %2543 = vmatpush1.bf16.msra.mxu0 %v2067
        %2544 = vmatprep.subr.bf16.mxu0 0
        %2545 = vmatpush1.bf16.msra.mxu0 0
        %2546 = vmatprep.subr.bf16.mxu0 0
        %2547 = vmatpush1.bf16.msra.mxu0 0
        %2548 = vmatprep.subr.bf16.mxu0 0
        %2549 = vmatpush1.bf16.msra.mxu0 0
        %2550 = vmatprep.subr.bf16.mxu0 0
        %2551 = vmatpush1.bf16.msra.mxu0 0
        %2552 = vmatprep.subr.bf16.mxu0 0
        %2553 = vmatpush1.bf16.msra.mxu0 0
        %2554 = vmatprep.subr.bf16.mxu0 0
        %2555 = vmatpush1.bf16.msra.mxu0 0
        %2556 = vmatprep.subr.bf16.mxu0 0
        %2557 = vmatpush1.bf16.msra.mxu0 0
        %2558 = vmatprep.subr.bf16.mxu0 0
        %2559 = vmatpush1.bf16.msra.mxu0 0
        %2560 = vmatprep.mubr.bf16.mxu0 0
        %2561 = vmatmul.mubr.bf16.gmra.mrb[0].mxu0 %v833
        %v2562 = vpop.f32.mrb[0].mxu0
        %v2563 = vadd.f32 %v2466, %v2562
        %v2564 = vpop.f32.mrb[0].mxu0
        %v2565 = vpop.f32.mrb[0].mxu0
        %v2566 = vadd.f32 %v2469, %v2565
        %v2567 = vpop.f32.mrb[0].mxu0
        %2568 = vmatprep.mubr.bf16.mxu0 0
        %2569 = vmatmul.mubr.bf16.gmra.mrb[0].mxu0 %v926
        %v2570 = vpop.f32.mrb[0].mxu0
        %v2571 = vadd.f32 %v2474, %v2570
        %v2572 = vpop.f32.mrb[0].mxu0
        %v2573 = vpop.f32.mrb[0].mxu0
        %v2574 = vadd.f32 %v2477, %v2573
        %v2575 = vpop.f32.mrb[0].mxu0
        %2576 = vmatprep.mubr.bf16.mxu0 0
        %2577 = vmatmul.mubr.bf16.gmra.mrb[0].mxu0 %v1019
        %v2578 = vpop.f32.mrb[0].mxu0
        %v2579 = vadd.f32 %v2482, %v2578
        %v2580 = vpop.f32.mrb[0].mxu0
        %v2581 = vpop.f32.mrb[0].mxu0
        %v2582 = vadd.f32 %v2485, %v2581
        %v2583 = vpop.f32.mrb[0].mxu0
        %2584 = vmatprep.mubr.bf16.mxu0 0
        %2585 = vmatmul.mubr.bf16.gmra.mrb[0].mxu0 %v1112
        %v2586 = vpop.f32.mrb[0].mxu0
        %v2587 = vadd.f32 %v2490, %v2586
        %v2588 = vpop.f32.mrb[0].mxu0
        %v2589 = vpop.f32.mrb[0].mxu0
        %v2590 = vadd.f32 %v2493, %v2589
        %v2591 = vpop.f32.mrb[0].mxu0
        %2592 = vmatprep.mubr.bf16.mxu0 0
        %2593 = vmatmul.mubr.bf16.gmra.mrb[0].mxu0 %v1205
        %v2594 = vpop.f32.mrb[0].mxu0
        %v2595 = vadd.f32 %v2498, %v2594
        %v2596 = vpop.f32.mrb[0].mxu0
        %v2597 = vpop.f32.mrb[0].mxu0
        %v2598 = vadd.f32 %v2501, %v2597
        %v2599 = vpop.f32.mrb[0].mxu0
        %2600 = vmatprep.mubr.bf16.mxu0 0
        %2601 = vmatmul.mubr.bf16.gmra.mrb[0].mxu0 %v1298
        %v2602 = vpop.f32.mrb[0].mxu0
        %v2603 = vadd.f32 %v2506, %v2602
        %v2604 = vpop.f32.mrb[0].mxu0
        %v2605 = vpop.f32.mrb[0].mxu0
        %v2606 = vadd.f32 %v2509, %v2605
        %v2607 = vpop.f32.mrb[0].mxu0
        %2608 = vmatprep.mubr.bf16.mxu0 0
        %2609 = vmatmul.mubr.bf16.gmra.mrb[0].mxu0 %v1391
        %v2610 = vpop.f32.mrb[0].mxu0
        %v2611 = vadd.f32 %v2514, %v2610
        %v2612 = vpop.f32.mrb[0].mxu0
        %v2613 = vpop.f32.mrb[0].mxu0
        %v2614 = vadd.f32 %v2517, %v2613
        %v2615 = vpop.f32.mrb[0].mxu0
        %2616 = vmatprep.mubr.bf16.mxu0 0
        %2617 = vmatmul.mubr.bf16.gmra.mrb[0].mxu0 %v1484
        %v2618 = vpop.f32.mrb[0].mxu0
        %v2619 = vadd.f32 %v2522, %v2618
        %v2620 = vpop.f32.mrb[0].mxu0
        %v2621 = vpop.f32.mrb[0].mxu0
        %v2622 = vadd.f32 %v2525, %v2621
        %v2623 = vpop.f32.mrb[0].mxu0
        %2624 = vdwg.mxu0
        %v2625 = vmax.f32 %v2563, 0.0
        %v2626 = vmax.f32 %v2566, 0.0
        %v2627 = vmax.f32 %v2571, 0.0
        %v2628 = vmax.f32 %v2574, 0.0
        %v2629 = vmax.f32 %v2579, 0.0
        %v2630 = vmax.f32 %v2582, 0.0
        %v2631 = vmax.f32 %v2587, 0.0
        %v2632 = vmax.f32 %v2590, 0.0
        %v2633 = vmax.f32 %v2595, 0.0
        %v2634 = vmax.f32 %v2598, 0.0
        %v2635 = vmax.f32 %v2603, 0.0
        %v2636 = vmax.f32 %v2606, 0.0
        %v2637 = vmax.f32 %v2611, 0.0
        %v2638 = vmax.f32 %v2614, 0.0
        %v2639 = vmax.f32 %v2619, 0.0
        %v2640 = vmax.f32 %v2622, 0.0
        %v2641 = vpack.c.bf16 %v2626, %v2625
        %v2642 = vpack.c.bf16 %v2628, %v2627
        %v2643 = vpack.c.bf16 %v2630, %v2629
        %v2644 = vpack.c.bf16 %v2632, %v2631
        %v2645 = vpack.c.bf16 %v2634, %v2633
        %v2646 = vpack.c.bf16 %v2636, %v2635
        %v2647 = vpack.c.bf16 %v2638, %v2637
        %v2648 = vpack.c.bf16 %v2640, %v2639
        %s2649 = scalar_lea.vmem [#allocation3], 24
        %2650 = vst [vmem:[%s2649 + $0x8] sm:$0xff] %v2641
        %2651 = vst [vmem:[%s2649 + $0x20] sm:$0xff] %v2642
        %2652 = vst [vmem:[%s2649 + $0x38] sm:$0xff] %v2643
        %2653 = vst [vmem:[%s2649 + $0x50] sm:$0xff] %v2644
        %2654 = vst [vmem:[%s2649 + $0x68] sm:$0xff] %v2645
        %2655 = vst [vmem:[%s2649 + $0x80] sm:$0xff] %v2646
        %2656 = vst [vmem:[%s2649 + $0x98] sm:$0xff] %v2647
        %2657 = vst [vmem:[%s2649 + $0xb0] sm:$0xff] %v2648
        %s2658 = scalar_lea.vmem [#allocation2], 192
        %v2659 = vld [vmem:[%s2658] sm:$0x80]
        %v2660 = vld [vmem:[%s2658 + $0x8] sm:$0xff]
        %v2661 = vld [vmem:[%s2658 + $0x18] sm:$0x80]
        %v2662 = vld [vmem:[%s2658 + $0x20] sm:$0xff]
        %v2663 = vld [vmem:[%s2658 + $0x30] sm:$0x80]
        %v2664 = vld [vmem:[%s2658 + $0x38] sm:$0xff]
        %v2665 = vld [vmem:[%s2658 + $0x48] sm:$0x80]
        %v2666 = vld [vmem:[%s2658 + $0x50] sm:$0xff]
        %v2667 = vld [vmem:[%s2658 + $0x60] sm:$0x80]
        %v2668 = vld [vmem:[%s2658 + $0x68] sm:$0xff]
        %v2669 = vld [vmem:[%s2658 + $0x78] sm:$0x80]
        %v2670 = vld [vmem:[%s2658 + $0x80] sm:$0xff]
        %v2671 = vld [vmem:[%s2658 + $0x90] sm:$0x80]
        %v2672 = vld [vmem:[%s2658 + $0x98] sm:$0xff]
        %v2673 = vld [vmem:[%s2658 + $0xa8] sm:$0x80]
        %v2674 = vld [vmem:[%s2658 + $0xb0] sm:$0xff]
        %v2675 = vld [vmem:[%s2658 + $0x10] sm:$0x1]
        %v2676 = vld [vmem:[%s2658 + $0x28] sm:$0x1]
        %v2677 = vld [vmem:[%s2658 + $0x40] sm:$0x1]
        %v2678 = vld [vmem:[%s2658 + $0x58] sm:$0x1]
        %v2679 = vld [vmem:[%s2658 + $0x70] sm:$0x1]
        %v2680 = vld [vmem:[%s2658 + $0x88] sm:$0x1]
        %v2681 = vld [vmem:[%s2658 + $0xa0] sm:$0x1]
        %v2682 = vld [vmem:[%s2658 + $0xb8] sm:$0x1]
        %s2683 = scalar_lea.vmem [#allocation2], 216
        %v2684 = vld [vmem:[%s2683] sm:$0x80]
        %v2685 = vld [vmem:[%s2683 + $0x8] sm:$0xff]
        %v2686 = vld [vmem:[%s2683 + $0x18] sm:$0x80]
        %v2687 = vld [vmem:[%s2683 + $0x20] sm:$0xff]
        %v2688 = vld [vmem:[%s2683 + $0x30] sm:$0x80]
        %v2689 = vld [vmem:[%s2683 + $0x38] sm:$0xff]
        %v2690 = vld [vmem:[%s2683 + $0x48] sm:$0x80]
        %v2691 = vld [vmem:[%s2683 + $0x50] sm:$0xff]
        %v2692 = vld [vmem:[%s2683 + $0x60] sm:$0x80]
        %v2693 = vld [vmem:[%s2683 + $0x68] sm:$0xff]
        %v2694 = vld [vmem:[%s2683 + $0x78] sm:$0x80]
        %v2695 = vld [vmem:[%s2683 + $0x80] sm:$0xff]
        %v2696 = vld [vmem:[%s2683 + $0x90] sm:$0x80]
        %v2697 = vld [vmem:[%s2683 + $0x98] sm:$0xff]
        %v2698 = vld [vmem:[%s2683 + $0xa8] sm:$0x80]
        %v2699 = vld [vmem:[%s2683 + $0xb0] sm:$0xff]
        %v2700 = vld [vmem:[%s2683 + $0x10] sm:$0x1]
        %v2701 = vld [vmem:[%s2683 + $0x28] sm:$0x1]
        %v2702 = vld [vmem:[%s2683 + $0x40] sm:$0x1]
        %v2703 = vld [vmem:[%s2683 + $0x58] sm:$0x1]
        %v2704 = vld [vmem:[%s2683 + $0x70] sm:$0x1]
        %v2705 = vld [vmem:[%s2683 + $0x88] sm:$0x1]
        %v2706 = vld [vmem:[%s2683 + $0xa0] sm:$0x1]
        %v2707 = vld [vmem:[%s2683 + $0xb8] sm:$0x1]
        %s2708 = scalar_lea.vmem [#allocation2], 240
        %v2709 = vld [vmem:[%s2708] sm:$0x80]
        %v2710 = vld [vmem:[%s2708 + $0x8] sm:$0xff]
        %v2711 = vld [vmem:[%s2708 + $0x18] sm:$0x80]
        %v2712 = vld [vmem:[%s2708 + $0x20] sm:$0xff]
        %v2713 = vld [vmem:[%s2708 + $0x30] sm:$0x80]
        %v2714 = vld [vmem:[%s2708 + $0x38] sm:$0xff]
        %v2715 = vld [vmem:[%s2708 + $0x48] sm:$0x80]
        %v2716 = vld [vmem:[%s2708 + $0x50] sm:$0xff]
        %v2717 = vld [vmem:[%s2708 + $0x60] sm:$0x80]
        %v2718 = vld [vmem:[%s2708 + $0x68] sm:$0xff]
        %v2719 = vld [vmem:[%s2708 + $0x78] sm:$0x80]
        %v2720 = vld [vmem:[%s2708 + $0x80] sm:$0xff]
        %v2721 = vld [vmem:[%s2708 + $0x90] sm:$0x80]
        %v2722 = vld [vmem:[%s2708 + $0x98] sm:$0xff]
        %v2723 = vld [vmem:[%s2708 + $0xa8] sm:$0x80]
        %v2724 = vld [vmem:[%s2708 + $0xb0] sm:$0xff]
        %v2725 = vld [vmem:[%s2708 + $0x10] sm:$0x1]
        %v2726 = vld [vmem:[%s2708 + $0x28] sm:$0x1]
        %v2727 = vld [vmem:[%s2708 + $0x40] sm:$0x1]
        %v2728 = vld [vmem:[%s2708 + $0x58] sm:$0x1]
        %v2729 = vld [vmem:[%s2708 + $0x70] sm:$0x1]
        %v2730 = vld [vmem:[%s2708 + $0x88] sm:$0x1]
        %v2731 = vld [vmem:[%s2708 + $0xa0] sm:$0x1]
        %v2732 = vld [vmem:[%s2708 + $0xb8] sm:$0x1]
        %v2734 = vshll.u32 %v2660, 16
        %v2736 = vrot.slane %v2734, 1
        %v2737 = vshrl.u32 %v2660, 16
        %v2739 = vor.u32 %v2737, %v2736
        %v2741 = vshll.u32 %v2662, 16
        %v2743 = vrot.slane %v2741, 1
        %v2744 = vshrl.u32 %v2662, 16
        %v2746 = vor.u32 %v2744, %v2743
        %v2748 = vshll.u32 %v2664, 16
        %v2750 = vrot.slane %v2748, 1
        %v2751 = vshrl.u32 %v2664, 16
        %v2753 = vor.u32 %v2751, %v2750
        %v2755 = vshll.u32 %v2666, 16
        %v2757 = vrot.slane %v2755, 1
        %v2758 = vshrl.u32 %v2666, 16
        %v2760 = vor.u32 %v2758, %v2757
        %v2762 = vshll.u32 %v2668, 16
        %v2764 = vrot.slane %v2762, 1
        %v2765 = vshrl.u32 %v2668, 16
        %v2767 = vor.u32 %v2765, %v2764
        %v2769 = vshll.u32 %v2670, 16
        %v2771 = vrot.slane %v2769, 1
        %v2772 = vshrl.u32 %v2670, 16
        %v2774 = vor.u32 %v2772, %v2771
        %v2776 = vshll.u32 %v2672, 16
        %v2778 = vrot.slane %v2776, 1
        %v2779 = vshrl.u32 %v2672, 16
        %v2781 = vor.u32 %v2779, %v2778
        %v2783 = vshll.u32 %v2674, 16
        %v2785 = vrot.slane %v2783, 1
        %v2786 = vshrl.u32 %v2674, 16
        %v2788 = vor.u32 %v2786, %v2785
        %v2805 = vrot.slane %v2660, 1
        %v2806 = vrot.slane %v2675, 1
        %v2807 = vsel %vm523, %v2805, %v2806
        %v2808 = vrot.slane %v2662, 1
        %v2809 = vrot.slane %v2676, 1
        %v2810 = vsel %vm523, %v2808, %v2809
        %v2811 = vrot.slane %v2664, 1
        %v2812 = vrot.slane %v2677, 1
        %v2813 = vsel %vm523, %v2811, %v2812
        %v2814 = vrot.slane %v2666, 1
        %v2815 = vrot.slane %v2678, 1
        %v2816 = vsel %vm523, %v2814, %v2815
        %v2817 = vrot.slane %v2668, 1
        %v2818 = vrot.slane %v2679, 1
        %v2819 = vsel %vm523, %v2817, %v2818
        %v2820 = vrot.slane %v2670, 1
        %v2821 = vrot.slane %v2680, 1
        %v2822 = vsel %vm523, %v2820, %v2821
        %v2823 = vrot.slane %v2672, 1
        %v2824 = vrot.slane %v2681, 1
        %v2825 = vsel %vm523, %v2823, %v2824
        %v2826 = vrot.slane %v2674, 1
        %v2827 = vrot.slane %v2682, 1
        %v2828 = vsel %vm523, %v2826, %v2827
        %v2830 = vshll.u32 %v2685, 16
        %v2832 = vrot.slane %v2830, 1
        %v2833 = vshrl.u32 %v2685, 16
        %v2835 = vor.u32 %v2833, %v2832
        %v2837 = vshll.u32 %v2687, 16
        %v2839 = vrot.slane %v2837, 1
        %v2840 = vshrl.u32 %v2687, 16
        %v2842 = vor.u32 %v2840, %v2839
        %v2844 = vshll.u32 %v2689, 16
        %v2846 = vrot.slane %v2844, 1
        %v2847 = vshrl.u32 %v2689, 16
        %v2849 = vor.u32 %v2847, %v2846
        %v2851 = vshll.u32 %v2691, 16
        %v2853 = vrot.slane %v2851, 1
        %v2854 = vshrl.u32 %v2691, 16
        %v2856 = vor.u32 %v2854, %v2853
        %v2858 = vshll.u32 %v2693, 16
        %v2860 = vrot.slane %v2858, 1
        %v2861 = vshrl.u32 %v2693, 16
        %v2863 = vor.u32 %v2861, %v2860
        %v2865 = vshll.u32 %v2695, 16
        %v2867 = vrot.slane %v2865, 1
        %v2868 = vshrl.u32 %v2695, 16
        %v2870 = vor.u32 %v2868, %v2867
        %v2872 = vshll.u32 %v2697, 16
        %v2874 = vrot.slane %v2872, 1
        %v2875 = vshrl.u32 %v2697, 16
        %v2877 = vor.u32 %v2875, %v2874
        %v2879 = vshll.u32 %v2699, 16
        %v2881 = vrot.slane %v2879, 1
        %v2882 = vshrl.u32 %v2699, 16
        %v2884 = vor.u32 %v2882, %v2881
        %v2901 = vrot.slane %v2685, 1
        %v2902 = vrot.slane %v2700, 1
        %v2903 = vsel %vm523, %v2901, %v2902
        %v2904 = vrot.slane %v2687, 1
        %v2905 = vrot.slane %v2701, 1
        %v2906 = vsel %vm523, %v2904, %v2905
        %v2907 = vrot.slane %v2689, 1
        %v2908 = vrot.slane %v2702, 1
        %v2909 = vsel %vm523, %v2907, %v2908
        %v2910 = vrot.slane %v2691, 1
        %v2911 = vrot.slane %v2703, 1
        %v2912 = vsel %vm523, %v2910, %v2911
        %v2913 = vrot.slane %v2693, 1
        %v2914 = vrot.slane %v2704, 1
        %v2915 = vsel %vm523, %v2913, %v2914
        %v2916 = vrot.slane %v2695, 1
        %v2917 = vrot.slane %v2705, 1
        %v2918 = vsel %vm523, %v2916, %v2917
        %v2919 = vrot.slane %v2697, 1
        %v2920 = vrot.slane %v2706, 1
        %v2921 = vsel %vm523, %v2919, %v2920
        %v2922 = vrot.slane %v2699, 1
        %v2923 = vrot.slane %v2707, 1
        %v2924 = vsel %vm523, %v2922, %v2923
        %v2926 = vshll.u32 %v2710, 16
        %v2928 = vrot.slane %v2926, 1
        %v2929 = vshrl.u32 %v2710, 16
        %v2931 = vor.u32 %v2929, %v2928
        %v2933 = vshll.u32 %v2712, 16
        %v2935 = vrot.slane %v2933, 1
        %v2936 = vshrl.u32 %v2712, 16
        %v2938 = vor.u32 %v2936, %v2935
        %v2940 = vshll.u32 %v2714, 16
        %v2942 = vrot.slane %v2940, 1
        %v2943 = vshrl.u32 %v2714, 16
        %v2945 = vor.u32 %v2943, %v2942
        %v2947 = vshll.u32 %v2716, 16
        %v2949 = vrot.slane %v2947, 1
        %v2950 = vshrl.u32 %v2716, 16
        %v2952 = vor.u32 %v2950, %v2949
        %v2954 = vshll.u32 %v2718, 16
        %v2956 = vrot.slane %v2954, 1
        %v2957 = vshrl.u32 %v2718, 16
        %v2959 = vor.u32 %v2957, %v2956
        %v2961 = vshll.u32 %v2720, 16
        %v2963 = vrot.slane %v2961, 1
        %v2964 = vshrl.u32 %v2720, 16
        %v2966 = vor.u32 %v2964, %v2963
        %v2968 = vshll.u32 %v2722, 16
        %v2970 = vrot.slane %v2968, 1
        %v2971 = vshrl.u32 %v2722, 16
        %v2973 = vor.u32 %v2971, %v2970
        %v2975 = vshll.u32 %v2724, 16
        %v2977 = vrot.slane %v2975, 1
        %v2978 = vshrl.u32 %v2724, 16
        %v2980 = vor.u32 %v2978, %v2977
        %v2997 = vrot.slane %v2710, 1
        %v2998 = vrot.slane %v2725, 1
        %v2999 = vsel %vm523, %v2997, %v2998
        %v3000 = vrot.slane %v2712, 1
        %v3001 = vrot.slane %v2726, 1
        %v3002 = vsel %vm523, %v3000, %v3001
        %v3003 = vrot.slane %v2714, 1
        %v3004 = vrot.slane %v2727, 1
        %v3005 = vsel %vm523, %v3003, %v3004
        %v3006 = vrot.slane %v2716, 1
        %v3007 = vrot.slane %v2728, 1
        %v3008 = vsel %vm523, %v3006, %v3007
        %v3009 = vrot.slane %v2718, 1
        %v3010 = vrot.slane %v2729, 1
        %v3011 = vsel %vm523, %v3009, %v3010
        %v3012 = vrot.slane %v2720, 1
        %v3013 = vrot.slane %v2730, 1
        %v3014 = vsel %vm523, %v3012, %v3013
        %v3015 = vrot.slane %v2722, 1
        %v3016 = vrot.slane %v2731, 1
        %v3017 = vsel %vm523, %v3015, %v3016
        %v3018 = vrot.slane %v2724, 1
        %v3019 = vrot.slane %v2732, 1
        %v3020 = vsel %vm523, %v3018, %v3019
        %v3022 = vshrl.u32 %v2659, 16
        %v3024 = vrot.slane %v3022, 7
        %v3025 = vrot.slane %v2737, 7
        %v3026 = vor.u32 %v3025, %v2734
        %v3027 = vsel %vm740, %v3024, %v3026
        %v3029 = vshrl.u32 %v2736, 16
        %v3031 = vrot.slane %v3029, 7
        %v3033 = vshrl.u32 %v2739, 16
        %v3035 = vrot.slane %v3033, 7
        %v3036 = vshll.u32 %v2739, 16
        %v3038 = vor.u32 %v3035, %v3036
        %v3039 = vsel %vm740, %v3031, %v3038
        %v3041 = vshrl.u32 %v2805, 16
        %v3043 = vrot.slane %v3041, 7
        %v3045 = vshrl.u32 %v2807, 16
        %v3047 = vrot.slane %v3045, 7
        %v3048 = vshll.u32 %v2807, 16
        %v3050 = vor.u32 %v3047, %v3048
        %v3051 = vsel %vm740, %v3043, %v3050
        %v3053 = vshrl.u32 %v2684, 16
        %v3055 = vrot.slane %v3053, 7
        %v3056 = vrot.slane %v2833, 7
        %v3057 = vor.u32 %v3056, %v2830
        %v3058 = vsel %vm740, %v3055, %v3057
        %v3060 = vshrl.u32 %v2832, 16
        %v3062 = vrot.slane %v3060, 7
        %v3064 = vshrl.u32 %v2835, 16
        %v3066 = vrot.slane %v3064, 7
        %v3067 = vshll.u32 %v2835, 16
        %v3069 = vor.u32 %v3066, %v3067
        %v3070 = vsel %vm740, %v3062, %v3069
        %v3072 = vshrl.u32 %v2901, 16
        %v3074 = vrot.slane %v3072, 7
        %v3076 = vshrl.u32 %v2903, 16
        %v3078 = vrot.slane %v3076, 7
        %v3079 = vshll.u32 %v2903, 16
        %v3081 = vor.u32 %v3078, %v3079
        %v3082 = vsel %vm740, %v3074, %v3081
        %v3084 = vshrl.u32 %v2709, 16
        %v3086 = vrot.slane %v3084, 7
        %v3087 = vrot.slane %v2929, 7
        %v3088 = vor.u32 %v3087, %v2926
        %v3089 = vsel %vm740, %v3086, %v3088
        %v3091 = vshrl.u32 %v2928, 16
        %v3093 = vrot.slane %v3091, 7
        %v3095 = vshrl.u32 %v2931, 16
        %v3097 = vrot.slane %v3095, 7
        %v3098 = vshll.u32 %v2931, 16
        %v3100 = vor.u32 %v3097, %v3098
        %v3101 = vsel %vm740, %v3093, %v3100
        %v3103 = vshrl.u32 %v2997, 16
        %v3105 = vrot.slane %v3103, 7
        %v3107 = vshrl.u32 %v2999, 16
        %v3109 = vrot.slane %v3107, 7
        %v3110 = vshll.u32 %v2999, 16
        %v3112 = vor.u32 %v3109, %v3110
        %v3113 = vsel %vm740, %v3105, %v3112
        %v3115 = vshrl.u32 %v2661, 16
        %v3117 = vrot.slane %v3115, 7
        %v3118 = vrot.slane %v2744, 7
        %v3119 = vor.u32 %v3118, %v2741
        %v3120 = vsel %vm740, %v3117, %v3119
        %v3122 = vshrl.u32 %v2743, 16
        %v3124 = vrot.slane %v3122, 7
        %v3126 = vshrl.u32 %v2746, 16
        %v3128 = vrot.slane %v3126, 7
        %v3129 = vshll.u32 %v2746, 16
        %v3131 = vor.u32 %v3128, %v3129
        %v3132 = vsel %vm740, %v3124, %v3131
        %v3134 = vshrl.u32 %v2808, 16
        %v3136 = vrot.slane %v3134, 7
        %v3138 = vshrl.u32 %v2810, 16
        %v3140 = vrot.slane %v3138, 7
        %v3141 = vshll.u32 %v2810, 16
        %v3143 = vor.u32 %v3140, %v3141
        %v3144 = vsel %vm740, %v3136, %v3143
        %v3146 = vshrl.u32 %v2686, 16
        %v3148 = vrot.slane %v3146, 7
        %v3149 = vrot.slane %v2840, 7
        %v3150 = vor.u32 %v3149, %v2837
        %v3151 = vsel %vm740, %v3148, %v3150
        %v3153 = vshrl.u32 %v2839, 16
        %v3155 = vrot.slane %v3153, 7
        %v3157 = vshrl.u32 %v2842, 16
        %v3159 = vrot.slane %v3157, 7
        %v3160 = vshll.u32 %v2842, 16
        %v3162 = vor.u32 %v3159, %v3160
        %v3163 = vsel %vm740, %v3155, %v3162
        %v3165 = vshrl.u32 %v2904, 16
        %v3167 = vrot.slane %v3165, 7
        %v3169 = vshrl.u32 %v2906, 16
        %v3171 = vrot.slane %v3169, 7
        %v3172 = vshll.u32 %v2906, 16
        %v3174 = vor.u32 %v3171, %v3172
        %v3175 = vsel %vm740, %v3167, %v3174
        %v3177 = vshrl.u32 %v2711, 16
        %v3179 = vrot.slane %v3177, 7
        %v3180 = vrot.slane %v2936, 7
        %v3181 = vor.u32 %v3180, %v2933
        %v3182 = vsel %vm740, %v3179, %v3181
        %v3184 = vshrl.u32 %v2935, 16
        %v3186 = vrot.slane %v3184, 7
        %v3188 = vshrl.u32 %v2938, 16
        %v3190 = vrot.slane %v3188, 7
        %v3191 = vshll.u32 %v2938, 16
        %v3193 = vor.u32 %v3190, %v3191
        %v3194 = vsel %vm740, %v3186, %v3193
        %v3196 = vshrl.u32 %v3000, 16
        %v3198 = vrot.slane %v3196, 7
        %v3200 = vshrl.u32 %v3002, 16
        %v3202 = vrot.slane %v3200, 7
        %v3203 = vshll.u32 %v3002, 16
        %v3205 = vor.u32 %v3202, %v3203
        %v3206 = vsel %vm740, %v3198, %v3205
        %v3208 = vshrl.u32 %v2663, 16
        %v3210 = vrot.slane %v3208, 7
        %v3211 = vrot.slane %v2751, 7
        %v3212 = vor.u32 %v3211, %v2748
        %v3213 = vsel %vm740, %v3210, %v3212
        %v3215 = vshrl.u32 %v2750, 16
        %v3217 = vrot.slane %v3215, 7
        %v3219 = vshrl.u32 %v2753, 16
        %v3221 = vrot.slane %v3219, 7
        %v3222 = vshll.u32 %v2753, 16
        %v3224 = vor.u32 %v3221, %v3222
        %v3225 = vsel %vm740, %v3217, %v3224
        %v3227 = vshrl.u32 %v2811, 16
        %v3229 = vrot.slane %v3227, 7
        %v3231 = vshrl.u32 %v2813, 16
        %v3233 = vrot.slane %v3231, 7
        %v3234 = vshll.u32 %v2813, 16
        %v3236 = vor.u32 %v3233, %v3234
        %v3237 = vsel %vm740, %v3229, %v3236
        %v3239 = vshrl.u32 %v2688, 16
        %v3241 = vrot.slane %v3239, 7
        %v3242 = vrot.slane %v2847, 7
        %v3243 = vor.u32 %v3242, %v2844
        %v3244 = vsel %vm740, %v3241, %v3243
        %v3246 = vshrl.u32 %v2846, 16
        %v3248 = vrot.slane %v3246, 7
        %v3250 = vshrl.u32 %v2849, 16
        %v3252 = vrot.slane %v3250, 7
        %v3253 = vshll.u32 %v2849, 16
        %v3255 = vor.u32 %v3252, %v3253
        %v3256 = vsel %vm740, %v3248, %v3255
        %v3258 = vshrl.u32 %v2907, 16
        %v3260 = vrot.slane %v3258, 7
        %v3262 = vshrl.u32 %v2909, 16
        %v3264 = vrot.slane %v3262, 7
        %v3265 = vshll.u32 %v2909, 16
        %v3267 = vor.u32 %v3264, %v3265
        %v3268 = vsel %vm740, %v3260, %v3267
        %v3270 = vshrl.u32 %v2713, 16
        %v3272 = vrot.slane %v3270, 7
        %v3273 = vrot.slane %v2943, 7
        %v3274 = vor.u32 %v3273, %v2940
        %v3275 = vsel %vm740, %v3272, %v3274
        %v3277 = vshrl.u32 %v2942, 16
        %v3279 = vrot.slane %v3277, 7
        %v3281 = vshrl.u32 %v2945, 16
        %v3283 = vrot.slane %v3281, 7
        %v3284 = vshll.u32 %v2945, 16
        %v3286 = vor.u32 %v3283, %v3284
        %v3287 = vsel %vm740, %v3279, %v3286
        %v3289 = vshrl.u32 %v3003, 16
        %v3291 = vrot.slane %v3289, 7
        %v3293 = vshrl.u32 %v3005, 16
        %v3295 = vrot.slane %v3293, 7
        %v3296 = vshll.u32 %v3005, 16
        %v3298 = vor.u32 %v3295, %v3296
        %v3299 = vsel %vm740, %v3291, %v3298
        %v3301 = vshrl.u32 %v2665, 16
        %v3303 = vrot.slane %v3301, 7
        %v3304 = vrot.slane %v2758, 7
        %v3305 = vor.u32 %v3304, %v2755
        %v3306 = vsel %vm740, %v3303, %v3305
        %v3308 = vshrl.u32 %v2757, 16
        %v3310 = vrot.slane %v3308, 7
        %v3312 = vshrl.u32 %v2760, 16
        %v3314 = vrot.slane %v3312, 7
        %v3315 = vshll.u32 %v2760, 16
        %v3317 = vor.u32 %v3314, %v3315
        %v3318 = vsel %vm740, %v3310, %v3317
        %v3320 = vshrl.u32 %v2814, 16
        %v3322 = vrot.slane %v3320, 7
        %v3324 = vshrl.u32 %v2816, 16
        %v3326 = vrot.slane %v3324, 7
        %v3327 = vshll.u32 %v2816, 16
        %v3329 = vor.u32 %v3326, %v3327
        %v3330 = vsel %vm740, %v3322, %v3329
        %v3332 = vshrl.u32 %v2690, 16
        %v3334 = vrot.slane %v3332, 7
        %v3335 = vrot.slane %v2854, 7
        %v3336 = vor.u32 %v3335, %v2851
        %v3337 = vsel %vm740, %v3334, %v3336
        %v3339 = vshrl.u32 %v2853, 16
        %v3341 = vrot.slane %v3339, 7
        %v3343 = vshrl.u32 %v2856, 16
        %v3345 = vrot.slane %v3343, 7
        %v3346 = vshll.u32 %v2856, 16
        %v3348 = vor.u32 %v3345, %v3346
        %v3349 = vsel %vm740, %v3341, %v3348
        %v3351 = vshrl.u32 %v2910, 16
        %v3353 = vrot.slane %v3351, 7
        %v3355 = vshrl.u32 %v2912, 16
        %v3357 = vrot.slane %v3355, 7
        %v3358 = vshll.u32 %v2912, 16
        %v3360 = vor.u32 %v3357, %v3358
        %v3361 = vsel %vm740, %v3353, %v3360
        %v3363 = vshrl.u32 %v2715, 16
        %v3365 = vrot.slane %v3363, 7
        %v3366 = vrot.slane %v2950, 7
        %v3367 = vor.u32 %v3366, %v2947
        %v3368 = vsel %vm740, %v3365, %v3367
        %v3370 = vshrl.u32 %v2949, 16
        %v3372 = vrot.slane %v3370, 7
        %v3374 = vshrl.u32 %v2952, 16
        %v3376 = vrot.slane %v3374, 7
        %v3377 = vshll.u32 %v2952, 16
        %v3379 = vor.u32 %v3376, %v3377
        %v3380 = vsel %vm740, %v3372, %v3379
        %v3382 = vshrl.u32 %v3006, 16
        %v3384 = vrot.slane %v3382, 7
        %v3386 = vshrl.u32 %v3008, 16
        %v3388 = vrot.slane %v3386, 7
        %v3389 = vshll.u32 %v3008, 16
        %v3391 = vor.u32 %v3388, %v3389
        %v3392 = vsel %vm740, %v3384, %v3391
        %v3394 = vshrl.u32 %v2667, 16
        %v3396 = vrot.slane %v3394, 7
        %v3397 = vrot.slane %v2765, 7
        %v3398 = vor.u32 %v3397, %v2762
        %v3399 = vsel %vm740, %v3396, %v3398
        %v3401 = vshrl.u32 %v2764, 16
        %v3403 = vrot.slane %v3401, 7
        %v3405 = vshrl.u32 %v2767, 16
        %v3407 = vrot.slane %v3405, 7
        %v3408 = vshll.u32 %v2767, 16
        %v3410 = vor.u32 %v3407, %v3408
        %v3411 = vsel %vm740, %v3403, %v3410
        %v3413 = vshrl.u32 %v2817, 16
        %v3415 = vrot.slane %v3413, 7
        %v3417 = vshrl.u32 %v2819, 16
        %v3419 = vrot.slane %v3417, 7
        %v3420 = vshll.u32 %v2819, 16
        %v3422 = vor.u32 %v3419, %v3420
        %v3423 = vsel %vm740, %v3415, %v3422
        %v3425 = vshrl.u32 %v2692, 16
        %v3427 = vrot.slane %v3425, 7
        %v3428 = vrot.slane %v2861, 7
        %v3429 = vor.u32 %v3428, %v2858
        %v3430 = vsel %vm740, %v3427, %v3429
        %v3432 = vshrl.u32 %v2860, 16
        %v3434 = vrot.slane %v3432, 7
        %v3436 = vshrl.u32 %v2863, 16
        %v3438 = vrot.slane %v3436, 7
        %v3439 = vshll.u32 %v2863, 16
        %v3441 = vor.u32 %v3438, %v3439
        %v3442 = vsel %vm740, %v3434, %v3441
        %v3444 = vshrl.u32 %v2913, 16
        %v3446 = vrot.slane %v3444, 7
        %v3448 = vshrl.u32 %v2915, 16
        %v3450 = vrot.slane %v3448, 7
        %v3451 = vshll.u32 %v2915, 16
        %v3453 = vor.u32 %v3450, %v3451
        %v3454 = vsel %vm740, %v3446, %v3453
        %v3456 = vshrl.u32 %v2717, 16
        %v3458 = vrot.slane %v3456, 7
        %v3459 = vrot.slane %v2957, 7
        %v3460 = vor.u32 %v3459, %v2954
        %v3461 = vsel %vm740, %v3458, %v3460
        %v3463 = vshrl.u32 %v2956, 16
        %v3465 = vrot.slane %v3463, 7
        %v3467 = vshrl.u32 %v2959, 16
        %v3469 = vrot.slane %v3467, 7
        %v3470 = vshll.u32 %v2959, 16
        %v3472 = vor.u32 %v3469, %v3470
        %v3473 = vsel %vm740, %v3465, %v3472
        %v3475 = vshrl.u32 %v3009, 16
        %v3477 = vrot.slane %v3475, 7
        %v3479 = vshrl.u32 %v3011, 16
        %v3481 = vrot.slane %v3479, 7
        %v3482 = vshll.u32 %v3011, 16
        %v3484 = vor.u32 %v3481, %v3482
        %v3485 = vsel %vm740, %v3477, %v3484
        %v3487 = vshrl.u32 %v2669, 16
        %v3489 = vrot.slane %v3487, 7
        %v3490 = vrot.slane %v2772, 7
        %v3491 = vor.u32 %v3490, %v2769
        %v3492 = vsel %vm740, %v3489, %v3491
        %v3494 = vshrl.u32 %v2771, 16
        %v3496 = vrot.slane %v3494, 7
        %v3498 = vshrl.u32 %v2774, 16
        %v3500 = vrot.slane %v3498, 7
        %v3501 = vshll.u32 %v2774, 16
        %v3503 = vor.u32 %v3500, %v3501
        %v3504 = vsel %vm740, %v3496, %v3503
        %v3506 = vshrl.u32 %v2820, 16
        %v3508 = vrot.slane %v3506, 7
        %v3510 = vshrl.u32 %v2822, 16
        %v3512 = vrot.slane %v3510, 7
        %v3513 = vshll.u32 %v2822, 16
        %v3515 = vor.u32 %v3512, %v3513
        %v3516 = vsel %vm740, %v3508, %v3515
        %v3518 = vshrl.u32 %v2694, 16
        %v3520 = vrot.slane %v3518, 7
        %v3521 = vrot.slane %v2868, 7
        %v3522 = vor.u32 %v3521, %v2865
        %v3523 = vsel %vm740, %v3520, %v3522
        %v3525 = vshrl.u32 %v2867, 16
        %v3527 = vrot.slane %v3525, 7
        %v3529 = vshrl.u32 %v2870, 16
        %v3531 = vrot.slane %v3529, 7
        %v3532 = vshll.u32 %v2870, 16
        %v3534 = vor.u32 %v3531, %v3532
        %v3535 = vsel %vm740, %v3527, %v3534
        %v3537 = vshrl.u32 %v2916, 16
        %v3539 = vrot.slane %v3537, 7
        %v3541 = vshrl.u32 %v2918, 16
        %v3543 = vrot.slane %v3541, 7
        %v3544 = vshll.u32 %v2918, 16
        %v3546 = vor.u32 %v3543, %v3544
        %v3547 = vsel %vm740, %v3539, %v3546
        %v3549 = vshrl.u32 %v2719, 16
        %v3551 = vrot.slane %v3549, 7
        %v3552 = vrot.slane %v2964, 7
        %v3553 = vor.u32 %v3552, %v2961
        %v3554 = vsel %vm740, %v3551, %v3553
        %v3556 = vshrl.u32 %v2963, 16
        %v3558 = vrot.slane %v3556, 7
        %v3560 = vshrl.u32 %v2966, 16
        %v3562 = vrot.slane %v3560, 7
        %v3563 = vshll.u32 %v2966, 16
        %v3565 = vor.u32 %v3562, %v3563
        %v3566 = vsel %vm740, %v3558, %v3565
        %v3568 = vshrl.u32 %v3012, 16
        %v3570 = vrot.slane %v3568, 7
        %v3572 = vshrl.u32 %v3014, 16
        %v3574 = vrot.slane %v3572, 7
        %v3575 = vshll.u32 %v3014, 16
        %v3577 = vor.u32 %v3574, %v3575
        %v3578 = vsel %vm740, %v3570, %v3577
        %v3580 = vshrl.u32 %v2671, 16
        %v3582 = vrot.slane %v3580, 7
        %v3583 = vrot.slane %v2779, 7
        %v3584 = vor.u32 %v3583, %v2776
        %v3585 = vsel %vm740, %v3582, %v3584
        %v3587 = vshrl.u32 %v2778, 16
        %v3589 = vrot.slane %v3587, 7
        %v3591 = vshrl.u32 %v2781, 16
        %v3593 = vrot.slane %v3591, 7
        %v3594 = vshll.u32 %v2781, 16
        %v3596 = vor.u32 %v3593, %v3594
        %v3597 = vsel %vm740, %v3589, %v3596
        %v3599 = vshrl.u32 %v2823, 16
        %v3601 = vrot.slane %v3599, 7
        %v3603 = vshrl.u32 %v2825, 16
        %v3605 = vrot.slane %v3603, 7
        %v3606 = vshll.u32 %v2825, 16
        %v3608 = vor.u32 %v3605, %v3606
        %v3609 = vsel %vm740, %v3601, %v3608
        %v3611 = vshrl.u32 %v2696, 16
        %v3613 = vrot.slane %v3611, 7
        %v3614 = vrot.slane %v2875, 7
        %v3615 = vor.u32 %v3614, %v2872
        %v3616 = vsel %vm740, %v3613, %v3615
        %v3618 = vshrl.u32 %v2874, 16
        %v3620 = vrot.slane %v3618, 7
        %v3622 = vshrl.u32 %v2877, 16
        %v3624 = vrot.slane %v3622, 7
        %v3625 = vshll.u32 %v2877, 16
        %v3627 = vor.u32 %v3624, %v3625
        %v3628 = vsel %vm740, %v3620, %v3627
        %v3630 = vshrl.u32 %v2919, 16
        %v3632 = vrot.slane %v3630, 7
        %v3634 = vshrl.u32 %v2921, 16
        %v3636 = vrot.slane %v3634, 7
        %v3637 = vshll.u32 %v2921, 16
        %v3639 = vor.u32 %v3636, %v3637
        %v3640 = vsel %vm740, %v3632, %v3639
        %v3642 = vshrl.u32 %v2721, 16
        %v3644 = vrot.slane %v3642, 7
        %v3645 = vrot.slane %v2971, 7
        %v3646 = vor.u32 %v3645, %v2968
        %v3647 = vsel %vm740, %v3644, %v3646
        %v3649 = vshrl.u32 %v2970, 16
        %v3651 = vrot.slane %v3649, 7
        %v3653 = vshrl.u32 %v2973, 16
        %v3655 = vrot.slane %v3653, 7
        %v3656 = vshll.u32 %v2973, 16
        %v3658 = vor.u32 %v3655, %v3656
        %v3659 = vsel %vm740, %v3651, %v3658
        %v3661 = vshrl.u32 %v3015, 16
        %v3663 = vrot.slane %v3661, 7
        %v3665 = vshrl.u32 %v3017, 16
        %v3667 = vrot.slane %v3665, 7
        %v3668 = vshll.u32 %v3017, 16
        %v3670 = vor.u32 %v3667, %v3668
        %v3671 = vsel %vm740, %v3663, %v3670
        %v3673 = vshrl.u32 %v2673, 16
        %v3675 = vrot.slane %v3673, 7
        %v3676 = vrot.slane %v2786, 7
        %v3677 = vor.u32 %v3676, %v2783
        %v3678 = vsel %vm740, %v3675, %v3677
        %v3680 = vshrl.u32 %v2785, 16
        %v3682 = vrot.slane %v3680, 7
        %v3684 = vshrl.u32 %v2788, 16
        %v3686 = vrot.slane %v3684, 7
        %v3687 = vshll.u32 %v2788, 16
        %v3689 = vor.u32 %v3686, %v3687
        %v3690 = vsel %vm740, %v3682, %v3689
        %v3692 = vshrl.u32 %v2826, 16
        %v3694 = vrot.slane %v3692, 7
        %v3696 = vshrl.u32 %v2828, 16
        %v3698 = vrot.slane %v3696, 7
        %v3699 = vshll.u32 %v2828, 16
        %v3701 = vor.u32 %v3698, %v3699
        %v3702 = vsel %vm740, %v3694, %v3701
        %v3704 = vshrl.u32 %v2698, 16
        %v3706 = vrot.slane %v3704, 7
        %v3707 = vrot.slane %v2882, 7
        %v3708 = vor.u32 %v3707, %v2879
        %v3709 = vsel %vm740, %v3706, %v3708
        %v3711 = vshrl.u32 %v2881, 16
        %v3713 = vrot.slane %v3711, 7
        %v3715 = vshrl.u32 %v2884, 16
        %v3717 = vrot.slane %v3715, 7
        %v3718 = vshll.u32 %v2884, 16
        %v3720 = vor.u32 %v3717, %v3718
        %v3721 = vsel %vm740, %v3713, %v3720
        %v3723 = vshrl.u32 %v2922, 16
        %v3725 = vrot.slane %v3723, 7
        %v3727 = vshrl.u32 %v2924, 16
        %v3729 = vrot.slane %v3727, 7
        %v3730 = vshll.u32 %v2924, 16
        %v3732 = vor.u32 %v3729, %v3730
        %v3733 = vsel %vm740, %v3725, %v3732
        %v3735 = vshrl.u32 %v2723, 16
        %v3737 = vrot.slane %v3735, 7
        %v3738 = vrot.slane %v2978, 7
        %v3739 = vor.u32 %v3738, %v2975
        %v3740 = vsel %vm740, %v3737, %v3739
        %v3742 = vshrl.u32 %v2977, 16
        %v3744 = vrot.slane %v3742, 7
        %v3746 = vshrl.u32 %v2980, 16
        %v3748 = vrot.slane %v3746, 7
        %v3749 = vshll.u32 %v2980, 16
        %v3751 = vor.u32 %v3748, %v3749
        %v3752 = vsel %vm740, %v3744, %v3751
        %v3754 = vshrl.u32 %v3018, 16
        %v3756 = vrot.slane %v3754, 7
        %v3758 = vshrl.u32 %v3020, 16
        %v3760 = vrot.slane %v3758, 7
        %v3761 = vshll.u32 %v3020, 16
        %v3763 = vor.u32 %v3760, %v3761
        %v3764 = vsel %vm740, %v3756, %v3763
        %v3837 = vld [vmem:[#allocation7] sm:$0xf]
        %v3838 = vld [vmem:[#allocation7 + $0x4] sm:$0xf]
        %v3839 = vld [vmem:[#allocation7 + $0x8] sm:$0xf]
        %v3840 = vld [vmem:[#allocation7 + $0xc] sm:$0xf]
        %v3841 = vld [vmem:[#allocation7 + $0x10] sm:$0xf]
        %v3842 = vld [vmem:[#allocation7 + $0x14] sm:$0xf]
        %v3843 = vld [vmem:[#allocation7 + $0x18] sm:$0xf]
        %v3844 = vld [vmem:[#allocation7 + $0x1c] sm:$0xf]
        %v3845 = vld [vmem:[#allocation7 + $0x20] sm:$0xf]
        %v3846 = vld [vmem:[#allocation7 + $0x24] sm:$0xf]
        %v3847 = vld [vmem:[#allocation7 + $0x28] sm:$0xf]
        %v3848 = vld [vmem:[#allocation7 + $0x2c] sm:$0xf]
        %v3849 = vld [vmem:[#allocation7 + $0x30] sm:$0xf]
        %v3850 = vld [vmem:[#allocation7 + $0x34] sm:$0xf]
        %v3851 = vld [vmem:[#allocation7 + $0x38] sm:$0xf]
        %v3852 = vld [vmem:[#allocation7 + $0x3c] sm:$0xf]
        %v3853 = vld [vmem:[#allocation7 + $0x40] sm:$0xf]
        %v3854 = vld [vmem:[#allocation7 + $0x44] sm:$0xf]
        %v3855 = vld [vmem:[#allocation7 + $0x48] sm:$0xf]
        %v3856 = vld [vmem:[#allocation7 + $0x4c] sm:$0xf]
        %v3857 = vld [vmem:[#allocation7 + $0x50] sm:$0xf]
        %v3858 = vld [vmem:[#allocation7 + $0x54] sm:$0xf]
        %v3859 = vld [vmem:[#allocation7 + $0x58] sm:$0xf]
        %v3860 = vld [vmem:[#allocation7 + $0x5c] sm:$0xf]
        %v3861 = vld [vmem:[#allocation7 + $0x60] sm:$0xf]
        %v3862 = vld [vmem:[#allocation7 + $0x64] sm:$0xf]
        %v3863 = vld [vmem:[#allocation7 + $0x68] sm:$0xf]
        %v3864 = vld [vmem:[#allocation7 + $0x6c] sm:$0xf]
        %v3865 = vld [vmem:[#allocation7 + $0x70] sm:$0xf]
        %v3866 = vld [vmem:[#allocation7 + $0x74] sm:$0xf]
        %v3867 = vld [vmem:[#allocation7 + $0x78] sm:$0xf]
        %v3868 = vld [vmem:[#allocation7 + $0x7c] sm:$0xf]
        %v3869 = vld [vmem:[#allocation7 + $0x80] sm:$0xf]
        %v3870 = vld [vmem:[#allocation7 + $0x84] sm:$0xf]
        %v3871 = vld [vmem:[#allocation7 + $0x88] sm:$0xf]
        %v3872 = vld [vmem:[#allocation7 + $0x8c] sm:$0xf]
        %v3873 = vld [vmem:[#allocation7 + $0x90] sm:$0xf]
        %v3874 = vld [vmem:[#allocation7 + $0x94] sm:$0xf]
        %v3875 = vld [vmem:[#allocation7 + $0x98] sm:$0xf]
        %v3876 = vld [vmem:[#allocation7 + $0x9c] sm:$0xf]
        %v3877 = vld [vmem:[#allocation7 + $0xa0] sm:$0xf]
        %v3878 = vld [vmem:[#allocation7 + $0xa4] sm:$0xf]
        %v3879 = vld [vmem:[#allocation7 + $0xa8] sm:$0xf]
        %v3880 = vld [vmem:[#allocation7 + $0xac] sm:$0xf]
        %v3881 = vld [vmem:[#allocation7 + $0xb0] sm:$0xf]
        %v3882 = vld [vmem:[#allocation7 + $0xb4] sm:$0xf]
        %v3883 = vld [vmem:[#allocation7 + $0xb8] sm:$0xf]
        %v3884 = vld [vmem:[#allocation7 + $0xbc] sm:$0xf]
        %v3885 = vld [vmem:[#allocation7 + $0xc0] sm:$0xf]
        %v3886 = vld [vmem:[#allocation7 + $0xc4] sm:$0xf]
        %v3887 = vld [vmem:[#allocation7 + $0xc8] sm:$0xf]
        %v3888 = vld [vmem:[#allocation7 + $0xcc] sm:$0xf]
        %v3889 = vld [vmem:[#allocation7 + $0xd0] sm:$0xf]
        %v3890 = vld [vmem:[#allocation7 + $0xd4] sm:$0xf]
        %v3891 = vld [vmem:[#allocation7 + $0xd8] sm:$0xf]
        %v3892 = vld [vmem:[#allocation7 + $0xdc] sm:$0xf]
        %v3893 = vld [vmem:[#allocation7 + $0xe0] sm:$0xf]
        %v3894 = vld [vmem:[#allocation7 + $0xe4] sm:$0xf]
        %v3895 = vld [vmem:[#allocation7 + $0xe8] sm:$0xf]
        %v3896 = vld [vmem:[#allocation7 + $0xec] sm:$0xf]
        %v3897 = vld [vmem:[#allocation7 + $0xf0] sm:$0xf]
        %v3898 = vld [vmem:[#allocation7 + $0xf4] sm:$0xf]
        %v3899 = vld [vmem:[#allocation7 + $0xf8] sm:$0xf]
        %v3900 = vld [vmem:[#allocation7 + $0xfc] sm:$0xf]
        %v3901 = vld [vmem:[#allocation7 + $0x100] sm:$0xf]
        %v3902 = vld [vmem:[#allocation7 + $0x104] sm:$0xf]
        %v3903 = vld [vmem:[#allocation7 + $0x108] sm:$0xf]
        %v3904 = vld [vmem:[#allocation7 + $0x10c] sm:$0xf]
        %v3905 = vld [vmem:[#allocation7 + $0x110] sm:$0xf]
        %v3906 = vld [vmem:[#allocation7 + $0x114] sm:$0xf]
        %v3907 = vld [vmem:[#allocation7 + $0x118] sm:$0xf]
        %v3908 = vld [vmem:[#allocation7 + $0x11c] sm:$0xf]
        %v3909 = vld [vmem:[#allocation7 + $0x120] sm:$0xf]
        %v3910 = vld [vmem:[#allocation7 + $0x124] sm:$0xf]
        %v3911 = vld [vmem:[#allocation7 + $0x128] sm:$0xf]
        %v3912 = vld [vmem:[#allocation7 + $0x12c] sm:$0xf]
        %v3913 = vld [vmem:[#allocation7 + $0x130] sm:$0xf]
        %v3914 = vld [vmem:[#allocation7 + $0x134] sm:$0xf]
        %v3915 = vld [vmem:[#allocation7 + $0x138] sm:$0xf]
        %v3916 = vld [vmem:[#allocation7 + $0x13c] sm:$0xf]
        %v3917 = vld [vmem:[#allocation7 + $0x140] sm:$0xf]
        %v3918 = vld [vmem:[#allocation7 + $0x144] sm:$0xf]
        %v3919 = vld [vmem:[#allocation7 + $0x148] sm:$0xf]
        %v3920 = vld [vmem:[#allocation7 + $0x14c] sm:$0xf]
        %v3921 = vld [vmem:[#allocation7 + $0x150] sm:$0xf]
        %v3922 = vld [vmem:[#allocation7 + $0x154] sm:$0xf]
        %v3923 = vld [vmem:[#allocation7 + $0x158] sm:$0xf]
        %v3924 = vld [vmem:[#allocation7 + $0x15c] sm:$0xf]
        %v3925 = vld [vmem:[#allocation7 + $0x160] sm:$0xf]
        %v3926 = vld [vmem:[#allocation7 + $0x164] sm:$0xf]
        %v3927 = vld [vmem:[#allocation7 + $0x168] sm:$0xf]
        %v3928 = vld [vmem:[#allocation7 + $0x16c] sm:$0xf]
        %v3929 = vld [vmem:[#allocation7 + $0x170] sm:$0xf]
        %v3930 = vld [vmem:[#allocation7 + $0x174] sm:$0xf]
        %v3931 = vld [vmem:[#allocation7 + $0x178] sm:$0xf]
        %v3932 = vld [vmem:[#allocation7 + $0x17c] sm:$0xf]
        %v3933 = vld [vmem:[#allocation7 + $0x180] sm:$0xf]
        %v3934 = vld [vmem:[#allocation7 + $0x184] sm:$0xf]
        %v3935 = vld [vmem:[#allocation7 + $0x188] sm:$0xf]
        %v3936 = vld [vmem:[#allocation7 + $0x18c] sm:$0xf]
        %v3937 = vld [vmem:[#allocation7 + $0x190] sm:$0xf]
        %v3938 = vld [vmem:[#allocation7 + $0x194] sm:$0xf]
        %v3939 = vld [vmem:[#allocation7 + $0x198] sm:$0xf]
        %v3940 = vld [vmem:[#allocation7 + $0x19c] sm:$0xf]
        %v3941 = vld [vmem:[#allocation7 + $0x1a0] sm:$0xf]
        %v3942 = vld [vmem:[#allocation7 + $0x1a4] sm:$0xf]
        %v3943 = vld [vmem:[#allocation7 + $0x1a8] sm:$0xf]
        %v3944 = vld [vmem:[#allocation7 + $0x1ac] sm:$0xf]
        %v3945 = vld [vmem:[#allocation7 + $0x1b0] sm:$0xf]
        %v3946 = vld [vmem:[#allocation7 + $0x1b4] sm:$0xf]
        %v3947 = vld [vmem:[#allocation7 + $0x1b8] sm:$0xf]
        %v3948 = vld [vmem:[#allocation7 + $0x1bc] sm:$0xf]
        %v3949 = vld [vmem:[#allocation7 + $0x1c0] sm:$0xf]
        %v3950 = vld [vmem:[#allocation7 + $0x1c4] sm:$0xf]
        %v3951 = vld [vmem:[#allocation7 + $0x1c8] sm:$0xf]
        %v3952 = vld [vmem:[#allocation7 + $0x1cc] sm:$0xf]
        %v3953 = vld [vmem:[#allocation7 + $0x1d0] sm:$0xf]
        %v3954 = vld [vmem:[#allocation7 + $0x1d4] sm:$0xf]
        %v3955 = vld [vmem:[#allocation7 + $0x1d8] sm:$0xf]
        %v3956 = vld [vmem:[#allocation7 + $0x1dc] sm:$0xf]
        %v3957 = vld [vmem:[#allocation7 + $0x1e0] sm:$0xf]
        %v3958 = vld [vmem:[#allocation7 + $0x1e4] sm:$0xf]
        %v3959 = vld [vmem:[#allocation7 + $0x1e8] sm:$0xf]
        %v3960 = vld [vmem:[#allocation7 + $0x1ec] sm:$0xf]
        %v3961 = vld [vmem:[#allocation7 + $0x1f0] sm:$0xf]
        %v3962 = vld [vmem:[#allocation7 + $0x1f4] sm:$0xf]
        %v3963 = vld [vmem:[#allocation7 + $0x1f8] sm:$0xf]
        %v3964 = vld [vmem:[#allocation7 + $0x1fc] sm:$0xf]
        %v3965 = vld [vmem:[#allocation7 + $0x200] sm:$0xf]
        %v3966 = vld [vmem:[#allocation7 + $0x204] sm:$0xf]
        %v3967 = vld [vmem:[#allocation7 + $0x208] sm:$0xf]
        %v3968 = vld [vmem:[#allocation7 + $0x20c] sm:$0xf]
        %v3969 = vld [vmem:[#allocation7 + $0x210] sm:$0xf]
        %v3970 = vld [vmem:[#allocation7 + $0x214] sm:$0xf]
        %v3971 = vld [vmem:[#allocation7 + $0x218] sm:$0xf]
        %v3972 = vld [vmem:[#allocation7 + $0x21c] sm:$0xf]
        %v3973 = vld [vmem:[#allocation7 + $0x220] sm:$0xf]
        %v3974 = vld [vmem:[#allocation7 + $0x224] sm:$0xf]
        %v3975 = vld [vmem:[#allocation7 + $0x228] sm:$0xf]
        %v3976 = vld [vmem:[#allocation7 + $0x22c] sm:$0xf]
        %v3977 = vld [vmem:[#allocation7 + $0x230] sm:$0xf]
        %v3978 = vld [vmem:[#allocation7 + $0x234] sm:$0xf]
        %v3979 = vld [vmem:[#allocation7 + $0x238] sm:$0xf]
        %v3980 = vld [vmem:[#allocation7 + $0x23c] sm:$0xf]
        %v3981 = vld [vmem:[%s2] sm:$0x1]
        %v3983 = vlaneseq
        %v3984 = vshrl.u32 %v3983, 7
        %v3985 = vsub.s32 0, %v3984
        %v3986 = vrot.slane %v3981, %v3985
        %v4132 = vunpack.c.l.b16 %v3837
        %v4133 = vunpack.c.l.b16 %v3838
        %v4134 = vunpack.c.l.b16 %v3839
        %v4135 = vunpack.c.l.b16 %v3840
        %v4136 = vunpack.c.l.b16 %v3841
        %v4137 = vunpack.c.l.b16 %v3842
        %v4138 = vunpack.c.l.b16 %v3843
        %v4139 = vunpack.c.l.b16 %v3844
        %v4140 = vunpack.c.l.b16 %v3845
        %v4141 = vunpack.c.l.b16 %v3846
        %v4142 = vunpack.c.l.b16 %v3847
        %v4143 = vunpack.c.l.b16 %v3848
        %v4144 = vunpack.c.l.b16 %v3849
        %v4145 = vunpack.c.l.b16 %v3850
        %v4146 = vunpack.c.l.b16 %v3851
        %v4147 = vunpack.c.l.b16 %v3852
        %v4148 = vunpack.c.l.b16 %v3853
        %v4149 = vunpack.c.l.b16 %v3854
        %v4150 = vunpack.c.l.b16 %v3855
        %v4151 = vunpack.c.l.b16 %v3856
        %v4152 = vunpack.c.l.b16 %v3857
        %v4153 = vunpack.c.l.b16 %v3858
        %v4154 = vunpack.c.l.b16 %v3859
        %v4155 = vunpack.c.l.b16 %v3860
        %v4156 = vunpack.c.l.b16 %v3861
        %v4157 = vunpack.c.l.b16 %v3862
        %v4158 = vunpack.c.l.b16 %v3863
        %v4159 = vunpack.c.l.b16 %v3864
        %v4160 = vunpack.c.l.b16 %v3865
        %v4161 = vunpack.c.l.b16 %v3866
        %v4162 = vunpack.c.l.b16 %v3867
        %v4163 = vunpack.c.l.b16 %v3868
        %v4164 = vunpack.c.l.b16 %v3869
        %v4165 = vunpack.c.l.b16 %v3870
        %v4166 = vunpack.c.l.b16 %v3871
        %v4167 = vunpack.c.l.b16 %v3872
        %v4168 = vunpack.c.l.b16 %v3873
        %v4169 = vunpack.c.l.b16 %v3874
        %v4170 = vunpack.c.l.b16 %v3875
        %v4171 = vunpack.c.l.b16 %v3876
        %v4172 = vunpack.c.l.b16 %v3877
        %v4173 = vunpack.c.l.b16 %v3878
        %v4174 = vunpack.c.l.b16 %v3879
        %v4175 = vunpack.c.l.b16 %v3880
        %v4176 = vunpack.c.l.b16 %v3881
        %v4177 = vunpack.c.l.b16 %v3882
        %v4178 = vunpack.c.l.b16 %v3883
        %v4179 = vunpack.c.l.b16 %v3884
        %v4180 = vunpack.c.l.b16 %v3885
        %v4181 = vunpack.c.l.b16 %v3886
        %v4182 = vunpack.c.l.b16 %v3887
        %v4183 = vunpack.c.l.b16 %v3888
        %v4184 = vunpack.c.l.b16 %v3889
        %v4185 = vunpack.c.l.b16 %v3890
        %v4186 = vunpack.c.l.b16 %v3891
        %v4187 = vunpack.c.l.b16 %v3892
        %v4188 = vunpack.c.l.b16 %v3893
        %v4189 = vunpack.c.l.b16 %v3894
        %v4190 = vunpack.c.l.b16 %v3895
        %v4191 = vunpack.c.l.b16 %v3896
        %v4192 = vunpack.c.l.b16 %v3897
        %v4193 = vunpack.c.l.b16 %v3898
        %v4194 = vunpack.c.l.b16 %v3899
        %v4195 = vunpack.c.l.b16 %v3900
        %v4196 = vunpack.c.l.b16 %v3901
        %v4197 = vunpack.c.l.b16 %v3902
        %v4198 = vunpack.c.l.b16 %v3903
        %v4199 = vunpack.c.l.b16 %v3904
        %v4200 = vunpack.c.l.b16 %v3905
        %v4201 = vunpack.c.l.b16 %v3906
        %v4202 = vunpack.c.l.b16 %v3907
        %v4203 = vunpack.c.l.b16 %v3908
        %v4204 = vunpack.c.l.b16 %v3909
        %v4205 = vunpack.c.l.b16 %v3910
        %v4206 = vunpack.c.l.b16 %v3911
        %v4207 = vunpack.c.l.b16 %v3912
        %v4208 = vunpack.c.l.b16 %v3913
        %v4209 = vunpack.c.l.b16 %v3914
        %v4210 = vunpack.c.l.b16 %v3915
        %v4211 = vunpack.c.l.b16 %v3916
        %v4212 = vunpack.c.l.b16 %v3917
        %v4213 = vunpack.c.l.b16 %v3918
        %v4214 = vunpack.c.l.b16 %v3919
        %v4215 = vunpack.c.l.b16 %v3920
        %v4216 = vunpack.c.l.b16 %v3921
        %v4217 = vunpack.c.l.b16 %v3922
        %v4218 = vunpack.c.l.b16 %v3923
        %v4219 = vunpack.c.l.b16 %v3924
        %v4220 = vunpack.c.l.b16 %v3925
        %v4221 = vunpack.c.l.b16 %v3926
        %v4222 = vunpack.c.l.b16 %v3927
        %v4223 = vunpack.c.l.b16 %v3928
        %v4224 = vunpack.c.l.b16 %v3929
        %v4225 = vunpack.c.l.b16 %v3930
        %v4226 = vunpack.c.l.b16 %v3931
        %v4227 = vunpack.c.l.b16 %v3932
        %v4228 = vunpack.c.l.b16 %v3933
        %v4229 = vunpack.c.l.b16 %v3934
        %v4230 = vunpack.c.l.b16 %v3935
        %v4231 = vunpack.c.l.b16 %v3936
        %v4232 = vunpack.c.l.b16 %v3937
        %v4233 = vunpack.c.l.b16 %v3938
        %v4234 = vunpack.c.l.b16 %v3939
        %v4235 = vunpack.c.l.b16 %v3940
        %v4236 = vunpack.c.l.b16 %v3941
        %v4237 = vunpack.c.l.b16 %v3942
        %v4238 = vunpack.c.l.b16 %v3943
        %v4239 = vunpack.c.l.b16 %v3944
        %v4240 = vunpack.c.l.b16 %v3945
        %v4241 = vunpack.c.l.b16 %v3946
        %v4242 = vunpack.c.l.b16 %v3947
        %v4243 = vunpack.c.l.b16 %v3948
        %v4244 = vunpack.c.l.b16 %v3949
        %v4245 = vunpack.c.l.b16 %v3950
        %v4246 = vunpack.c.l.b16 %v3951
        %v4247 = vunpack.c.l.b16 %v3952
        %v4248 = vunpack.c.l.b16 %v3953
        %v4249 = vunpack.c.l.b16 %v3954
        %v4250 = vunpack.c.l.b16 %v3955
        %v4251 = vunpack.c.l.b16 %v3956
        %v4252 = vunpack.c.l.b16 %v3957
        %v4253 = vunpack.c.l.b16 %v3958
        %v4254 = vunpack.c.l.b16 %v3959
        %v4255 = vunpack.c.l.b16 %v3960
        %v4256 = vunpack.c.l.b16 %v3961
        %v4257 = vunpack.c.l.b16 %v3962
        %v4258 = vunpack.c.l.b16 %v3963
        %v4259 = vunpack.c.l.b16 %v3964
        %v4260 = vunpack.c.l.b16 %v3965
        %v4261 = vunpack.c.l.b16 %v3966
        %v4262 = vunpack.c.l.b16 %v3967
        %v4263 = vunpack.c.l.b16 %v3968
        %v4264 = vunpack.c.l.b16 %v3969
        %v4265 = vunpack.c.l.b16 %v3970
        %v4266 = vunpack.c.l.b16 %v3971
        %v4267 = vunpack.c.l.b16 %v3972
        %v4268 = vunpack.c.l.b16 %v3973
        %v4269 = vunpack.c.l.b16 %v3974
        %v4270 = vunpack.c.l.b16 %v3975
        %v4271 = vunpack.c.l.b16 %v3976
        %v4272 = vunpack.c.l.b16 %v3977
        %v4273 = vunpack.c.l.b16 %v3978
        %v4274 = vunpack.c.l.b16 %v3979
        %v4275 = vunpack.c.l.b16 %v3980
        %v4276 = vpack.c.b16 %v4133, %v4132
        %v4277 = vpack.c.b16 %v4135, %v4134
        %v4278 = vpack.c.b16 %v4137, %v4136
        %v4279 = vpack.c.b16 %v4139, %v4138
        %v4280 = vpack.c.b16 %v4141, %v4140
        %v4281 = vpack.c.b16 %v4143, %v4142
        %v4282 = vpack.c.b16 %v4145, %v4144
        %v4283 = vpack.c.b16 %v4147, %v4146
        %v4284 = vpack.c.b16 %v4149, %v4148
        %v4285 = vpack.c.b16 %v4151, %v4150
        %v4286 = vpack.c.b16 %v4153, %v4152
        %v4287 = vpack.c.b16 %v4155, %v4154
        %v4288 = vpack.c.b16 %v4157, %v4156
        %v4289 = vpack.c.b16 %v4159, %v4158
        %v4290 = vpack.c.b16 %v4161, %v4160
        %v4291 = vpack.c.b16 %v4163, %v4162
        %v4292 = vpack.c.b16 %v4165, %v4164
        %v4293 = vpack.c.b16 %v4167, %v4166
        %v4294 = vpack.c.b16 %v4169, %v4168
        %v4295 = vpack.c.b16 %v4171, %v4170
        %v4296 = vpack.c.b16 %v4173, %v4172
        %v4297 = vpack.c.b16 %v4175, %v4174
        %v4298 = vpack.c.b16 %v4177, %v4176
        %v4299 = vpack.c.b16 %v4179, %v4178
        %v4300 = vpack.c.b16 %v4181, %v4180
        %v4301 = vpack.c.b16 %v4183, %v4182
        %v4302 = vpack.c.b16 %v4185, %v4184
        %v4303 = vpack.c.b16 %v4187, %v4186
        %v4304 = vpack.c.b16 %v4189, %v4188
        %v4305 = vpack.c.b16 %v4191, %v4190
        %v4306 = vpack.c.b16 %v4193, %v4192
        %v4307 = vpack.c.b16 %v4195, %v4194
        %v4308 = vpack.c.b16 %v4197, %v4196
        %v4309 = vpack.c.b16 %v4199, %v4198
        %v4310 = vpack.c.b16 %v4201, %v4200
        %v4311 = vpack.c.b16 %v4203, %v4202
        %v4312 = vpack.c.b16 %v4205, %v4204
        %v4313 = vpack.c.b16 %v4207, %v4206
        %v4314 = vpack.c.b16 %v4209, %v4208
        %v4315 = vpack.c.b16 %v4211, %v4210
        %v4316 = vpack.c.b16 %v4213, %v4212
        %v4317 = vpack.c.b16 %v4215, %v4214
        %v4318 = vpack.c.b16 %v4217, %v4216
        %v4319 = vpack.c.b16 %v4219, %v4218
        %v4320 = vpack.c.b16 %v4221, %v4220
        %v4321 = vpack.c.b16 %v4223, %v4222
        %v4322 = vpack.c.b16 %v4225, %v4224
        %v4323 = vpack.c.b16 %v4227, %v4226
        %v4324 = vpack.c.b16 %v4229, %v4228
        %v4325 = vpack.c.b16 %v4231, %v4230
        %v4326 = vpack.c.b16 %v4233, %v4232
        %v4327 = vpack.c.b16 %v4235, %v4234
        %v4328 = vpack.c.b16 %v4237, %v4236
        %v4329 = vpack.c.b16 %v4239, %v4238
        %v4330 = vpack.c.b16 %v4241, %v4240
        %v4331 = vpack.c.b16 %v4243, %v4242
        %v4332 = vpack.c.b16 %v4245, %v4244
        %v4333 = vpack.c.b16 %v4247, %v4246
        %v4334 = vpack.c.b16 %v4249, %v4248
        %v4335 = vpack.c.b16 %v4251, %v4250
        %v4336 = vpack.c.b16 %v4253, %v4252
        %v4337 = vpack.c.b16 %v4255, %v4254
        %v4338 = vpack.c.b16 %v4257, %v4256
        %v4339 = vpack.c.b16 %v4259, %v4258
        %v4340 = vpack.c.b16 %v4261, %v4260
        %v4341 = vpack.c.b16 %v4263, %v4262
        %v4342 = vpack.c.b16 %v4265, %v4264
        %v4343 = vpack.c.b16 %v4267, %v4266
        %v4344 = vpack.c.b16 %v4269, %v4268
        %v4345 = vpack.c.b16 %v4271, %v4270
        %v4346 = vpack.c.b16 %v4273, %v4272
        %v4347 = vpack.c.b16 %v4275, %v4274
        %4420 = vmatprep.subr.bf16.mxu0 0
        %4421 = vmatpush1.bf16.msra.mxu0 %v4276
        %4422 = vmatprep.subr.bf16.mxu0 0
        %4423 = vmatpush1.bf16.msra.mxu0 %v4277
        %4424 = vmatprep.subr.bf16.mxu0 0
        %4425 = vmatpush1.bf16.msra.mxu0 %v4278
        %4426 = vmatprep.subr.bf16.mxu0 0
        %4427 = vmatpush1.bf16.msra.mxu0 %v4279
        %4428 = vmatprep.subr.bf16.mxu0 0
        %4429 = vmatpush1.bf16.msra.mxu0 %v4280
        %4430 = vmatprep.subr.bf16.mxu0 0
        %4431 = vmatpush1.bf16.msra.mxu0 %v4281
        %4432 = vmatprep.subr.bf16.mxu0 0
        %4433 = vmatpush1.bf16.msra.mxu0 %v4282
        %4434 = vmatprep.subr.bf16.mxu0 0
        %4435 = vmatpush1.bf16.msra.mxu0 %v4283
        %4436 = vmatprep.subr.bf16.mxu0 0
        %4437 = vmatpush1.bf16.msra.mxu0 %v4284
        %4438 = vmatprep.subr.bf16.mxu0 0
        %4439 = vmatpush1.bf16.msra.mxu0 %v4285
        %4440 = vmatprep.subr.bf16.mxu0 0
        %4441 = vmatpush1.bf16.msra.mxu0 %v4286
        %4442 = vmatprep.subr.bf16.mxu0 0
        %4443 = vmatpush1.bf16.msra.mxu0 %v4287
        %4444 = vmatprep.subr.bf16.mxu0 0
        %4445 = vmatpush1.bf16.msra.mxu0 %v4288
        %4446 = vmatprep.subr.bf16.mxu0 0
        %4447 = vmatpush1.bf16.msra.mxu0 %v4289
        %4448 = vmatprep.subr.bf16.mxu0 0
        %4449 = vmatpush1.bf16.msra.mxu0 %v4290
        %4450 = vmatprep.subr.bf16.mxu0 0
        %4451 = vmatpush1.bf16.msra.mxu0 %v4291
        %4452 = vmatprep.mubr.bf16.mxu0 %v3039
        %4453 = vmatmul.mubr.bf16.gmra.mrb[0].mxu0 %v3027
        %v4454 = vpop.f32.mrb[0].mxu0
        %v4455 = vadd.f32 %v3986, %v4454
        %v4456 = vpop.f32.mrb[0].mxu0
        %v4457 = vpop.f32.mrb[0].mxu0
        %v4458 = vadd.f32 %v3986, %v4457
        %v4459 = vpop.f32.mrb[0].mxu0
        %4460 = vmatprep.mubr.bf16.mxu0 %v3132
        %4461 = vmatmul.mubr.bf16.gmra.mrb[0].mxu0 %v3120
        %v4462 = vpop.f32.mrb[0].mxu0
        %v4463 = vadd.f32 %v3986, %v4462
        %v4464 = vpop.f32.mrb[0].mxu0
        %v4465 = vpop.f32.mrb[0].mxu0
        %v4466 = vadd.f32 %v3986, %v4465
        %v4467 = vpop.f32.mrb[0].mxu0
        %4468 = vmatprep.mubr.bf16.mxu0 %v3225
        %4469 = vmatmul.mubr.bf16.gmra.mrb[0].mxu0 %v3213
        %v4470 = vpop.f32.mrb[0].mxu0
        %v4471 = vadd.f32 %v3986, %v4470
        %v4472 = vpop.f32.mrb[0].mxu0
        %v4473 = vpop.f32.mrb[0].mxu0
        %v4474 = vadd.f32 %v3986, %v4473
        %v4475 = vpop.f32.mrb[0].mxu0
        %4476 = vmatprep.mubr.bf16.mxu0 %v3318
        %4477 = vmatmul.mubr.bf16.gmra.mrb[0].mxu0 %v3306
        %v4478 = vpop.f32.mrb[0].mxu0
        %v4479 = vadd.f32 %v3986, %v4478
        %v4480 = vpop.f32.mrb[0].mxu0
        %v4481 = vpop.f32.mrb[0].mxu0
        %v4482 = vadd.f32 %v3986, %v4481
        %v4483 = vpop.f32.mrb[0].mxu0
        %4484 = vmatprep.mubr.bf16.mxu0 %v3411
        %4485 = vmatmul.mubr.bf16.gmra.mrb[0].mxu0 %v3399
        %v4486 = vpop.f32.mrb[0].mxu0
        %v4487 = vadd.f32 %v3986, %v4486
        %v4488 = vpop.f32.mrb[0].mxu0
        %v4489 = vpop.f32.mrb[0].mxu0
        %v4490 = vadd.f32 %v3986, %v4489
        %v4491 = vpop.f32.mrb[0].mxu0
        %4492 = vmatprep.mubr.bf16.mxu0 %v3504
        %4493 = vmatmul.mubr.bf16.gmra.mrb[0].mxu0 %v3492
        %v4494 = vpop.f32.mrb[0].mxu0
        %v4495 = vadd.f32 %v3986, %v4494
        %v4496 = vpop.f32.mrb[0].mxu0
        %v4497 = vpop.f32.mrb[0].mxu0
        %v4498 = vadd.f32 %v3986, %v4497
        %v4499 = vpop.f32.mrb[0].mxu0
        %4500 = vmatprep.mubr.bf16.mxu0 %v3597
        %4501 = vmatmul.mubr.bf16.gmra.mrb[0].mxu0 %v3585
        %v4502 = vpop.f32.mrb[0].mxu0
        %v4503 = vadd.f32 %v3986, %v4502
        %v4504 = vpop.f32.mrb[0].mxu0
        %v4505 = vpop.f32.mrb[0].mxu0
        %v4506 = vadd.f32 %v3986, %v4505
        %v4507 = vpop.f32.mrb[0].mxu0
        %4508 = vmatprep.mubr.bf16.mxu0 %v3690
        %4509 = vmatmul.mubr.bf16.gmra.mrb[0].mxu0 %v3678
        %v4510 = vpop.f32.mrb[0].mxu0
        %v4511 = vadd.f32 %v3986, %v4510
        %v4512 = vpop.f32.mrb[0].mxu0
        %v4513 = vpop.f32.mrb[0].mxu0
        %v4514 = vadd.f32 %v3986, %v4513
        %v4515 = vpop.f32.mrb[0].mxu0
        %4516 = vdwg.mxu0
        %4517 = vmatprep.subr.bf16.mxu0 0
        %4518 = vmatpush1.bf16.msra.mxu0 %v4292
        %4519 = vmatprep.subr.bf16.mxu0 0
        %4520 = vmatpush1.bf16.msra.mxu0 %v4293
        %4521 = vmatprep.subr.bf16.mxu0 0
        %4522 = vmatpush1.bf16.msra.mxu0 %v4294
        %4523 = vmatprep.subr.bf16.mxu0 0
        %4524 = vmatpush1.bf16.msra.mxu0 %v4295
        %4525 = vmatprep.subr.bf16.mxu0 0
        %4526 = vmatpush1.bf16.msra.mxu0 %v4296
        %4527 = vmatprep.subr.bf16.mxu0 0
        %4528 = vmatpush1.bf16.msra.mxu0 %v4297
        %4529 = vmatprep.subr.bf16.mxu0 0
        %4530 = vmatpush1.bf16.msra.mxu0 %v4298
        %4531 = vmatprep.subr.bf16.mxu0 0
        %4532 = vmatpush1.bf16.msra.mxu0 %v4299
        %4533 = vmatprep.subr.bf16.mxu0 0
        %4534 = vmatpush1.bf16.msra.mxu0 %v4300
        %4535 = vmatprep.subr.bf16.mxu0 0
        %4536 = vmatpush1.bf16.msra.mxu0 %v4301
        %4537 = vmatprep.subr.bf16.mxu0 0
        %4538 = vmatpush1.bf16.msra.mxu0 %v4302
        %4539 = vmatprep.subr.bf16.mxu0 0
        %4540 = vmatpush1.bf16.msra.mxu0 %v4303
        %4541 = vmatprep.subr.bf16.mxu0 0
        %4542 = vmatpush1.bf16.msra.mxu0 %v4304
        %4543 = vmatprep.subr.bf16.mxu0 0
        %4544 = vmatpush1.bf16.msra.mxu0 %v4305
        %4545 = vmatprep.subr.bf16.mxu0 0
        %4546 = vmatpush1.bf16.msra.mxu0 %v4306
        %4547 = vmatprep.subr.bf16.mxu0 0
        %4548 = vmatpush1.bf16.msra.mxu0 %v4307
        %4549 = vmatprep.mubr.bf16.mxu0 %v3058
        %4550 = vmatmul.mubr.bf16.gmra.mrb[0].mxu0 %v3051
        %v4551 = vpop.f32.mrb[0].mxu0
        %v4552 = vadd.f32 %v4455, %v4551
        %v4553 = vpop.f32.mrb[0].mxu0
        %v4554 = vpop.f32.mrb[0].mxu0
        %v4555 = vadd.f32 %v4458, %v4554
        %v4556 = vpop.f32.mrb[0].mxu0
        %4557 = vmatprep.mubr.bf16.mxu0 %v3151
        %4558 = vmatmul.mubr.bf16.gmra.mrb[0].mxu0 %v3144
        %v4559 = vpop.f32.mrb[0].mxu0
        %v4560 = vadd.f32 %v4463, %v4559
        %v4561 = vpop.f32.mrb[0].mxu0
        %v4562 = vpop.f32.mrb[0].mxu0
        %v4563 = vadd.f32 %v4466, %v4562
        %v4564 = vpop.f32.mrb[0].mxu0
        %4565 = vmatprep.mubr.bf16.mxu0 %v3244
        %4566 = vmatmul.mubr.bf16.gmra.mrb[0].mxu0 %v3237
        %v4567 = vpop.f32.mrb[0].mxu0
        %v4568 = vadd.f32 %v4471, %v4567
        %v4569 = vpop.f32.mrb[0].mxu0
        %v4570 = vpop.f32.mrb[0].mxu0
        %v4571 = vadd.f32 %v4474, %v4570
        %v4572 = vpop.f32.mrb[0].mxu0
        %4573 = vmatprep.mubr.bf16.mxu0 %v3337
        %4574 = vmatmul.mubr.bf16.gmra.mrb[0].mxu0 %v3330
        %v4575 = vpop.f32.mrb[0].mxu0
        %v4576 = vadd.f32 %v4479, %v4575
        %v4577 = vpop.f32.mrb[0].mxu0
        %v4578 = vpop.f32.mrb[0].mxu0
        %v4579 = vadd.f32 %v4482, %v4578
        %v4580 = vpop.f32.mrb[0].mxu0
        %4581 = vmatprep.mubr.bf16.mxu0 %v3430
        %4582 = vmatmul.mubr.bf16.gmra.mrb[0].mxu0 %v3423
        %v4583 = vpop.f32.mrb[0].mxu0
        %v4584 = vadd.f32 %v4487, %v4583
        %v4585 = vpop.f32.mrb[0].mxu0
        %v4586 = vpop.f32.mrb[0].mxu0
        %v4587 = vadd.f32 %v4490, %v4586
        %v4588 = vpop.f32.mrb[0].mxu0
        %4589 = vmatprep.mubr.bf16.mxu0 %v3523
        %4590 = vmatmul.mubr.bf16.gmra.mrb[0].mxu0 %v3516
        %v4591 = vpop.f32.mrb[0].mxu0
        %v4592 = vadd.f32 %v4495, %v4591
        %v4593 = vpop.f32.mrb[0].mxu0
        %v4594 = vpop.f32.mrb[0].mxu0
        %v4595 = vadd.f32 %v4498, %v4594
        %v4596 = vpop.f32.mrb[0].mxu0
        %4597 = vmatprep.mubr.bf16.mxu0 %v3616
        %4598 = vmatmul.mubr.bf16.gmra.mrb[0].mxu0 %v3609
        %v4599 = vpop.f32.mrb[0].mxu0
        %v4600 = vadd.f32 %v4503, %v4599
        %v4601 = vpop.f32.mrb[0].mxu0
        %v4602 = vpop.f32.mrb[0].mxu0
        %v4603 = vadd.f32 %v4506, %v4602
        %v4604 = vpop.f32.mrb[0].mxu0
        %4605 = vmatprep.mubr.bf16.mxu0 %v3709
        %4606 = vmatmul.mubr.bf16.gmra.mrb[0].mxu0 %v3702
        %v4607 = vpop.f32.mrb[0].mxu0
        %v4608 = vadd.f32 %v4511, %v4607
        %v4609 = vpop.f32.mrb[0].mxu0
        %v4610 = vpop.f32.mrb[0].mxu0
        %v4611 = vadd.f32 %v4514, %v4610
        %v4612 = vpop.f32.mrb[0].mxu0
        %4613 = vdwg.mxu0
        %4614 = vmatprep.subr.bf16.mxu0 0
        %4615 = vmatpush1.bf16.msra.mxu0 %v4308
        %4616 = vmatprep.subr.bf16.mxu0 0
        %4617 = vmatpush1.bf16.msra.mxu0 %v4309
        %4618 = vmatprep.subr.bf16.mxu0 0
        %4619 = vmatpush1.bf16.msra.mxu0 %v4310
        %4620 = vmatprep.subr.bf16.mxu0 0
        %4621 = vmatpush1.bf16.msra.mxu0 %v4311
        %4622 = vmatprep.subr.bf16.mxu0 0
        %4623 = vmatpush1.bf16.msra.mxu0 %v4312
        %4624 = vmatprep.subr.bf16.mxu0 0
        %4625 = vmatpush1.bf16.msra.mxu0 %v4313
        %4626 = vmatprep.subr.bf16.mxu0 0
        %4627 = vmatpush1.bf16.msra.mxu0 %v4314
        %4628 = vmatprep.subr.bf16.mxu0 0
        %4629 = vmatpush1.bf16.msra.mxu0 %v4315
        %4630 = vmatprep.subr.bf16.mxu0 0
        %4631 = vmatpush1.bf16.msra.mxu0 %v4316
        %4632 = vmatprep.subr.bf16.mxu0 0
        %4633 = vmatpush1.bf16.msra.mxu0 %v4317
        %4634 = vmatprep.subr.bf16.mxu0 0
        %4635 = vmatpush1.bf16.msra.mxu0 %v4318
        %4636 = vmatprep.subr.bf16.mxu0 0
        %4637 = vmatpush1.bf16.msra.mxu0 %v4319
        %4638 = vmatprep.subr.bf16.mxu0 0
        %4639 = vmatpush1.bf16.msra.mxu0 %v4320
        %4640 = vmatprep.subr.bf16.mxu0 0
        %4641 = vmatpush1.bf16.msra.mxu0 %v4321
        %4642 = vmatprep.subr.bf16.mxu0 0
        %4643 = vmatpush1.bf16.msra.mxu0 %v4322
        %4644 = vmatprep.subr.bf16.mxu0 0
        %4645 = vmatpush1.bf16.msra.mxu0 %v4323
        %4646 = vmatprep.mubr.bf16.mxu0 %v3082
        %4647 = vmatmul.mubr.bf16.gmra.mrb[0].mxu0 %v3070
        %v4648 = vpop.f32.mrb[0].mxu0
        %v4649 = vadd.f32 %v4552, %v4648
        %v4650 = vpop.f32.mrb[0].mxu0
        %v4651 = vpop.f32.mrb[0].mxu0
        %v4652 = vadd.f32 %v4555, %v4651
        %v4653 = vpop.f32.mrb[0].mxu0
        %4654 = vmatprep.mubr.bf16.mxu0 %v3175
        %4655 = vmatmul.mubr.bf16.gmra.mrb[0].mxu0 %v3163
        %v4656 = vpop.f32.mrb[0].mxu0
        %v4657 = vadd.f32 %v4560, %v4656
        %v4658 = vpop.f32.mrb[0].mxu0
        %v4659 = vpop.f32.mrb[0].mxu0
        %v4660 = vadd.f32 %v4563, %v4659
        %v4661 = vpop.f32.mrb[0].mxu0
        %4662 = vmatprep.mubr.bf16.mxu0 %v3268
        %4663 = vmatmul.mubr.bf16.gmra.mrb[0].mxu0 %v3256
        %v4664 = vpop.f32.mrb[0].mxu0
        %v4665 = vadd.f32 %v4568, %v4664
        %v4666 = vpop.f32.mrb[0].mxu0
        %v4667 = vpop.f32.mrb[0].mxu0
        %v4668 = vadd.f32 %v4571, %v4667
        %v4669 = vpop.f32.mrb[0].mxu0
        %4670 = vmatprep.mubr.bf16.mxu0 %v3361
        %4671 = vmatmul.mubr.bf16.gmra.mrb[0].mxu0 %v3349
        %v4672 = vpop.f32.mrb[0].mxu0
        %v4673 = vadd.f32 %v4576, %v4672
        %v4674 = vpop.f32.mrb[0].mxu0
        %v4675 = vpop.f32.mrb[0].mxu0
        %v4676 = vadd.f32 %v4579, %v4675
        %v4677 = vpop.f32.mrb[0].mxu0
        %4678 = vmatprep.mubr.bf16.mxu0 %v3454
        %4679 = vmatmul.mubr.bf16.gmra.mrb[0].mxu0 %v3442
        %v4680 = vpop.f32.mrb[0].mxu0
        %v4681 = vadd.f32 %v4584, %v4680
        %v4682 = vpop.f32.mrb[0].mxu0
        %v4683 = vpop.f32.mrb[0].mxu0
        %v4684 = vadd.f32 %v4587, %v4683
        %v4685 = vpop.f32.mrb[0].mxu0
        %4686 = vmatprep.mubr.bf16.mxu0 %v3547
        %4687 = vmatmul.mubr.bf16.gmra.mrb[0].mxu0 %v3535
        %v4688 = vpop.f32.mrb[0].mxu0
        %v4689 = vadd.f32 %v4592, %v4688
        %v4690 = vpop.f32.mrb[0].mxu0
        %v4691 = vpop.f32.mrb[0].mxu0
        %v4692 = vadd.f32 %v4595, %v4691
        %v4693 = vpop.f32.mrb[0].mxu0
        %4694 = vmatprep.mubr.bf16.mxu0 %v3640
        %4695 = vmatmul.mubr.bf16.gmra.mrb[0].mxu0 %v3628
        %v4696 = vpop.f32.mrb[0].mxu0
        %v4697 = vadd.f32 %v4600, %v4696
        %v4698 = vpop.f32.mrb[0].mxu0
        %v4699 = vpop.f32.mrb[0].mxu0
        %v4700 = vadd.f32 %v4603, %v4699
        %v4701 = vpop.f32.mrb[0].mxu0
        %4702 = vmatprep.mubr.bf16.mxu0 %v3733
        %4703 = vmatmul.mubr.bf16.gmra.mrb[0].mxu0 %v3721
        %v4704 = vpop.f32.mrb[0].mxu0
        %v4705 = vadd.f32 %v4608, %v4704
        %v4706 = vpop.f32.mrb[0].mxu0
        %v4707 = vpop.f32.mrb[0].mxu0
        %v4708 = vadd.f32 %v4611, %v4707
        %v4709 = vpop.f32.mrb[0].mxu0
        %4710 = vdwg.mxu0
        %4711 = vmatprep.subr.bf16.mxu0 0
        %4712 = vmatpush1.bf16.msra.mxu0 %v4324
        %4713 = vmatprep.subr.bf16.mxu0 0
        %4714 = vmatpush1.bf16.msra.mxu0 %v4325
        %4715 = vmatprep.subr.bf16.mxu0 0
        %4716 = vmatpush1.bf16.msra.mxu0 %v4326
        %4717 = vmatprep.subr.bf16.mxu0 0
        %4718 = vmatpush1.bf16.msra.mxu0 %v4327
        %4719 = vmatprep.subr.bf16.mxu0 0
        %4720 = vmatpush1.bf16.msra.mxu0 %v4328
        %4721 = vmatprep.subr.bf16.mxu0 0
        %4722 = vmatpush1.bf16.msra.mxu0 %v4329
        %4723 = vmatprep.subr.bf16.mxu0 0
        %4724 = vmatpush1.bf16.msra.mxu0 %v4330
        %4725 = vmatprep.subr.bf16.mxu0 0
        %4726 = vmatpush1.bf16.msra.mxu0 %v4331
        %4727 = vmatprep.subr.bf16.mxu0 0
        %4728 = vmatpush1.bf16.msra.mxu0 %v4332
        %4729 = vmatprep.subr.bf16.mxu0 0
        %4730 = vmatpush1.bf16.msra.mxu0 %v4333
        %4731 = vmatprep.subr.bf16.mxu0 0
        %4732 = vmatpush1.bf16.msra.mxu0 %v4334
        %4733 = vmatprep.subr.bf16.mxu0 0
        %4734 = vmatpush1.bf16.msra.mxu0 %v4335
        %4735 = vmatprep.subr.bf16.mxu0 0
        %4736 = vmatpush1.bf16.msra.mxu0 %v4336
        %4737 = vmatprep.subr.bf16.mxu0 0
        %4738 = vmatpush1.bf16.msra.mxu0 %v4337
        %4739 = vmatprep.subr.bf16.mxu0 0
        %4740 = vmatpush1.bf16.msra.mxu0 %v4338
        %4741 = vmatprep.subr.bf16.mxu0 0
        %4742 = vmatpush1.bf16.msra.mxu0 %v4339
        %4743 = vmatprep.mubr.bf16.mxu0 %v3101
        %4744 = vmatmul.mubr.bf16.gmra.mrb[0].mxu0 %v3089
        %v4745 = vpop.f32.mrb[0].mxu0
        %v4746 = vadd.f32 %v4649, %v4745
        %v4747 = vpop.f32.mrb[0].mxu0
        %v4748 = vpop.f32.mrb[0].mxu0
        %v4749 = vadd.f32 %v4652, %v4748
        %v4750 = vpop.f32.mrb[0].mxu0
        %4751 = vmatprep.mubr.bf16.mxu0 %v3194
        %4752 = vmatmul.mubr.bf16.gmra.mrb[0].mxu0 %v3182
        %v4753 = vpop.f32.mrb[0].mxu0
        %v4754 = vadd.f32 %v4657, %v4753
        %v4755 = vpop.f32.mrb[0].mxu0
        %v4756 = vpop.f32.mrb[0].mxu0
        %v4757 = vadd.f32 %v4660, %v4756
        %v4758 = vpop.f32.mrb[0].mxu0
        %4759 = vmatprep.mubr.bf16.mxu0 %v3287
        %4760 = vmatmul.mubr.bf16.gmra.mrb[0].mxu0 %v3275
        %v4761 = vpop.f32.mrb[0].mxu0
        %v4762 = vadd.f32 %v4665, %v4761
        %v4763 = vpop.f32.mrb[0].mxu0
        %v4764 = vpop.f32.mrb[0].mxu0
        %v4765 = vadd.f32 %v4668, %v4764
        %v4766 = vpop.f32.mrb[0].mxu0
        %4767 = vmatprep.mubr.bf16.mxu0 %v3380
        %4768 = vmatmul.mubr.bf16.gmra.mrb[0].mxu0 %v3368
        %v4769 = vpop.f32.mrb[0].mxu0
        %v4770 = vadd.f32 %v4673, %v4769
        %v4771 = vpop.f32.mrb[0].mxu0
        %v4772 = vpop.f32.mrb[0].mxu0
        %v4773 = vadd.f32 %v4676, %v4772
        %v4774 = vpop.f32.mrb[0].mxu0
        %4775 = vmatprep.mubr.bf16.mxu0 %v3473
        %4776 = vmatmul.mubr.bf16.gmra.mrb[0].mxu0 %v3461
        %v4777 = vpop.f32.mrb[0].mxu0
        %v4778 = vadd.f32 %v4681, %v4777
        %v4779 = vpop.f32.mrb[0].mxu0
        %v4780 = vpop.f32.mrb[0].mxu0
        %v4781 = vadd.f32 %v4684, %v4780
        %v4782 = vpop.f32.mrb[0].mxu0
        %4783 = vmatprep.mubr.bf16.mxu0 %v3566
        %4784 = vmatmul.mubr.bf16.gmra.mrb[0].mxu0 %v3554
        %v4785 = vpop.f32.mrb[0].mxu0
        %v4786 = vadd.f32 %v4689, %v4785
        %v4787 = vpop.f32.mrb[0].mxu0
        %v4788 = vpop.f32.mrb[0].mxu0
        %v4789 = vadd.f32 %v4692, %v4788
        %v4790 = vpop.f32.mrb[0].mxu0
        %4791 = vmatprep.mubr.bf16.mxu0 %v3659
        %4792 = vmatmul.mubr.bf16.gmra.mrb[0].mxu0 %v3647
        %v4793 = vpop.f32.mrb[0].mxu0
        %v4794 = vadd.f32 %v4697, %v4793
        %v4795 = vpop.f32.mrb[0].mxu0
        %v4796 = vpop.f32.mrb[0].mxu0
        %v4797 = vadd.f32 %v4700, %v4796
        %v4798 = vpop.f32.mrb[0].mxu0
        %4799 = vmatprep.mubr.bf16.mxu0 %v3752
        %4800 = vmatmul.mubr.bf16.gmra.mrb[0].mxu0 %v3740
        %v4801 = vpop.f32.mrb[0].mxu0
        %v4802 = vadd.f32 %v4705, %v4801
        %v4803 = vpop.f32.mrb[0].mxu0
        %v4804 = vpop.f32.mrb[0].mxu0
        %v4805 = vadd.f32 %v4708, %v4804
        %v4806 = vpop.f32.mrb[0].mxu0
        %4807 = vdwg.mxu0
        %4808 = vmatprep.subr.bf16.mxu0 0
        %4809 = vmatpush1.bf16.msra.mxu0 %v4340
        %4810 = vmatprep.subr.bf16.mxu0 0
        %4811 = vmatpush1.bf16.msra.mxu0 %v4341
        %4812 = vmatprep.subr.bf16.mxu0 0
        %4813 = vmatpush1.bf16.msra.mxu0 %v4342
        %4814 = vmatprep.subr.bf16.mxu0 0
        %4815 = vmatpush1.bf16.msra.mxu0 %v4343
        %4816 = vmatprep.subr.bf16.mxu0 0
        %4817 = vmatpush1.bf16.msra.mxu0 %v4344
        %4818 = vmatprep.subr.bf16.mxu0 0
        %4819 = vmatpush1.bf16.msra.mxu0 %v4345
        %4820 = vmatprep.subr.bf16.mxu0 0
        %4821 = vmatpush1.bf16.msra.mxu0 %v4346
        %4822 = vmatprep.subr.bf16.mxu0 0
        %4823 = vmatpush1.bf16.msra.mxu0 %v4347
        %4824 = vmatprep.subr.bf16.mxu0 0
        %4825 = vmatpush1.bf16.msra.mxu0 0
        %4826 = vmatprep.subr.bf16.mxu0 0
        %4827 = vmatpush1.bf16.msra.mxu0 0
        %4828 = vmatprep.subr.bf16.mxu0 0
        %4829 = vmatpush1.bf16.msra.mxu0 0
        %4830 = vmatprep.subr.bf16.mxu0 0
        %4831 = vmatpush1.bf16.msra.mxu0 0
        %4832 = vmatprep.subr.bf16.mxu0 0
        %4833 = vmatpush1.bf16.msra.mxu0 0
        %4834 = vmatprep.subr.bf16.mxu0 0
        %4835 = vmatpush1.bf16.msra.mxu0 0
        %4836 = vmatprep.subr.bf16.mxu0 0
        %4837 = vmatpush1.bf16.msra.mxu0 0
        %4838 = vmatprep.subr.bf16.mxu0 0
        %4839 = vmatpush1.bf16.msra.mxu0 0
        %4840 = vmatprep.mubr.bf16.mxu0 0
        %4841 = vmatmul.mubr.bf16.gmra.mrb[0].mxu0 %v3113
        %v4842 = vpop.f32.mrb[0].mxu0
        %v4843 = vadd.f32 %v4746, %v4842
        %v4844 = vpop.f32.mrb[0].mxu0
        %v4845 = vpop.f32.mrb[0].mxu0
        %v4846 = vadd.f32 %v4749, %v4845
        %v4847 = vpop.f32.mrb[0].mxu0
        %4848 = vmatprep.mubr.bf16.mxu0 0
        %4849 = vmatmul.mubr.bf16.gmra.mrb[0].mxu0 %v3206
        %v4850 = vpop.f32.mrb[0].mxu0
        %v4851 = vadd.f32 %v4754, %v4850
        %v4852 = vpop.f32.mrb[0].mxu0
        %v4853 = vpop.f32.mrb[0].mxu0
        %v4854 = vadd.f32 %v4757, %v4853
        %v4855 = vpop.f32.mrb[0].mxu0
        %4856 = vmatprep.mubr.bf16.mxu0 0
        %4857 = vmatmul.mubr.bf16.gmra.mrb[0].mxu0 %v3299
        %v4858 = vpop.f32.mrb[0].mxu0
        %v4859 = vadd.f32 %v4762, %v4858
        %v4860 = vpop.f32.mrb[0].mxu0
        %v4861 = vpop.f32.mrb[0].mxu0
        %v4862 = vadd.f32 %v4765, %v4861
        %v4863 = vpop.f32.mrb[0].mxu0
        %4864 = vmatprep.mubr.bf16.mxu0 0
        %4865 = vmatmul.mubr.bf16.gmra.mrb[0].mxu0 %v3392
        %v4866 = vpop.f32.mrb[0].mxu0
        %v4867 = vadd.f32 %v4770, %v4866
        %v4868 = vpop.f32.mrb[0].mxu0
        %v4869 = vpop.f32.mrb[0].mxu0
        %v4870 = vadd.f32 %v4773, %v4869
        %v4871 = vpop.f32.mrb[0].mxu0
        %4872 = vmatprep.mubr.bf16.mxu0 0
        %4873 = vmatmul.mubr.bf16.gmra.mrb[0].mxu0 %v3485
        %v4874 = vpop.f32.mrb[0].mxu0
        %v4875 = vadd.f32 %v4778, %v4874
        %v4876 = vpop.f32.mrb[0].mxu0
        %v4877 = vpop.f32.mrb[0].mxu0
        %v4878 = vadd.f32 %v4781, %v4877
        %v4879 = vpop.f32.mrb[0].mxu0
        %4880 = vmatprep.mubr.bf16.mxu0 0
        %4881 = vmatmul.mubr.bf16.gmra.mrb[0].mxu0 %v3578
        %v4882 = vpop.f32.mrb[0].mxu0
        %v4883 = vadd.f32 %v4786, %v4882
        %v4884 = vpop.f32.mrb[0].mxu0
        %v4885 = vpop.f32.mrb[0].mxu0
        %v4886 = vadd.f32 %v4789, %v4885
        %v4887 = vpop.f32.mrb[0].mxu0
        %4888 = vmatprep.mubr.bf16.mxu0 0
        %4889 = vmatmul.mubr.bf16.gmra.mrb[0].mxu0 %v3671
        %v4890 = vpop.f32.mrb[0].mxu0
        %v4891 = vadd.f32 %v4794, %v4890
        %v4892 = vpop.f32.mrb[0].mxu0
        %v4893 = vpop.f32.mrb[0].mxu0
        %v4894 = vadd.f32 %v4797, %v4893
        %v4895 = vpop.f32.mrb[0].mxu0
        %4896 = vmatprep.mubr.bf16.mxu0 0
        %4897 = vmatmul.mubr.bf16.gmra.mrb[0].mxu0 %v3764
        %v4898 = vpop.f32.mrb[0].mxu0
        %v4899 = vadd.f32 %v4802, %v4898
        %v4900 = vpop.f32.mrb[0].mxu0
        %v4901 = vpop.f32.mrb[0].mxu0
        %v4902 = vadd.f32 %v4805, %v4901
        %v4903 = vpop.f32.mrb[0].mxu0
        %4904 = vdwg.mxu0
        %v4905 = vmax.f32 %v4843, 0.0
        %v4906 = vmax.f32 %v4846, 0.0
        %v4907 = vmax.f32 %v4851, 0.0
        %v4908 = vmax.f32 %v4854, 0.0
        %v4909 = vmax.f32 %v4859, 0.0
        %v4910 = vmax.f32 %v4862, 0.0
        %v4911 = vmax.f32 %v4867, 0.0
        %v4912 = vmax.f32 %v4870, 0.0
        %v4913 = vmax.f32 %v4875, 0.0
        %v4914 = vmax.f32 %v4878, 0.0
        %v4915 = vmax.f32 %v4883, 0.0
        %v4916 = vmax.f32 %v4886, 0.0
        %v4917 = vmax.f32 %v4891, 0.0
        %v4918 = vmax.f32 %v4894, 0.0
        %v4919 = vmax.f32 %v4899, 0.0
        %v4920 = vmax.f32 %v4902, 0.0
        %v4921 = vpack.c.bf16 %v4906, %v4905
        %v4922 = vpack.c.bf16 %v4908, %v4907
        %v4923 = vpack.c.bf16 %v4910, %v4909
        %v4924 = vpack.c.bf16 %v4912, %v4911
        %v4925 = vpack.c.bf16 %v4914, %v4913
        %v4926 = vpack.c.bf16 %v4916, %v4915
        %v4927 = vpack.c.bf16 %v4918, %v4917
        %v4928 = vpack.c.bf16 %v4920, %v4919
        %s4929 = scalar_lea.vmem [#allocation3], 216
        %4930 = vst [vmem:[%s4929 + $0x8] sm:$0xff] %v4921
        %4931 = vst [vmem:[%s4929 + $0x20] sm:$0xff] %v4922
        %4932 = vst [vmem:[%s4929 + $0x38] sm:$0xff] %v4923
        %4933 = vst [vmem:[%s4929 + $0x50] sm:$0xff] %v4924
        %4934 = vst [vmem:[%s4929 + $0x68] sm:$0xff] %v4925
        %4935 = vst [vmem:[%s4929 + $0x80] sm:$0xff] %v4926
        %4936 = vst [vmem:[%s4929 + $0x98] sm:$0xff] %v4927
        %4937 = vst [vmem:[%s4929 + $0xb0] sm:$0xff] %v4928
        %v4938 = vld [vmem:[#allocation3] sm:$0x80]
        %v4939 = vld [vmem:[#allocation3 + $0x8] sm:$0xff]
        %v4940 = vld [vmem:[#allocation3 + $0x18] sm:$0x80]
        %v4941 = vld [vmem:[#allocation3 + $0x20] sm:$0xff]
        %v4942 = vld [vmem:[#allocation3 + $0x30] sm:$0x80]
        %v4943 = vld [vmem:[#allocation3 + $0x38] sm:$0xff]
        %v4944 = vld [vmem:[#allocation3 + $0x48] sm:$0x80]
        %v4945 = vld [vmem:[#allocation3 + $0x50] sm:$0xff]
        %v4946 = vld [vmem:[#allocation3 + $0x60] sm:$0x80]
        %v4947 = vld [vmem:[#allocation3 + $0x68] sm:$0xff]
        %v4948 = vld [vmem:[#allocation3 + $0x78] sm:$0x80]
        %v4949 = vld [vmem:[#allocation3 + $0x80] sm:$0xff]
        %v4950 = vld [vmem:[#allocation3 + $0x90] sm:$0x80]
        %v4951 = vld [vmem:[#allocation3 + $0x98] sm:$0xff]
        %v4952 = vld [vmem:[#allocation3 + $0xa8] sm:$0x80]
        %v4953 = vld [vmem:[#allocation3 + $0xb0] sm:$0xff]
        %v4954 = vld [vmem:[#allocation3 + $0x10] sm:$0x1]
        %v4955 = vld [vmem:[#allocation3 + $0x28] sm:$0x1]
        %v4956 = vld [vmem:[#allocation3 + $0x40] sm:$0x1]
        %v4957 = vld [vmem:[#allocation3 + $0x58] sm:$0x1]
        %v4958 = vld [vmem:[#allocation3 + $0x70] sm:$0x1]
        %v4959 = vld [vmem:[#allocation3 + $0x88] sm:$0x1]
        %v4960 = vld [vmem:[#allocation3 + $0xa0] sm:$0x1]
        %v4961 = vld [vmem:[#allocation3 + $0xb8] sm:$0x1]
        %v4962 = vld [vmem:[%s2649] sm:$0x80]
        %v4963 = vld [vmem:[%s2649 + $0x8] sm:$0xff]
        %v4964 = vld [vmem:[%s2649 + $0x18] sm:$0x80]
        %v4965 = vld [vmem:[%s2649 + $0x20] sm:$0xff]
        %v4966 = vld [vmem:[%s2649 + $0x30] sm:$0x80]
        %v4967 = vld [vmem:[%s2649 + $0x38] sm:$0xff]
        %v4968 = vld [vmem:[%s2649 + $0x48] sm:$0x80]
        %v4969 = vld [vmem:[%s2649 + $0x50] sm:$0xff]
        %v4970 = vld [vmem:[%s2649 + $0x60] sm:$0x80]
        %v4971 = vld [vmem:[%s2649 + $0x68] sm:$0xff]
        %v4972 = vld [vmem:[%s2649 + $0x78] sm:$0x80]
        %v4973 = vld [vmem:[%s2649 + $0x80] sm:$0xff]
        %v4974 = vld [vmem:[%s2649 + $0x90] sm:$0x80]
        %v4975 = vld [vmem:[%s2649 + $0x98] sm:$0xff]
        %v4976 = vld [vmem:[%s2649 + $0xa8] sm:$0x80]
        %v4977 = vld [vmem:[%s2649 + $0xb0] sm:$0xff]
        %v4978 = vld [vmem:[%s2649 + $0x10] sm:$0x1]
        %v4979 = vld [vmem:[%s2649 + $0x28] sm:$0x1]
        %v4980 = vld [vmem:[%s2649 + $0x40] sm:$0x1]
        %v4981 = vld [vmem:[%s2649 + $0x58] sm:$0x1]
        %v4982 = vld [vmem:[%s2649 + $0x70] sm:$0x1]
        %v4983 = vld [vmem:[%s2649 + $0x88] sm:$0x1]
        %v4984 = vld [vmem:[%s2649 + $0xa0] sm:$0x1]
        %v4985 = vld [vmem:[%s2649 + $0xb8] sm:$0x1]
        %s4986 = scalar_lea.vmem [#allocation3], 48
        %v4987 = vld [vmem:[%s4986] sm:$0x80]
        %v4988 = vld [vmem:[%s4986 + $0x8] sm:$0xff]
        %v4989 = vld [vmem:[%s4986 + $0x18] sm:$0x80]
        %v4990 = vld [vmem:[%s4986 + $0x20] sm:$0xff]
        %v4991 = vld [vmem:[%s4986 + $0x30] sm:$0x80]
        %v4992 = vld [vmem:[%s4986 + $0x38] sm:$0xff]
        %v4993 = vld [vmem:[%s4986 + $0x48] sm:$0x80]
        %v4994 = vld [vmem:[%s4986 + $0x50] sm:$0xff]
        %v4995 = vld [vmem:[%s4986 + $0x60] sm:$0x80]
        %v4996 = vld [vmem:[%s4986 + $0x68] sm:$0xff]
        %v4997 = vld [vmem:[%s4986 + $0x78] sm:$0x80]
        %v4998 = vld [vmem:[%s4986 + $0x80] sm:$0xff]
        %v4999 = vld [vmem:[%s4986 + $0x90] sm:$0x80]
        %v5000 = vld [vmem:[%s4986 + $0x98] sm:$0xff]
        %v5001 = vld [vmem:[%s4986 + $0xa8] sm:$0x80]
        %v5002 = vld [vmem:[%s4986 + $0xb0] sm:$0xff]
        %v5003 = vld [vmem:[%s4986 + $0x10] sm:$0x1]
        %v5004 = vld [vmem:[%s4986 + $0x28] sm:$0x1]
        %v5005 = vld [vmem:[%s4986 + $0x40] sm:$0x1]
        %v5006 = vld [vmem:[%s4986 + $0x58] sm:$0x1]
        %v5007 = vld [vmem:[%s4986 + $0x70] sm:$0x1]
        %v5008 = vld [vmem:[%s4986 + $0x88] sm:$0x1]
        %v5009 = vld [vmem:[%s4986 + $0xa0] sm:$0x1]
        %v5010 = vld [vmem:[%s4986 + $0xb8] sm:$0x1]
        %v5012 = vshll.u32 %v4939, 16
        %v5014 = vrot.slane %v5012, 1
        %v5015 = vshrl.u32 %v4939, 16
        %v5017 = vor.u32 %v5015, %v5014
        %v5019 = vshll.u32 %v4941, 16
        %v5021 = vrot.slane %v5019, 1
        %v5022 = vshrl.u32 %v4941, 16
        %v5024 = vor.u32 %v5022, %v5021
        %v5026 = vshll.u32 %v4943, 16
        %v5028 = vrot.slane %v5026, 1
        %v5029 = vshrl.u32 %v4943, 16
        %v5031 = vor.u32 %v5029, %v5028
        %v5033 = vshll.u32 %v4945, 16
        %v5035 = vrot.slane %v5033, 1
        %v5036 = vshrl.u32 %v4945, 16
        %v5038 = vor.u32 %v5036, %v5035
        %v5040 = vshll.u32 %v4947, 16
        %v5042 = vrot.slane %v5040, 1
        %v5043 = vshrl.u32 %v4947, 16
        %v5045 = vor.u32 %v5043, %v5042
        %v5047 = vshll.u32 %v4949, 16
        %v5049 = vrot.slane %v5047, 1
        %v5050 = vshrl.u32 %v4949, 16
        %v5052 = vor.u32 %v5050, %v5049
        %v5054 = vshll.u32 %v4951, 16
        %v5056 = vrot.slane %v5054, 1
        %v5057 = vshrl.u32 %v4951, 16
        %v5059 = vor.u32 %v5057, %v5056
        %v5061 = vshll.u32 %v4953, 16
        %v5063 = vrot.slane %v5061, 1
        %v5064 = vshrl.u32 %v4953, 16
        %v5066 = vor.u32 %v5064, %v5063
        %v5083 = vrot.slane %v4939, 1
        %v5084 = vrot.slane %v4954, 1
        %v5085 = vsel %vm523, %v5083, %v5084
        %v5086 = vrot.slane %v4941, 1
        %v5087 = vrot.slane %v4955, 1
        %v5088 = vsel %vm523, %v5086, %v5087
        %v5089 = vrot.slane %v4943, 1
        %v5090 = vrot.slane %v4956, 1
        %v5091 = vsel %vm523, %v5089, %v5090
        %v5092 = vrot.slane %v4945, 1
        %v5093 = vrot.slane %v4957, 1
        %v5094 = vsel %vm523, %v5092, %v5093
        %v5095 = vrot.slane %v4947, 1
        %v5096 = vrot.slane %v4958, 1
        %v5097 = vsel %vm523, %v5095, %v5096
        %v5098 = vrot.slane %v4949, 1
        %v5099 = vrot.slane %v4959, 1
        %v5100 = vsel %vm523, %v5098, %v5099
        %v5101 = vrot.slane %v4951, 1
        %v5102 = vrot.slane %v4960, 1
        %v5103 = vsel %vm523, %v5101, %v5102
        %v5104 = vrot.slane %v4953, 1
        %v5105 = vrot.slane %v4961, 1
        %v5106 = vsel %vm523, %v5104, %v5105
        %v5108 = vshll.u32 %v4963, 16
        %v5110 = vrot.slane %v5108, 1
        %v5111 = vshrl.u32 %v4963, 16
        %v5113 = vor.u32 %v5111, %v5110
        %v5115 = vshll.u32 %v4965, 16
        %v5117 = vrot.slane %v5115, 1
        %v5118 = vshrl.u32 %v4965, 16
        %v5120 = vor.u32 %v5118, %v5117
        %v5122 = vshll.u32 %v4967, 16
        %v5124 = vrot.slane %v5122, 1
        %v5125 = vshrl.u32 %v4967, 16
        %v5127 = vor.u32 %v5125, %v5124
        %v5129 = vshll.u32 %v4969, 16
        %v5131 = vrot.slane %v5129, 1
        %v5132 = vshrl.u32 %v4969, 16
        %v5134 = vor.u32 %v5132, %v5131
        %v5136 = vshll.u32 %v4971, 16
        %v5138 = vrot.slane %v5136, 1
        %v5139 = vshrl.u32 %v4971, 16
        %v5141 = vor.u32 %v5139, %v5138
        %v5143 = vshll.u32 %v4973, 16
        %v5145 = vrot.slane %v5143, 1
        %v5146 = vshrl.u32 %v4973, 16
        %v5148 = vor.u32 %v5146, %v5145
        %v5150 = vshll.u32 %v4975, 16
        %v5152 = vrot.slane %v5150, 1
        %v5153 = vshrl.u32 %v4975, 16
        %v5155 = vor.u32 %v5153, %v5152
        %v5157 = vshll.u32 %v4977, 16
        %v5159 = vrot.slane %v5157, 1
        %v5160 = vshrl.u32 %v4977, 16
        %v5162 = vor.u32 %v5160, %v5159
        %v5179 = vrot.slane %v4963, 1
        %v5180 = vrot.slane %v4978, 1
        %v5181 = vsel %vm523, %v5179, %v5180
        %v5182 = vrot.slane %v4965, 1
        %v5183 = vrot.slane %v4979, 1
        %v5184 = vsel %vm523, %v5182, %v5183
        %v5185 = vrot.slane %v4967, 1
        %v5186 = vrot.slane %v4980, 1
        %v5187 = vsel %vm523, %v5185, %v5186
        %v5188 = vrot.slane %v4969, 1
        %v5189 = vrot.slane %v4981, 1
        %v5190 = vsel %vm523, %v5188, %v5189
        %v5191 = vrot.slane %v4971, 1
        %v5192 = vrot.slane %v4982, 1
        %v5193 = vsel %vm523, %v5191, %v5192
        %v5194 = vrot.slane %v4973, 1
        %v5195 = vrot.slane %v4983, 1
        %v5196 = vsel %vm523, %v5194, %v5195
        %v5197 = vrot.slane %v4975, 1
        %v5198 = vrot.slane %v4984, 1
        %v5199 = vsel %vm523, %v5197, %v5198
        %v5200 = vrot.slane %v4977, 1
        %v5201 = vrot.slane %v4985, 1
        %v5202 = vsel %vm523, %v5200, %v5201
        %v5204 = vshll.u32 %v4988, 16
        %v5206 = vrot.slane %v5204, 1
        %v5207 = vshrl.u32 %v4988, 16
        %v5209 = vor.u32 %v5207, %v5206
        %v5211 = vshll.u32 %v4990, 16
        %v5213 = vrot.slane %v5211, 1
        %v5214 = vshrl.u32 %v4990, 16
        %v5216 = vor.u32 %v5214, %v5213
        %v5218 = vshll.u32 %v4992, 16
        %v5220 = vrot.slane %v5218, 1
        %v5221 = vshrl.u32 %v4992, 16
        %v5223 = vor.u32 %v5221, %v5220
        %v5225 = vshll.u32 %v4994, 16
        %v5227 = vrot.slane %v5225, 1
        %v5228 = vshrl.u32 %v4994, 16
        %v5230 = vor.u32 %v5228, %v5227
        %v5232 = vshll.u32 %v4996, 16
        %v5234 = vrot.slane %v5232, 1
        %v5235 = vshrl.u32 %v4996, 16
        %v5237 = vor.u32 %v5235, %v5234
        %v5239 = vshll.u32 %v4998, 16
        %v5241 = vrot.slane %v5239, 1
        %v5242 = vshrl.u32 %v4998, 16
        %v5244 = vor.u32 %v5242, %v5241
        %v5246 = vshll.u32 %v5000, 16
        %v5248 = vrot.slane %v5246, 1
        %v5249 = vshrl.u32 %v5000, 16
        %v5251 = vor.u32 %v5249, %v5248
        %v5253 = vshll.u32 %v5002, 16
        %v5255 = vrot.slane %v5253, 1
        %v5256 = vshrl.u32 %v5002, 16
        %v5258 = vor.u32 %v5256, %v5255
        %v5275 = vrot.slane %v4988, 1
        %v5276 = vrot.slane %v5003, 1
        %v5277 = vsel %vm523, %v5275, %v5276
        %v5278 = vrot.slane %v4990, 1
        %v5279 = vrot.slane %v5004, 1
        %v5280 = vsel %vm523, %v5278, %v5279
        %v5281 = vrot.slane %v4992, 1
        %v5282 = vrot.slane %v5005, 1
        %v5283 = vsel %vm523, %v5281, %v5282
        %v5284 = vrot.slane %v4994, 1
        %v5285 = vrot.slane %v5006, 1
        %v5286 = vsel %vm523, %v5284, %v5285
        %v5287 = vrot.slane %v4996, 1
        %v5288 = vrot.slane %v5007, 1
        %v5289 = vsel %vm523, %v5287, %v5288
        %v5290 = vrot.slane %v4998, 1
        %v5291 = vrot.slane %v5008, 1
        %v5292 = vsel %vm523, %v5290, %v5291
        %v5293 = vrot.slane %v5000, 1
        %v5294 = vrot.slane %v5009, 1
        %v5295 = vsel %vm523, %v5293, %v5294
        %v5296 = vrot.slane %v5002, 1
        %v5297 = vrot.slane %v5010, 1
        %v5298 = vsel %vm523, %v5296, %v5297
        %v5300 = vshrl.u32 %v4938, 16
        %v5302 = vrot.slane %v5300, 7
        %v5303 = vrot.slane %v5015, 7
        %v5304 = vor.u32 %v5303, %v5012
        %v5305 = vsel %vm740, %v5302, %v5304
        %v5307 = vshrl.u32 %v5014, 16
        %v5309 = vrot.slane %v5307, 7
        %v5311 = vshrl.u32 %v5017, 16
        %v5313 = vrot.slane %v5311, 7
        %v5314 = vshll.u32 %v5017, 16
        %v5316 = vor.u32 %v5313, %v5314
        %v5317 = vsel %vm740, %v5309, %v5316
        %v5319 = vshrl.u32 %v5083, 16
        %v5321 = vrot.slane %v5319, 7
        %v5323 = vshrl.u32 %v5085, 16
        %v5325 = vrot.slane %v5323, 7
        %v5326 = vshll.u32 %v5085, 16
        %v5328 = vor.u32 %v5325, %v5326
        %v5329 = vsel %vm740, %v5321, %v5328
        %v5331 = vshrl.u32 %v4962, 16
        %v5333 = vrot.slane %v5331, 7
        %v5334 = vrot.slane %v5111, 7
        %v5335 = vor.u32 %v5334, %v5108
        %v5336 = vsel %vm740, %v5333, %v5335
        %v5338 = vshrl.u32 %v5110, 16
        %v5340 = vrot.slane %v5338, 7
        %v5342 = vshrl.u32 %v5113, 16
        %v5344 = vrot.slane %v5342, 7
        %v5345 = vshll.u32 %v5113, 16
        %v5347 = vor.u32 %v5344, %v5345
        %v5348 = vsel %vm740, %v5340, %v5347
        %v5350 = vshrl.u32 %v5179, 16
        %v5352 = vrot.slane %v5350, 7
        %v5354 = vshrl.u32 %v5181, 16
        %v5356 = vrot.slane %v5354, 7
        %v5357 = vshll.u32 %v5181, 16
        %v5359 = vor.u32 %v5356, %v5357
        %v5360 = vsel %vm740, %v5352, %v5359
        %v5362 = vshrl.u32 %v4987, 16
        %v5364 = vrot.slane %v5362, 7
        %v5365 = vrot.slane %v5207, 7
        %v5366 = vor.u32 %v5365, %v5204
        %v5367 = vsel %vm740, %v5364, %v5366
        %v5369 = vshrl.u32 %v5206, 16
        %v5371 = vrot.slane %v5369, 7
        %v5373 = vshrl.u32 %v5209, 16
        %v5375 = vrot.slane %v5373, 7
        %v5376 = vshll.u32 %v5209, 16
        %v5378 = vor.u32 %v5375, %v5376
        %v5379 = vsel %vm740, %v5371, %v5378
        %v5381 = vshrl.u32 %v5275, 16
        %v5383 = vrot.slane %v5381, 7
        %v5385 = vshrl.u32 %v5277, 16
        %v5387 = vrot.slane %v5385, 7
        %v5388 = vshll.u32 %v5277, 16
        %v5390 = vor.u32 %v5387, %v5388
        %v5391 = vsel %vm740, %v5383, %v5390
        %v5393 = vshrl.u32 %v4940, 16
        %v5395 = vrot.slane %v5393, 7
        %v5396 = vrot.slane %v5022, 7
        %v5397 = vor.u32 %v5396, %v5019
        %v5398 = vsel %vm740, %v5395, %v5397
        %v5400 = vshrl.u32 %v5021, 16
        %v5402 = vrot.slane %v5400, 7
        %v5404 = vshrl.u32 %v5024, 16
        %v5406 = vrot.slane %v5404, 7
        %v5407 = vshll.u32 %v5024, 16
        %v5409 = vor.u32 %v5406, %v5407
        %v5410 = vsel %vm740, %v5402, %v5409
        %v5412 = vshrl.u32 %v5086, 16
        %v5414 = vrot.slane %v5412, 7
        %v5416 = vshrl.u32 %v5088, 16
        %v5418 = vrot.slane %v5416, 7
        %v5419 = vshll.u32 %v5088, 16
        %v5421 = vor.u32 %v5418, %v5419
        %v5422 = vsel %vm740, %v5414, %v5421
        %v5424 = vshrl.u32 %v4964, 16
        %v5426 = vrot.slane %v5424, 7
        %v5427 = vrot.slane %v5118, 7
        %v5428 = vor.u32 %v5427, %v5115
        %v5429 = vsel %vm740, %v5426, %v5428
        %v5431 = vshrl.u32 %v5117, 16
        %v5433 = vrot.slane %v5431, 7
        %v5435 = vshrl.u32 %v5120, 16
        %v5437 = vrot.slane %v5435, 7
        %v5438 = vshll.u32 %v5120, 16
        %v5440 = vor.u32 %v5437, %v5438
        %v5441 = vsel %vm740, %v5433, %v5440
        %v5443 = vshrl.u32 %v5182, 16
        %v5445 = vrot.slane %v5443, 7
        %v5447 = vshrl.u32 %v5184, 16
        %v5449 = vrot.slane %v5447, 7
        %v5450 = vshll.u32 %v5184, 16
        %v5452 = vor.u32 %v5449, %v5450
        %v5453 = vsel %vm740, %v5445, %v5452
        %v5455 = vshrl.u32 %v4989, 16
        %v5457 = vrot.slane %v5455, 7
        %v5458 = vrot.slane %v5214, 7
        %v5459 = vor.u32 %v5458, %v5211
        %v5460 = vsel %vm740, %v5457, %v5459
        %v5462 = vshrl.u32 %v5213, 16
        %v5464 = vrot.slane %v5462, 7
        %v5466 = vshrl.u32 %v5216, 16
        %v5468 = vrot.slane %v5466, 7
        %v5469 = vshll.u32 %v5216, 16
        %v5471 = vor.u32 %v5468, %v5469
        %v5472 = vsel %vm740, %v5464, %v5471
        %v5474 = vshrl.u32 %v5278, 16
        %v5476 = vrot.slane %v5474, 7
        %v5478 = vshrl.u32 %v5280, 16
        %v5480 = vrot.slane %v5478, 7
        %v5481 = vshll.u32 %v5280, 16
        %v5483 = vor.u32 %v5480, %v5481
        %v5484 = vsel %vm740, %v5476, %v5483
        %v5486 = vshrl.u32 %v4942, 16
        %v5488 = vrot.slane %v5486, 7
        %v5489 = vrot.slane %v5029, 7
        %v5490 = vor.u32 %v5489, %v5026
        %v5491 = vsel %vm740, %v5488, %v5490
        %v5493 = vshrl.u32 %v5028, 16
        %v5495 = vrot.slane %v5493, 7
        %v5497 = vshrl.u32 %v5031, 16
        %v5499 = vrot.slane %v5497, 7
        %v5500 = vshll.u32 %v5031, 16
        %v5502 = vor.u32 %v5499, %v5500
        %v5503 = vsel %vm740, %v5495, %v5502
        %v5505 = vshrl.u32 %v5089, 16
        %v5507 = vrot.slane %v5505, 7
        %v5509 = vshrl.u32 %v5091, 16
        %v5511 = vrot.slane %v5509, 7
        %v5512 = vshll.u32 %v5091, 16
        %v5514 = vor.u32 %v5511, %v5512
        %v5515 = vsel %vm740, %v5507, %v5514
        %v5517 = vshrl.u32 %v4966, 16
        %v5519 = vrot.slane %v5517, 7
        %v5520 = vrot.slane %v5125, 7
        %v5521 = vor.u32 %v5520, %v5122
        %v5522 = vsel %vm740, %v5519, %v5521
        %v5524 = vshrl.u32 %v5124, 16
        %v5526 = vrot.slane %v5524, 7
        %v5528 = vshrl.u32 %v5127, 16
        %v5530 = vrot.slane %v5528, 7
        %v5531 = vshll.u32 %v5127, 16
        %v5533 = vor.u32 %v5530, %v5531
        %v5534 = vsel %vm740, %v5526, %v5533
        %v5536 = vshrl.u32 %v5185, 16
        %v5538 = vrot.slane %v5536, 7
        %v5540 = vshrl.u32 %v5187, 16
        %v5542 = vrot.slane %v5540, 7
        %v5543 = vshll.u32 %v5187, 16
        %v5545 = vor.u32 %v5542, %v5543
        %v5546 = vsel %vm740, %v5538, %v5545
        %v5548 = vshrl.u32 %v4991, 16
        %v5550 = vrot.slane %v5548, 7
        %v5551 = vrot.slane %v5221, 7
        %v5552 = vor.u32 %v5551, %v5218
        %v5553 = vsel %vm740, %v5550, %v5552
        %v5555 = vshrl.u32 %v5220, 16
        %v5557 = vrot.slane %v5555, 7
        %v5559 = vshrl.u32 %v5223, 16
        %v5561 = vrot.slane %v5559, 7
        %v5562 = vshll.u32 %v5223, 16
        %v5564 = vor.u32 %v5561, %v5562
        %v5565 = vsel %vm740, %v5557, %v5564
        %v5567 = vshrl.u32 %v5281, 16
        %v5569 = vrot.slane %v5567, 7
        %v5571 = vshrl.u32 %v5283, 16
        %v5573 = vrot.slane %v5571, 7
        %v5574 = vshll.u32 %v5283, 16
        %v5576 = vor.u32 %v5573, %v5574
        %v5577 = vsel %vm740, %v5569, %v5576
        %v5579 = vshrl.u32 %v4944, 16
        %v5581 = vrot.slane %v5579, 7
        %v5582 = vrot.slane %v5036, 7
        %v5583 = vor.u32 %v5582, %v5033
        %v5584 = vsel %vm740, %v5581, %v5583
        %v5586 = vshrl.u32 %v5035, 16
        %v5588 = vrot.slane %v5586, 7
        %v5590 = vshrl.u32 %v5038, 16
        %v5592 = vrot.slane %v5590, 7
        %v5593 = vshll.u32 %v5038, 16
        %v5595 = vor.u32 %v5592, %v5593
        %v5596 = vsel %vm740, %v5588, %v5595
        %v5598 = vshrl.u32 %v5092, 16
        %v5600 = vrot.slane %v5598, 7
        %v5602 = vshrl.u32 %v5094, 16
        %v5604 = vrot.slane %v5602, 7
        %v5605 = vshll.u32 %v5094, 16
        %v5607 = vor.u32 %v5604, %v5605
        %v5608 = vsel %vm740, %v5600, %v5607
        %v5610 = vshrl.u32 %v4968, 16
        %v5612 = vrot.slane %v5610, 7
        %v5613 = vrot.slane %v5132, 7
        %v5614 = vor.u32 %v5613, %v5129
        %v5615 = vsel %vm740, %v5612, %v5614
        %v5617 = vshrl.u32 %v5131, 16
        %v5619 = vrot.slane %v5617, 7
        %v5621 = vshrl.u32 %v5134, 16
        %v5623 = vrot.slane %v5621, 7
        %v5624 = vshll.u32 %v5134, 16
        %v5626 = vor.u32 %v5623, %v5624
        %v5627 = vsel %vm740, %v5619, %v5626
        %v5629 = vshrl.u32 %v5188, 16
        %v5631 = vrot.slane %v5629, 7
        %v5633 = vshrl.u32 %v5190, 16
        %v5635 = vrot.slane %v5633, 7
        %v5636 = vshll.u32 %v5190, 16
        %v5638 = vor.u32 %v5635, %v5636
        %v5639 = vsel %vm740, %v5631, %v5638
        %v5641 = vshrl.u32 %v4993, 16
        %v5643 = vrot.slane %v5641, 7
        %v5644 = vrot.slane %v5228, 7
        %v5645 = vor.u32 %v5644, %v5225
        %v5646 = vsel %vm740, %v5643, %v5645
        %v5648 = vshrl.u32 %v5227, 16
        %v5650 = vrot.slane %v5648, 7
        %v5652 = vshrl.u32 %v5230, 16
        %v5654 = vrot.slane %v5652, 7
        %v5655 = vshll.u32 %v5230, 16
        %v5657 = vor.u32 %v5654, %v5655
        %v5658 = vsel %vm740, %v5650, %v5657
        %v5660 = vshrl.u32 %v5284, 16
        %v5662 = vrot.slane %v5660, 7
        %v5664 = vshrl.u32 %v5286, 16
        %v5666 = vrot.slane %v5664, 7
        %v5667 = vshll.u32 %v5286, 16
        %v5669 = vor.u32 %v5666, %v5667
        %v5670 = vsel %vm740, %v5662, %v5669
        %v5672 = vshrl.u32 %v4946, 16
        %v5674 = vrot.slane %v5672, 7
        %v5675 = vrot.slane %v5043, 7
        %v5676 = vor.u32 %v5675, %v5040
        %v5677 = vsel %vm740, %v5674, %v5676
        %v5679 = vshrl.u32 %v5042, 16
        %v5681 = vrot.slane %v5679, 7
        %v5683 = vshrl.u32 %v5045, 16
        %v5685 = vrot.slane %v5683, 7
        %v5686 = vshll.u32 %v5045, 16
        %v5688 = vor.u32 %v5685, %v5686
        %v5689 = vsel %vm740, %v5681, %v5688
        %v5691 = vshrl.u32 %v5095, 16
        %v5693 = vrot.slane %v5691, 7
        %v5695 = vshrl.u32 %v5097, 16
        %v5697 = vrot.slane %v5695, 7
        %v5698 = vshll.u32 %v5097, 16
        %v5700 = vor.u32 %v5697, %v5698
        %v5701 = vsel %vm740, %v5693, %v5700
        %v5703 = vshrl.u32 %v4970, 16
        %v5705 = vrot.slane %v5703, 7
        %v5706 = vrot.slane %v5139, 7
        %v5707 = vor.u32 %v5706, %v5136
        %v5708 = vsel %vm740, %v5705, %v5707
        %v5710 = vshrl.u32 %v5138, 16
        %v5712 = vrot.slane %v5710, 7
        %v5714 = vshrl.u32 %v5141, 16
        %v5716 = vrot.slane %v5714, 7
        %v5717 = vshll.u32 %v5141, 16
        %v5719 = vor.u32 %v5716, %v5717
        %v5720 = vsel %vm740, %v5712, %v5719
        %v5722 = vshrl.u32 %v5191, 16
        %v5724 = vrot.slane %v5722, 7
        %v5726 = vshrl.u32 %v5193, 16
        %v5728 = vrot.slane %v5726, 7
        %v5729 = vshll.u32 %v5193, 16
        %v5731 = vor.u32 %v5728, %v5729
        %v5732 = vsel %vm740, %v5724, %v5731
        %v5734 = vshrl.u32 %v4995, 16
        %v5736 = vrot.slane %v5734, 7
        %v5737 = vrot.slane %v5235, 7
        %v5738 = vor.u32 %v5737, %v5232
        %v5739 = vsel %vm740, %v5736, %v5738
        %v5741 = vshrl.u32 %v5234, 16
        %v5743 = vrot.slane %v5741, 7
        %v5745 = vshrl.u32 %v5237, 16
        %v5747 = vrot.slane %v5745, 7
        %v5748 = vshll.u32 %v5237, 16
        %v5750 = vor.u32 %v5747, %v5748
        %v5751 = vsel %vm740, %v5743, %v5750
        %v5753 = vshrl.u32 %v5287, 16
        %v5755 = vrot.slane %v5753, 7
        %v5757 = vshrl.u32 %v5289, 16
        %v5759 = vrot.slane %v5757, 7
        %v5760 = vshll.u32 %v5289, 16
        %v5762 = vor.u32 %v5759, %v5760
        %v5763 = vsel %vm740, %v5755, %v5762
        %v5765 = vshrl.u32 %v4948, 16
        %v5767 = vrot.slane %v5765, 7
        %v5768 = vrot.slane %v5050, 7
        %v5769 = vor.u32 %v5768, %v5047
        %v5770 = vsel %vm740, %v5767, %v5769
        %v5772 = vshrl.u32 %v5049, 16
        %v5774 = vrot.slane %v5772, 7
        %v5776 = vshrl.u32 %v5052, 16
        %v5778 = vrot.slane %v5776, 7
        %v5779 = vshll.u32 %v5052, 16
        %v5781 = vor.u32 %v5778, %v5779
        %v5782 = vsel %vm740, %v5774, %v5781
        %v5784 = vshrl.u32 %v5098, 16
        %v5786 = vrot.slane %v5784, 7
        %v5788 = vshrl.u32 %v5100, 16
        %v5790 = vrot.slane %v5788, 7
        %v5791 = vshll.u32 %v5100, 16
        %v5793 = vor.u32 %v5790, %v5791
        %v5794 = vsel %vm740, %v5786, %v5793
        %v5796 = vshrl.u32 %v4972, 16
        %v5798 = vrot.slane %v5796, 7
        %v5799 = vrot.slane %v5146, 7
        %v5800 = vor.u32 %v5799, %v5143
        %v5801 = vsel %vm740, %v5798, %v5800
        %v5803 = vshrl.u32 %v5145, 16
        %v5805 = vrot.slane %v5803, 7
        %v5807 = vshrl.u32 %v5148, 16
        %v5809 = vrot.slane %v5807, 7
        %v5810 = vshll.u32 %v5148, 16
        %v5812 = vor.u32 %v5809, %v5810
        %v5813 = vsel %vm740, %v5805, %v5812
        %v5815 = vshrl.u32 %v5194, 16
        %v5817 = vrot.slane %v5815, 7
        %v5819 = vshrl.u32 %v5196, 16
        %v5821 = vrot.slane %v5819, 7
        %v5822 = vshll.u32 %v5196, 16
        %v5824 = vor.u32 %v5821, %v5822
        %v5825 = vsel %vm740, %v5817, %v5824
        %v5827 = vshrl.u32 %v4997, 16
        %v5829 = vrot.slane %v5827, 7
        %v5830 = vrot.slane %v5242, 7
        %v5831 = vor.u32 %v5830, %v5239
        %v5832 = vsel %vm740, %v5829, %v5831
        %v5834 = vshrl.u32 %v5241, 16
        %v5836 = vrot.slane %v5834, 7
        %v5838 = vshrl.u32 %v5244, 16
        %v5840 = vrot.slane %v5838, 7
        %v5841 = vshll.u32 %v5244, 16
        %v5843 = vor.u32 %v5840, %v5841
        %v5844 = vsel %vm740, %v5836, %v5843
        %v5846 = vshrl.u32 %v5290, 16
        %v5848 = vrot.slane %v5846, 7
        %v5850 = vshrl.u32 %v5292, 16
        %v5852 = vrot.slane %v5850, 7
        %v5853 = vshll.u32 %v5292, 16
        %v5855 = vor.u32 %v5852, %v5853
        %v5856 = vsel %vm740, %v5848, %v5855
        %v5858 = vshrl.u32 %v4950, 16
        %v5860 = vrot.slane %v5858, 7
        %v5861 = vrot.slane %v5057, 7
        %v5862 = vor.u32 %v5861, %v5054
        %v5863 = vsel %vm740, %v5860, %v5862
        %v5865 = vshrl.u32 %v5056, 16
        %v5867 = vrot.slane %v5865, 7
        %v5869 = vshrl.u32 %v5059, 16
        %v5871 = vrot.slane %v5869, 7
        %v5872 = vshll.u32 %v5059, 16
        %v5874 = vor.u32 %v5871, %v5872
        %v5875 = vsel %vm740, %v5867, %v5874
        %v5877 = vshrl.u32 %v5101, 16
        %v5879 = vrot.slane %v5877, 7
        %v5881 = vshrl.u32 %v5103, 16
        %v5883 = vrot.slane %v5881, 7
        %v5884 = vshll.u32 %v5103, 16
        %v5886 = vor.u32 %v5883, %v5884
        %v5887 = vsel %vm740, %v5879, %v5886
        %v5889 = vshrl.u32 %v4974, 16
        %v5891 = vrot.slane %v5889, 7
        %v5892 = vrot.slane %v5153, 7
        %v5893 = vor.u32 %v5892, %v5150
        %v5894 = vsel %vm740, %v5891, %v5893
        %v5896 = vshrl.u32 %v5152, 16
        %v5898 = vrot.slane %v5896, 7
        %v5900 = vshrl.u32 %v5155, 16
        %v5902 = vrot.slane %v5900, 7
        %v5903 = vshll.u32 %v5155, 16
        %v5905 = vor.u32 %v5902, %v5903
        %v5906 = vsel %vm740, %v5898, %v5905
        %v5908 = vshrl.u32 %v5197, 16
        %v5910 = vrot.slane %v5908, 7
        %v5912 = vshrl.u32 %v5199, 16
        %v5914 = vrot.slane %v5912, 7
        %v5915 = vshll.u32 %v5199, 16
        %v5917 = vor.u32 %v5914, %v5915
        %v5918 = vsel %vm740, %v5910, %v5917
        %v5920 = vshrl.u32 %v4999, 16
        %v5922 = vrot.slane %v5920, 7
        %v5923 = vrot.slane %v5249, 7
        %v5924 = vor.u32 %v5923, %v5246
        %v5925 = vsel %vm740, %v5922, %v5924
        %v5927 = vshrl.u32 %v5248, 16
        %v5929 = vrot.slane %v5927, 7
        %v5931 = vshrl.u32 %v5251, 16
        %v5933 = vrot.slane %v5931, 7
        %v5934 = vshll.u32 %v5251, 16
        %v5936 = vor.u32 %v5933, %v5934
        %v5937 = vsel %vm740, %v5929, %v5936
        %v5939 = vshrl.u32 %v5293, 16
        %v5941 = vrot.slane %v5939, 7
        %v5943 = vshrl.u32 %v5295, 16
        %v5945 = vrot.slane %v5943, 7
        %v5946 = vshll.u32 %v5295, 16
        %v5948 = vor.u32 %v5945, %v5946
        %v5949 = vsel %vm740, %v5941, %v5948
        %v5951 = vshrl.u32 %v4952, 16
        %v5953 = vrot.slane %v5951, 7
        %v5954 = vrot.slane %v5064, 7
        %v5955 = vor.u32 %v5954, %v5061
        %v5956 = vsel %vm740, %v5953, %v5955
        %v5958 = vshrl.u32 %v5063, 16
        %v5960 = vrot.slane %v5958, 7
        %v5962 = vshrl.u32 %v5066, 16
        %v5964 = vrot.slane %v5962, 7
        %v5965 = vshll.u32 %v5066, 16
        %v5967 = vor.u32 %v5964, %v5965
        %v5968 = vsel %vm740, %v5960, %v5967
        %v5970 = vshrl.u32 %v5104, 16
        %v5972 = vrot.slane %v5970, 7
        %v5974 = vshrl.u32 %v5106, 16
        %v5976 = vrot.slane %v5974, 7
        %v5977 = vshll.u32 %v5106, 16
        %v5979 = vor.u32 %v5976, %v5977
        %v5980 = vsel %vm740, %v5972, %v5979
        %v5982 = vshrl.u32 %v4976, 16
        %v5984 = vrot.slane %v5982, 7
        %v5985 = vrot.slane %v5160, 7
        %v5986 = vor.u32 %v5985, %v5157
        %v5987 = vsel %vm740, %v5984, %v5986
        %v5989 = vshrl.u32 %v5159, 16
        %v5991 = vrot.slane %v5989, 7
        %v5993 = vshrl.u32 %v5162, 16
        %v5995 = vrot.slane %v5993, 7
        %v5996 = vshll.u32 %v5162, 16
        %v5998 = vor.u32 %v5995, %v5996
        %v5999 = vsel %vm740, %v5991, %v5998
        %v6001 = vshrl.u32 %v5200, 16
        %v6003 = vrot.slane %v6001, 7
        %v6005 = vshrl.u32 %v5202, 16
        %v6007 = vrot.slane %v6005, 7
        %v6008 = vshll.u32 %v5202, 16
        %v6010 = vor.u32 %v6007, %v6008
        %v6011 = vsel %vm740, %v6003, %v6010
        %v6013 = vshrl.u32 %v5001, 16
        %v6015 = vrot.slane %v6013, 7
        %v6016 = vrot.slane %v5256, 7
        %v6017 = vor.u32 %v6016, %v5253
        %v6018 = vsel %vm740, %v6015, %v6017
        %v6020 = vshrl.u32 %v5255, 16
        %v6022 = vrot.slane %v6020, 7
        %v6024 = vshrl.u32 %v5258, 16
        %v6026 = vrot.slane %v6024, 7
        %v6027 = vshll.u32 %v5258, 16
        %v6029 = vor.u32 %v6026, %v6027
        %v6030 = vsel %vm740, %v6022, %v6029
        %v6032 = vshrl.u32 %v5296, 16
        %v6034 = vrot.slane %v6032, 7
        %v6036 = vshrl.u32 %v5298, 16
        %v6038 = vrot.slane %v6036, 7
        %v6039 = vshll.u32 %v5298, 16
        %v6041 = vor.u32 %v6038, %v6039
        %v6042 = vsel %vm740, %v6034, %v6041
        %s6115 = scalar_lea.vmem [#allocation7], 576
        %v6116 = vld [vmem:[%s6115] sm:$0xf]
        %v6117 = vld [vmem:[%s6115 + $0x4] sm:$0xf]
        %v6118 = vld [vmem:[%s6115 + $0x8] sm:$0xf]
        %v6119 = vld [vmem:[%s6115 + $0xc] sm:$0xf]
        %v6120 = vld [vmem:[%s6115 + $0x10] sm:$0xf]
        %v6121 = vld [vmem:[%s6115 + $0x14] sm:$0xf]
        %v6122 = vld [vmem:[%s6115 + $0x18] sm:$0xf]
        %v6123 = vld [vmem:[%s6115 + $0x1c] sm:$0xf]
        %v6124 = vld [vmem:[%s6115 + $0x20] sm:$0xf]
        %v6125 = vld [vmem:[%s6115 + $0x24] sm:$0xf]
        %v6126 = vld [vmem:[%s6115 + $0x28] sm:$0xf]
        %v6127 = vld [vmem:[%s6115 + $0x2c] sm:$0xf]
        %v6128 = vld [vmem:[%s6115 + $0x30] sm:$0xf]
        %v6129 = vld [vmem:[%s6115 + $0x34] sm:$0xf]
        %v6130 = vld [vmem:[%s6115 + $0x38] sm:$0xf]
        %v6131 = vld [vmem:[%s6115 + $0x3c] sm:$0xf]
        %v6132 = vld [vmem:[%s6115 + $0x40] sm:$0xf]
        %v6133 = vld [vmem:[%s6115 + $0x44] sm:$0xf]
        %v6134 = vld [vmem:[%s6115 + $0x48] sm:$0xf]
        %v6135 = vld [vmem:[%s6115 + $0x4c] sm:$0xf]
        %v6136 = vld [vmem:[%s6115 + $0x50] sm:$0xf]
        %v6137 = vld [vmem:[%s6115 + $0x54] sm:$0xf]
        %v6138 = vld [vmem:[%s6115 + $0x58] sm:$0xf]
        %v6139 = vld [vmem:[%s6115 + $0x5c] sm:$0xf]
        %v6140 = vld [vmem:[%s6115 + $0x60] sm:$0xf]
        %v6141 = vld [vmem:[%s6115 + $0x64] sm:$0xf]
        %v6142 = vld [vmem:[%s6115 + $0x68] sm:$0xf]
        %v6143 = vld [vmem:[%s6115 + $0x6c] sm:$0xf]
        %v6144 = vld [vmem:[%s6115 + $0x70] sm:$0xf]
        %v6145 = vld [vmem:[%s6115 + $0x74] sm:$0xf]
        %v6146 = vld [vmem:[%s6115 + $0x78] sm:$0xf]
        %v6147 = vld [vmem:[%s6115 + $0x7c] sm:$0xf]
        %v6148 = vld [vmem:[%s6115 + $0x80] sm:$0xf]
        %v6149 = vld [vmem:[%s6115 + $0x84] sm:$0xf]
        %v6150 = vld [vmem:[%s6115 + $0x88] sm:$0xf]
        %v6151 = vld [vmem:[%s6115 + $0x8c] sm:$0xf]
        %v6152 = vld [vmem:[%s6115 + $0x90] sm:$0xf]
        %v6153 = vld [vmem:[%s6115 + $0x94] sm:$0xf]
        %v6154 = vld [vmem:[%s6115 + $0x98] sm:$0xf]
        %v6155 = vld [vmem:[%s6115 + $0x9c] sm:$0xf]
        %v6156 = vld [vmem:[%s6115 + $0xa0] sm:$0xf]
        %v6157 = vld [vmem:[%s6115 + $0xa4] sm:$0xf]
        %v6158 = vld [vmem:[%s6115 + $0xa8] sm:$0xf]
        %v6159 = vld [vmem:[%s6115 + $0xac] sm:$0xf]
        %v6160 = vld [vmem:[%s6115 + $0xb0] sm:$0xf]
        %v6161 = vld [vmem:[%s6115 + $0xb4] sm:$0xf]
        %v6162 = vld [vmem:[%s6115 + $0xb8] sm:$0xf]
        %v6163 = vld [vmem:[%s6115 + $0xbc] sm:$0xf]
        %v6164 = vld [vmem:[%s6115 + $0xc0] sm:$0xf]
        %v6165 = vld [vmem:[%s6115 + $0xc4] sm:$0xf]
        %v6166 = vld [vmem:[%s6115 + $0xc8] sm:$0xf]
        %v6167 = vld [vmem:[%s6115 + $0xcc] sm:$0xf]
        %v6168 = vld [vmem:[%s6115 + $0xd0] sm:$0xf]
        %v6169 = vld [vmem:[%s6115 + $0xd4] sm:$0xf]
        %v6170 = vld [vmem:[%s6115 + $0xd8] sm:$0xf]
        %v6171 = vld [vmem:[%s6115 + $0xdc] sm:$0xf]
        %v6172 = vld [vmem:[%s6115 + $0xe0] sm:$0xf]
        %v6173 = vld [vmem:[%s6115 + $0xe4] sm:$0xf]
        %v6174 = vld [vmem:[%s6115 + $0xe8] sm:$0xf]
        %v6175 = vld [vmem:[%s6115 + $0xec] sm:$0xf]
        %v6176 = vld [vmem:[%s6115 + $0xf0] sm:$0xf]
        %v6177 = vld [vmem:[%s6115 + $0xf4] sm:$0xf]
        %v6178 = vld [vmem:[%s6115 + $0xf8] sm:$0xf]
        %v6179 = vld [vmem:[%s6115 + $0xfc] sm:$0xf]
        %v6180 = vld [vmem:[%s6115 + $0x100] sm:$0xf]
        %v6181 = vld [vmem:[%s6115 + $0x104] sm:$0xf]
        %v6182 = vld [vmem:[%s6115 + $0x108] sm:$0xf]
        %v6183 = vld [vmem:[%s6115 + $0x10c] sm:$0xf]
        %v6184 = vld [vmem:[%s6115 + $0x110] sm:$0xf]
        %v6185 = vld [vmem:[%s6115 + $0x114] sm:$0xf]
        %v6186 = vld [vmem:[%s6115 + $0x118] sm:$0xf]
        %v6187 = vld [vmem:[%s6115 + $0x11c] sm:$0xf]
        %v6188 = vld [vmem:[%s6115 + $0x120] sm:$0xf]
        %v6189 = vld [vmem:[%s6115 + $0x124] sm:$0xf]
        %v6190 = vld [vmem:[%s6115 + $0x128] sm:$0xf]
        %v6191 = vld [vmem:[%s6115 + $0x12c] sm:$0xf]
        %v6192 = vld [vmem:[%s6115 + $0x130] sm:$0xf]
        %v6193 = vld [vmem:[%s6115 + $0x134] sm:$0xf]
        %v6194 = vld [vmem:[%s6115 + $0x138] sm:$0xf]
        %v6195 = vld [vmem:[%s6115 + $0x13c] sm:$0xf]
        %v6196 = vld [vmem:[%s6115 + $0x140] sm:$0xf]
        %v6197 = vld [vmem:[%s6115 + $0x144] sm:$0xf]
        %v6198 = vld [vmem:[%s6115 + $0x148] sm:$0xf]
        %v6199 = vld [vmem:[%s6115 + $0x14c] sm:$0xf]
        %v6200 = vld [vmem:[%s6115 + $0x150] sm:$0xf]
        %v6201 = vld [vmem:[%s6115 + $0x154] sm:$0xf]
        %v6202 = vld [vmem:[%s6115 + $0x158] sm:$0xf]
        %v6203 = vld [vmem:[%s6115 + $0x15c] sm:$0xf]
        %v6204 = vld [vmem:[%s6115 + $0x160] sm:$0xf]
        %v6205 = vld [vmem:[%s6115 + $0x164] sm:$0xf]
        %v6206 = vld [vmem:[%s6115 + $0x168] sm:$0xf]
        %v6207 = vld [vmem:[%s6115 + $0x16c] sm:$0xf]
        %v6208 = vld [vmem:[%s6115 + $0x170] sm:$0xf]
        %v6209 = vld [vmem:[%s6115 + $0x174] sm:$0xf]
        %v6210 = vld [vmem:[%s6115 + $0x178] sm:$0xf]
        %v6211 = vld [vmem:[%s6115 + $0x17c] sm:$0xf]
        %v6212 = vld [vmem:[%s6115 + $0x180] sm:$0xf]
        %v6213 = vld [vmem:[%s6115 + $0x184] sm:$0xf]
        %v6214 = vld [vmem:[%s6115 + $0x188] sm:$0xf]
        %v6215 = vld [vmem:[%s6115 + $0x18c] sm:$0xf]
        %v6216 = vld [vmem:[%s6115 + $0x190] sm:$0xf]
        %v6217 = vld [vmem:[%s6115 + $0x194] sm:$0xf]
        %v6218 = vld [vmem:[%s6115 + $0x198] sm:$0xf]
        %v6219 = vld [vmem:[%s6115 + $0x19c] sm:$0xf]
        %v6220 = vld [vmem:[%s6115 + $0x1a0] sm:$0xf]
        %v6221 = vld [vmem:[%s6115 + $0x1a4] sm:$0xf]
        %v6222 = vld [vmem:[%s6115 + $0x1a8] sm:$0xf]
        %v6223 = vld [vmem:[%s6115 + $0x1ac] sm:$0xf]
        %v6224 = vld [vmem:[%s6115 + $0x1b0] sm:$0xf]
        %v6225 = vld [vmem:[%s6115 + $0x1b4] sm:$0xf]
        %v6226 = vld [vmem:[%s6115 + $0x1b8] sm:$0xf]
        %v6227 = vld [vmem:[%s6115 + $0x1bc] sm:$0xf]
        %v6228 = vld [vmem:[%s6115 + $0x1c0] sm:$0xf]
        %v6229 = vld [vmem:[%s6115 + $0x1c4] sm:$0xf]
        %v6230 = vld [vmem:[%s6115 + $0x1c8] sm:$0xf]
        %v6231 = vld [vmem:[%s6115 + $0x1cc] sm:$0xf]
        %v6232 = vld [vmem:[%s6115 + $0x1d0] sm:$0xf]
        %v6233 = vld [vmem:[%s6115 + $0x1d4] sm:$0xf]
        %v6234 = vld [vmem:[%s6115 + $0x1d8] sm:$0xf]
        %v6235 = vld [vmem:[%s6115 + $0x1dc] sm:$0xf]
        %v6236 = vld [vmem:[%s6115 + $0x1e0] sm:$0xf]
        %v6237 = vld [vmem:[%s6115 + $0x1e4] sm:$0xf]
        %v6238 = vld [vmem:[%s6115 + $0x1e8] sm:$0xf]
        %v6239 = vld [vmem:[%s6115 + $0x1ec] sm:$0xf]
        %v6240 = vld [vmem:[%s6115 + $0x1f0] sm:$0xf]
        %v6241 = vld [vmem:[%s6115 + $0x1f4] sm:$0xf]
        %v6242 = vld [vmem:[%s6115 + $0x1f8] sm:$0xf]
        %v6243 = vld [vmem:[%s6115 + $0x1fc] sm:$0xf]
        %v6244 = vld [vmem:[%s6115 + $0x200] sm:$0xf]
        %v6245 = vld [vmem:[%s6115 + $0x204] sm:$0xf]
        %v6246 = vld [vmem:[%s6115 + $0x208] sm:$0xf]
        %v6247 = vld [vmem:[%s6115 + $0x20c] sm:$0xf]
        %v6248 = vld [vmem:[%s6115 + $0x210] sm:$0xf]
        %v6249 = vld [vmem:[%s6115 + $0x214] sm:$0xf]
        %v6250 = vld [vmem:[%s6115 + $0x218] sm:$0xf]
        %v6251 = vld [vmem:[%s6115 + $0x21c] sm:$0xf]
        %v6252 = vld [vmem:[%s6115 + $0x220] sm:$0xf]
        %v6253 = vld [vmem:[%s6115 + $0x224] sm:$0xf]
        %v6254 = vld [vmem:[%s6115 + $0x228] sm:$0xf]
        %v6255 = vld [vmem:[%s6115 + $0x22c] sm:$0xf]
        %v6256 = vld [vmem:[%s6115 + $0x230] sm:$0xf]
        %v6257 = vld [vmem:[%s6115 + $0x234] sm:$0xf]
        %v6258 = vld [vmem:[%s6115 + $0x238] sm:$0xf]
        %v6259 = vld [vmem:[%s6115 + $0x23c] sm:$0xf]
        %s6260 = scalar_lea.vmem %s2, 1
        %v6261 = vld [vmem:[%s6260] sm:$0x1]
        %v6263 = vlaneseq
        %v6264 = vshrl.u32 %v6263, 7
        %v6265 = vsub.s32 0, %v6264
        %v6266 = vrot.slane %v6261, %v6265
        %v6412 = vunpack.c.l.b16 %v6116
        %v6413 = vunpack.c.l.b16 %v6117
        %v6414 = vunpack.c.l.b16 %v6118
        %v6415 = vunpack.c.l.b16 %v6119
        %v6416 = vunpack.c.l.b16 %v6120
        %v6417 = vunpack.c.l.b16 %v6121
        %v6418 = vunpack.c.l.b16 %v6122
        %v6419 = vunpack.c.l.b16 %v6123
        %v6420 = vunpack.c.l.b16 %v6124
        %v6421 = vunpack.c.l.b16 %v6125
        %v6422 = vunpack.c.l.b16 %v6126
        %v6423 = vunpack.c.l.b16 %v6127
        %v6424 = vunpack.c.l.b16 %v6128
        %v6425 = vunpack.c.l.b16 %v6129
        %v6426 = vunpack.c.l.b16 %v6130
        %v6427 = vunpack.c.l.b16 %v6131
        %v6428 = vunpack.c.l.b16 %v6132
        %v6429 = vunpack.c.l.b16 %v6133
        %v6430 = vunpack.c.l.b16 %v6134
        %v6431 = vunpack.c.l.b16 %v6135
        %v6432 = vunpack.c.l.b16 %v6136
        %v6433 = vunpack.c.l.b16 %v6137
        %v6434 = vunpack.c.l.b16 %v6138
        %v6435 = vunpack.c.l.b16 %v6139
        %v6436 = vunpack.c.l.b16 %v6140
        %v6437 = vunpack.c.l.b16 %v6141
        %v6438 = vunpack.c.l.b16 %v6142
        %v6439 = vunpack.c.l.b16 %v6143
        %v6440 = vunpack.c.l.b16 %v6144
        %v6441 = vunpack.c.l.b16 %v6145
        %v6442 = vunpack.c.l.b16 %v6146
        %v6443 = vunpack.c.l.b16 %v6147
        %v6444 = vunpack.c.l.b16 %v6148
        %v6445 = vunpack.c.l.b16 %v6149
        %v6446 = vunpack.c.l.b16 %v6150
        %v6447 = vunpack.c.l.b16 %v6151
        %v6448 = vunpack.c.l.b16 %v6152
        %v6449 = vunpack.c.l.b16 %v6153
        %v6450 = vunpack.c.l.b16 %v6154
        %v6451 = vunpack.c.l.b16 %v6155
        %v6452 = vunpack.c.l.b16 %v6156
        %v6453 = vunpack.c.l.b16 %v6157
        %v6454 = vunpack.c.l.b16 %v6158
        %v6455 = vunpack.c.l.b16 %v6159
        %v6456 = vunpack.c.l.b16 %v6160
        %v6457 = vunpack.c.l.b16 %v6161
        %v6458 = vunpack.c.l.b16 %v6162
        %v6459 = vunpack.c.l.b16 %v6163
        %v6460 = vunpack.c.l.b16 %v6164
        %v6461 = vunpack.c.l.b16 %v6165
        %v6462 = vunpack.c.l.b16 %v6166
        %v6463 = vunpack.c.l.b16 %v6167
        %v6464 = vunpack.c.l.b16 %v6168
        %v6465 = vunpack.c.l.b16 %v6169
        %v6466 = vunpack.c.l.b16 %v6170
        %v6467 = vunpack.c.l.b16 %v6171
        %v6468 = vunpack.c.l.b16 %v6172
        %v6469 = vunpack.c.l.b16 %v6173
        %v6470 = vunpack.c.l.b16 %v6174
        %v6471 = vunpack.c.l.b16 %v6175
        %v6472 = vunpack.c.l.b16 %v6176
        %v6473 = vunpack.c.l.b16 %v6177
        %v6474 = vunpack.c.l.b16 %v6178
        %v6475 = vunpack.c.l.b16 %v6179
        %v6476 = vunpack.c.l.b16 %v6180
        %v6477 = vunpack.c.l.b16 %v6181
        %v6478 = vunpack.c.l.b16 %v6182
        %v6479 = vunpack.c.l.b16 %v6183
        %v6480 = vunpack.c.l.b16 %v6184
        %v6481 = vunpack.c.l.b16 %v6185
        %v6482 = vunpack.c.l.b16 %v6186
        %v6483 = vunpack.c.l.b16 %v6187
        %v6484 = vunpack.c.l.b16 %v6188
        %v6485 = vunpack.c.l.b16 %v6189
        %v6486 = vunpack.c.l.b16 %v6190
        %v6487 = vunpack.c.l.b16 %v6191
        %v6488 = vunpack.c.l.b16 %v6192
        %v6489 = vunpack.c.l.b16 %v6193
        %v6490 = vunpack.c.l.b16 %v6194
        %v6491 = vunpack.c.l.b16 %v6195
        %v6492 = vunpack.c.l.b16 %v6196
        %v6493 = vunpack.c.l.b16 %v6197
        %v6494 = vunpack.c.l.b16 %v6198
        %v6495 = vunpack.c.l.b16 %v6199
        %v6496 = vunpack.c.l.b16 %v6200
        %v6497 = vunpack.c.l.b16 %v6201
        %v6498 = vunpack.c.l.b16 %v6202
        %v6499 = vunpack.c.l.b16 %v6203
        %v6500 = vunpack.c.l.b16 %v6204
        %v6501 = vunpack.c.l.b16 %v6205
        %v6502 = vunpack.c.l.b16 %v6206
        %v6503 = vunpack.c.l.b16 %v6207
        %v6504 = vunpack.c.l.b16 %v6208
        %v6505 = vunpack.c.l.b16 %v6209
        %v6506 = vunpack.c.l.b16 %v6210
        %v6507 = vunpack.c.l.b16 %v6211
        %v6508 = vunpack.c.l.b16 %v6212
        %v6509 = vunpack.c.l.b16 %v6213
        %v6510 = vunpack.c.l.b16 %v6214
        %v6511 = vunpack.c.l.b16 %v6215
        %v6512 = vunpack.c.l.b16 %v6216
        %v6513 = vunpack.c.l.b16 %v6217
        %v6514 = vunpack.c.l.b16 %v6218
        %v6515 = vunpack.c.l.b16 %v6219
        %v6516 = vunpack.c.l.b16 %v6220
        %v6517 = vunpack.c.l.b16 %v6221
        %v6518 = vunpack.c.l.b16 %v6222
        %v6519 = vunpack.c.l.b16 %v6223
        %v6520 = vunpack.c.l.b16 %v6224
        %v6521 = vunpack.c.l.b16 %v6225
        %v6522 = vunpack.c.l.b16 %v6226
        %v6523 = vunpack.c.l.b16 %v6227
        %v6524 = vunpack.c.l.b16 %v6228
        %v6525 = vunpack.c.l.b16 %v6229
        %v6526 = vunpack.c.l.b16 %v6230
        %v6527 = vunpack.c.l.b16 %v6231
        %v6528 = vunpack.c.l.b16 %v6232
        %v6529 = vunpack.c.l.b16 %v6233
        %v6530 = vunpack.c.l.b16 %v6234
        %v6531 = vunpack.c.l.b16 %v6235
        %v6532 = vunpack.c.l.b16 %v6236
        %v6533 = vunpack.c.l.b16 %v6237
        %v6534 = vunpack.c.l.b16 %v6238
        %v6535 = vunpack.c.l.b16 %v6239
        %v6536 = vunpack.c.l.b16 %v6240
        %v6537 = vunpack.c.l.b16 %v6241
        %v6538 = vunpack.c.l.b16 %v6242
        %v6539 = vunpack.c.l.b16 %v6243
        %v6540 = vunpack.c.l.b16 %v6244
        %v6541 = vunpack.c.l.b16 %v6245
        %v6542 = vunpack.c.l.b16 %v6246
        %v6543 = vunpack.c.l.b16 %v6247
        %v6544 = vunpack.c.l.b16 %v6248
        %v6545 = vunpack.c.l.b16 %v6249
        %v6546 = vunpack.c.l.b16 %v6250
        %v6547 = vunpack.c.l.b16 %v6251
        %v6548 = vunpack.c.l.b16 %v6252
        %v6549 = vunpack.c.l.b16 %v6253
        %v6550 = vunpack.c.l.b16 %v6254
        %v6551 = vunpack.c.l.b16 %v6255
        %v6552 = vunpack.c.l.b16 %v6256
        %v6553 = vunpack.c.l.b16 %v6257
        %v6554 = vunpack.c.l.b16 %v6258
        %v6555 = vunpack.c.l.b16 %v6259
        %v6556 = vpack.c.b16 %v6413, %v6412
        %v6557 = vpack.c.b16 %v6415, %v6414
        %v6558 = vpack.c.b16 %v6417, %v6416
        %v6559 = vpack.c.b16 %v6419, %v6418
        %v6560 = vpack.c.b16 %v6421, %v6420
        %v6561 = vpack.c.b16 %v6423, %v6422
        %v6562 = vpack.c.b16 %v6425, %v6424
        %v6563 = vpack.c.b16 %v6427, %v6426
        %v6564 = vpack.c.b16 %v6429, %v6428
        %v6565 = vpack.c.b16 %v6431, %v6430
        %v6566 = vpack.c.b16 %v6433, %v6432
        %v6567 = vpack.c.b16 %v6435, %v6434
        %v6568 = vpack.c.b16 %v6437, %v6436
        %v6569 = vpack.c.b16 %v6439, %v6438
        %v6570 = vpack.c.b16 %v6441, %v6440
        %v6571 = vpack.c.b16 %v6443, %v6442
        %v6572 = vpack.c.b16 %v6445, %v6444
        %v6573 = vpack.c.b16 %v6447, %v6446
        %v6574 = vpack.c.b16 %v6449, %v6448
        %v6575 = vpack.c.b16 %v6451, %v6450
        %v6576 = vpack.c.b16 %v6453, %v6452
        %v6577 = vpack.c.b16 %v6455, %v6454
        %v6578 = vpack.c.b16 %v6457, %v6456
        %v6579 = vpack.c.b16 %v6459, %v6458
        %v6580 = vpack.c.b16 %v6461, %v6460
        %v6581 = vpack.c.b16 %v6463, %v6462
        %v6582 = vpack.c.b16 %v6465, %v6464
        %v6583 = vpack.c.b16 %v6467, %v6466
        %v6584 = vpack.c.b16 %v6469, %v6468
        %v6585 = vpack.c.b16 %v6471, %v6470
        %v6586 = vpack.c.b16 %v6473, %v6472
        %v6587 = vpack.c.b16 %v6475, %v6474
        %v6588 = vpack.c.b16 %v6477, %v6476
        %v6589 = vpack.c.b16 %v6479, %v6478
        %v6590 = vpack.c.b16 %v6481, %v6480
        %v6591 = vpack.c.b16 %v6483, %v6482
        %v6592 = vpack.c.b16 %v6485, %v6484
        %v6593 = vpack.c.b16 %v6487, %v6486
        %v6594 = vpack.c.b16 %v6489, %v6488
        %v6595 = vpack.c.b16 %v6491, %v6490
        %v6596 = vpack.c.b16 %v6493, %v6492
        %v6597 = vpack.c.b16 %v6495, %v6494
        %v6598 = vpack.c.b16 %v6497, %v6496
        %v6599 = vpack.c.b16 %v6499, %v6498
        %v6600 = vpack.c.b16 %v6501, %v6500
        %v6601 = vpack.c.b16 %v6503, %v6502
        %v6602 = vpack.c.b16 %v6505, %v6504
        %v6603 = vpack.c.b16 %v6507, %v6506
        %v6604 = vpack.c.b16 %v6509, %v6508
        %v6605 = vpack.c.b16 %v6511, %v6510
        %v6606 = vpack.c.b16 %v6513, %v6512
        %v6607 = vpack.c.b16 %v6515, %v6514
        %v6608 = vpack.c.b16 %v6517, %v6516
        %v6609 = vpack.c.b16 %v6519, %v6518
        %v6610 = vpack.c.b16 %v6521, %v6520
        %v6611 = vpack.c.b16 %v6523, %v6522
        %v6612 = vpack.c.b16 %v6525, %v6524
        %v6613 = vpack.c.b16 %v6527, %v6526
        %v6614 = vpack.c.b16 %v6529, %v6528
        %v6615 = vpack.c.b16 %v6531, %v6530
        %v6616 = vpack.c.b16 %v6533, %v6532
        %v6617 = vpack.c.b16 %v6535, %v6534
        %v6618 = vpack.c.b16 %v6537, %v6536
        %v6619 = vpack.c.b16 %v6539, %v6538
        %v6620 = vpack.c.b16 %v6541, %v6540
        %v6621 = vpack.c.b16 %v6543, %v6542
        %v6622 = vpack.c.b16 %v6545, %v6544
        %v6623 = vpack.c.b16 %v6547, %v6546
        %v6624 = vpack.c.b16 %v6549, %v6548
        %v6625 = vpack.c.b16 %v6551, %v6550
        %v6626 = vpack.c.b16 %v6553, %v6552
        %v6627 = vpack.c.b16 %v6555, %v6554
        %6700 = vmatprep.subr.bf16.mxu0 0
        %6701 = vmatpush1.bf16.msra.mxu0 %v6556
        %6702 = vmatprep.subr.bf16.mxu0 0
        %6703 = vmatpush1.bf16.msra.mxu0 %v6557
        %6704 = vmatprep.subr.bf16.mxu0 0
        %6705 = vmatpush1.bf16.msra.mxu0 %v6558
        %6706 = vmatprep.subr.bf16.mxu0 0
        %6707 = vmatpush1.bf16.msra.mxu0 %v6559
        %6708 = vmatprep.subr.bf16.mxu0 0
        %6709 = vmatpush1.bf16.msra.mxu0 %v6560
        %6710 = vmatprep.subr.bf16.mxu0 0
        %6711 = vmatpush1.bf16.msra.mxu0 %v6561
        %6712 = vmatprep.subr.bf16.mxu0 0
        %6713 = vmatpush1.bf16.msra.mxu0 %v6562
        %6714 = vmatprep.subr.bf16.mxu0 0
        %6715 = vmatpush1.bf16.msra.mxu0 %v6563
        %6716 = vmatprep.subr.bf16.mxu0 0
        %6717 = vmatpush1.bf16.msra.mxu0 %v6564
        %6718 = vmatprep.subr.bf16.mxu0 0
        %6719 = vmatpush1.bf16.msra.mxu0 %v6565
        %6720 = vmatprep.subr.bf16.mxu0 0
        %6721 = vmatpush1.bf16.msra.mxu0 %v6566
        %6722 = vmatprep.subr.bf16.mxu0 0
        %6723 = vmatpush1.bf16.msra.mxu0 %v6567
        %6724 = vmatprep.subr.bf16.mxu0 0
        %6725 = vmatpush1.bf16.msra.mxu0 %v6568
        %6726 = vmatprep.subr.bf16.mxu0 0
        %6727 = vmatpush1.bf16.msra.mxu0 %v6569
        %6728 = vmatprep.subr.bf16.mxu0 0
        %6729 = vmatpush1.bf16.msra.mxu0 %v6570
        %6730 = vmatprep.subr.bf16.mxu0 0
        %6731 = vmatpush1.bf16.msra.mxu0 %v6571
        %6732 = vmatprep.mubr.bf16.mxu0 %v5317
        %6733 = vmatmul.mubr.bf16.gmra.mrb[0].mxu0 %v5305
        %v6734 = vpop.f32.mrb[0].mxu0
        %v6735 = vadd.f32 %v6266, %v6734
        %v6736 = vpop.f32.mrb[0].mxu0
        %v6737 = vpop.f32.mrb[0].mxu0
        %v6738 = vadd.f32 %v6266, %v6737
        %v6739 = vpop.f32.mrb[0].mxu0
        %6740 = vmatprep.mubr.bf16.mxu0 %v5410
        %6741 = vmatmul.mubr.bf16.gmra.mrb[0].mxu0 %v5398
        %v6742 = vpop.f32.mrb[0].mxu0
        %v6743 = vadd.f32 %v6266, %v6742
        %v6744 = vpop.f32.mrb[0].mxu0
        %v6745 = vpop.f32.mrb[0].mxu0
        %v6746 = vadd.f32 %v6266, %v6745
        %v6747 = vpop.f32.mrb[0].mxu0
        %6748 = vmatprep.mubr.bf16.mxu0 %v5503
        %6749 = vmatmul.mubr.bf16.gmra.mrb[0].mxu0 %v5491
        %v6750 = vpop.f32.mrb[0].mxu0
        %v6751 = vadd.f32 %v6266, %v6750
        %v6752 = vpop.f32.mrb[0].mxu0
        %v6753 = vpop.f32.mrb[0].mxu0
        %v6754 = vadd.f32 %v6266, %v6753
        %v6755 = vpop.f32.mrb[0].mxu0
        %6756 = vmatprep.mubr.bf16.mxu0 %v5596
        %6757 = vmatmul.mubr.bf16.gmra.mrb[0].mxu0 %v5584
        %v6758 = vpop.f32.mrb[0].mxu0
        %v6759 = vadd.f32 %v6266, %v6758
        %v6760 = vpop.f32.mrb[0].mxu0
        %v6761 = vpop.f32.mrb[0].mxu0
        %v6762 = vadd.f32 %v6266, %v6761
        %v6763 = vpop.f32.mrb[0].mxu0
        %6764 = vmatprep.mubr.bf16.mxu0 %v5689
        %6765 = vmatmul.mubr.bf16.gmra.mrb[0].mxu0 %v5677
        %v6766 = vpop.f32.mrb[0].mxu0
        %v6767 = vadd.f32 %v6266, %v6766
        %v6768 = vpop.f32.mrb[0].mxu0
        %v6769 = vpop.f32.mrb[0].mxu0
        %v6770 = vadd.f32 %v6266, %v6769
        %v6771 = vpop.f32.mrb[0].mxu0
        %6772 = vmatprep.mubr.bf16.mxu0 %v5782
        %6773 = vmatmul.mubr.bf16.gmra.mrb[0].mxu0 %v5770
        %v6774 = vpop.f32.mrb[0].mxu0
        %v6775 = vadd.f32 %v6266, %v6774
        %v6776 = vpop.f32.mrb[0].mxu0
        %v6777 = vpop.f32.mrb[0].mxu0
        %v6778 = vadd.f32 %v6266, %v6777
        %v6779 = vpop.f32.mrb[0].mxu0
        %6780 = vmatprep.mubr.bf16.mxu0 %v5875
        %6781 = vmatmul.mubr.bf16.gmra.mrb[0].mxu0 %v5863
        %v6782 = vpop.f32.mrb[0].mxu0
        %v6783 = vadd.f32 %v6266, %v6782
        %v6784 = vpop.f32.mrb[0].mxu0
        %v6785 = vpop.f32.mrb[0].mxu0
        %v6786 = vadd.f32 %v6266, %v6785
        %v6787 = vpop.f32.mrb[0].mxu0
        %6788 = vmatprep.mubr.bf16.mxu0 %v5968
        %6789 = vmatmul.mubr.bf16.gmra.mrb[0].mxu0 %v5956
        %v6790 = vpop.f32.mrb[0].mxu0
        %v6791 = vadd.f32 %v6266, %v6790
        %v6792 = vpop.f32.mrb[0].mxu0
        %v6793 = vpop.f32.mrb[0].mxu0
        %v6794 = vadd.f32 %v6266, %v6793
        %v6795 = vpop.f32.mrb[0].mxu0
        %6796 = vdwg.mxu0
        %6797 = vmatprep.subr.bf16.mxu0 0
        %6798 = vmatpush1.bf16.msra.mxu0 %v6572
        %6799 = vmatprep.subr.bf16.mxu0 0
        %6800 = vmatpush1.bf16.msra.mxu0 %v6573
        %6801 = vmatprep.subr.bf16.mxu0 0
        %6802 = vmatpush1.bf16.msra.mxu0 %v6574
        %6803 = vmatprep.subr.bf16.mxu0 0
        %6804 = vmatpush1.bf16.msra.mxu0 %v6575
        %6805 = vmatprep.subr.bf16.mxu0 0
        %6806 = vmatpush1.bf16.msra.mxu0 %v6576
        %6807 = vmatprep.subr.bf16.mxu0 0
        %6808 = vmatpush1.bf16.msra.mxu0 %v6577
        %6809 = vmatprep.subr.bf16.mxu0 0
        %6810 = vmatpush1.bf16.msra.mxu0 %v6578
        %6811 = vmatprep.subr.bf16.mxu0 0
        %6812 = vmatpush1.bf16.msra.mxu0 %v6579
        %6813 = vmatprep.subr.bf16.mxu0 0
        %6814 = vmatpush1.bf16.msra.mxu0 %v6580
        %6815 = vmatprep.subr.bf16.mxu0 0
        %6816 = vmatpush1.bf16.msra.mxu0 %v6581
        %6817 = vmatprep.subr.bf16.mxu0 0
        %6818 = vmatpush1.bf16.msra.mxu0 %v6582
        %6819 = vmatprep.subr.bf16.mxu0 0
        %6820 = vmatpush1.bf16.msra.mxu0 %v6583
        %6821 = vmatprep.subr.bf16.mxu0 0
        %6822 = vmatpush1.bf16.msra.mxu0 %v6584
        %6823 = vmatprep.subr.bf16.mxu0 0
        %6824 = vmatpush1.bf16.msra.mxu0 %v6585
        %6825 = vmatprep.subr.bf16.mxu0 0
        %6826 = vmatpush1.bf16.msra.mxu0 %v6586
        %6827 = vmatprep.subr.bf16.mxu0 0
        %6828 = vmatpush1.bf16.msra.mxu0 %v6587
        %6829 = vmatprep.mubr.bf16.mxu0 %v5336
        %6830 = vmatmul.mubr.bf16.gmra.mrb[0].mxu0 %v5329
        %v6831 = vpop.f32.mrb[0].mxu0
        %v6832 = vadd.f32 %v6735, %v6831
        %v6833 = vpop.f32.mrb[0].mxu0
        %v6834 = vpop.f32.mrb[0].mxu0
        %v6835 = vadd.f32 %v6738, %v6834
        %v6836 = vpop.f32.mrb[0].mxu0
        %6837 = vmatprep.mubr.bf16.mxu0 %v5429
        %6838 = vmatmul.mubr.bf16.gmra.mrb[0].mxu0 %v5422
        %v6839 = vpop.f32.mrb[0].mxu0
        %v6840 = vadd.f32 %v6743, %v6839
        %v6841 = vpop.f32.mrb[0].mxu0
        %v6842 = vpop.f32.mrb[0].mxu0
        %v6843 = vadd.f32 %v6746, %v6842
        %v6844 = vpop.f32.mrb[0].mxu0
        %6845 = vmatprep.mubr.bf16.mxu0 %v5522
        %6846 = vmatmul.mubr.bf16.gmra.mrb[0].mxu0 %v5515
        %v6847 = vpop.f32.mrb[0].mxu0
        %v6848 = vadd.f32 %v6751, %v6847
        %v6849 = vpop.f32.mrb[0].mxu0
        %v6850 = vpop.f32.mrb[0].mxu0
        %v6851 = vadd.f32 %v6754, %v6850
        %v6852 = vpop.f32.mrb[0].mxu0
        %6853 = vmatprep.mubr.bf16.mxu0 %v5615
        %6854 = vmatmul.mubr.bf16.gmra.mrb[0].mxu0 %v5608
        %v6855 = vpop.f32.mrb[0].mxu0
        %v6856 = vadd.f32 %v6759, %v6855
        %v6857 = vpop.f32.mrb[0].mxu0
        %v6858 = vpop.f32.mrb[0].mxu0
        %v6859 = vadd.f32 %v6762, %v6858
        %v6860 = vpop.f32.mrb[0].mxu0
        %6861 = vmatprep.mubr.bf16.mxu0 %v5708
        %6862 = vmatmul.mubr.bf16.gmra.mrb[0].mxu0 %v5701
        %v6863 = vpop.f32.mrb[0].mxu0
        %v6864 = vadd.f32 %v6767, %v6863
        %v6865 = vpop.f32.mrb[0].mxu0
        %v6866 = vpop.f32.mrb[0].mxu0
        %v6867 = vadd.f32 %v6770, %v6866
        %v6868 = vpop.f32.mrb[0].mxu0
        %6869 = vmatprep.mubr.bf16.mxu0 %v5801
        %6870 = vmatmul.mubr.bf16.gmra.mrb[0].mxu0 %v5794
        %v6871 = vpop.f32.mrb[0].mxu0
        %v6872 = vadd.f32 %v6775, %v6871
        %v6873 = vpop.f32.mrb[0].mxu0
        %v6874 = vpop.f32.mrb[0].mxu0
        %v6875 = vadd.f32 %v6778, %v6874
        %v6876 = vpop.f32.mrb[0].mxu0
        %6877 = vmatprep.mubr.bf16.mxu0 %v5894
        %6878 = vmatmul.mubr.bf16.gmra.mrb[0].mxu0 %v5887
        %v6879 = vpop.f32.mrb[0].mxu0
        %v6880 = vadd.f32 %v6783, %v6879
        %v6881 = vpop.f32.mrb[0].mxu0
        %v6882 = vpop.f32.mrb[0].mxu0
        %v6883 = vadd.f32 %v6786, %v6882
        %v6884 = vpop.f32.mrb[0].mxu0
        %6885 = vmatprep.mubr.bf16.mxu0 %v5987
        %6886 = vmatmul.mubr.bf16.gmra.mrb[0].mxu0 %v5980
        %v6887 = vpop.f32.mrb[0].mxu0
        %v6888 = vadd.f32 %v6791, %v6887
        %v6889 = vpop.f32.mrb[0].mxu0
        %v6890 = vpop.f32.mrb[0].mxu0
        %v6891 = vadd.f32 %v6794, %v6890
        %v6892 = vpop.f32.mrb[0].mxu0
        %6893 = vdwg.mxu0
        %6894 = vmatprep.subr.bf16.mxu0 0
        %6895 = vmatpush1.bf16.msra.mxu0 %v6588
        %6896 = vmatprep.subr.bf16.mxu0 0
        %6897 = vmatpush1.bf16.msra.mxu0 %v6589
        %6898 = vmatprep.subr.bf16.mxu0 0
        %6899 = vmatpush1.bf16.msra.mxu0 %v6590
        %6900 = vmatprep.subr.bf16.mxu0 0
        %6901 = vmatpush1.bf16.msra.mxu0 %v6591
        %6902 = vmatprep.subr.bf16.mxu0 0
        %6903 = vmatpush1.bf16.msra.mxu0 %v6592
        %6904 = vmatprep.subr.bf16.mxu0 0
        %6905 = vmatpush1.bf16.msra.mxu0 %v6593
        %6906 = vmatprep.subr.bf16.mxu0 0
        %6907 = vmatpush1.bf16.msra.mxu0 %v6594
        %6908 = vmatprep.subr.bf16.mxu0 0
        %6909 = vmatpush1.bf16.msra.mxu0 %v6595
        %6910 = vmatprep.subr.bf16.mxu0 0
        %6911 = vmatpush1.bf16.msra.mxu0 %v6596
        %6912 = vmatprep.subr.bf16.mxu0 0
        %6913 = vmatpush1.bf16.msra.mxu0 %v6597
        %6914 = vmatprep.subr.bf16.mxu0 0
        %6915 = vmatpush1.bf16.msra.mxu0 %v6598
        %6916 = vmatprep.subr.bf16.mxu0 0
        %6917 = vmatpush1.bf16.msra.mxu0 %v6599
        %6918 = vmatprep.subr.bf16.mxu0 0
        %6919 = vmatpush1.bf16.msra.mxu0 %v6600
        %6920 = vmatprep.subr.bf16.mxu0 0
        %6921 = vmatpush1.bf16.msra.mxu0 %v6601
        %6922 = vmatprep.subr.bf16.mxu0 0
        %6923 = vmatpush1.bf16.msra.mxu0 %v6602
        %6924 = vmatprep.subr.bf16.mxu0 0
        %6925 = vmatpush1.bf16.msra.mxu0 %v6603
        %6926 = vmatprep.mubr.bf16.mxu0 %v5360
        %6927 = vmatmul.mubr.bf16.gmra.mrb[0].mxu0 %v5348
        %v6928 = vpop.f32.mrb[0].mxu0
        %v6929 = vadd.f32 %v6832, %v6928
        %v6930 = vpop.f32.mrb[0].mxu0
        %v6931 = vpop.f32.mrb[0].mxu0
        %v6932 = vadd.f32 %v6835, %v6931
        %v6933 = vpop.f32.mrb[0].mxu0
        %6934 = vmatprep.mubr.bf16.mxu0 %v5453
        %6935 = vmatmul.mubr.bf16.gmra.mrb[0].mxu0 %v5441
        %v6936 = vpop.f32.mrb[0].mxu0
        %v6937 = vadd.f32 %v6840, %v6936
        %v6938 = vpop.f32.mrb[0].mxu0
        %v6939 = vpop.f32.mrb[0].mxu0
        %v6940 = vadd.f32 %v6843, %v6939
        %v6941 = vpop.f32.mrb[0].mxu0
        %6942 = vmatprep.mubr.bf16.mxu0 %v5546
        %6943 = vmatmul.mubr.bf16.gmra.mrb[0].mxu0 %v5534
        %v6944 = vpop.f32.mrb[0].mxu0
        %v6945 = vadd.f32 %v6848, %v6944
        %v6946 = vpop.f32.mrb[0].mxu0
        %v6947 = vpop.f32.mrb[0].mxu0
        %v6948 = vadd.f32 %v6851, %v6947
        %v6949 = vpop.f32.mrb[0].mxu0
        %6950 = vmatprep.mubr.bf16.mxu0 %v5639
        %6951 = vmatmul.mubr.bf16.gmra.mrb[0].mxu0 %v5627
        %v6952 = vpop.f32.mrb[0].mxu0
        %v6953 = vadd.f32 %v6856, %v6952
        %v6954 = vpop.f32.mrb[0].mxu0
        %v6955 = vpop.f32.mrb[0].mxu0
        %v6956 = vadd.f32 %v6859, %v6955
        %v6957 = vpop.f32.mrb[0].mxu0
        %6958 = vmatprep.mubr.bf16.mxu0 %v5732
        %6959 = vmatmul.mubr.bf16.gmra.mrb[0].mxu0 %v5720
        %v6960 = vpop.f32.mrb[0].mxu0
        %v6961 = vadd.f32 %v6864, %v6960
        %v6962 = vpop.f32.mrb[0].mxu0
        %v6963 = vpop.f32.mrb[0].mxu0
        %v6964 = vadd.f32 %v6867, %v6963
        %v6965 = vpop.f32.mrb[0].mxu0
        %6966 = vmatprep.mubr.bf16.mxu0 %v5825
        %6967 = vmatmul.mubr.bf16.gmra.mrb[0].mxu0 %v5813
        %v6968 = vpop.f32.mrb[0].mxu0
        %v6969 = vadd.f32 %v6872, %v6968
        %v6970 = vpop.f32.mrb[0].mxu0
        %v6971 = vpop.f32.mrb[0].mxu0
        %v6972 = vadd.f32 %v6875, %v6971
        %v6973 = vpop.f32.mrb[0].mxu0
        %6974 = vmatprep.mubr.bf16.mxu0 %v5918
        %6975 = vmatmul.mubr.bf16.gmra.mrb[0].mxu0 %v5906
        %v6976 = vpop.f32.mrb[0].mxu0
        %v6977 = vadd.f32 %v6880, %v6976
        %v6978 = vpop.f32.mrb[0].mxu0
        %v6979 = vpop.f32.mrb[0].mxu0
        %v6980 = vadd.f32 %v6883, %v6979
        %v6981 = vpop.f32.mrb[0].mxu0
        %6982 = vmatprep.mubr.bf16.mxu0 %v6011
        %6983 = vmatmul.mubr.bf16.gmra.mrb[0].mxu0 %v5999
        %v6984 = vpop.f32.mrb[0].mxu0
        %v6985 = vadd.f32 %v6888, %v6984
        %v6986 = vpop.f32.mrb[0].mxu0
        %v6987 = vpop.f32.mrb[0].mxu0
        %v6988 = vadd.f32 %v6891, %v6987
        %v6989 = vpop.f32.mrb[0].mxu0
        %6990 = vdwg.mxu0
        %6991 = vmatprep.subr.bf16.mxu0 0
        %6992 = vmatpush1.bf16.msra.mxu0 %v6604
        %6993 = vmatprep.subr.bf16.mxu0 0
        %6994 = vmatpush1.bf16.msra.mxu0 %v6605
        %6995 = vmatprep.subr.bf16.mxu0 0
        %6996 = vmatpush1.bf16.msra.mxu0 %v6606
        %6997 = vmatprep.subr.bf16.mxu0 0
        %6998 = vmatpush1.bf16.msra.mxu0 %v6607
        %6999 = vmatprep.subr.bf16.mxu0 0
        %7000 = vmatpush1.bf16.msra.mxu0 %v6608
        %7001 = vmatprep.subr.bf16.mxu0 0
        %7002 = vmatpush1.bf16.msra.mxu0 %v6609
        %7003 = vmatprep.subr.bf16.mxu0 0
        %7004 = vmatpush1.bf16.msra.mxu0 %v6610
        %7005 = vmatprep.subr.bf16.mxu0 0
        %7006 = vmatpush1.bf16.msra.mxu0 %v6611
        %7007 = vmatprep.subr.bf16.mxu0 0
        %7008 = vmatpush1.bf16.msra.mxu0 %v6612
        %7009 = vmatprep.subr.bf16.mxu0 0
        %7010 = vmatpush1.bf16.msra.mxu0 %v6613
        %7011 = vmatprep.subr.bf16.mxu0 0
        %7012 = vmatpush1.bf16.msra.mxu0 %v6614
        %7013 = vmatprep.subr.bf16.mxu0 0
        %7014 = vmatpush1.bf16.msra.mxu0 %v6615
        %7015 = vmatprep.subr.bf16.mxu0 0
        %7016 = vmatpush1.bf16.msra.mxu0 %v6616
        %7017 = vmatprep.subr.bf16.mxu0 0
        %7018 = vmatpush1.bf16.msra.mxu0 %v6617
        %7019 = vmatprep.subr.bf16.mxu0 0
        %7020 = vmatpush1.bf16.msra.mxu0 %v6618
        %7021 = vmatprep.subr.bf16.mxu0 0
        %7022 = vmatpush1.bf16.msra.mxu0 %v6619
        %7023 = vmatprep.mubr.bf16.mxu0 %v5379
        %7024 = vmatmul.mubr.bf16.gmra.mrb[0].mxu0 %v5367
        %v7025 = vpop.f32.mrb[0].mxu0
        %v7026 = vadd.f32 %v6929, %v7025
        %v7027 = vpop.f32.mrb[0].mxu0
        %v7028 = vpop.f32.mrb[0].mxu0
        %v7029 = vadd.f32 %v6932, %v7028
        %v7030 = vpop.f32.mrb[0].mxu0
        %7031 = vmatprep.mubr.bf16.mxu0 %v5472
        %7032 = vmatmul.mubr.bf16.gmra.mrb[0].mxu0 %v5460
        %v7033 = vpop.f32.mrb[0].mxu0
        %v7034 = vadd.f32 %v6937, %v7033
        %v7035 = vpop.f32.mrb[0].mxu0
        %v7036 = vpop.f32.mrb[0].mxu0
        %v7037 = vadd.f32 %v6940, %v7036
        %v7038 = vpop.f32.mrb[0].mxu0
        %7039 = vmatprep.mubr.bf16.mxu0 %v5565
        %7040 = vmatmul.mubr.bf16.gmra.mrb[0].mxu0 %v5553
        %v7041 = vpop.f32.mrb[0].mxu0
        %v7042 = vadd.f32 %v6945, %v7041
        %v7043 = vpop.f32.mrb[0].mxu0
        %v7044 = vpop.f32.mrb[0].mxu0
        %v7045 = vadd.f32 %v6948, %v7044
        %v7046 = vpop.f32.mrb[0].mxu0
        %7047 = vmatprep.mubr.bf16.mxu0 %v5658
        %7048 = vmatmul.mubr.bf16.gmra.mrb[0].mxu0 %v5646
        %v7049 = vpop.f32.mrb[0].mxu0
        %v7050 = vadd.f32 %v6953, %v7049
        %v7051 = vpop.f32.mrb[0].mxu0
        %v7052 = vpop.f32.mrb[0].mxu0
        %v7053 = vadd.f32 %v6956, %v7052
        %v7054 = vpop.f32.mrb[0].mxu0
        %7055 = vmatprep.mubr.bf16.mxu0 %v5751
        %7056 = vmatmul.mubr.bf16.gmra.mrb[0].mxu0 %v5739
        %v7057 = vpop.f32.mrb[0].mxu0
        %v7058 = vadd.f32 %v6961, %v7057
        %v7059 = vpop.f32.mrb[0].mxu0
        %v7060 = vpop.f32.mrb[0].mxu0
        %v7061 = vadd.f32 %v6964, %v7060
        %v7062 = vpop.f32.mrb[0].mxu0
        %7063 = vmatprep.mubr.bf16.mxu0 %v5844
        %7064 = vmatmul.mubr.bf16.gmra.mrb[0].mxu0 %v5832
        %v7065 = vpop.f32.mrb[0].mxu0
        %v7066 = vadd.f32 %v6969, %v7065
        %v7067 = vpop.f32.mrb[0].mxu0
        %v7068 = vpop.f32.mrb[0].mxu0
        %v7069 = vadd.f32 %v6972, %v7068
        %v7070 = vpop.f32.mrb[0].mxu0
        %7071 = vmatprep.mubr.bf16.mxu0 %v5937
        %7072 = vmatmul.mubr.bf16.gmra.mrb[0].mxu0 %v5925
        %v7073 = vpop.f32.mrb[0].mxu0
        %v7074 = vadd.f32 %v6977, %v7073
        %v7075 = vpop.f32.mrb[0].mxu0
        %v7076 = vpop.f32.mrb[0].mxu0
        %v7077 = vadd.f32 %v6980, %v7076
        %v7078 = vpop.f32.mrb[0].mxu0
        %7079 = vmatprep.mubr.bf16.mxu0 %v6030
        %7080 = vmatmul.mubr.bf16.gmra.mrb[0].mxu0 %v6018
        %v7081 = vpop.f32.mrb[0].mxu0
        %v7082 = vadd.f32 %v6985, %v7081
        %v7083 = vpop.f32.mrb[0].mxu0
        %v7084 = vpop.f32.mrb[0].mxu0
        %v7085 = vadd.f32 %v6988, %v7084
        %v7086 = vpop.f32.mrb[0].mxu0
        %7087 = vdwg.mxu0
        %7088 = vmatprep.subr.bf16.mxu0 0
        %7089 = vmatpush1.bf16.msra.mxu0 %v6620
        %7090 = vmatprep.subr.bf16.mxu0 0
        %7091 = vmatpush1.bf16.msra.mxu0 %v6621
        %7092 = vmatprep.subr.bf16.mxu0 0
        %7093 = vmatpush1.bf16.msra.mxu0 %v6622
        %7094 = vmatprep.subr.bf16.mxu0 0
        %7095 = vmatpush1.bf16.msra.mxu0 %v6623
        %7096 = vmatprep.subr.bf16.mxu0 0
        %7097 = vmatpush1.bf16.msra.mxu0 %v6624
        %7098 = vmatprep.subr.bf16.mxu0 0
        %7099 = vmatpush1.bf16.msra.mxu0 %v6625
        %7100 = vmatprep.subr.bf16.mxu0 0
        %7101 = vmatpush1.bf16.msra.mxu0 %v6626
        %7102 = vmatprep.subr.bf16.mxu0 0
        %7103 = vmatpush1.bf16.msra.mxu0 %v6627
        %7104 = vmatprep.subr.bf16.mxu0 0
        %7105 = vmatpush1.bf16.msra.mxu0 0
        %7106 = vmatprep.subr.bf16.mxu0 0
        %7107 = vmatpush1.bf16.msra.mxu0 0
        %7108 = vmatprep.subr.bf16.mxu0 0
        %7109 = vmatpush1.bf16.msra.mxu0 0
        %7110 = vmatprep.subr.bf16.mxu0 0
        %7111 = vmatpush1.bf16.msra.mxu0 0
        %7112 = vmatprep.subr.bf16.mxu0 0
        %7113 = vmatpush1.bf16.msra.mxu0 0
        %7114 = vmatprep.subr.bf16.mxu0 0
        %7115 = vmatpush1.bf16.msra.mxu0 0
        %7116 = vmatprep.subr.bf16.mxu0 0
        %7117 = vmatpush1.bf16.msra.mxu0 0
        %7118 = vmatprep.subr.bf16.mxu0 0
        %7119 = vmatpush1.bf16.msra.mxu0 0
        %7120 = vmatprep.mubr.bf16.mxu0 0
        %7121 = vmatmul.mubr.bf16.gmra.mrb[0].mxu0 %v5391
        %v7122 = vpop.f32.mrb[0].mxu0
        %v7123 = vadd.f32 %v7026, %v7122
        %v7124 = vpop.f32.mrb[0].mxu0
        %v7125 = vpop.f32.mrb[0].mxu0
        %v7126 = vadd.f32 %v7029, %v7125
        %v7127 = vpop.f32.mrb[0].mxu0
        %7128 = vmatprep.mubr.bf16.mxu0 0
        %7129 = vmatmul.mubr.bf16.gmra.mrb[0].mxu0 %v5484
        %v7130 = vpop.f32.mrb[0].mxu0
        %v7131 = vadd.f32 %v7034, %v7130
        %v7132 = vpop.f32.mrb[0].mxu0
        %v7133 = vpop.f32.mrb[0].mxu0
        %v7134 = vadd.f32 %v7037, %v7133
        %v7135 = vpop.f32.mrb[0].mxu0
        %7136 = vmatprep.mubr.bf16.mxu0 0
        %7137 = vmatmul.mubr.bf16.gmra.mrb[0].mxu0 %v5577
        %v7138 = vpop.f32.mrb[0].mxu0
        %v7139 = vadd.f32 %v7042, %v7138
        %v7140 = vpop.f32.mrb[0].mxu0
        %v7141 = vpop.f32.mrb[0].mxu0
        %v7142 = vadd.f32 %v7045, %v7141
        %v7143 = vpop.f32.mrb[0].mxu0
        %7144 = vmatprep.mubr.bf16.mxu0 0
        %7145 = vmatmul.mubr.bf16.gmra.mrb[0].mxu0 %v5670
        %v7146 = vpop.f32.mrb[0].mxu0
        %v7147 = vadd.f32 %v7050, %v7146
        %v7148 = vpop.f32.mrb[0].mxu0
        %v7149 = vpop.f32.mrb[0].mxu0
        %v7150 = vadd.f32 %v7053, %v7149
        %v7151 = vpop.f32.mrb[0].mxu0
        %7152 = vmatprep.mubr.bf16.mxu0 0
        %7153 = vmatmul.mubr.bf16.gmra.mrb[0].mxu0 %v5763
        %v7154 = vpop.f32.mrb[0].mxu0
        %v7155 = vadd.f32 %v7058, %v7154
        %v7156 = vpop.f32.mrb[0].mxu0
        %v7157 = vpop.f32.mrb[0].mxu0
        %v7158 = vadd.f32 %v7061, %v7157
        %v7159 = vpop.f32.mrb[0].mxu0
        %7160 = vmatprep.mubr.bf16.mxu0 0
        %7161 = vmatmul.mubr.bf16.gmra.mrb[0].mxu0 %v5856
        %v7162 = vpop.f32.mrb[0].mxu0
        %v7163 = vadd.f32 %v7066, %v7162
        %v7164 = vpop.f32.mrb[0].mxu0
        %v7165 = vpop.f32.mrb[0].mxu0
        %v7166 = vadd.f32 %v7069, %v7165
        %v7167 = vpop.f32.mrb[0].mxu0
        %7168 = vmatprep.mubr.bf16.mxu0 0
        %7169 = vmatmul.mubr.bf16.gmra.mrb[0].mxu0 %v5949
        %v7170 = vpop.f32.mrb[0].mxu0
        %v7171 = vadd.f32 %v7074, %v7170
        %v7172 = vpop.f32.mrb[0].mxu0
        %v7173 = vpop.f32.mrb[0].mxu0
        %v7174 = vadd.f32 %v7077, %v7173
        %v7175 = vpop.f32.mrb[0].mxu0
        %7176 = vmatprep.mubr.bf16.mxu0 0
        %7177 = vmatmul.mubr.bf16.gmra.mrb[0].mxu0 %v6042
        %v7178 = vpop.f32.mrb[0].mxu0
        %v7179 = vadd.f32 %v7082, %v7178
        %v7180 = vpop.f32.mrb[0].mxu0
        %v7181 = vpop.f32.mrb[0].mxu0
        %v7182 = vadd.f32 %v7085, %v7181
        %v7183 = vpop.f32.mrb[0].mxu0
        %7184 = vdwg.mxu0
        %v7185 = vmax.f32 %v7123, 0.0
        %v7186 = vmax.f32 %v7126, 0.0
        %v7187 = vmax.f32 %v7131, 0.0
        %v7188 = vmax.f32 %v7134, 0.0
        %v7189 = vmax.f32 %v7139, 0.0
        %v7190 = vmax.f32 %v7142, 0.0
        %v7191 = vmax.f32 %v7147, 0.0
        %v7192 = vmax.f32 %v7150, 0.0
        %v7193 = vmax.f32 %v7155, 0.0
        %v7194 = vmax.f32 %v7158, 0.0
        %v7195 = vmax.f32 %v7163, 0.0
        %v7196 = vmax.f32 %v7166, 0.0
        %v7197 = vmax.f32 %v7171, 0.0
        %v7198 = vmax.f32 %v7174, 0.0
        %v7199 = vmax.f32 %v7179, 0.0
        %v7200 = vmax.f32 %v7182, 0.0
        %v7201 = vpack.c.bf16 %v7186, %v7185
        %v7202 = vpack.c.bf16 %v7188, %v7187
        %v7203 = vpack.c.bf16 %v7190, %v7189
        %v7204 = vpack.c.bf16 %v7192, %v7191
        %v7205 = vpack.c.bf16 %v7194, %v7193
        %v7206 = vpack.c.bf16 %v7196, %v7195
        %v7207 = vpack.c.bf16 %v7198, %v7197
        %v7208 = vpack.c.bf16 %v7200, %v7199
        %7209 = vst [vmem:[%s361 + $0x8] sm:$0xff] %v7201
        %7210 = vst [vmem:[%s361 + $0x20] sm:$0xff] %v7202
        %7211 = vst [vmem:[%s361 + $0x38] sm:$0xff] %v7203
        %7212 = vst [vmem:[%s361 + $0x50] sm:$0xff] %v7204
        %7213 = vst [vmem:[%s361 + $0x68] sm:$0xff] %v7205
        %7214 = vst [vmem:[%s361 + $0x80] sm:$0xff] %v7206
        %7215 = vst [vmem:[%s361 + $0x98] sm:$0xff] %v7207
        %7216 = vst [vmem:[%s361 + $0xb0] sm:$0xff] %v7208
        %s7217 = scalar_lea.vmem [#allocation3], 192
        %v7218 = vld [vmem:[%s7217] sm:$0x80]
        %v7219 = vld [vmem:[%s7217 + $0x8] sm:$0xff]
        %v7220 = vld [vmem:[%s7217 + $0x18] sm:$0x80]
        %v7221 = vld [vmem:[%s7217 + $0x20] sm:$0xff]
        %v7222 = vld [vmem:[%s7217 + $0x30] sm:$0x80]
        %v7223 = vld [vmem:[%s7217 + $0x38] sm:$0xff]
        %v7224 = vld [vmem:[%s7217 + $0x48] sm:$0x80]
        %v7225 = vld [vmem:[%s7217 + $0x50] sm:$0xff]
        %v7226 = vld [vmem:[%s7217 + $0x60] sm:$0x80]
        %v7227 = vld [vmem:[%s7217 + $0x68] sm:$0xff]
        %v7228 = vld [vmem:[%s7217 + $0x78] sm:$0x80]
        %v7229 = vld [vmem:[%s7217 + $0x80] sm:$0xff]
        %v7230 = vld [vmem:[%s7217 + $0x90] sm:$0x80]
        %v7231 = vld [vmem:[%s7217 + $0x98] sm:$0xff]
        %v7232 = vld [vmem:[%s7217 + $0xa8] sm:$0x80]
        %v7233 = vld [vmem:[%s7217 + $0xb0] sm:$0xff]
        %v7234 = vld [vmem:[%s7217 + $0x10] sm:$0x1]
        %v7235 = vld [vmem:[%s7217 + $0x28] sm:$0x1]
        %v7236 = vld [vmem:[%s7217 + $0x40] sm:$0x1]
        %v7237 = vld [vmem:[%s7217 + $0x58] sm:$0x1]
        %v7238 = vld [vmem:[%s7217 + $0x70] sm:$0x1]
        %v7239 = vld [vmem:[%s7217 + $0x88] sm:$0x1]
        %v7240 = vld [vmem:[%s7217 + $0xa0] sm:$0x1]
        %v7241 = vld [vmem:[%s7217 + $0xb8] sm:$0x1]
        %v7242 = vld [vmem:[%s4929] sm:$0x80]
        %v7243 = vld [vmem:[%s4929 + $0x8] sm:$0xff]
        %v7244 = vld [vmem:[%s4929 + $0x18] sm:$0x80]
        %v7245 = vld [vmem:[%s4929 + $0x20] sm:$0xff]
        %v7246 = vld [vmem:[%s4929 + $0x30] sm:$0x80]
        %v7247 = vld [vmem:[%s4929 + $0x38] sm:$0xff]
        %v7248 = vld [vmem:[%s4929 + $0x48] sm:$0x80]
        %v7249 = vld [vmem:[%s4929 + $0x50] sm:$0xff]
        %v7250 = vld [vmem:[%s4929 + $0x60] sm:$0x80]
        %v7251 = vld [vmem:[%s4929 + $0x68] sm:$0xff]
        %v7252 = vld [vmem:[%s4929 + $0x78] sm:$0x80]
        %v7253 = vld [vmem:[%s4929 + $0x80] sm:$0xff]
        %v7254 = vld [vmem:[%s4929 + $0x90] sm:$0x80]
        %v7255 = vld [vmem:[%s4929 + $0x98] sm:$0xff]
        %v7256 = vld [vmem:[%s4929 + $0xa8] sm:$0x80]
        %v7257 = vld [vmem:[%s4929 + $0xb0] sm:$0xff]
        %v7258 = vld [vmem:[%s4929 + $0x10] sm:$0x1]
        %v7259 = vld [vmem:[%s4929 + $0x28] sm:$0x1]
        %v7260 = vld [vmem:[%s4929 + $0x40] sm:$0x1]
        %v7261 = vld [vmem:[%s4929 + $0x58] sm:$0x1]
        %v7262 = vld [vmem:[%s4929 + $0x70] sm:$0x1]
        %v7263 = vld [vmem:[%s4929 + $0x88] sm:$0x1]
        %v7264 = vld [vmem:[%s4929 + $0xa0] sm:$0x1]
        %v7265 = vld [vmem:[%s4929 + $0xb8] sm:$0x1]
        %s7266 = scalar_lea.vmem [#allocation3], 240
        %v7267 = vld [vmem:[%s7266] sm:$0x80]
        %v7268 = vld [vmem:[%s7266 + $0x8] sm:$0xff]
        %v7269 = vld [vmem:[%s7266 + $0x18] sm:$0x80]
        %v7270 = vld [vmem:[%s7266 + $0x20] sm:$0xff]
        %v7271 = vld [vmem:[%s7266 + $0x30] sm:$0x80]
        %v7272 = vld [vmem:[%s7266 + $0x38] sm:$0xff]
        %v7273 = vld [vmem:[%s7266 + $0x48] sm:$0x80]
        %v7274 = vld [vmem:[%s7266 + $0x50] sm:$0xff]
        %v7275 = vld [vmem:[%s7266 + $0x60] sm:$0x80]
        %v7276 = vld [vmem:[%s7266 + $0x68] sm:$0xff]
        %v7277 = vld [vmem:[%s7266 + $0x78] sm:$0x80]
        %v7278 = vld [vmem:[%s7266 + $0x80] sm:$0xff]
        %v7279 = vld [vmem:[%s7266 + $0x90] sm:$0x80]
        %v7280 = vld [vmem:[%s7266 + $0x98] sm:$0xff]
        %v7281 = vld [vmem:[%s7266 + $0xa8] sm:$0x80]
        %v7282 = vld [vmem:[%s7266 + $0xb0] sm:$0xff]
        %v7283 = vld [vmem:[%s7266 + $0x10] sm:$0x1]
        %v7284 = vld [vmem:[%s7266 + $0x28] sm:$0x1]
        %v7285 = vld [vmem:[%s7266 + $0x40] sm:$0x1]
        %v7286 = vld [vmem:[%s7266 + $0x58] sm:$0x1]
        %v7287 = vld [vmem:[%s7266 + $0x70] sm:$0x1]
        %v7288 = vld [vmem:[%s7266 + $0x88] sm:$0x1]
        %v7289 = vld [vmem:[%s7266 + $0xa0] sm:$0x1]
        %v7290 = vld [vmem:[%s7266 + $0xb8] sm:$0x1]
        %v7292 = vshll.u32 %v7219, 16
        %v7294 = vrot.slane %v7292, 1
        %v7295 = vshrl.u32 %v7219, 16
        %v7297 = vor.u32 %v7295, %v7294
        %v7299 = vshll.u32 %v7221, 16
        %v7301 = vrot.slane %v7299, 1
        %v7302 = vshrl.u32 %v7221, 16
        %v7304 = vor.u32 %v7302, %v7301
        %v7306 = vshll.u32 %v7223, 16
        %v7308 = vrot.slane %v7306, 1
        %v7309 = vshrl.u32 %v7223, 16
        %v7311 = vor.u32 %v7309, %v7308
        %v7313 = vshll.u32 %v7225, 16
        %v7315 = vrot.slane %v7313, 1
        %v7316 = vshrl.u32 %v7225, 16
        %v7318 = vor.u32 %v7316, %v7315
        %v7320 = vshll.u32 %v7227, 16
        %v7322 = vrot.slane %v7320, 1
        %v7323 = vshrl.u32 %v7227, 16
        %v7325 = vor.u32 %v7323, %v7322
        %v7327 = vshll.u32 %v7229, 16
        %v7329 = vrot.slane %v7327, 1
        %v7330 = vshrl.u32 %v7229, 16
        %v7332 = vor.u32 %v7330, %v7329
        %v7334 = vshll.u32 %v7231, 16
        %v7336 = vrot.slane %v7334, 1
        %v7337 = vshrl.u32 %v7231, 16
        %v7339 = vor.u32 %v7337, %v7336
        %v7341 = vshll.u32 %v7233, 16
        %v7343 = vrot.slane %v7341, 1
        %v7344 = vshrl.u32 %v7233, 16
        %v7346 = vor.u32 %v7344, %v7343
        %v7363 = vrot.slane %v7219, 1
        %v7364 = vrot.slane %v7234, 1
        %v7365 = vsel %vm523, %v7363, %v7364
        %v7366 = vrot.slane %v7221, 1
        %v7367 = vrot.slane %v7235, 1
        %v7368 = vsel %vm523, %v7366, %v7367
        %v7369 = vrot.slane %v7223, 1
        %v7370 = vrot.slane %v7236, 1
        %v7371 = vsel %vm523, %v7369, %v7370
        %v7372 = vrot.slane %v7225, 1
        %v7373 = vrot.slane %v7237, 1
        %v7374 = vsel %vm523, %v7372, %v7373
        %v7375 = vrot.slane %v7227, 1
        %v7376 = vrot.slane %v7238, 1
        %v7377 = vsel %vm523, %v7375, %v7376
        %v7378 = vrot.slane %v7229, 1
        %v7379 = vrot.slane %v7239, 1
        %v7380 = vsel %vm523, %v7378, %v7379
        %v7381 = vrot.slane %v7231, 1
        %v7382 = vrot.slane %v7240, 1
        %v7383 = vsel %vm523, %v7381, %v7382
        %v7384 = vrot.slane %v7233, 1
        %v7385 = vrot.slane %v7241, 1
        %v7386 = vsel %vm523, %v7384, %v7385
        %v7388 = vshll.u32 %v7243, 16
        %v7390 = vrot.slane %v7388, 1
        %v7391 = vshrl.u32 %v7243, 16
        %v7393 = vor.u32 %v7391, %v7390
        %v7395 = vshll.u32 %v7245, 16
        %v7397 = vrot.slane %v7395, 1
        %v7398 = vshrl.u32 %v7245, 16
        %v7400 = vor.u32 %v7398, %v7397
        %v7402 = vshll.u32 %v7247, 16
        %v7404 = vrot.slane %v7402, 1
        %v7405 = vshrl.u32 %v7247, 16
        %v7407 = vor.u32 %v7405, %v7404
        %v7409 = vshll.u32 %v7249, 16
        %v7411 = vrot.slane %v7409, 1
        %v7412 = vshrl.u32 %v7249, 16
        %v7414 = vor.u32 %v7412, %v7411
        %v7416 = vshll.u32 %v7251, 16
        %v7418 = vrot.slane %v7416, 1
        %v7419 = vshrl.u32 %v7251, 16
        %v7421 = vor.u32 %v7419, %v7418
        %v7423 = vshll.u32 %v7253, 16
        %v7425 = vrot.slane %v7423, 1
        %v7426 = vshrl.u32 %v7253, 16
        %v7428 = vor.u32 %v7426, %v7425
        %v7430 = vshll.u32 %v7255, 16
        %v7432 = vrot.slane %v7430, 1
        %v7433 = vshrl.u32 %v7255, 16
        %v7435 = vor.u32 %v7433, %v7432
        %v7437 = vshll.u32 %v7257, 16
        %v7439 = vrot.slane %v7437, 1
        %v7440 = vshrl.u32 %v7257, 16
        %v7442 = vor.u32 %v7440, %v7439
        %v7459 = vrot.slane %v7243, 1
        %v7460 = vrot.slane %v7258, 1
        %v7461 = vsel %vm523, %v7459, %v7460
        %v7462 = vrot.slane %v7245, 1
        %v7463 = vrot.slane %v7259, 1
        %v7464 = vsel %vm523, %v7462, %v7463
        %v7465 = vrot.slane %v7247, 1
        %v7466 = vrot.slane %v7260, 1
        %v7467 = vsel %vm523, %v7465, %v7466
        %v7468 = vrot.slane %v7249, 1
        %v7469 = vrot.slane %v7261, 1
        %v7470 = vsel %vm523, %v7468, %v7469
        %v7471 = vrot.slane %v7251, 1
        %v7472 = vrot.slane %v7262, 1
        %v7473 = vsel %vm523, %v7471, %v7472
        %v7474 = vrot.slane %v7253, 1
        %v7475 = vrot.slane %v7263, 1
        %v7476 = vsel %vm523, %v7474, %v7475
        %v7477 = vrot.slane %v7255, 1
        %v7478 = vrot.slane %v7264, 1
        %v7479 = vsel %vm523, %v7477, %v7478
        %v7480 = vrot.slane %v7257, 1
        %v7481 = vrot.slane %v7265, 1
        %v7482 = vsel %vm523, %v7480, %v7481
        %v7484 = vshll.u32 %v7268, 16
        %v7486 = vrot.slane %v7484, 1
        %v7487 = vshrl.u32 %v7268, 16
        %v7489 = vor.u32 %v7487, %v7486
        %v7491 = vshll.u32 %v7270, 16
        %v7493 = vrot.slane %v7491, 1
        %v7494 = vshrl.u32 %v7270, 16
        %v7496 = vor.u32 %v7494, %v7493
        %v7498 = vshll.u32 %v7272, 16
        %v7500 = vrot.slane %v7498, 1
        %v7501 = vshrl.u32 %v7272, 16
        %v7503 = vor.u32 %v7501, %v7500
        %v7505 = vshll.u32 %v7274, 16
        %v7507 = vrot.slane %v7505, 1
        %v7508 = vshrl.u32 %v7274, 16
        %v7510 = vor.u32 %v7508, %v7507
        %v7512 = vshll.u32 %v7276, 16
        %v7514 = vrot.slane %v7512, 1
        %v7515 = vshrl.u32 %v7276, 16
        %v7517 = vor.u32 %v7515, %v7514
        %v7519 = vshll.u32 %v7278, 16
        %v7521 = vrot.slane %v7519, 1
        %v7522 = vshrl.u32 %v7278, 16
        %v7524 = vor.u32 %v7522, %v7521
        %v7526 = vshll.u32 %v7280, 16
        %v7528 = vrot.slane %v7526, 1
        %v7529 = vshrl.u32 %v7280, 16
        %v7531 = vor.u32 %v7529, %v7528
        %v7533 = vshll.u32 %v7282, 16
        %v7535 = vrot.slane %v7533, 1
        %v7536 = vshrl.u32 %v7282, 16
        %v7538 = vor.u32 %v7536, %v7535
        %v7555 = vrot.slane %v7268, 1
        %v7556 = vrot.slane %v7283, 1
        %v7557 = vsel %vm523, %v7555, %v7556
        %v7558 = vrot.slane %v7270, 1
        %v7559 = vrot.slane %v7284, 1
        %v7560 = vsel %vm523, %v7558, %v7559
        %v7561 = vrot.slane %v7272, 1
        %v7562 = vrot.slane %v7285, 1
        %v7563 = vsel %vm523, %v7561, %v7562
        %v7564 = vrot.slane %v7274, 1
        %v7565 = vrot.slane %v7286, 1
        %v7566 = vsel %vm523, %v7564, %v7565
        %v7567 = vrot.slane %v7276, 1
        %v7568 = vrot.slane %v7287, 1
        %v7569 = vsel %vm523, %v7567, %v7568
        %v7570 = vrot.slane %v7278, 1
        %v7571 = vrot.slane %v7288, 1
        %v7572 = vsel %vm523, %v7570, %v7571
        %v7573 = vrot.slane %v7280, 1
        %v7574 = vrot.slane %v7289, 1
        %v7575 = vsel %vm523, %v7573, %v7574
        %v7576 = vrot.slane %v7282, 1
        %v7577 = vrot.slane %v7290, 1
        %v7578 = vsel %vm523, %v7576, %v7577
        %v7580 = vshrl.u32 %v7218, 16
        %v7582 = vrot.slane %v7580, 7
        %v7583 = vrot.slane %v7295, 7
        %v7584 = vor.u32 %v7583, %v7292
        %v7585 = vsel %vm740, %v7582, %v7584
        %v7587 = vshrl.u32 %v7294, 16
        %v7589 = vrot.slane %v7587, 7
        %v7591 = vshrl.u32 %v7297, 16
        %v7593 = vrot.slane %v7591, 7
        %v7594 = vshll.u32 %v7297, 16
        %v7596 = vor.u32 %v7593, %v7594
        %v7597 = vsel %vm740, %v7589, %v7596
        %v7599 = vshrl.u32 %v7363, 16
        %v7601 = vrot.slane %v7599, 7
        %v7603 = vshrl.u32 %v7365, 16
        %v7605 = vrot.slane %v7603, 7
        %v7606 = vshll.u32 %v7365, 16
        %v7608 = vor.u32 %v7605, %v7606
        %v7609 = vsel %vm740, %v7601, %v7608
        %v7611 = vshrl.u32 %v7242, 16
        %v7613 = vrot.slane %v7611, 7
        %v7614 = vrot.slane %v7391, 7
        %v7615 = vor.u32 %v7614, %v7388
        %v7616 = vsel %vm740, %v7613, %v7615
        %v7618 = vshrl.u32 %v7390, 16
        %v7620 = vrot.slane %v7618, 7
        %v7622 = vshrl.u32 %v7393, 16
        %v7624 = vrot.slane %v7622, 7
        %v7625 = vshll.u32 %v7393, 16
        %v7627 = vor.u32 %v7624, %v7625
        %v7628 = vsel %vm740, %v7620, %v7627
        %v7630 = vshrl.u32 %v7459, 16
        %v7632 = vrot.slane %v7630, 7
        %v7634 = vshrl.u32 %v7461, 16
        %v7636 = vrot.slane %v7634, 7
        %v7637 = vshll.u32 %v7461, 16
        %v7639 = vor.u32 %v7636, %v7637
        %v7640 = vsel %vm740, %v7632, %v7639
        %v7642 = vshrl.u32 %v7267, 16
        %v7644 = vrot.slane %v7642, 7
        %v7645 = vrot.slane %v7487, 7
        %v7646 = vor.u32 %v7645, %v7484
        %v7647 = vsel %vm740, %v7644, %v7646
        %v7649 = vshrl.u32 %v7486, 16
        %v7651 = vrot.slane %v7649, 7
        %v7653 = vshrl.u32 %v7489, 16
        %v7655 = vrot.slane %v7653, 7
        %v7656 = vshll.u32 %v7489, 16
        %v7658 = vor.u32 %v7655, %v7656
        %v7659 = vsel %vm740, %v7651, %v7658
        %v7661 = vshrl.u32 %v7555, 16
        %v7663 = vrot.slane %v7661, 7
        %v7665 = vshrl.u32 %v7557, 16
        %v7667 = vrot.slane %v7665, 7
        %v7668 = vshll.u32 %v7557, 16
        %v7670 = vor.u32 %v7667, %v7668
        %v7671 = vsel %vm740, %v7663, %v7670
        %v7673 = vshrl.u32 %v7220, 16
        %v7675 = vrot.slane %v7673, 7
        %v7676 = vrot.slane %v7302, 7
        %v7677 = vor.u32 %v7676, %v7299
        %v7678 = vsel %vm740, %v7675, %v7677
        %v7680 = vshrl.u32 %v7301, 16
        %v7682 = vrot.slane %v7680, 7
        %v7684 = vshrl.u32 %v7304, 16
        %v7686 = vrot.slane %v7684, 7
        %v7687 = vshll.u32 %v7304, 16
        %v7689 = vor.u32 %v7686, %v7687
        %v7690 = vsel %vm740, %v7682, %v7689
        %v7692 = vshrl.u32 %v7366, 16
        %v7694 = vrot.slane %v7692, 7
        %v7696 = vshrl.u32 %v7368, 16
        %v7698 = vrot.slane %v7696, 7
        %v7699 = vshll.u32 %v7368, 16
        %v7701 = vor.u32 %v7698, %v7699
        %v7702 = vsel %vm740, %v7694, %v7701
        %v7704 = vshrl.u32 %v7244, 16
        %v7706 = vrot.slane %v7704, 7
        %v7707 = vrot.slane %v7398, 7
        %v7708 = vor.u32 %v7707, %v7395
        %v7709 = vsel %vm740, %v7706, %v7708
        %v7711 = vshrl.u32 %v7397, 16
        %v7713 = vrot.slane %v7711, 7
        %v7715 = vshrl.u32 %v7400, 16
        %v7717 = vrot.slane %v7715, 7
        %v7718 = vshll.u32 %v7400, 16
        %v7720 = vor.u32 %v7717, %v7718
        %v7721 = vsel %vm740, %v7713, %v7720
        %v7723 = vshrl.u32 %v7462, 16
        %v7725 = vrot.slane %v7723, 7
        %v7727 = vshrl.u32 %v7464, 16
        %v7729 = vrot.slane %v7727, 7
        %v7730 = vshll.u32 %v7464, 16
        %v7732 = vor.u32 %v7729, %v7730
        %v7733 = vsel %vm740, %v7725, %v7732
        %v7735 = vshrl.u32 %v7269, 16
        %v7737 = vrot.slane %v7735, 7
        %v7738 = vrot.slane %v7494, 7
        %v7739 = vor.u32 %v7738, %v7491
        %v7740 = vsel %vm740, %v7737, %v7739
        %v7742 = vshrl.u32 %v7493, 16
        %v7744 = vrot.slane %v7742, 7
        %v7746 = vshrl.u32 %v7496, 16
        %v7748 = vrot.slane %v7746, 7
        %v7749 = vshll.u32 %v7496, 16
        %v7751 = vor.u32 %v7748, %v7749
        %v7752 = vsel %vm740, %v7744, %v7751
        %v7754 = vshrl.u32 %v7558, 16
        %v7756 = vrot.slane %v7754, 7
        %v7758 = vshrl.u32 %v7560, 16
        %v7760 = vrot.slane %v7758, 7
        %v7761 = vshll.u32 %v7560, 16
        %v7763 = vor.u32 %v7760, %v7761
        %v7764 = vsel %vm740, %v7756, %v7763
        %v7766 = vshrl.u32 %v7222, 16
        %v7768 = vrot.slane %v7766, 7
        %v7769 = vrot.slane %v7309, 7
        %v7770 = vor.u32 %v7769, %v7306
        %v7771 = vsel %vm740, %v7768, %v7770
        %v7773 = vshrl.u32 %v7308, 16
        %v7775 = vrot.slane %v7773, 7
        %v7777 = vshrl.u32 %v7311, 16
        %v7779 = vrot.slane %v7777, 7
        %v7780 = vshll.u32 %v7311, 16
        %v7782 = vor.u32 %v7779, %v7780
        %v7783 = vsel %vm740, %v7775, %v7782
        %v7785 = vshrl.u32 %v7369, 16
        %v7787 = vrot.slane %v7785, 7
        %v7789 = vshrl.u32 %v7371, 16
        %v7791 = vrot.slane %v7789, 7
        %v7792 = vshll.u32 %v7371, 16
        %v7794 = vor.u32 %v7791, %v7792
        %v7795 = vsel %vm740, %v7787, %v7794
        %v7797 = vshrl.u32 %v7246, 16
        %v7799 = vrot.slane %v7797, 7
        %v7800 = vrot.slane %v7405, 7
        %v7801 = vor.u32 %v7800, %v7402
        %v7802 = vsel %vm740, %v7799, %v7801
        %v7804 = vshrl.u32 %v7404, 16
        %v7806 = vrot.slane %v7804, 7
        %v7808 = vshrl.u32 %v7407, 16
        %v7810 = vrot.slane %v7808, 7
        %v7811 = vshll.u32 %v7407, 16
        %v7813 = vor.u32 %v7810, %v7811
        %v7814 = vsel %vm740, %v7806, %v7813
        %v7816 = vshrl.u32 %v7465, 16
        %v7818 = vrot.slane %v7816, 7
        %v7820 = vshrl.u32 %v7467, 16
        %v7822 = vrot.slane %v7820, 7
        %v7823 = vshll.u32 %v7467, 16
        %v7825 = vor.u32 %v7822, %v7823
        %v7826 = vsel %vm740, %v7818, %v7825
        %v7828 = vshrl.u32 %v7271, 16
        %v7830 = vrot.slane %v7828, 7
        %v7831 = vrot.slane %v7501, 7
        %v7832 = vor.u32 %v7831, %v7498
        %v7833 = vsel %vm740, %v7830, %v7832
        %v7835 = vshrl.u32 %v7500, 16
        %v7837 = vrot.slane %v7835, 7
        %v7839 = vshrl.u32 %v7503, 16
        %v7841 = vrot.slane %v7839, 7
        %v7842 = vshll.u32 %v7503, 16
        %v7844 = vor.u32 %v7841, %v7842
        %v7845 = vsel %vm740, %v7837, %v7844
        %v7847 = vshrl.u32 %v7561, 16
        %v7849 = vrot.slane %v7847, 7
        %v7851 = vshrl.u32 %v7563, 16
        %v7853 = vrot.slane %v7851, 7
        %v7854 = vshll.u32 %v7563, 16
        %v7856 = vor.u32 %v7853, %v7854
        %v7857 = vsel %vm740, %v7849, %v7856
        %v7859 = vshrl.u32 %v7224, 16
        %v7861 = vrot.slane %v7859, 7
        %v7862 = vrot.slane %v7316, 7
        %v7863 = vor.u32 %v7862, %v7313
        %v7864 = vsel %vm740, %v7861, %v7863
        %v7866 = vshrl.u32 %v7315, 16
        %v7868 = vrot.slane %v7866, 7
        %v7870 = vshrl.u32 %v7318, 16
        %v7872 = vrot.slane %v7870, 7
        %v7873 = vshll.u32 %v7318, 16
        %v7875 = vor.u32 %v7872, %v7873
        %v7876 = vsel %vm740, %v7868, %v7875
        %v7878 = vshrl.u32 %v7372, 16
        %v7880 = vrot.slane %v7878, 7
        %v7882 = vshrl.u32 %v7374, 16
        %v7884 = vrot.slane %v7882, 7
        %v7885 = vshll.u32 %v7374, 16
        %v7887 = vor.u32 %v7884, %v7885
        %v7888 = vsel %vm740, %v7880, %v7887
        %v7890 = vshrl.u32 %v7248, 16
        %v7892 = vrot.slane %v7890, 7
        %v7893 = vrot.slane %v7412, 7
        %v7894 = vor.u32 %v7893, %v7409
        %v7895 = vsel %vm740, %v7892, %v7894
        %v7897 = vshrl.u32 %v7411, 16
        %v7899 = vrot.slane %v7897, 7
        %v7901 = vshrl.u32 %v7414, 16
        %v7903 = vrot.slane %v7901, 7
        %v7904 = vshll.u32 %v7414, 16
        %v7906 = vor.u32 %v7903, %v7904
        %v7907 = vsel %vm740, %v7899, %v7906
        %v7909 = vshrl.u32 %v7468, 16
        %v7911 = vrot.slane %v7909, 7
        %v7913 = vshrl.u32 %v7470, 16
        %v7915 = vrot.slane %v7913, 7
        %v7916 = vshll.u32 %v7470, 16
        %v7918 = vor.u32 %v7915, %v7916
        %v7919 = vsel %vm740, %v7911, %v7918
        %v7921 = vshrl.u32 %v7273, 16
        %v7923 = vrot.slane %v7921, 7
        %v7924 = vrot.slane %v7508, 7
        %v7925 = vor.u32 %v7924, %v7505
        %v7926 = vsel %vm740, %v7923, %v7925
        %v7928 = vshrl.u32 %v7507, 16
        %v7930 = vrot.slane %v7928, 7
        %v7932 = vshrl.u32 %v7510, 16
        %v7934 = vrot.slane %v7932, 7
        %v7935 = vshll.u32 %v7510, 16
        %v7937 = vor.u32 %v7934, %v7935
        %v7938 = vsel %vm740, %v7930, %v7937
        %v7940 = vshrl.u32 %v7564, 16
        %v7942 = vrot.slane %v7940, 7
        %v7944 = vshrl.u32 %v7566, 16
        %v7946 = vrot.slane %v7944, 7
        %v7947 = vshll.u32 %v7566, 16
        %v7949 = vor.u32 %v7946, %v7947
        %v7950 = vsel %vm740, %v7942, %v7949
        %v7952 = vshrl.u32 %v7226, 16
        %v7954 = vrot.slane %v7952, 7
        %v7955 = vrot.slane %v7323, 7
        %v7956 = vor.u32 %v7955, %v7320
        %v7957 = vsel %vm740, %v7954, %v7956
        %v7959 = vshrl.u32 %v7322, 16
        %v7961 = vrot.slane %v7959, 7
        %v7963 = vshrl.u32 %v7325, 16
        %v7965 = vrot.slane %v7963, 7
        %v7966 = vshll.u32 %v7325, 16
        %v7968 = vor.u32 %v7965, %v7966
        %v7969 = vsel %vm740, %v7961, %v7968
        %v7971 = vshrl.u32 %v7375, 16
        %v7973 = vrot.slane %v7971, 7
        %v7975 = vshrl.u32 %v7377, 16
        %v7977 = vrot.slane %v7975, 7
        %v7978 = vshll.u32 %v7377, 16
        %v7980 = vor.u32 %v7977, %v7978
        %v7981 = vsel %vm740, %v7973, %v7980
        %v7983 = vshrl.u32 %v7250, 16
        %v7985 = vrot.slane %v7983, 7
        %v7986 = vrot.slane %v7419, 7
        %v7987 = vor.u32 %v7986, %v7416
        %v7988 = vsel %vm740, %v7985, %v7987
        %v7990 = vshrl.u32 %v7418, 16
        %v7992 = vrot.slane %v7990, 7
        %v7994 = vshrl.u32 %v7421, 16
        %v7996 = vrot.slane %v7994, 7
        %v7997 = vshll.u32 %v7421, 16
        %v7999 = vor.u32 %v7996, %v7997
        %v8000 = vsel %vm740, %v7992, %v7999
        %v8002 = vshrl.u32 %v7471, 16
        %v8004 = vrot.slane %v8002, 7
        %v8006 = vshrl.u32 %v7473, 16
        %v8008 = vrot.slane %v8006, 7
        %v8009 = vshll.u32 %v7473, 16
        %v8011 = vor.u32 %v8008, %v8009
        %v8012 = vsel %vm740, %v8004, %v8011
        %v8014 = vshrl.u32 %v7275, 16
        %v8016 = vrot.slane %v8014, 7
        %v8017 = vrot.slane %v7515, 7
        %v8018 = vor.u32 %v8017, %v7512
        %v8019 = vsel %vm740, %v8016, %v8018
        %v8021 = vshrl.u32 %v7514, 16
        %v8023 = vrot.slane %v8021, 7
        %v8025 = vshrl.u32 %v7517, 16
        %v8027 = vrot.slane %v8025, 7
        %v8028 = vshll.u32 %v7517, 16
        %v8030 = vor.u32 %v8027, %v8028
        %v8031 = vsel %vm740, %v8023, %v8030
        %v8033 = vshrl.u32 %v7567, 16
        %v8035 = vrot.slane %v8033, 7
        %v8037 = vshrl.u32 %v7569, 16
        %v8039 = vrot.slane %v8037, 7
        %v8040 = vshll.u32 %v7569, 16
        %v8042 = vor.u32 %v8039, %v8040
        %v8043 = vsel %vm740, %v8035, %v8042
        %v8045 = vshrl.u32 %v7228, 16
        %v8047 = vrot.slane %v8045, 7
        %v8048 = vrot.slane %v7330, 7
        %v8049 = vor.u32 %v8048, %v7327
        %v8050 = vsel %vm740, %v8047, %v8049
        %v8052 = vshrl.u32 %v7329, 16
        %v8054 = vrot.slane %v8052, 7
        %v8056 = vshrl.u32 %v7332, 16
        %v8058 = vrot.slane %v8056, 7
        %v8059 = vshll.u32 %v7332, 16
        %v8061 = vor.u32 %v8058, %v8059
        %v8062 = vsel %vm740, %v8054, %v8061
        %v8064 = vshrl.u32 %v7378, 16
        %v8066 = vrot.slane %v8064, 7
        %v8068 = vshrl.u32 %v7380, 16
        %v8070 = vrot.slane %v8068, 7
        %v8071 = vshll.u32 %v7380, 16
        %v8073 = vor.u32 %v8070, %v8071
        %v8074 = vsel %vm740, %v8066, %v8073
        %v8076 = vshrl.u32 %v7252, 16
        %v8078 = vrot.slane %v8076, 7
        %v8079 = vrot.slane %v7426, 7
        %v8080 = vor.u32 %v8079, %v7423
        %v8081 = vsel %vm740, %v8078, %v8080
        %v8083 = vshrl.u32 %v7425, 16
        %v8085 = vrot.slane %v8083, 7
        %v8087 = vshrl.u32 %v7428, 16
        %v8089 = vrot.slane %v8087, 7
        %v8090 = vshll.u32 %v7428, 16
        %v8092 = vor.u32 %v8089, %v8090
        %v8093 = vsel %vm740, %v8085, %v8092
        %v8095 = vshrl.u32 %v7474, 16
        %v8097 = vrot.slane %v8095, 7
        %v8099 = vshrl.u32 %v7476, 16
        %v8101 = vrot.slane %v8099, 7
        %v8102 = vshll.u32 %v7476, 16
        %v8104 = vor.u32 %v8101, %v8102
        %v8105 = vsel %vm740, %v8097, %v8104
        %v8107 = vshrl.u32 %v7277, 16
        %v8109 = vrot.slane %v8107, 7
        %v8110 = vrot.slane %v7522, 7
        %v8111 = vor.u32 %v8110, %v7519
        %v8112 = vsel %vm740, %v8109, %v8111
        %v8114 = vshrl.u32 %v7521, 16
        %v8116 = vrot.slane %v8114, 7
        %v8118 = vshrl.u32 %v7524, 16
        %v8120 = vrot.slane %v8118, 7
        %v8121 = vshll.u32 %v7524, 16
        %v8123 = vor.u32 %v8120, %v8121
        %v8124 = vsel %vm740, %v8116, %v8123
        %v8126 = vshrl.u32 %v7570, 16
        %v8128 = vrot.slane %v8126, 7
        %v8130 = vshrl.u32 %v7572, 16
        %v8132 = vrot.slane %v8130, 7
        %v8133 = vshll.u32 %v7572, 16
        %v8135 = vor.u32 %v8132, %v8133
        %v8136 = vsel %vm740, %v8128, %v8135
        %v8138 = vshrl.u32 %v7230, 16
        %v8140 = vrot.slane %v8138, 7
        %v8141 = vrot.slane %v7337, 7
        %v8142 = vor.u32 %v8141, %v7334
        %v8143 = vsel %vm740, %v8140, %v8142
        %v8145 = vshrl.u32 %v7336, 16
        %v8147 = vrot.slane %v8145, 7
        %v8149 = vshrl.u32 %v7339, 16
        %v8151 = vrot.slane %v8149, 7
        %v8152 = vshll.u32 %v7339, 16
        %v8154 = vor.u32 %v8151, %v8152
        %v8155 = vsel %vm740, %v8147, %v8154
        %v8157 = vshrl.u32 %v7381, 16
        %v8159 = vrot.slane %v8157, 7
        %v8161 = vshrl.u32 %v7383, 16
        %v8163 = vrot.slane %v8161, 7
        %v8164 = vshll.u32 %v7383, 16
        %v8166 = vor.u32 %v8163, %v8164
        %v8167 = vsel %vm740, %v8159, %v8166
        %v8169 = vshrl.u32 %v7254, 16
        %v8171 = vrot.slane %v8169, 7
        %v8172 = vrot.slane %v7433, 7
        %v8173 = vor.u32 %v8172, %v7430
        %v8174 = vsel %vm740, %v8171, %v8173
        %v8176 = vshrl.u32 %v7432, 16
        %v8178 = vrot.slane %v8176, 7
        %v8180 = vshrl.u32 %v7435, 16
        %v8182 = vrot.slane %v8180, 7
        %v8183 = vshll.u32 %v7435, 16
        %v8185 = vor.u32 %v8182, %v8183
        %v8186 = vsel %vm740, %v8178, %v8185
        %v8188 = vshrl.u32 %v7477, 16
        %v8190 = vrot.slane %v8188, 7
        %v8192 = vshrl.u32 %v7479, 16
        %v8194 = vrot.slane %v8192, 7
        %v8195 = vshll.u32 %v7479, 16
        %v8197 = vor.u32 %v8194, %v8195
        %v8198 = vsel %vm740, %v8190, %v8197
        %v8200 = vshrl.u32 %v7279, 16
        %v8202 = vrot.slane %v8200, 7
        %v8203 = vrot.slane %v7529, 7
        %v8204 = vor.u32 %v8203, %v7526
        %v8205 = vsel %vm740, %v8202, %v8204
        %v8207 = vshrl.u32 %v7528, 16
        %v8209 = vrot.slane %v8207, 7
        %v8211 = vshrl.u32 %v7531, 16
        %v8213 = vrot.slane %v8211, 7
        %v8214 = vshll.u32 %v7531, 16
        %v8216 = vor.u32 %v8213, %v8214
        %v8217 = vsel %vm740, %v8209, %v8216
        %v8219 = vshrl.u32 %v7573, 16
        %v8221 = vrot.slane %v8219, 7
        %v8223 = vshrl.u32 %v7575, 16
        %v8225 = vrot.slane %v8223, 7
        %v8226 = vshll.u32 %v7575, 16
        %v8228 = vor.u32 %v8225, %v8226
        %v8229 = vsel %vm740, %v8221, %v8228
        %v8231 = vshrl.u32 %v7232, 16
        %v8233 = vrot.slane %v8231, 7
        %v8234 = vrot.slane %v7344, 7
        %v8235 = vor.u32 %v8234, %v7341
        %v8236 = vsel %vm740, %v8233, %v8235
        %v8238 = vshrl.u32 %v7343, 16
        %v8240 = vrot.slane %v8238, 7
        %v8242 = vshrl.u32 %v7346, 16
        %v8244 = vrot.slane %v8242, 7
        %v8245 = vshll.u32 %v7346, 16
        %v8247 = vor.u32 %v8244, %v8245
        %v8248 = vsel %vm740, %v8240, %v8247
        %v8250 = vshrl.u32 %v7384, 16
        %v8252 = vrot.slane %v8250, 7
        %v8254 = vshrl.u32 %v7386, 16
        %v8256 = vrot.slane %v8254, 7
        %v8257 = vshll.u32 %v7386, 16
        %v8259 = vor.u32 %v8256, %v8257
        %v8260 = vsel %vm740, %v8252, %v8259
        %v8262 = vshrl.u32 %v7256, 16
        %v8264 = vrot.slane %v8262, 7
        %v8265 = vrot.slane %v7440, 7
        %v8266 = vor.u32 %v8265, %v7437
        %v8267 = vsel %vm740, %v8264, %v8266
        %v8269 = vshrl.u32 %v7439, 16
        %v8271 = vrot.slane %v8269, 7
        %v8273 = vshrl.u32 %v7442, 16
        %v8275 = vrot.slane %v8273, 7
        %v8276 = vshll.u32 %v7442, 16
        %v8278 = vor.u32 %v8275, %v8276
        %v8279 = vsel %vm740, %v8271, %v8278
        %v8281 = vshrl.u32 %v7480, 16
        %v8283 = vrot.slane %v8281, 7
        %v8285 = vshrl.u32 %v7482, 16
        %v8287 = vrot.slane %v8285, 7
        %v8288 = vshll.u32 %v7482, 16
        %v8290 = vor.u32 %v8287, %v8288
        %v8291 = vsel %vm740, %v8283, %v8290
        %v8293 = vshrl.u32 %v7281, 16
        %v8295 = vrot.slane %v8293, 7
        %v8296 = vrot.slane %v7536, 7
        %v8297 = vor.u32 %v8296, %v7533
        %v8298 = vsel %vm740, %v8295, %v8297
        %v8300 = vshrl.u32 %v7535, 16
        %v8302 = vrot.slane %v8300, 7
        %v8304 = vshrl.u32 %v7538, 16
        %v8306 = vrot.slane %v8304, 7
        %v8307 = vshll.u32 %v7538, 16
        %v8309 = vor.u32 %v8306, %v8307
        %v8310 = vsel %vm740, %v8302, %v8309
        %v8312 = vshrl.u32 %v7576, 16
        %v8314 = vrot.slane %v8312, 7
        %v8316 = vshrl.u32 %v7578, 16
        %v8318 = vrot.slane %v8316, 7
        %v8319 = vshll.u32 %v7578, 16
        %v8321 = vor.u32 %v8318, %v8319
        %v8322 = vsel %vm740, %v8314, %v8321
        %v8395 = vld [vmem:[%s6115] sm:$0xf]
        %v8396 = vld [vmem:[%s6115 + $0x4] sm:$0xf]
        %v8397 = vld [vmem:[%s6115 + $0x8] sm:$0xf]
        %v8398 = vld [vmem:[%s6115 + $0xc] sm:$0xf]
        %v8399 = vld [vmem:[%s6115 + $0x10] sm:$0xf]
        %v8400 = vld [vmem:[%s6115 + $0x14] sm:$0xf]
        %v8401 = vld [vmem:[%s6115 + $0x18] sm:$0xf]
        %v8402 = vld [vmem:[%s6115 + $0x1c] sm:$0xf]
        %v8403 = vld [vmem:[%s6115 + $0x20] sm:$0xf]
        %v8404 = vld [vmem:[%s6115 + $0x24] sm:$0xf]
        %v8405 = vld [vmem:[%s6115 + $0x28] sm:$0xf]
        %v8406 = vld [vmem:[%s6115 + $0x2c] sm:$0xf]
        %v8407 = vld [vmem:[%s6115 + $0x30] sm:$0xf]
        %v8408 = vld [vmem:[%s6115 + $0x34] sm:$0xf]
        %v8409 = vld [vmem:[%s6115 + $0x38] sm:$0xf]
        %v8410 = vld [vmem:[%s6115 + $0x3c] sm:$0xf]
        %v8411 = vld [vmem:[%s6115 + $0x40] sm:$0xf]
        %v8412 = vld [vmem:[%s6115 + $0x44] sm:$0xf]
        %v8413 = vld [vmem:[%s6115 + $0x48] sm:$0xf]
        %v8414 = vld [vmem:[%s6115 + $0x4c] sm:$0xf]
        %v8415 = vld [vmem:[%s6115 + $0x50] sm:$0xf]
        %v8416 = vld [vmem:[%s6115 + $0x54] sm:$0xf]
        %v8417 = vld [vmem:[%s6115 + $0x58] sm:$0xf]
        %v8418 = vld [vmem:[%s6115 + $0x5c] sm:$0xf]
        %v8419 = vld [vmem:[%s6115 + $0x60] sm:$0xf]
        %v8420 = vld [vmem:[%s6115 + $0x64] sm:$0xf]
        %v8421 = vld [vmem:[%s6115 + $0x68] sm:$0xf]
        %v8422 = vld [vmem:[%s6115 + $0x6c] sm:$0xf]
        %v8423 = vld [vmem:[%s6115 + $0x70] sm:$0xf]
        %v8424 = vld [vmem:[%s6115 + $0x74] sm:$0xf]
        %v8425 = vld [vmem:[%s6115 + $0x78] sm:$0xf]
        %v8426 = vld [vmem:[%s6115 + $0x7c] sm:$0xf]
        %v8427 = vld [vmem:[%s6115 + $0x80] sm:$0xf]
        %v8428 = vld [vmem:[%s6115 + $0x84] sm:$0xf]
        %v8429 = vld [vmem:[%s6115 + $0x88] sm:$0xf]
        %v8430 = vld [vmem:[%s6115 + $0x8c] sm:$0xf]
        %v8431 = vld [vmem:[%s6115 + $0x90] sm:$0xf]
        %v8432 = vld [vmem:[%s6115 + $0x94] sm:$0xf]
        %v8433 = vld [vmem:[%s6115 + $0x98] sm:$0xf]
        %v8434 = vld [vmem:[%s6115 + $0x9c] sm:$0xf]
        %v8435 = vld [vmem:[%s6115 + $0xa0] sm:$0xf]
        %v8436 = vld [vmem:[%s6115 + $0xa4] sm:$0xf]
        %v8437 = vld [vmem:[%s6115 + $0xa8] sm:$0xf]
        %v8438 = vld [vmem:[%s6115 + $0xac] sm:$0xf]
        %v8439 = vld [vmem:[%s6115 + $0xb0] sm:$0xf]
        %v8440 = vld [vmem:[%s6115 + $0xb4] sm:$0xf]
        %v8441 = vld [vmem:[%s6115 + $0xb8] sm:$0xf]
        %v8442 = vld [vmem:[%s6115 + $0xbc] sm:$0xf]
        %v8443 = vld [vmem:[%s6115 + $0xc0] sm:$0xf]
        %v8444 = vld [vmem:[%s6115 + $0xc4] sm:$0xf]
        %v8445 = vld [vmem:[%s6115 + $0xc8] sm:$0xf]
        %v8446 = vld [vmem:[%s6115 + $0xcc] sm:$0xf]
        %v8447 = vld [vmem:[%s6115 + $0xd0] sm:$0xf]
        %v8448 = vld [vmem:[%s6115 + $0xd4] sm:$0xf]
        %v8449 = vld [vmem:[%s6115 + $0xd8] sm:$0xf]
        %v8450 = vld [vmem:[%s6115 + $0xdc] sm:$0xf]
        %v8451 = vld [vmem:[%s6115 + $0xe0] sm:$0xf]
        %v8452 = vld [vmem:[%s6115 + $0xe4] sm:$0xf]
        %v8453 = vld [vmem:[%s6115 + $0xe8] sm:$0xf]
        %v8454 = vld [vmem:[%s6115 + $0xec] sm:$0xf]
        %v8455 = vld [vmem:[%s6115 + $0xf0] sm:$0xf]
        %v8456 = vld [vmem:[%s6115 + $0xf4] sm:$0xf]
        %v8457 = vld [vmem:[%s6115 + $0xf8] sm:$0xf]
        %v8458 = vld [vmem:[%s6115 + $0xfc] sm:$0xf]
        %v8459 = vld [vmem:[%s6115 + $0x100] sm:$0xf]
        %v8460 = vld [vmem:[%s6115 + $0x104] sm:$0xf]
        %v8461 = vld [vmem:[%s6115 + $0x108] sm:$0xf]
        %v8462 = vld [vmem:[%s6115 + $0x10c] sm:$0xf]
        %v8463 = vld [vmem:[%s6115 + $0x110] sm:$0xf]
        %v8464 = vld [vmem:[%s6115 + $0x114] sm:$0xf]
        %v8465 = vld [vmem:[%s6115 + $0x118] sm:$0xf]
        %v8466 = vld [vmem:[%s6115 + $0x11c] sm:$0xf]
        %v8467 = vld [vmem:[%s6115 + $0x120] sm:$0xf]
        %v8468 = vld [vmem:[%s6115 + $0x124] sm:$0xf]
        %v8469 = vld [vmem:[%s6115 + $0x128] sm:$0xf]
        %v8470 = vld [vmem:[%s6115 + $0x12c] sm:$0xf]
        %v8471 = vld [vmem:[%s6115 + $0x130] sm:$0xf]
        %v8472 = vld [vmem:[%s6115 + $0x134] sm:$0xf]
        %v8473 = vld [vmem:[%s6115 + $0x138] sm:$0xf]
        %v8474 = vld [vmem:[%s6115 + $0x13c] sm:$0xf]
        %v8475 = vld [vmem:[%s6115 + $0x140] sm:$0xf]
        %v8476 = vld [vmem:[%s6115 + $0x144] sm:$0xf]
        %v8477 = vld [vmem:[%s6115 + $0x148] sm:$0xf]
        %v8478 = vld [vmem:[%s6115 + $0x14c] sm:$0xf]
        %v8479 = vld [vmem:[%s6115 + $0x150] sm:$0xf]
        %v8480 = vld [vmem:[%s6115 + $0x154] sm:$0xf]
        %v8481 = vld [vmem:[%s6115 + $0x158] sm:$0xf]
        %v8482 = vld [vmem:[%s6115 + $0x15c] sm:$0xf]
        %v8483 = vld [vmem:[%s6115 + $0x160] sm:$0xf]
        %v8484 = vld [vmem:[%s6115 + $0x164] sm:$0xf]
        %v8485 = vld [vmem:[%s6115 + $0x168] sm:$0xf]
        %v8486 = vld [vmem:[%s6115 + $0x16c] sm:$0xf]
        %v8487 = vld [vmem:[%s6115 + $0x170] sm:$0xf]
        %v8488 = vld [vmem:[%s6115 + $0x174] sm:$0xf]
        %v8489 = vld [vmem:[%s6115 + $0x178] sm:$0xf]
        %v8490 = vld [vmem:[%s6115 + $0x17c] sm:$0xf]
        %v8491 = vld [vmem:[%s6115 + $0x180] sm:$0xf]
        %v8492 = vld [vmem:[%s6115 + $0x184] sm:$0xf]
        %v8493 = vld [vmem:[%s6115 + $0x188] sm:$0xf]
        %v8494 = vld [vmem:[%s6115 + $0x18c] sm:$0xf]
        %v8495 = vld [vmem:[%s6115 + $0x190] sm:$0xf]
        %v8496 = vld [vmem:[%s6115 + $0x194] sm:$0xf]
        %v8497 = vld [vmem:[%s6115 + $0x198] sm:$0xf]
        %v8498 = vld [vmem:[%s6115 + $0x19c] sm:$0xf]
        %v8499 = vld [vmem:[%s6115 + $0x1a0] sm:$0xf]
        %v8500 = vld [vmem:[%s6115 + $0x1a4] sm:$0xf]
        %v8501 = vld [vmem:[%s6115 + $0x1a8] sm:$0xf]
        %v8502 = vld [vmem:[%s6115 + $0x1ac] sm:$0xf]
        %v8503 = vld [vmem:[%s6115 + $0x1b0] sm:$0xf]
        %v8504 = vld [vmem:[%s6115 + $0x1b4] sm:$0xf]
        %v8505 = vld [vmem:[%s6115 + $0x1b8] sm:$0xf]
        %v8506 = vld [vmem:[%s6115 + $0x1bc] sm:$0xf]
        %v8507 = vld [vmem:[%s6115 + $0x1c0] sm:$0xf]
        %v8508 = vld [vmem:[%s6115 + $0x1c4] sm:$0xf]
        %v8509 = vld [vmem:[%s6115 + $0x1c8] sm:$0xf]
        %v8510 = vld [vmem:[%s6115 + $0x1cc] sm:$0xf]
        %v8511 = vld [vmem:[%s6115 + $0x1d0] sm:$0xf]
        %v8512 = vld [vmem:[%s6115 + $0x1d4] sm:$0xf]
        %v8513 = vld [vmem:[%s6115 + $0x1d8] sm:$0xf]
        %v8514 = vld [vmem:[%s6115 + $0x1dc] sm:$0xf]
        %v8515 = vld [vmem:[%s6115 + $0x1e0] sm:$0xf]
        %v8516 = vld [vmem:[%s6115 + $0x1e4] sm:$0xf]
        %v8517 = vld [vmem:[%s6115 + $0x1e8] sm:$0xf]
        %v8518 = vld [vmem:[%s6115 + $0x1ec] sm:$0xf]
        %v8519 = vld [vmem:[%s6115 + $0x1f0] sm:$0xf]
        %v8520 = vld [vmem:[%s6115 + $0x1f4] sm:$0xf]
        %v8521 = vld [vmem:[%s6115 + $0x1f8] sm:$0xf]
        %v8522 = vld [vmem:[%s6115 + $0x1fc] sm:$0xf]
        %v8523 = vld [vmem:[%s6115 + $0x200] sm:$0xf]
        %v8524 = vld [vmem:[%s6115 + $0x204] sm:$0xf]
        %v8525 = vld [vmem:[%s6115 + $0x208] sm:$0xf]
        %v8526 = vld [vmem:[%s6115 + $0x20c] sm:$0xf]
        %v8527 = vld [vmem:[%s6115 + $0x210] sm:$0xf]
        %v8528 = vld [vmem:[%s6115 + $0x214] sm:$0xf]
        %v8529 = vld [vmem:[%s6115 + $0x218] sm:$0xf]
        %v8530 = vld [vmem:[%s6115 + $0x21c] sm:$0xf]
        %v8531 = vld [vmem:[%s6115 + $0x220] sm:$0xf]
        %v8532 = vld [vmem:[%s6115 + $0x224] sm:$0xf]
        %v8533 = vld [vmem:[%s6115 + $0x228] sm:$0xf]
        %v8534 = vld [vmem:[%s6115 + $0x22c] sm:$0xf]
        %v8535 = vld [vmem:[%s6115 + $0x230] sm:$0xf]
        %v8536 = vld [vmem:[%s6115 + $0x234] sm:$0xf]
        %v8537 = vld [vmem:[%s6115 + $0x238] sm:$0xf]
        %v8538 = vld [vmem:[%s6115 + $0x23c] sm:$0xf]
        %v8539 = vld [vmem:[%s6260] sm:$0x1]
        %v8541 = vlaneseq
        %v8542 = vshrl.u32 %v8541, 7
        %v8543 = vsub.s32 0, %v8542
        %v8544 = vrot.slane %v8539, %v8543
        %v8690 = vunpack.c.l.b16 %v8395
        %v8691 = vunpack.c.l.b16 %v8396
        %v8692 = vunpack.c.l.b16 %v8397
        %v8693 = vunpack.c.l.b16 %v8398
        %v8694 = vunpack.c.l.b16 %v8399
        %v8695 = vunpack.c.l.b16 %v8400
        %v8696 = vunpack.c.l.b16 %v8401
        %v8697 = vunpack.c.l.b16 %v8402
        %v8698 = vunpack.c.l.b16 %v8403
        %v8699 = vunpack.c.l.b16 %v8404
        %v8700 = vunpack.c.l.b16 %v8405
        %v8701 = vunpack.c.l.b16 %v8406
        %v8702 = vunpack.c.l.b16 %v8407
        %v8703 = vunpack.c.l.b16 %v8408
        %v8704 = vunpack.c.l.b16 %v8409
        %v8705 = vunpack.c.l.b16 %v8410
        %v8706 = vunpack.c.l.b16 %v8411
        %v8707 = vunpack.c.l.b16 %v8412
        %v8708 = vunpack.c.l.b16 %v8413
        %v8709 = vunpack.c.l.b16 %v8414
        %v8710 = vunpack.c.l.b16 %v8415
        %v8711 = vunpack.c.l.b16 %v8416
        %v8712 = vunpack.c.l.b16 %v8417
        %v8713 = vunpack.c.l.b16 %v8418
        %v8714 = vunpack.c.l.b16 %v8419
        %v8715 = vunpack.c.l.b16 %v8420
        %v8716 = vunpack.c.l.b16 %v8421
        %v8717 = vunpack.c.l.b16 %v8422
        %v8718 = vunpack.c.l.b16 %v8423
        %v8719 = vunpack.c.l.b16 %v8424
        %v8720 = vunpack.c.l.b16 %v8425
        %v8721 = vunpack.c.l.b16 %v8426
        %v8722 = vunpack.c.l.b16 %v8427
        %v8723 = vunpack.c.l.b16 %v8428
        %v8724 = vunpack.c.l.b16 %v8429
        %v8725 = vunpack.c.l.b16 %v8430
        %v8726 = vunpack.c.l.b16 %v8431
        %v8727 = vunpack.c.l.b16 %v8432
        %v8728 = vunpack.c.l.b16 %v8433
        %v8729 = vunpack.c.l.b16 %v8434
        %v8730 = vunpack.c.l.b16 %v8435
        %v8731 = vunpack.c.l.b16 %v8436
        %v8732 = vunpack.c.l.b16 %v8437
        %v8733 = vunpack.c.l.b16 %v8438
        %v8734 = vunpack.c.l.b16 %v8439
        %v8735 = vunpack.c.l.b16 %v8440
        %v8736 = vunpack.c.l.b16 %v8441
        %v8737 = vunpack.c.l.b16 %v8442
        %v8738 = vunpack.c.l.b16 %v8443
        %v8739 = vunpack.c.l.b16 %v8444
        %v8740 = vunpack.c.l.b16 %v8445
        %v8741 = vunpack.c.l.b16 %v8446
        %v8742 = vunpack.c.l.b16 %v8447
        %v8743 = vunpack.c.l.b16 %v8448
        %v8744 = vunpack.c.l.b16 %v8449
        %v8745 = vunpack.c.l.b16 %v8450
        %v8746 = vunpack.c.l.b16 %v8451
        %v8747 = vunpack.c.l.b16 %v8452
        %v8748 = vunpack.c.l.b16 %v8453
        %v8749 = vunpack.c.l.b16 %v8454
        %v8750 = vunpack.c.l.b16 %v8455
        %v8751 = vunpack.c.l.b16 %v8456
        %v8752 = vunpack.c.l.b16 %v8457
        %v8753 = vunpack.c.l.b16 %v8458
        %v8754 = vunpack.c.l.b16 %v8459
        %v8755 = vunpack.c.l.b16 %v8460
        %v8756 = vunpack.c.l.b16 %v8461
        %v8757 = vunpack.c.l.b16 %v8462
        %v8758 = vunpack.c.l.b16 %v8463
        %v8759 = vunpack.c.l.b16 %v8464
        %v8760 = vunpack.c.l.b16 %v8465
        %v8761 = vunpack.c.l.b16 %v8466
        %v8762 = vunpack.c.l.b16 %v8467
        %v8763 = vunpack.c.l.b16 %v8468
        %v8764 = vunpack.c.l.b16 %v8469
        %v8765 = vunpack.c.l.b16 %v8470
        %v8766 = vunpack.c.l.b16 %v8471
        %v8767 = vunpack.c.l.b16 %v8472
        %v8768 = vunpack.c.l.b16 %v8473
        %v8769 = vunpack.c.l.b16 %v8474
        %v8770 = vunpack.c.l.b16 %v8475
        %v8771 = vunpack.c.l.b16 %v8476
        %v8772 = vunpack.c.l.b16 %v8477
        %v8773 = vunpack.c.l.b16 %v8478
        %v8774 = vunpack.c.l.b16 %v8479
        %v8775 = vunpack.c.l.b16 %v8480
        %v8776 = vunpack.c.l.b16 %v8481
        %v8777 = vunpack.c.l.b16 %v8482
        %v8778 = vunpack.c.l.b16 %v8483
        %v8779 = vunpack.c.l.b16 %v8484
        %v8780 = vunpack.c.l.b16 %v8485
        %v8781 = vunpack.c.l.b16 %v8486
        %v8782 = vunpack.c.l.b16 %v8487
        %v8783 = vunpack.c.l.b16 %v8488
        %v8784 = vunpack.c.l.b16 %v8489
        %v8785 = vunpack.c.l.b16 %v8490
        %v8786 = vunpack.c.l.b16 %v8491
        %v8787 = vunpack.c.l.b16 %v8492
        %v8788 = vunpack.c.l.b16 %v8493
        %v8789 = vunpack.c.l.b16 %v8494
        %v8790 = vunpack.c.l.b16 %v8495
        %v8791 = vunpack.c.l.b16 %v8496
        %v8792 = vunpack.c.l.b16 %v8497
        %v8793 = vunpack.c.l.b16 %v8498
        %v8794 = vunpack.c.l.b16 %v8499
        %v8795 = vunpack.c.l.b16 %v8500
        %v8796 = vunpack.c.l.b16 %v8501
        %v8797 = vunpack.c.l.b16 %v8502
        %v8798 = vunpack.c.l.b16 %v8503
        %v8799 = vunpack.c.l.b16 %v8504
        %v8800 = vunpack.c.l.b16 %v8505
        %v8801 = vunpack.c.l.b16 %v8506
        %v8802 = vunpack.c.l.b16 %v8507
        %v8803 = vunpack.c.l.b16 %v8508
        %v8804 = vunpack.c.l.b16 %v8509
        %v8805 = vunpack.c.l.b16 %v8510
        %v8806 = vunpack.c.l.b16 %v8511
        %v8807 = vunpack.c.l.b16 %v8512
        %v8808 = vunpack.c.l.b16 %v8513
        %v8809 = vunpack.c.l.b16 %v8514
        %v8810 = vunpack.c.l.b16 %v8515
        %v8811 = vunpack.c.l.b16 %v8516
        %v8812 = vunpack.c.l.b16 %v8517
        %v8813 = vunpack.c.l.b16 %v8518
        %v8814 = vunpack.c.l.b16 %v8519
        %v8815 = vunpack.c.l.b16 %v8520
        %v8816 = vunpack.c.l.b16 %v8521
        %v8817 = vunpack.c.l.b16 %v8522
        %v8818 = vunpack.c.l.b16 %v8523
        %v8819 = vunpack.c.l.b16 %v8524
        %v8820 = vunpack.c.l.b16 %v8525
        %v8821 = vunpack.c.l.b16 %v8526
        %v8822 = vunpack.c.l.b16 %v8527
        %v8823 = vunpack.c.l.b16 %v8528
        %v8824 = vunpack.c.l.b16 %v8529
        %v8825 = vunpack.c.l.b16 %v8530
        %v8826 = vunpack.c.l.b16 %v8531
        %v8827 = vunpack.c.l.b16 %v8532
        %v8828 = vunpack.c.l.b16 %v8533
        %v8829 = vunpack.c.l.b16 %v8534
        %v8830 = vunpack.c.l.b16 %v8535
        %v8831 = vunpack.c.l.b16 %v8536
        %v8832 = vunpack.c.l.b16 %v8537
        %v8833 = vunpack.c.l.b16 %v8538
        %v8834 = vpack.c.b16 %v8691, %v8690
        %v8835 = vpack.c.b16 %v8693, %v8692
        %v8836 = vpack.c.b16 %v8695, %v8694
        %v8837 = vpack.c.b16 %v8697, %v8696
        %v8838 = vpack.c.b16 %v8699, %v8698
        %v8839 = vpack.c.b16 %v8701, %v8700
        %v8840 = vpack.c.b16 %v8703, %v8702
        %v8841 = vpack.c.b16 %v8705, %v8704
        %v8842 = vpack.c.b16 %v8707, %v8706
        %v8843 = vpack.c.b16 %v8709, %v8708
        %v8844 = vpack.c.b16 %v8711, %v8710
        %v8845 = vpack.c.b16 %v8713, %v8712
        %v8846 = vpack.c.b16 %v8715, %v8714
        %v8847 = vpack.c.b16 %v8717, %v8716
        %v8848 = vpack.c.b16 %v8719, %v8718
        %v8849 = vpack.c.b16 %v8721, %v8720
        %v8850 = vpack.c.b16 %v8723, %v8722
        %v8851 = vpack.c.b16 %v8725, %v8724
        %v8852 = vpack.c.b16 %v8727, %v8726
        %v8853 = vpack.c.b16 %v8729, %v8728
        %v8854 = vpack.c.b16 %v8731, %v8730
        %v8855 = vpack.c.b16 %v8733, %v8732
        %v8856 = vpack.c.b16 %v8735, %v8734
        %v8857 = vpack.c.b16 %v8737, %v8736
        %v8858 = vpack.c.b16 %v8739, %v8738
        %v8859 = vpack.c.b16 %v8741, %v8740
        %v8860 = vpack.c.b16 %v8743, %v8742
        %v8861 = vpack.c.b16 %v8745, %v8744
        %v8862 = vpack.c.b16 %v8747, %v8746
        %v8863 = vpack.c.b16 %v8749, %v8748
        %v8864 = vpack.c.b16 %v8751, %v8750
        %v8865 = vpack.c.b16 %v8753, %v8752
        %v8866 = vpack.c.b16 %v8755, %v8754
        %v8867 = vpack.c.b16 %v8757, %v8756
        %v8868 = vpack.c.b16 %v8759, %v8758
        %v8869 = vpack.c.b16 %v8761, %v8760
        %v8870 = vpack.c.b16 %v8763, %v8762
        %v8871 = vpack.c.b16 %v8765, %v8764
        %v8872 = vpack.c.b16 %v8767, %v8766
        %v8873 = vpack.c.b16 %v8769, %v8768
        %v8874 = vpack.c.b16 %v8771, %v8770
        %v8875 = vpack.c.b16 %v8773, %v8772
        %v8876 = vpack.c.b16 %v8775, %v8774
        %v8877 = vpack.c.b16 %v8777, %v8776
        %v8878 = vpack.c.b16 %v8779, %v8778
        %v8879 = vpack.c.b16 %v8781, %v8780
        %v8880 = vpack.c.b16 %v8783, %v8782
        %v8881 = vpack.c.b16 %v8785, %v8784
        %v8882 = vpack.c.b16 %v8787, %v8786
        %v8883 = vpack.c.b16 %v8789, %v8788
        %v8884 = vpack.c.b16 %v8791, %v8790
        %v8885 = vpack.c.b16 %v8793, %v8792
        %v8886 = vpack.c.b16 %v8795, %v8794
        %v8887 = vpack.c.b16 %v8797, %v8796
        %v8888 = vpack.c.b16 %v8799, %v8798
        %v8889 = vpack.c.b16 %v8801, %v8800
        %v8890 = vpack.c.b16 %v8803, %v8802
        %v8891 = vpack.c.b16 %v8805, %v8804
        %v8892 = vpack.c.b16 %v8807, %v8806
        %v8893 = vpack.c.b16 %v8809, %v8808
        %v8894 = vpack.c.b16 %v8811, %v8810
        %v8895 = vpack.c.b16 %v8813, %v8812
        %v8896 = vpack.c.b16 %v8815, %v8814
        %v8897 = vpack.c.b16 %v8817, %v8816
        %v8898 = vpack.c.b16 %v8819, %v8818
        %v8899 = vpack.c.b16 %v8821, %v8820
        %v8900 = vpack.c.b16 %v8823, %v8822
        %v8901 = vpack.c.b16 %v8825, %v8824
        %v8902 = vpack.c.b16 %v8827, %v8826
        %v8903 = vpack.c.b16 %v8829, %v8828
        %v8904 = vpack.c.b16 %v8831, %v8830
        %v8905 = vpack.c.b16 %v8833, %v8832
        %8978 = vmatprep.subr.bf16.mxu0 0
        %8979 = vmatpush1.bf16.msra.mxu0 %v8834
        %8980 = vmatprep.subr.bf16.mxu0 0
        %8981 = vmatpush1.bf16.msra.mxu0 %v8835
        %8982 = vmatprep.subr.bf16.mxu0 0
        %8983 = vmatpush1.bf16.msra.mxu0 %v8836
        %8984 = vmatprep.subr.bf16.mxu0 0
        %8985 = vmatpush1.bf16.msra.mxu0 %v8837
        %8986 = vmatprep.subr.bf16.mxu0 0
        %8987 = vmatpush1.bf16.msra.mxu0 %v8838
        %8988 = vmatprep.subr.bf16.mxu0 0
        %8989 = vmatpush1.bf16.msra.mxu0 %v8839
        %8990 = vmatprep.subr.bf16.mxu0 0
        %8991 = vmatpush1.bf16.msra.mxu0 %v8840
        %8992 = vmatprep.subr.bf16.mxu0 0
        %8993 = vmatpush1.bf16.msra.mxu0 %v8841
        %8994 = vmatprep.subr.bf16.mxu0 0
        %8995 = vmatpush1.bf16.msra.mxu0 %v8842
        %8996 = vmatprep.subr.bf16.mxu0 0
        %8997 = vmatpush1.bf16.msra.mxu0 %v8843
        %8998 = vmatprep.subr.bf16.mxu0 0
        %8999 = vmatpush1.bf16.msra.mxu0 %v8844
        %9000 = vmatprep.subr.bf16.mxu0 0
        %9001 = vmatpush1.bf16.msra.mxu0 %v8845
        %9002 = vmatprep.subr.bf16.mxu0 0
        %9003 = vmatpush1.bf16.msra.mxu0 %v8846
        %9004 = vmatprep.subr.bf16.mxu0 0
        %9005 = vmatpush1.bf16.msra.mxu0 %v8847
        %9006 = vmatprep.subr.bf16.mxu0 0
        %9007 = vmatpush1.bf16.msra.mxu0 %v8848
        %9008 = vmatprep.subr.bf16.mxu0 0
        %9009 = vmatpush1.bf16.msra.mxu0 %v8849
        %9010 = vmatprep.mubr.bf16.mxu0 %v7597
        %9011 = vmatmul.mubr.bf16.gmra.mrb[0].mxu0 %v7585
        %v9012 = vpop.f32.mrb[0].mxu0
        %v9013 = vadd.f32 %v8544, %v9012
        %v9014 = vpop.f32.mrb[0].mxu0
        %v9015 = vpop.f32.mrb[0].mxu0
        %v9016 = vadd.f32 %v8544, %v9015
        %v9017 = vpop.f32.mrb[0].mxu0
        %9018 = vmatprep.mubr.bf16.mxu0 %v7690
        %9019 = vmatmul.mubr.bf16.gmra.mrb[0].mxu0 %v7678
        %v9020 = vpop.f32.mrb[0].mxu0
        %v9021 = vadd.f32 %v8544, %v9020
        %v9022 = vpop.f32.mrb[0].mxu0
        %v9023 = vpop.f32.mrb[0].mxu0
        %v9024 = vadd.f32 %v8544, %v9023
        %v9025 = vpop.f32.mrb[0].mxu0
        %9026 = vmatprep.mubr.bf16.mxu0 %v7783
        %9027 = vmatmul.mubr.bf16.gmra.mrb[0].mxu0 %v7771
        %v9028 = vpop.f32.mrb[0].mxu0
        %v9029 = vadd.f32 %v8544, %v9028
        %v9030 = vpop.f32.mrb[0].mxu0
        %v9031 = vpop.f32.mrb[0].mxu0
        %v9032 = vadd.f32 %v8544, %v9031
        %v9033 = vpop.f32.mrb[0].mxu0
        %9034 = vmatprep.mubr.bf16.mxu0 %v7876
        %9035 = vmatmul.mubr.bf16.gmra.mrb[0].mxu0 %v7864
        %v9036 = vpop.f32.mrb[0].mxu0
        %v9037 = vadd.f32 %v8544, %v9036
        %v9038 = vpop.f32.mrb[0].mxu0
        %v9039 = vpop.f32.mrb[0].mxu0
        %v9040 = vadd.f32 %v8544, %v9039
        %v9041 = vpop.f32.mrb[0].mxu0
        %9042 = vmatprep.mubr.bf16.mxu0 %v7969
        %9043 = vmatmul.mubr.bf16.gmra.mrb[0].mxu0 %v7957
        %v9044 = vpop.f32.mrb[0].mxu0
        %v9045 = vadd.f32 %v8544, %v9044
        %v9046 = vpop.f32.mrb[0].mxu0
        %v9047 = vpop.f32.mrb[0].mxu0
        %v9048 = vadd.f32 %v8544, %v9047
        %v9049 = vpop.f32.mrb[0].mxu0
        %9050 = vmatprep.mubr.bf16.mxu0 %v8062
        %9051 = vmatmul.mubr.bf16.gmra.mrb[0].mxu0 %v8050
        %v9052 = vpop.f32.mrb[0].mxu0
        %v9053 = vadd.f32 %v8544, %v9052
        %v9054 = vpop.f32.mrb[0].mxu0
        %v9055 = vpop.f32.mrb[0].mxu0
        %v9056 = vadd.f32 %v8544, %v9055
        %v9057 = vpop.f32.mrb[0].mxu0
        %9058 = vmatprep.mubr.bf16.mxu0 %v8155
        %9059 = vmatmul.mubr.bf16.gmra.mrb[0].mxu0 %v8143
        %v9060 = vpop.f32.mrb[0].mxu0
        %v9061 = vadd.f32 %v8544, %v9060
        %v9062 = vpop.f32.mrb[0].mxu0
        %v9063 = vpop.f32.mrb[0].mxu0
        %v9064 = vadd.f32 %v8544, %v9063
        %v9065 = vpop.f32.mrb[0].mxu0
        %9066 = vmatprep.mubr.bf16.mxu0 %v8248
        %9067 = vmatmul.mubr.bf16.gmra.mrb[0].mxu0 %v8236
        %v9068 = vpop.f32.mrb[0].mxu0
        %v9069 = vadd.f32 %v8544, %v9068
        %v9070 = vpop.f32.mrb[0].mxu0
        %v9071 = vpop.f32.mrb[0].mxu0
        %v9072 = vadd.f32 %v8544, %v9071
        %v9073 = vpop.f32.mrb[0].mxu0
        %9074 = vdwg.mxu0
        %9075 = vmatprep.subr.bf16.mxu0 0
        %9076 = vmatpush1.bf16.msra.mxu0 %v8850
        %9077 = vmatprep.subr.bf16.mxu0 0
        %9078 = vmatpush1.bf16.msra.mxu0 %v8851
        %9079 = vmatprep.subr.bf16.mxu0 0
        %9080 = vmatpush1.bf16.msra.mxu0 %v8852
        %9081 = vmatprep.subr.bf16.mxu0 0
        %9082 = vmatpush1.bf16.msra.mxu0 %v8853
        %9083 = vmatprep.subr.bf16.mxu0 0
        %9084 = vmatpush1.bf16.msra.mxu0 %v8854
        %9085 = vmatprep.subr.bf16.mxu0 0
        %9086 = vmatpush1.bf16.msra.mxu0 %v8855
        %9087 = vmatprep.subr.bf16.mxu0 0
        %9088 = vmatpush1.bf16.msra.mxu0 %v8856
        %9089 = vmatprep.subr.bf16.mxu0 0
        %9090 = vmatpush1.bf16.msra.mxu0 %v8857
        %9091 = vmatprep.subr.bf16.mxu0 0
        %9092 = vmatpush1.bf16.msra.mxu0 %v8858
        %9093 = vmatprep.subr.bf16.mxu0 0
        %9094 = vmatpush1.bf16.msra.mxu0 %v8859
        %9095 = vmatprep.subr.bf16.mxu0 0
        %9096 = vmatpush1.bf16.msra.mxu0 %v8860
        %9097 = vmatprep.subr.bf16.mxu0 0
        %9098 = vmatpush1.bf16.msra.mxu0 %v8861
        %9099 = vmatprep.subr.bf16.mxu0 0
        %9100 = vmatpush1.bf16.msra.mxu0 %v8862
        %9101 = vmatprep.subr.bf16.mxu0 0
        %9102 = vmatpush1.bf16.msra.mxu0 %v8863
        %9103 = vmatprep.subr.bf16.mxu0 0
        %9104 = vmatpush1.bf16.msra.mxu0 %v8864
        %9105 = vmatprep.subr.bf16.mxu0 0
        %9106 = vmatpush1.bf16.msra.mxu0 %v8865
        %9107 = vmatprep.mubr.bf16.mxu0 %v7616
        %9108 = vmatmul.mubr.bf16.gmra.mrb[0].mxu0 %v7609
        %v9109 = vpop.f32.mrb[0].mxu0
        %v9110 = vadd.f32 %v9013, %v9109
        %v9111 = vpop.f32.mrb[0].mxu0
        %v9112 = vpop.f32.mrb[0].mxu0
        %v9113 = vadd.f32 %v9016, %v9112
        %v9114 = vpop.f32.mrb[0].mxu0
        %9115 = vmatprep.mubr.bf16.mxu0 %v7709
        %9116 = vmatmul.mubr.bf16.gmra.mrb[0].mxu0 %v7702
        %v9117 = vpop.f32.mrb[0].mxu0
        %v9118 = vadd.f32 %v9021, %v9117
        %v9119 = vpop.f32.mrb[0].mxu0
        %v9120 = vpop.f32.mrb[0].mxu0
        %v9121 = vadd.f32 %v9024, %v9120
        %v9122 = vpop.f32.mrb[0].mxu0
        %9123 = vmatprep.mubr.bf16.mxu0 %v7802
        %9124 = vmatmul.mubr.bf16.gmra.mrb[0].mxu0 %v7795
        %v9125 = vpop.f32.mrb[0].mxu0
        %v9126 = vadd.f32 %v9029, %v9125
        %v9127 = vpop.f32.mrb[0].mxu0
        %v9128 = vpop.f32.mrb[0].mxu0
        %v9129 = vadd.f32 %v9032, %v9128
        %v9130 = vpop.f32.mrb[0].mxu0
        %9131 = vmatprep.mubr.bf16.mxu0 %v7895
        %9132 = vmatmul.mubr.bf16.gmra.mrb[0].mxu0 %v7888
        %v9133 = vpop.f32.mrb[0].mxu0
        %v9134 = vadd.f32 %v9037, %v9133
        %v9135 = vpop.f32.mrb[0].mxu0
        %v9136 = vpop.f32.mrb[0].mxu0
        %v9137 = vadd.f32 %v9040, %v9136
        %v9138 = vpop.f32.mrb[0].mxu0
        %9139 = vmatprep.mubr.bf16.mxu0 %v7988
        %9140 = vmatmul.mubr.bf16.gmra.mrb[0].mxu0 %v7981
        %v9141 = vpop.f32.mrb[0].mxu0
        %v9142 = vadd.f32 %v9045, %v9141
        %v9143 = vpop.f32.mrb[0].mxu0
        %v9144 = vpop.f32.mrb[0].mxu0
        %v9145 = vadd.f32 %v9048, %v9144
        %v9146 = vpop.f32.mrb[0].mxu0
        %9147 = vmatprep.mubr.bf16.mxu0 %v8081
        %9148 = vmatmul.mubr.bf16.gmra.mrb[0].mxu0 %v8074
        %v9149 = vpop.f32.mrb[0].mxu0
        %v9150 = vadd.f32 %v9053, %v9149
        %v9151 = vpop.f32.mrb[0].mxu0
        %v9152 = vpop.f32.mrb[0].mxu0
        %v9153 = vadd.f32 %v9056, %v9152
        %v9154 = vpop.f32.mrb[0].mxu0
        %9155 = vmatprep.mubr.bf16.mxu0 %v8174
        %9156 = vmatmul.mubr.bf16.gmra.mrb[0].mxu0 %v8167
        %v9157 = vpop.f32.mrb[0].mxu0
        %v9158 = vadd.f32 %v9061, %v9157
        %v9159 = vpop.f32.mrb[0].mxu0
        %v9160 = vpop.f32.mrb[0].mxu0
        %v9161 = vadd.f32 %v9064, %v9160
        %v9162 = vpop.f32.mrb[0].mxu0
        %9163 = vmatprep.mubr.bf16.mxu0 %v8267
        %9164 = vmatmul.mubr.bf16.gmra.mrb[0].mxu0 %v8260
        %v9165 = vpop.f32.mrb[0].mxu0
        %v9166 = vadd.f32 %v9069, %v9165
        %v9167 = vpop.f32.mrb[0].mxu0
        %v9168 = vpop.f32.mrb[0].mxu0
        %v9169 = vadd.f32 %v9072, %v9168
        %v9170 = vpop.f32.mrb[0].mxu0
        %9171 = vdwg.mxu0
        %9172 = vmatprep.subr.bf16.mxu0 0
        %9173 = vmatpush1.bf16.msra.mxu0 %v8866
        %9174 = vmatprep.subr.bf16.mxu0 0
        %9175 = vmatpush1.bf16.msra.mxu0 %v8867
        %9176 = vmatprep.subr.bf16.mxu0 0
        %9177 = vmatpush1.bf16.msra.mxu0 %v8868
        %9178 = vmatprep.subr.bf16.mxu0 0
        %9179 = vmatpush1.bf16.msra.mxu0 %v8869
        %9180 = vmatprep.subr.bf16.mxu0 0
        %9181 = vmatpush1.bf16.msra.mxu0 %v8870
        %9182 = vmatprep.subr.bf16.mxu0 0
        %9183 = vmatpush1.bf16.msra.mxu0 %v8871
        %9184 = vmatprep.subr.bf16.mxu0 0
        %9185 = vmatpush1.bf16.msra.mxu0 %v8872
        %9186 = vmatprep.subr.bf16.mxu0 0
        %9187 = vmatpush1.bf16.msra.mxu0 %v8873
        %9188 = vmatprep.subr.bf16.mxu0 0
        %9189 = vmatpush1.bf16.msra.mxu0 %v8874
        %9190 = vmatprep.subr.bf16.mxu0 0
        %9191 = vmatpush1.bf16.msra.mxu0 %v8875
        %9192 = vmatprep.subr.bf16.mxu0 0
        %9193 = vmatpush1.bf16.msra.mxu0 %v8876
        %9194 = vmatprep.subr.bf16.mxu0 0
        %9195 = vmatpush1.bf16.msra.mxu0 %v8877
        %9196 = vmatprep.subr.bf16.mxu0 0
        %9197 = vmatpush1.bf16.msra.mxu0 %v8878
        %9198 = vmatprep.subr.bf16.mxu0 0
        %9199 = vmatpush1.bf16.msra.mxu0 %v8879
        %9200 = vmatprep.subr.bf16.mxu0 0
        %9201 = vmatpush1.bf16.msra.mxu0 %v8880
        %9202 = vmatprep.subr.bf16.mxu0 0
        %9203 = vmatpush1.bf16.msra.mxu0 %v8881
        %9204 = vmatprep.mubr.bf16.mxu0 %v7640
        %9205 = vmatmul.mubr.bf16.gmra.mrb[0].mxu0 %v7628
        %v9206 = vpop.f32.mrb[0].mxu0
        %v9207 = vadd.f32 %v9110, %v9206
        %v9208 = vpop.f32.mrb[0].mxu0
        %v9209 = vpop.f32.mrb[0].mxu0
        %v9210 = vadd.f32 %v9113, %v9209
        %v9211 = vpop.f32.mrb[0].mxu0
        %9212 = vmatprep.mubr.bf16.mxu0 %v7733
        %9213 = vmatmul.mubr.bf16.gmra.mrb[0].mxu0 %v7721
        %v9214 = vpop.f32.mrb[0].mxu0
        %v9215 = vadd.f32 %v9118, %v9214
        %v9216 = vpop.f32.mrb[0].mxu0
        %v9217 = vpop.f32.mrb[0].mxu0
        %v9218 = vadd.f32 %v9121, %v9217
        %v9219 = vpop.f32.mrb[0].mxu0
        %9220 = vmatprep.mubr.bf16.mxu0 %v7826
        %9221 = vmatmul.mubr.bf16.gmra.mrb[0].mxu0 %v7814
        %v9222 = vpop.f32.mrb[0].mxu0
        %v9223 = vadd.f32 %v9126, %v9222
        %v9224 = vpop.f32.mrb[0].mxu0
        %v9225 = vpop.f32.mrb[0].mxu0
        %v9226 = vadd.f32 %v9129, %v9225
        %v9227 = vpop.f32.mrb[0].mxu0
        %9228 = vmatprep.mubr.bf16.mxu0 %v7919
        %9229 = vmatmul.mubr.bf16.gmra.mrb[0].mxu0 %v7907
        %v9230 = vpop.f32.mrb[0].mxu0
        %v9231 = vadd.f32 %v9134, %v9230
        %v9232 = vpop.f32.mrb[0].mxu0
        %v9233 = vpop.f32.mrb[0].mxu0
        %v9234 = vadd.f32 %v9137, %v9233
        %v9235 = vpop.f32.mrb[0].mxu0
        %9236 = vmatprep.mubr.bf16.mxu0 %v8012
        %9237 = vmatmul.mubr.bf16.gmra.mrb[0].mxu0 %v8000
        %v9238 = vpop.f32.mrb[0].mxu0
        %v9239 = vadd.f32 %v9142, %v9238
        %v9240 = vpop.f32.mrb[0].mxu0
        %v9241 = vpop.f32.mrb[0].mxu0
        %v9242 = vadd.f32 %v9145, %v9241
        %v9243 = vpop.f32.mrb[0].mxu0
        %9244 = vmatprep.mubr.bf16.mxu0 %v8105
        %9245 = vmatmul.mubr.bf16.gmra.mrb[0].mxu0 %v8093
        %v9246 = vpop.f32.mrb[0].mxu0
        %v9247 = vadd.f32 %v9150, %v9246
        %v9248 = vpop.f32.mrb[0].mxu0
        %v9249 = vpop.f32.mrb[0].mxu0
        %v9250 = vadd.f32 %v9153, %v9249
        %v9251 = vpop.f32.mrb[0].mxu0
        %9252 = vmatprep.mubr.bf16.mxu0 %v8198
        %9253 = vmatmul.mubr.bf16.gmra.mrb[0].mxu0 %v8186
        %v9254 = vpop.f32.mrb[0].mxu0
        %v9255 = vadd.f32 %v9158, %v9254
        %v9256 = vpop.f32.mrb[0].mxu0
        %v9257 = vpop.f32.mrb[0].mxu0
        %v9258 = vadd.f32 %v9161, %v9257
        %v9259 = vpop.f32.mrb[0].mxu0
        %9260 = vmatprep.mubr.bf16.mxu0 %v8291
        %9261 = vmatmul.mubr.bf16.gmra.mrb[0].mxu0 %v8279
        %v9262 = vpop.f32.mrb[0].mxu0
        %v9263 = vadd.f32 %v9166, %v9262
        %v9264 = vpop.f32.mrb[0].mxu0
        %v9265 = vpop.f32.mrb[0].mxu0
        %v9266 = vadd.f32 %v9169, %v9265
        %v9267 = vpop.f32.mrb[0].mxu0
        %9268 = vdwg.mxu0
        %9269 = vmatprep.subr.bf16.mxu0 0
        %9270 = vmatpush1.bf16.msra.mxu0 %v8882
        %9271 = vmatprep.subr.bf16.mxu0 0
        %9272 = vmatpush1.bf16.msra.mxu0 %v8883
        %9273 = vmatprep.subr.bf16.mxu0 0
        %9274 = vmatpush1.bf16.msra.mxu0 %v8884
        %9275 = vmatprep.subr.bf16.mxu0 0
        %9276 = vmatpush1.bf16.msra.mxu0 %v8885
        %9277 = vmatprep.subr.bf16.mxu0 0
        %9278 = vmatpush1.bf16.msra.mxu0 %v8886
        %9279 = vmatprep.subr.bf16.mxu0 0
        %9280 = vmatpush1.bf16.msra.mxu0 %v8887
        %9281 = vmatprep.subr.bf16.mxu0 0
        %9282 = vmatpush1.bf16.msra.mxu0 %v8888
        %9283 = vmatprep.subr.bf16.mxu0 0
        %9284 = vmatpush1.bf16.msra.mxu0 %v8889
        %9285 = vmatprep.subr.bf16.mxu0 0
        %9286 = vmatpush1.bf16.msra.mxu0 %v8890
        %9287 = vmatprep.subr.bf16.mxu0 0
        %9288 = vmatpush1.bf16.msra.mxu0 %v8891
        %9289 = vmatprep.subr.bf16.mxu0 0
        %9290 = vmatpush1.bf16.msra.mxu0 %v8892
        %9291 = vmatprep.subr.bf16.mxu0 0
        %9292 = vmatpush1.bf16.msra.mxu0 %v8893
        %9293 = vmatprep.subr.bf16.mxu0 0
        %9294 = vmatpush1.bf16.msra.mxu0 %v8894
        %9295 = vmatprep.subr.bf16.mxu0 0
        %9296 = vmatpush1.bf16.msra.mxu0 %v8895
        %9297 = vmatprep.subr.bf16.mxu0 0
        %9298 = vmatpush1.bf16.msra.mxu0 %v8896
        %9299 = vmatprep.subr.bf16.mxu0 0
        %9300 = vmatpush1.bf16.msra.mxu0 %v8897
        %9301 = vmatprep.mubr.bf16.mxu0 %v7659
        %9302 = vmatmul.mubr.bf16.gmra.mrb[0].mxu0 %v7647
        %v9303 = vpop.f32.mrb[0].mxu0
        %v9304 = vadd.f32 %v9207, %v9303
        %v9305 = vpop.f32.mrb[0].mxu0
        %v9306 = vpop.f32.mrb[0].mxu0
        %v9307 = vadd.f32 %v9210, %v9306
        %v9308 = vpop.f32.mrb[0].mxu0
        %9309 = vmatprep.mubr.bf16.mxu0 %v7752
        %9310 = vmatmul.mubr.bf16.gmra.mrb[0].mxu0 %v7740
        %v9311 = vpop.f32.mrb[0].mxu0
        %v9312 = vadd.f32 %v9215, %v9311
        %v9313 = vpop.f32.mrb[0].mxu0
        %v9314 = vpop.f32.mrb[0].mxu0
        %v9315 = vadd.f32 %v9218, %v9314
        %v9316 = vpop.f32.mrb[0].mxu0
        %9317 = vmatprep.mubr.bf16.mxu0 %v7845
        %9318 = vmatmul.mubr.bf16.gmra.mrb[0].mxu0 %v7833
        %v9319 = vpop.f32.mrb[0].mxu0
        %v9320 = vadd.f32 %v9223, %v9319
        %v9321 = vpop.f32.mrb[0].mxu0
        %v9322 = vpop.f32.mrb[0].mxu0
        %v9323 = vadd.f32 %v9226, %v9322
        %v9324 = vpop.f32.mrb[0].mxu0
        %9325 = vmatprep.mubr.bf16.mxu0 %v7938
        %9326 = vmatmul.mubr.bf16.gmra.mrb[0].mxu0 %v7926
        %v9327 = vpop.f32.mrb[0].mxu0
        %v9328 = vadd.f32 %v9231, %v9327
        %v9329 = vpop.f32.mrb[0].mxu0
        %v9330 = vpop.f32.mrb[0].mxu0
        %v9331 = vadd.f32 %v9234, %v9330
        %v9332 = vpop.f32.mrb[0].mxu0
        %9333 = vmatprep.mubr.bf16.mxu0 %v8031
        %9334 = vmatmul.mubr.bf16.gmra.mrb[0].mxu0 %v8019
        %v9335 = vpop.f32.mrb[0].mxu0
        %v9336 = vadd.f32 %v9239, %v9335
        %v9337 = vpop.f32.mrb[0].mxu0
        %v9338 = vpop.f32.mrb[0].mxu0
        %v9339 = vadd.f32 %v9242, %v9338
        %v9340 = vpop.f32.mrb[0].mxu0
        %9341 = vmatprep.mubr.bf16.mxu0 %v8124
        %9342 = vmatmul.mubr.bf16.gmra.mrb[0].mxu0 %v8112
        %v9343 = vpop.f32.mrb[0].mxu0
        %v9344 = vadd.f32 %v9247, %v9343
        %v9345 = vpop.f32.mrb[0].mxu0
        %v9346 = vpop.f32.mrb[0].mxu0
        %v9347 = vadd.f32 %v9250, %v9346
        %v9348 = vpop.f32.mrb[0].mxu0
        %9349 = vmatprep.mubr.bf16.mxu0 %v8217
        %9350 = vmatmul.mubr.bf16.gmra.mrb[0].mxu0 %v8205
        %v9351 = vpop.f32.mrb[0].mxu0
        %v9352 = vadd.f32 %v9255, %v9351
        %v9353 = vpop.f32.mrb[0].mxu0
        %v9354 = vpop.f32.mrb[0].mxu0
        %v9355 = vadd.f32 %v9258, %v9354
        %v9356 = vpop.f32.mrb[0].mxu0
        %9357 = vmatprep.mubr.bf16.mxu0 %v8310
        %9358 = vmatmul.mubr.bf16.gmra.mrb[0].mxu0 %v8298
        %v9359 = vpop.f32.mrb[0].mxu0
        %v9360 = vadd.f32 %v9263, %v9359
        %v9361 = vpop.f32.mrb[0].mxu0
        %v9362 = vpop.f32.mrb[0].mxu0
        %v9363 = vadd.f32 %v9266, %v9362
        %v9364 = vpop.f32.mrb[0].mxu0
        %9365 = vdwg.mxu0
        %9366 = vmatprep.subr.bf16.mxu0 0
        %9367 = vmatpush1.bf16.msra.mxu0 %v8898
        %9368 = vmatprep.subr.bf16.mxu0 0
        %9369 = vmatpush1.bf16.msra.mxu0 %v8899
        %9370 = vmatprep.subr.bf16.mxu0 0
        %9371 = vmatpush1.bf16.msra.mxu0 %v8900
        %9372 = vmatprep.subr.bf16.mxu0 0
        %9373 = vmatpush1.bf16.msra.mxu0 %v8901
        %9374 = vmatprep.subr.bf16.mxu0 0
        %9375 = vmatpush1.bf16.msra.mxu0 %v8902
        %9376 = vmatprep.subr.bf16.mxu0 0
        %9377 = vmatpush1.bf16.msra.mxu0 %v8903
        %9378 = vmatprep.subr.bf16.mxu0 0
        %9379 = vmatpush1.bf16.msra.mxu0 %v8904
        %9380 = vmatprep.subr.bf16.mxu0 0
        %9381 = vmatpush1.bf16.msra.mxu0 %v8905
        %9382 = vmatprep.subr.bf16.mxu0 0
        %9383 = vmatpush1.bf16.msra.mxu0 0
        %9384 = vmatprep.subr.bf16.mxu0 0
        %9385 = vmatpush1.bf16.msra.mxu0 0
        %9386 = vmatprep.subr.bf16.mxu0 0
        %9387 = vmatpush1.bf16.msra.mxu0 0
        %9388 = vmatprep.subr.bf16.mxu0 0
        %9389 = vmatpush1.bf16.msra.mxu0 0
        %9390 = vmatprep.subr.bf16.mxu0 0
        %9391 = vmatpush1.bf16.msra.mxu0 0
        %9392 = vmatprep.subr.bf16.mxu0 0
        %9393 = vmatpush1.bf16.msra.mxu0 0
        %9394 = vmatprep.subr.bf16.mxu0 0
        %9395 = vmatpush1.bf16.msra.mxu0 0
        %9396 = vmatprep.subr.bf16.mxu0 0
        %9397 = vmatpush1.bf16.msra.mxu0 0
        %9398 = vmatprep.mubr.bf16.mxu0 0
        %9399 = vmatmul.mubr.bf16.gmra.mrb[0].mxu0 %v7671
        %v9400 = vpop.f32.mrb[0].mxu0
        %v9401 = vadd.f32 %v9304, %v9400
        %v9402 = vpop.f32.mrb[0].mxu0
        %v9403 = vpop.f32.mrb[0].mxu0
        %v9404 = vadd.f32 %v9307, %v9403
        %v9405 = vpop.f32.mrb[0].mxu0
        %9406 = vmatprep.mubr.bf16.mxu0 0
        %9407 = vmatmul.mubr.bf16.gmra.mrb[0].mxu0 %v7764
        %v9408 = vpop.f32.mrb[0].mxu0
        %v9409 = vadd.f32 %v9312, %v9408
        %v9410 = vpop.f32.mrb[0].mxu0
        %v9411 = vpop.f32.mrb[0].mxu0
        %v9412 = vadd.f32 %v9315, %v9411
        %v9413 = vpop.f32.mrb[0].mxu0
        %9414 = vmatprep.mubr.bf16.mxu0 0
        %9415 = vmatmul.mubr.bf16.gmra.mrb[0].mxu0 %v7857
        %v9416 = vpop.f32.mrb[0].mxu0
        %v9417 = vadd.f32 %v9320, %v9416
        %v9418 = vpop.f32.mrb[0].mxu0
        %v9419 = vpop.f32.mrb[0].mxu0
        %v9420 = vadd.f32 %v9323, %v9419
        %v9421 = vpop.f32.mrb[0].mxu0
        %9422 = vmatprep.mubr.bf16.mxu0 0
        %9423 = vmatmul.mubr.bf16.gmra.mrb[0].mxu0 %v7950
        %v9424 = vpop.f32.mrb[0].mxu0
        %v9425 = vadd.f32 %v9328, %v9424
        %v9426 = vpop.f32.mrb[0].mxu0
        %v9427 = vpop.f32.mrb[0].mxu0
        %v9428 = vadd.f32 %v9331, %v9427
        %v9429 = vpop.f32.mrb[0].mxu0
        %9430 = vmatprep.mubr.bf16.mxu0 0
        %9431 = vmatmul.mubr.bf16.gmra.mrb[0].mxu0 %v8043
        %v9432 = vpop.f32.mrb[0].mxu0
        %v9433 = vadd.f32 %v9336, %v9432
        %v9434 = vpop.f32.mrb[0].mxu0
        %v9435 = vpop.f32.mrb[0].mxu0
        %v9436 = vadd.f32 %v9339, %v9435
        %v9437 = vpop.f32.mrb[0].mxu0
        %9438 = vmatprep.mubr.bf16.mxu0 0
        %9439 = vmatmul.mubr.bf16.gmra.mrb[0].mxu0 %v8136
        %v9440 = vpop.f32.mrb[0].mxu0
        %v9441 = vadd.f32 %v9344, %v9440
        %v9442 = vpop.f32.mrb[0].mxu0
        %v9443 = vpop.f32.mrb[0].mxu0
        %v9444 = vadd.f32 %v9347, %v9443
        %v9445 = vpop.f32.mrb[0].mxu0
        %9446 = vmatprep.mubr.bf16.mxu0 0
        %9447 = vmatmul.mubr.bf16.gmra.mrb[0].mxu0 %v8229
        %v9448 = vpop.f32.mrb[0].mxu0
        %v9449 = vadd.f32 %v9352, %v9448
        %v9450 = vpop.f32.mrb[0].mxu0
        %v9451 = vpop.f32.mrb[0].mxu0
        %v9452 = vadd.f32 %v9355, %v9451
        %v9453 = vpop.f32.mrb[0].mxu0
        %9454 = vmatprep.mubr.bf16.mxu0 0
        %9455 = vmatmul.mubr.bf16.gmra.mrb[0].mxu0 %v8322
        %v9456 = vpop.f32.mrb[0].mxu0
        %v9457 = vadd.f32 %v9360, %v9456
        %v9458 = vpop.f32.mrb[0].mxu0
        %v9459 = vpop.f32.mrb[0].mxu0
        %v9460 = vadd.f32 %v9363, %v9459
        %v9461 = vpop.f32.mrb[0].mxu0
        %9462 = vdwg.mxu0
        %v9463 = vmax.f32 %v9401, 0.0
        %v9464 = vmax.f32 %v9404, 0.0
        %v9465 = vmax.f32 %v9409, 0.0
        %v9466 = vmax.f32 %v9412, 0.0
        %v9467 = vmax.f32 %v9417, 0.0
        %v9468 = vmax.f32 %v9420, 0.0
        %v9469 = vmax.f32 %v9425, 0.0
        %v9470 = vmax.f32 %v9428, 0.0
        %v9471 = vmax.f32 %v9433, 0.0
        %v9472 = vmax.f32 %v9436, 0.0
        %v9473 = vmax.f32 %v9441, 0.0
        %v9474 = vmax.f32 %v9444, 0.0
        %v9475 = vmax.f32 %v9449, 0.0
        %v9476 = vmax.f32 %v9452, 0.0
        %v9477 = vmax.f32 %v9457, 0.0
        %v9478 = vmax.f32 %v9460, 0.0
        %v9479 = vpack.c.bf16 %v9464, %v9463
        %v9480 = vpack.c.bf16 %v9466, %v9465
        %v9481 = vpack.c.bf16 %v9468, %v9467
        %v9482 = vpack.c.bf16 %v9470, %v9469
        %v9483 = vpack.c.bf16 %v9472, %v9471
        %v9484 = vpack.c.bf16 %v9474, %v9473
        %v9485 = vpack.c.bf16 %v9476, %v9475
        %v9486 = vpack.c.bf16 %v9478, %v9477
        %9487 = vst [vmem:[%s2683 + $0x8] sm:$0xff] %v9479
        %9488 = vst [vmem:[%s2683 + $0x20] sm:$0xff] %v9480
        %9489 = vst [vmem:[%s2683 + $0x38] sm:$0xff] %v9481
        %9490 = vst [vmem:[%s2683 + $0x50] sm:$0xff] %v9482
        %9491 = vst [vmem:[%s2683 + $0x68] sm:$0xff] %v9483
        %9492 = vst [vmem:[%s2683 + $0x80] sm:$0xff] %v9484
        %9493 = vst [vmem:[%s2683 + $0x98] sm:$0xff] %v9485
        %9494 = vst [vmem:[%s2683 + $0xb0] sm:$0xff] %v9486
        %v9495 = vld [vmem:[#allocation2] sm:$0x80]
        %v9496 = vld [vmem:[#allocation2 + $0x8] sm:$0xff]
        %v9497 = vld [vmem:[#allocation2 + $0x18] sm:$0x80]
        %v9498 = vld [vmem:[#allocation2 + $0x20] sm:$0xff]
        %v9499 = vld [vmem:[#allocation2 + $0x30] sm:$0x80]
        %v9500 = vld [vmem:[#allocation2 + $0x38] sm:$0xff]
        %v9501 = vld [vmem:[#allocation2 + $0x48] sm:$0x80]
        %v9502 = vld [vmem:[#allocation2 + $0x50] sm:$0xff]
        %v9503 = vld [vmem:[#allocation2 + $0x60] sm:$0x80]
        %v9504 = vld [vmem:[#allocation2 + $0x68] sm:$0xff]
        %v9505 = vld [vmem:[#allocation2 + $0x78] sm:$0x80]
        %v9506 = vld [vmem:[#allocation2 + $0x80] sm:$0xff]
        %v9507 = vld [vmem:[#allocation2 + $0x90] sm:$0x80]
        %v9508 = vld [vmem:[#allocation2 + $0x98] sm:$0xff]
        %v9509 = vld [vmem:[#allocation2 + $0xa8] sm:$0x80]
        %v9510 = vld [vmem:[#allocation2 + $0xb0] sm:$0xff]
        %v9511 = vld [vmem:[#allocation2 + $0x10] sm:$0x1]
        %v9512 = vld [vmem:[#allocation2 + $0x28] sm:$0x1]
        %v9513 = vld [vmem:[#allocation2 + $0x40] sm:$0x1]
        %v9514 = vld [vmem:[#allocation2 + $0x58] sm:$0x1]
        %v9515 = vld [vmem:[#allocation2 + $0x70] sm:$0x1]
        %v9516 = vld [vmem:[#allocation2 + $0x88] sm:$0x1]
        %v9517 = vld [vmem:[#allocation2 + $0xa0] sm:$0x1]
        %v9518 = vld [vmem:[#allocation2 + $0xb8] sm:$0x1]
        %v9519 = vld [vmem:[%s361] sm:$0x80]
        %v9520 = vld [vmem:[%s361 + $0x8] sm:$0xff]
        %v9521 = vld [vmem:[%s361 + $0x18] sm:$0x80]
        %v9522 = vld [vmem:[%s361 + $0x20] sm:$0xff]
        %v9523 = vld [vmem:[%s361 + $0x30] sm:$0x80]
        %v9524 = vld [vmem:[%s361 + $0x38] sm:$0xff]
        %v9525 = vld [vmem:[%s361 + $0x48] sm:$0x80]
        %v9526 = vld [vmem:[%s361 + $0x50] sm:$0xff]
        %v9527 = vld [vmem:[%s361 + $0x60] sm:$0x80]
        %v9528 = vld [vmem:[%s361 + $0x68] sm:$0xff]
        %v9529 = vld [vmem:[%s361 + $0x78] sm:$0x80]
        %v9530 = vld [vmem:[%s361 + $0x80] sm:$0xff]
        %v9531 = vld [vmem:[%s361 + $0x90] sm:$0x80]
        %v9532 = vld [vmem:[%s361 + $0x98] sm:$0xff]
        %v9533 = vld [vmem:[%s361 + $0xa8] sm:$0x80]
        %v9534 = vld [vmem:[%s361 + $0xb0] sm:$0xff]
        %v9535 = vld [vmem:[%s361 + $0x10] sm:$0x1]
        %v9536 = vld [vmem:[%s361 + $0x28] sm:$0x1]
        %v9537 = vld [vmem:[%s361 + $0x40] sm:$0x1]
        %v9538 = vld [vmem:[%s361 + $0x58] sm:$0x1]
        %v9539 = vld [vmem:[%s361 + $0x70] sm:$0x1]
        %v9540 = vld [vmem:[%s361 + $0x88] sm:$0x1]
        %v9541 = vld [vmem:[%s361 + $0xa0] sm:$0x1]
        %v9542 = vld [vmem:[%s361 + $0xb8] sm:$0x1]
        %v9543 = vld [vmem:[%s426] sm:$0x80]
        %v9544 = vld [vmem:[%s426 + $0x8] sm:$0xff]
        %v9545 = vld [vmem:[%s426 + $0x18] sm:$0x80]
        %v9546 = vld [vmem:[%s426 + $0x20] sm:$0xff]
        %v9547 = vld [vmem:[%s426 + $0x30] sm:$0x80]
        %v9548 = vld [vmem:[%s426 + $0x38] sm:$0xff]
        %v9549 = vld [vmem:[%s426 + $0x48] sm:$0x80]
        %v9550 = vld [vmem:[%s426 + $0x50] sm:$0xff]
        %v9551 = vld [vmem:[%s426 + $0x60] sm:$0x80]
        %v9552 = vld [vmem:[%s426 + $0x68] sm:$0xff]
        %v9553 = vld [vmem:[%s426 + $0x78] sm:$0x80]
        %v9554 = vld [vmem:[%s426 + $0x80] sm:$0xff]
        %v9555 = vld [vmem:[%s426 + $0x90] sm:$0x80]
        %v9556 = vld [vmem:[%s426 + $0x98] sm:$0xff]
        %v9557 = vld [vmem:[%s426 + $0xa8] sm:$0x80]
        %v9558 = vld [vmem:[%s426 + $0xb0] sm:$0xff]
        %v9559 = vld [vmem:[%s426 + $0x10] sm:$0x1]
        %v9560 = vld [vmem:[%s426 + $0x28] sm:$0x1]
        %v9561 = vld [vmem:[%s426 + $0x40] sm:$0x1]
        %v9562 = vld [vmem:[%s426 + $0x58] sm:$0x1]
        %v9563 = vld [vmem:[%s426 + $0x70] sm:$0x1]
        %v9564 = vld [vmem:[%s426 + $0x88] sm:$0x1]
        %v9565 = vld [vmem:[%s426 + $0xa0] sm:$0x1]
        %v9566 = vld [vmem:[%s426 + $0xb8] sm:$0x1]
        %v9568 = vshll.u32 %v9496, 16
        %v9570 = vrot.slane %v9568, 1
        %v9571 = vshrl.u32 %v9496, 16
        %v9573 = vor.u32 %v9571, %v9570
        %v9575 = vshll.u32 %v9498, 16
        %v9577 = vrot.slane %v9575, 1
        %v9578 = vshrl.u32 %v9498, 16
        %v9580 = vor.u32 %v9578, %v9577
        %v9582 = vshll.u32 %v9500, 16
        %v9584 = vrot.slane %v9582, 1
        %v9585 = vshrl.u32 %v9500, 16
        %v9587 = vor.u32 %v9585, %v9584
        %v9589 = vshll.u32 %v9502, 16
        %v9591 = vrot.slane %v9589, 1
        %v9592 = vshrl.u32 %v9502, 16
        %v9594 = vor.u32 %v9592, %v9591
        %v9596 = vshll.u32 %v9504, 16
        %v9598 = vrot.slane %v9596, 1
        %v9599 = vshrl.u32 %v9504, 16
        %v9601 = vor.u32 %v9599, %v9598
        %v9603 = vshll.u32 %v9506, 16
        %v9605 = vrot.slane %v9603, 1
        %v9606 = vshrl.u32 %v9506, 16
        %v9608 = vor.u32 %v9606, %v9605
        %v9610 = vshll.u32 %v9508, 16
        %v9612 = vrot.slane %v9610, 1
        %v9613 = vshrl.u32 %v9508, 16
        %v9615 = vor.u32 %v9613, %v9612
        %v9617 = vshll.u32 %v9510, 16
        %v9619 = vrot.slane %v9617, 1
        %v9620 = vshrl.u32 %v9510, 16
        %v9622 = vor.u32 %v9620, %v9619
        %v9639 = vrot.slane %v9496, 1
        %v9640 = vrot.slane %v9511, 1
        %v9641 = vsel %vm523, %v9639, %v9640
        %v9642 = vrot.slane %v9498, 1
        %v9643 = vrot.slane %v9512, 1
        %v9644 = vsel %vm523, %v9642, %v9643
        %v9645 = vrot.slane %v9500, 1
        %v9646 = vrot.slane %v9513, 1
        %v9647 = vsel %vm523, %v9645, %v9646
        %v9648 = vrot.slane %v9502, 1
        %v9649 = vrot.slane %v9514, 1
        %v9650 = vsel %vm523, %v9648, %v9649
        %v9651 = vrot.slane %v9504, 1
        %v9652 = vrot.slane %v9515, 1
        %v9653 = vsel %vm523, %v9651, %v9652
        %v9654 = vrot.slane %v9506, 1
        %v9655 = vrot.slane %v9516, 1
        %v9656 = vsel %vm523, %v9654, %v9655
        %v9657 = vrot.slane %v9508, 1
        %v9658 = vrot.slane %v9517, 1
        %v9659 = vsel %vm523, %v9657, %v9658
        %v9660 = vrot.slane %v9510, 1
        %v9661 = vrot.slane %v9518, 1
        %v9662 = vsel %vm523, %v9660, %v9661
        %v9664 = vshll.u32 %v9520, 16
        %v9666 = vrot.slane %v9664, 1
        %v9667 = vshrl.u32 %v9520, 16
        %v9669 = vor.u32 %v9667, %v9666
        %v9671 = vshll.u32 %v9522, 16
        %v9673 = vrot.slane %v9671, 1
        %v9674 = vshrl.u32 %v9522, 16
        %v9676 = vor.u32 %v9674, %v9673
        %v9678 = vshll.u32 %v9524, 16
        %v9680 = vrot.slane %v9678, 1
        %v9681 = vshrl.u32 %v9524, 16
        %v9683 = vor.u32 %v9681, %v9680
        %v9685 = vshll.u32 %v9526, 16
        %v9687 = vrot.slane %v9685, 1
        %v9688 = vshrl.u32 %v9526, 16
        %v9690 = vor.u32 %v9688, %v9687
        %v9692 = vshll.u32 %v9528, 16
        %v9694 = vrot.slane %v9692, 1
        %v9695 = vshrl.u32 %v9528, 16
        %v9697 = vor.u32 %v9695, %v9694
        %v9699 = vshll.u32 %v9530, 16
        %v9701 = vrot.slane %v9699, 1
        %v9702 = vshrl.u32 %v9530, 16
        %v9704 = vor.u32 %v9702, %v9701
        %v9706 = vshll.u32 %v9532, 16
        %v9708 = vrot.slane %v9706, 1
        %v9709 = vshrl.u32 %v9532, 16
        %v9711 = vor.u32 %v9709, %v9708
        %v9713 = vshll.u32 %v9534, 16
        %v9715 = vrot.slane %v9713, 1
        %v9716 = vshrl.u32 %v9534, 16
        %v9718 = vor.u32 %v9716, %v9715
        %v9735 = vrot.slane %v9520, 1
        %v9736 = vrot.slane %v9535, 1
        %v9737 = vsel %vm523, %v9735, %v9736
        %v9738 = vrot.slane %v9522, 1
        %v9739 = vrot.slane %v9536, 1
        %v9740 = vsel %vm523, %v9738, %v9739
        %v9741 = vrot.slane %v9524, 1
        %v9742 = vrot.slane %v9537, 1
        %v9743 = vsel %vm523, %v9741, %v9742
        %v9744 = vrot.slane %v9526, 1
        %v9745 = vrot.slane %v9538, 1
        %v9746 = vsel %vm523, %v9744, %v9745
        %v9747 = vrot.slane %v9528, 1
        %v9748 = vrot.slane %v9539, 1
        %v9749 = vsel %vm523, %v9747, %v9748
        %v9750 = vrot.slane %v9530, 1
        %v9751 = vrot.slane %v9540, 1
        %v9752 = vsel %vm523, %v9750, %v9751
        %v9753 = vrot.slane %v9532, 1
        %v9754 = vrot.slane %v9541, 1
        %v9755 = vsel %vm523, %v9753, %v9754
        %v9756 = vrot.slane %v9534, 1
        %v9757 = vrot.slane %v9542, 1
        %v9758 = vsel %vm523, %v9756, %v9757
        %v9760 = vshll.u32 %v9544, 16
        %v9762 = vrot.slane %v9760, 1
        %v9763 = vshrl.u32 %v9544, 16
        %v9765 = vor.u32 %v9763, %v9762
        %v9767 = vshll.u32 %v9546, 16
        %v9769 = vrot.slane %v9767, 1
        %v9770 = vshrl.u32 %v9546, 16
        %v9772 = vor.u32 %v9770, %v9769
        %v9774 = vshll.u32 %v9548, 16
        %v9776 = vrot.slane %v9774, 1
        %v9777 = vshrl.u32 %v9548, 16
        %v9779 = vor.u32 %v9777, %v9776
        %v9781 = vshll.u32 %v9550, 16
        %v9783 = vrot.slane %v9781, 1
        %v9784 = vshrl.u32 %v9550, 16
        %v9786 = vor.u32 %v9784, %v9783
        %v9788 = vshll.u32 %v9552, 16
        %v9790 = vrot.slane %v9788, 1
        %v9791 = vshrl.u32 %v9552, 16
        %v9793 = vor.u32 %v9791, %v9790
        %v9795 = vshll.u32 %v9554, 16
        %v9797 = vrot.slane %v9795, 1
        %v9798 = vshrl.u32 %v9554, 16
        %v9800 = vor.u32 %v9798, %v9797
        %v9802 = vshll.u32 %v9556, 16
        %v9804 = vrot.slane %v9802, 1
        %v9805 = vshrl.u32 %v9556, 16
        %v9807 = vor.u32 %v9805, %v9804
        %v9809 = vshll.u32 %v9558, 16
        %v9811 = vrot.slane %v9809, 1
        %v9812 = vshrl.u32 %v9558, 16
        %v9814 = vor.u32 %v9812, %v9811
        %v9831 = vrot.slane %v9544, 1
        %v9832 = vrot.slane %v9559, 1
        %v9833 = vsel %vm523, %v9831, %v9832
        %v9834 = vrot.slane %v9546, 1
        %v9835 = vrot.slane %v9560, 1
        %v9836 = vsel %vm523, %v9834, %v9835
        %v9837 = vrot.slane %v9548, 1
        %v9838 = vrot.slane %v9561, 1
        %v9839 = vsel %vm523, %v9837, %v9838
        %v9840 = vrot.slane %v9550, 1
        %v9841 = vrot.slane %v9562, 1
        %v9842 = vsel %vm523, %v9840, %v9841
        %v9843 = vrot.slane %v9552, 1
        %v9844 = vrot.slane %v9563, 1
        %v9845 = vsel %vm523, %v9843, %v9844
        %v9846 = vrot.slane %v9554, 1
        %v9847 = vrot.slane %v9564, 1
        %v9848 = vsel %vm523, %v9846, %v9847
        %v9849 = vrot.slane %v9556, 1
        %v9850 = vrot.slane %v9565, 1
        %v9851 = vsel %vm523, %v9849, %v9850
        %v9852 = vrot.slane %v9558, 1
        %v9853 = vrot.slane %v9566, 1
        %v9854 = vsel %vm523, %v9852, %v9853
        %v9856 = vshrl.u32 %v9495, 16
        %v9858 = vrot.slane %v9856, 7
        %v9859 = vrot.slane %v9571, 7
        %v9860 = vor.u32 %v9859, %v9568
        %v9861 = vsel %vm740, %v9858, %v9860
        %v9863 = vshrl.u32 %v9570, 16
        %v9865 = vrot.slane %v9863, 7
        %v9867 = vshrl.u32 %v9573, 16
        %v9869 = vrot.slane %v9867, 7
        %v9870 = vshll.u32 %v9573, 16
        %v9872 = vor.u32 %v9869, %v9870
        %v9873 = vsel %vm740, %v9865, %v9872
        %v9875 = vshrl.u32 %v9639, 16
        %v9877 = vrot.slane %v9875, 7
        %v9879 = vshrl.u32 %v9641, 16
        %v9881 = vrot.slane %v9879, 7
        %v9882 = vshll.u32 %v9641, 16
        %v9884 = vor.u32 %v9881, %v9882
        %v9885 = vsel %vm740, %v9877, %v9884
        %v9887 = vshrl.u32 %v9519, 16
        %v9889 = vrot.slane %v9887, 7
        %v9890 = vrot.slane %v9667, 7
        %v9891 = vor.u32 %v9890, %v9664
        %v9892 = vsel %vm740, %v9889, %v9891
        %v9894 = vshrl.u32 %v9666, 16
        %v9896 = vrot.slane %v9894, 7
        %v9898 = vshrl.u32 %v9669, 16
        %v9900 = vrot.slane %v9898, 7
        %v9901 = vshll.u32 %v9669, 16
        %v9903 = vor.u32 %v9900, %v9901
        %v9904 = vsel %vm740, %v9896, %v9903
        %v9906 = vshrl.u32 %v9735, 16
        %v9908 = vrot.slane %v9906, 7
        %v9910 = vshrl.u32 %v9737, 16
        %v9912 = vrot.slane %v9910, 7
        %v9913 = vshll.u32 %v9737, 16
        %v9915 = vor.u32 %v9912, %v9913
        %v9916 = vsel %vm740, %v9908, %v9915
        %v9918 = vshrl.u32 %v9543, 16
        %v9920 = vrot.slane %v9918, 7
        %v9921 = vrot.slane %v9763, 7
        %v9922 = vor.u32 %v9921, %v9760
        %v9923 = vsel %vm740, %v9920, %v9922
        %v9925 = vshrl.u32 %v9762, 16
        %v9927 = vrot.slane %v9925, 7
        %v9929 = vshrl.u32 %v9765, 16
        %v9931 = vrot.slane %v9929, 7
        %v9932 = vshll.u32 %v9765, 16
        %v9934 = vor.u32 %v9931, %v9932
        %v9935 = vsel %vm740, %v9927, %v9934
        %v9937 = vshrl.u32 %v9831, 16
        %v9939 = vrot.slane %v9937, 7
        %v9941 = vshrl.u32 %v9833, 16
        %v9943 = vrot.slane %v9941, 7
        %v9944 = vshll.u32 %v9833, 16
        %v9946 = vor.u32 %v9943, %v9944
        %v9947 = vsel %vm740, %v9939, %v9946
        %v9949 = vshrl.u32 %v9497, 16
        %v9951 = vrot.slane %v9949, 7
        %v9952 = vrot.slane %v9578, 7
        %v9953 = vor.u32 %v9952, %v9575
        %v9954 = vsel %vm740, %v9951, %v9953
        %v9956 = vshrl.u32 %v9577, 16
        %v9958 = vrot.slane %v9956, 7
        %v9960 = vshrl.u32 %v9580, 16
        %v9962 = vrot.slane %v9960, 7
        %v9963 = vshll.u32 %v9580, 16
        %v9965 = vor.u32 %v9962, %v9963
        %v9966 = vsel %vm740, %v9958, %v9965
        %v9968 = vshrl.u32 %v9642, 16
        %v9970 = vrot.slane %v9968, 7
        %v9972 = vshrl.u32 %v9644, 16
        %v9974 = vrot.slane %v9972, 7
        %v9975 = vshll.u32 %v9644, 16
        %v9977 = vor.u32 %v9974, %v9975
        %v9978 = vsel %vm740, %v9970, %v9977
        %v9980 = vshrl.u32 %v9521, 16
        %v9982 = vrot.slane %v9980, 7
        %v9983 = vrot.slane %v9674, 7
        %v9984 = vor.u32 %v9983, %v9671
        %v9985 = vsel %vm740, %v9982, %v9984
        %v9987 = vshrl.u32 %v9673, 16
        %v9989 = vrot.slane %v9987, 7
        %v9991 = vshrl.u32 %v9676, 16
        %v9993 = vrot.slane %v9991, 7
        %v9994 = vshll.u32 %v9676, 16
        %v9996 = vor.u32 %v9993, %v9994
        %v9997 = vsel %vm740, %v9989, %v9996
        %v9999 = vshrl.u32 %v9738, 16
        %v10001 = vrot.slane %v9999, 7
        %v10003 = vshrl.u32 %v9740, 16
        %v10005 = vrot.slane %v10003, 7
        %v10006 = vshll.u32 %v9740, 16
        %v10008 = vor.u32 %v10005, %v10006
        %v10009 = vsel %vm740, %v10001, %v10008
        %v10011 = vshrl.u32 %v9545, 16
        %v10013 = vrot.slane %v10011, 7
        %v10014 = vrot.slane %v9770, 7
        %v10015 = vor.u32 %v10014, %v9767
        %v10016 = vsel %vm740, %v10013, %v10015
        %v10018 = vshrl.u32 %v9769, 16
        %v10020 = vrot.slane %v10018, 7
        %v10022 = vshrl.u32 %v9772, 16
        %v10024 = vrot.slane %v10022, 7
        %v10025 = vshll.u32 %v9772, 16
        %v10027 = vor.u32 %v10024, %v10025
        %v10028 = vsel %vm740, %v10020, %v10027
        %v10030 = vshrl.u32 %v9834, 16
        %v10032 = vrot.slane %v10030, 7
        %v10034 = vshrl.u32 %v9836, 16
        %v10036 = vrot.slane %v10034, 7
        %v10037 = vshll.u32 %v9836, 16
        %v10039 = vor.u32 %v10036, %v10037
        %v10040 = vsel %vm740, %v10032, %v10039
        %v10042 = vshrl.u32 %v9499, 16
        %v10044 = vrot.slane %v10042, 7
        %v10045 = vrot.slane %v9585, 7
        %v10046 = vor.u32 %v10045, %v9582
        %v10047 = vsel %vm740, %v10044, %v10046
        %v10049 = vshrl.u32 %v9584, 16
        %v10051 = vrot.slane %v10049, 7
        %v10053 = vshrl.u32 %v9587, 16
        %v10055 = vrot.slane %v10053, 7
        %v10056 = vshll.u32 %v9587, 16
        %v10058 = vor.u32 %v10055, %v10056
        %v10059 = vsel %vm740, %v10051, %v10058
        %v10061 = vshrl.u32 %v9645, 16
        %v10063 = vrot.slane %v10061, 7
        %v10065 = vshrl.u32 %v9647, 16
        %v10067 = vrot.slane %v10065, 7
        %v10068 = vshll.u32 %v9647, 16
        %v10070 = vor.u32 %v10067, %v10068
        %v10071 = vsel %vm740, %v10063, %v10070
        %v10073 = vshrl.u32 %v9523, 16
        %v10075 = vrot.slane %v10073, 7
        %v10076 = vrot.slane %v9681, 7
        %v10077 = vor.u32 %v10076, %v9678
        %v10078 = vsel %vm740, %v10075, %v10077
        %v10080 = vshrl.u32 %v9680, 16
        %v10082 = vrot.slane %v10080, 7
        %v10084 = vshrl.u32 %v9683, 16
        %v10086 = vrot.slane %v10084, 7
        %v10087 = vshll.u32 %v9683, 16
        %v10089 = vor.u32 %v10086, %v10087
        %v10090 = vsel %vm740, %v10082, %v10089
        %v10092 = vshrl.u32 %v9741, 16
        %v10094 = vrot.slane %v10092, 7
        %v10096 = vshrl.u32 %v9743, 16
        %v10098 = vrot.slane %v10096, 7
        %v10099 = vshll.u32 %v9743, 16
        %v10101 = vor.u32 %v10098, %v10099
        %v10102 = vsel %vm740, %v10094, %v10101
        %v10104 = vshrl.u32 %v9547, 16
        %v10106 = vrot.slane %v10104, 7
        %v10107 = vrot.slane %v9777, 7
        %v10108 = vor.u32 %v10107, %v9774
        %v10109 = vsel %vm740, %v10106, %v10108
        %v10111 = vshrl.u32 %v9776, 16
        %v10113 = vrot.slane %v10111, 7
        %v10115 = vshrl.u32 %v9779, 16
        %v10117 = vrot.slane %v10115, 7
        %v10118 = vshll.u32 %v9779, 16
        %v10120 = vor.u32 %v10117, %v10118
        %v10121 = vsel %vm740, %v10113, %v10120
        %v10123 = vshrl.u32 %v9837, 16
        %v10125 = vrot.slane %v10123, 7
        %v10127 = vshrl.u32 %v9839, 16
        %v10129 = vrot.slane %v10127, 7
        %v10130 = vshll.u32 %v9839, 16
        %v10132 = vor.u32 %v10129, %v10130
        %v10133 = vsel %vm740, %v10125, %v10132
        %v10135 = vshrl.u32 %v9501, 16
        %v10137 = vrot.slane %v10135, 7
        %v10138 = vrot.slane %v9592, 7
        %v10139 = vor.u32 %v10138, %v9589
        %v10140 = vsel %vm740, %v10137, %v10139
        %v10142 = vshrl.u32 %v9591, 16
        %v10144 = vrot.slane %v10142, 7
        %v10146 = vshrl.u32 %v9594, 16
        %v10148 = vrot.slane %v10146, 7
        %v10149 = vshll.u32 %v9594, 16
        %v10151 = vor.u32 %v10148, %v10149
        %v10152 = vsel %vm740, %v10144, %v10151
        %v10154 = vshrl.u32 %v9648, 16
        %v10156 = vrot.slane %v10154, 7
        %v10158 = vshrl.u32 %v9650, 16
        %v10160 = vrot.slane %v10158, 7
        %v10161 = vshll.u32 %v9650, 16
        %v10163 = vor.u32 %v10160, %v10161
        %v10164 = vsel %vm740, %v10156, %v10163
        %v10166 = vshrl.u32 %v9525, 16
        %v10168 = vrot.slane %v10166, 7
        %v10169 = vrot.slane %v9688, 7
        %v10170 = vor.u32 %v10169, %v9685
        %v10171 = vsel %vm740, %v10168, %v10170
        %v10173 = vshrl.u32 %v9687, 16
        %v10175 = vrot.slane %v10173, 7
        %v10177 = vshrl.u32 %v9690, 16
        %v10179 = vrot.slane %v10177, 7
        %v10180 = vshll.u32 %v9690, 16
        %v10182 = vor.u32 %v10179, %v10180
        %v10183 = vsel %vm740, %v10175, %v10182
        %v10185 = vshrl.u32 %v9744, 16
        %v10187 = vrot.slane %v10185, 7
        %v10189 = vshrl.u32 %v9746, 16
        %v10191 = vrot.slane %v10189, 7
        %v10192 = vshll.u32 %v9746, 16
        %v10194 = vor.u32 %v10191, %v10192
        %v10195 = vsel %vm740, %v10187, %v10194
        %v10197 = vshrl.u32 %v9549, 16
        %v10199 = vrot.slane %v10197, 7
        %v10200 = vrot.slane %v9784, 7
        %v10201 = vor.u32 %v10200, %v9781
        %v10202 = vsel %vm740, %v10199, %v10201
        %v10204 = vshrl.u32 %v9783, 16
        %v10206 = vrot.slane %v10204, 7
        %v10208 = vshrl.u32 %v9786, 16
        %v10210 = vrot.slane %v10208, 7
        %v10211 = vshll.u32 %v9786, 16
        %v10213 = vor.u32 %v10210, %v10211
        %v10214 = vsel %vm740, %v10206, %v10213
        %v10216 = vshrl.u32 %v9840, 16
        %v10218 = vrot.slane %v10216, 7
        %v10220 = vshrl.u32 %v9842, 16
        %v10222 = vrot.slane %v10220, 7
        %v10223 = vshll.u32 %v9842, 16
        %v10225 = vor.u32 %v10222, %v10223
        %v10226 = vsel %vm740, %v10218, %v10225
        %v10228 = vshrl.u32 %v9503, 16
        %v10230 = vrot.slane %v10228, 7
        %v10231 = vrot.slane %v9599, 7
        %v10232 = vor.u32 %v10231, %v9596
        %v10233 = vsel %vm740, %v10230, %v10232
        %v10235 = vshrl.u32 %v9598, 16
        %v10237 = vrot.slane %v10235, 7
        %v10239 = vshrl.u32 %v9601, 16
        %v10241 = vrot.slane %v10239, 7
        %v10242 = vshll.u32 %v9601, 16
        %v10244 = vor.u32 %v10241, %v10242
        %v10245 = vsel %vm740, %v10237, %v10244
        %v10247 = vshrl.u32 %v9651, 16
        %v10249 = vrot.slane %v10247, 7
        %v10251 = vshrl.u32 %v9653, 16
        %v10253 = vrot.slane %v10251, 7
        %v10254 = vshll.u32 %v9653, 16
        %v10256 = vor.u32 %v10253, %v10254
        %v10257 = vsel %vm740, %v10249, %v10256
        %v10259 = vshrl.u32 %v9527, 16
        %v10261 = vrot.slane %v10259, 7
        %v10262 = vrot.slane %v9695, 7
        %v10263 = vor.u32 %v10262, %v9692
        %v10264 = vsel %vm740, %v10261, %v10263
        %v10266 = vshrl.u32 %v9694, 16
        %v10268 = vrot.slane %v10266, 7
        %v10270 = vshrl.u32 %v9697, 16
        %v10272 = vrot.slane %v10270, 7
        %v10273 = vshll.u32 %v9697, 16
        %v10275 = vor.u32 %v10272, %v10273
        %v10276 = vsel %vm740, %v10268, %v10275
        %v10278 = vshrl.u32 %v9747, 16
        %v10280 = vrot.slane %v10278, 7
        %v10282 = vshrl.u32 %v9749, 16
        %v10284 = vrot.slane %v10282, 7
        %v10285 = vshll.u32 %v9749, 16
        %v10287 = vor.u32 %v10284, %v10285
        %v10288 = vsel %vm740, %v10280, %v10287
        %v10290 = vshrl.u32 %v9551, 16
        %v10292 = vrot.slane %v10290, 7
        %v10293 = vrot.slane %v9791, 7
        %v10294 = vor.u32 %v10293, %v9788
        %v10295 = vsel %vm740, %v10292, %v10294
        %v10297 = vshrl.u32 %v9790, 16
        %v10299 = vrot.slane %v10297, 7
        %v10301 = vshrl.u32 %v9793, 16
        %v10303 = vrot.slane %v10301, 7
        %v10304 = vshll.u32 %v9793, 16
        %v10306 = vor.u32 %v10303, %v10304
        %v10307 = vsel %vm740, %v10299, %v10306
        %v10309 = vshrl.u32 %v9843, 16
        %v10311 = vrot.slane %v10309, 7
        %v10313 = vshrl.u32 %v9845, 16
        %v10315 = vrot.slane %v10313, 7
        %v10316 = vshll.u32 %v9845, 16
        %v10318 = vor.u32 %v10315, %v10316
        %v10319 = vsel %vm740, %v10311, %v10318
        %v10321 = vshrl.u32 %v9505, 16
        %v10323 = vrot.slane %v10321, 7
        %v10324 = vrot.slane %v9606, 7
        %v10325 = vor.u32 %v10324, %v9603
        %v10326 = vsel %vm740, %v10323, %v10325
        %v10328 = vshrl.u32 %v9605, 16
        %v10330 = vrot.slane %v10328, 7
        %v10332 = vshrl.u32 %v9608, 16
        %v10334 = vrot.slane %v10332, 7
        %v10335 = vshll.u32 %v9608, 16
        %v10337 = vor.u32 %v10334, %v10335
        %v10338 = vsel %vm740, %v10330, %v10337
        %v10340 = vshrl.u32 %v9654, 16
        %v10342 = vrot.slane %v10340, 7
        %v10344 = vshrl.u32 %v9656, 16
        %v10346 = vrot.slane %v10344, 7
        %v10347 = vshll.u32 %v9656, 16
        %v10349 = vor.u32 %v10346, %v10347
        %v10350 = vsel %vm740, %v10342, %v10349
        %v10352 = vshrl.u32 %v9529, 16
        %v10354 = vrot.slane %v10352, 7
        %v10355 = vrot.slane %v9702, 7
        %v10356 = vor.u32 %v10355, %v9699
        %v10357 = vsel %vm740, %v10354, %v10356
        %v10359 = vshrl.u32 %v9701, 16
        %v10361 = vrot.slane %v10359, 7
        %v10363 = vshrl.u32 %v9704, 16
        %v10365 = vrot.slane %v10363, 7
        %v10366 = vshll.u32 %v9704, 16
        %v10368 = vor.u32 %v10365, %v10366
        %v10369 = vsel %vm740, %v10361, %v10368
        %v10371 = vshrl.u32 %v9750, 16
        %v10373 = vrot.slane %v10371, 7
        %v10375 = vshrl.u32 %v9752, 16
        %v10377 = vrot.slane %v10375, 7
        %v10378 = vshll.u32 %v9752, 16
        %v10380 = vor.u32 %v10377, %v10378
        %v10381 = vsel %vm740, %v10373, %v10380
        %v10383 = vshrl.u32 %v9553, 16
        %v10385 = vrot.slane %v10383, 7
        %v10386 = vrot.slane %v9798, 7
        %v10387 = vor.u32 %v10386, %v9795
        %v10388 = vsel %vm740, %v10385, %v10387
        %v10390 = vshrl.u32 %v9797, 16
        %v10392 = vrot.slane %v10390, 7
        %v10394 = vshrl.u32 %v9800, 16
        %v10396 = vrot.slane %v10394, 7
        %v10397 = vshll.u32 %v9800, 16
        %v10399 = vor.u32 %v10396, %v10397
        %v10400 = vsel %vm740, %v10392, %v10399
        %v10402 = vshrl.u32 %v9846, 16
        %v10404 = vrot.slane %v10402, 7
        %v10406 = vshrl.u32 %v9848, 16
        %v10408 = vrot.slane %v10406, 7
        %v10409 = vshll.u32 %v9848, 16
        %v10411 = vor.u32 %v10408, %v10409
        %v10412 = vsel %vm740, %v10404, %v10411
        %v10414 = vshrl.u32 %v9507, 16
        %v10416 = vrot.slane %v10414, 7
        %v10417 = vrot.slane %v9613, 7
        %v10418 = vor.u32 %v10417, %v9610
        %v10419 = vsel %vm740, %v10416, %v10418
        %v10421 = vshrl.u32 %v9612, 16
        %v10423 = vrot.slane %v10421, 7
        %v10425 = vshrl.u32 %v9615, 16
        %v10427 = vrot.slane %v10425, 7
        %v10428 = vshll.u32 %v9615, 16
        %v10430 = vor.u32 %v10427, %v10428
        %v10431 = vsel %vm740, %v10423, %v10430
        %v10433 = vshrl.u32 %v9657, 16
        %v10435 = vrot.slane %v10433, 7
        %v10437 = vshrl.u32 %v9659, 16
        %v10439 = vrot.slane %v10437, 7
        %v10440 = vshll.u32 %v9659, 16
        %v10442 = vor.u32 %v10439, %v10440
        %v10443 = vsel %vm740, %v10435, %v10442
        %v10445 = vshrl.u32 %v9531, 16
        %v10447 = vrot.slane %v10445, 7
        %v10448 = vrot.slane %v9709, 7
        %v10449 = vor.u32 %v10448, %v9706
        %v10450 = vsel %vm740, %v10447, %v10449
        %v10452 = vshrl.u32 %v9708, 16
        %v10454 = vrot.slane %v10452, 7
        %v10456 = vshrl.u32 %v9711, 16
        %v10458 = vrot.slane %v10456, 7
        %v10459 = vshll.u32 %v9711, 16
        %v10461 = vor.u32 %v10458, %v10459
        %v10462 = vsel %vm740, %v10454, %v10461
        %v10464 = vshrl.u32 %v9753, 16
        %v10466 = vrot.slane %v10464, 7
        %v10468 = vshrl.u32 %v9755, 16
        %v10470 = vrot.slane %v10468, 7
        %v10471 = vshll.u32 %v9755, 16
        %v10473 = vor.u32 %v10470, %v10471
        %v10474 = vsel %vm740, %v10466, %v10473
        %v10476 = vshrl.u32 %v9555, 16
        %v10478 = vrot.slane %v10476, 7
        %v10479 = vrot.slane %v9805, 7
        %v10480 = vor.u32 %v10479, %v9802
        %v10481 = vsel %vm740, %v10478, %v10480
        %v10483 = vshrl.u32 %v9804, 16
        %v10485 = vrot.slane %v10483, 7
        %v10487 = vshrl.u32 %v9807, 16
        %v10489 = vrot.slane %v10487, 7
        %v10490 = vshll.u32 %v9807, 16
        %v10492 = vor.u32 %v10489, %v10490
        %v10493 = vsel %vm740, %v10485, %v10492
        %v10495 = vshrl.u32 %v9849, 16
        %v10497 = vrot.slane %v10495, 7
        %v10499 = vshrl.u32 %v9851, 16
        %v10501 = vrot.slane %v10499, 7
        %v10502 = vshll.u32 %v9851, 16
        %v10504 = vor.u32 %v10501, %v10502
        %v10505 = vsel %vm740, %v10497, %v10504
        %v10507 = vshrl.u32 %v9509, 16
        %v10509 = vrot.slane %v10507, 7
        %v10510 = vrot.slane %v9620, 7
        %v10511 = vor.u32 %v10510, %v9617
        %v10512 = vsel %vm740, %v10509, %v10511
        %v10514 = vshrl.u32 %v9619, 16
        %v10516 = vrot.slane %v10514, 7
        %v10518 = vshrl.u32 %v9622, 16
        %v10520 = vrot.slane %v10518, 7
        %v10521 = vshll.u32 %v9622, 16
        %v10523 = vor.u32 %v10520, %v10521
        %v10524 = vsel %vm740, %v10516, %v10523
        %v10526 = vshrl.u32 %v9660, 16
        %v10528 = vrot.slane %v10526, 7
        %v10530 = vshrl.u32 %v9662, 16
        %v10532 = vrot.slane %v10530, 7
        %v10533 = vshll.u32 %v9662, 16
        %v10535 = vor.u32 %v10532, %v10533
        %v10536 = vsel %vm740, %v10528, %v10535
        %v10538 = vshrl.u32 %v9533, 16
        %v10540 = vrot.slane %v10538, 7
        %v10541 = vrot.slane %v9716, 7
        %v10542 = vor.u32 %v10541, %v9713
        %v10543 = vsel %vm740, %v10540, %v10542
        %v10545 = vshrl.u32 %v9715, 16
        %v10547 = vrot.slane %v10545, 7
        %v10549 = vshrl.u32 %v9718, 16
        %v10551 = vrot.slane %v10549, 7
        %v10552 = vshll.u32 %v9718, 16
        %v10554 = vor.u32 %v10551, %v10552
        %v10555 = vsel %vm740, %v10547, %v10554
        %v10557 = vshrl.u32 %v9756, 16
        %v10559 = vrot.slane %v10557, 7
        %v10561 = vshrl.u32 %v9758, 16
        %v10563 = vrot.slane %v10561, 7
        %v10564 = vshll.u32 %v9758, 16
        %v10566 = vor.u32 %v10563, %v10564
        %v10567 = vsel %vm740, %v10559, %v10566
        %v10569 = vshrl.u32 %v9557, 16
        %v10571 = vrot.slane %v10569, 7
        %v10572 = vrot.slane %v9812, 7
        %v10573 = vor.u32 %v10572, %v9809
        %v10574 = vsel %vm740, %v10571, %v10573
        %v10576 = vshrl.u32 %v9811, 16
        %v10578 = vrot.slane %v10576, 7
        %v10580 = vshrl.u32 %v9814, 16
        %v10582 = vrot.slane %v10580, 7
        %v10583 = vshll.u32 %v9814, 16
        %v10585 = vor.u32 %v10582, %v10583
        %v10586 = vsel %vm740, %v10578, %v10585
        %v10588 = vshrl.u32 %v9852, 16
        %v10590 = vrot.slane %v10588, 7
        %v10592 = vshrl.u32 %v9854, 16
        %v10594 = vrot.slane %v10592, 7
        %v10595 = vshll.u32 %v9854, 16
        %v10597 = vor.u32 %v10594, %v10595
        %v10598 = vsel %vm740, %v10590, %v10597
        %s10671 = scalar_lea.vmem [#allocation7], 1152
        %v10672 = vld [vmem:[%s10671] sm:$0xf]
        %v10673 = vld [vmem:[%s10671 + $0x4] sm:$0xf]
        %v10674 = vld [vmem:[%s10671 + $0x8] sm:$0xf]
        %v10675 = vld [vmem:[%s10671 + $0xc] sm:$0xf]
        %v10676 = vld [vmem:[%s10671 + $0x10] sm:$0xf]
        %v10677 = vld [vmem:[%s10671 + $0x14] sm:$0xf]
        %v10678 = vld [vmem:[%s10671 + $0x18] sm:$0xf]
        %v10679 = vld [vmem:[%s10671 + $0x1c] sm:$0xf]
        %v10680 = vld [vmem:[%s10671 + $0x20] sm:$0xf]
        %v10681 = vld [vmem:[%s10671 + $0x24] sm:$0xf]
        %v10682 = vld [vmem:[%s10671 + $0x28] sm:$0xf]
        %v10683 = vld [vmem:[%s10671 + $0x2c] sm:$0xf]
        %v10684 = vld [vmem:[%s10671 + $0x30] sm:$0xf]
        %v10685 = vld [vmem:[%s10671 + $0x34] sm:$0xf]
        %v10686 = vld [vmem:[%s10671 + $0x38] sm:$0xf]
        %v10687 = vld [vmem:[%s10671 + $0x3c] sm:$0xf]
        %v10688 = vld [vmem:[%s10671 + $0x40] sm:$0xf]
        %v10689 = vld [vmem:[%s10671 + $0x44] sm:$0xf]
        %v10690 = vld [vmem:[%s10671 + $0x48] sm:$0xf]
        %v10691 = vld [vmem:[%s10671 + $0x4c] sm:$0xf]
        %v10692 = vld [vmem:[%s10671 + $0x50] sm:$0xf]
        %v10693 = vld [vmem:[%s10671 + $0x54] sm:$0xf]
        %v10694 = vld [vmem:[%s10671 + $0x58] sm:$0xf]
        %v10695 = vld [vmem:[%s10671 + $0x5c] sm:$0xf]
        %v10696 = vld [vmem:[%s10671 + $0x60] sm:$0xf]
        %v10697 = vld [vmem:[%s10671 + $0x64] sm:$0xf]
        %v10698 = vld [vmem:[%s10671 + $0x68] sm:$0xf]
        %v10699 = vld [vmem:[%s10671 + $0x6c] sm:$0xf]
        %v10700 = vld [vmem:[%s10671 + $0x70] sm:$0xf]
        %v10701 = vld [vmem:[%s10671 + $0x74] sm:$0xf]
        %v10702 = vld [vmem:[%s10671 + $0x78] sm:$0xf]
        %v10703 = vld [vmem:[%s10671 + $0x7c] sm:$0xf]
        %v10704 = vld [vmem:[%s10671 + $0x80] sm:$0xf]
        %v10705 = vld [vmem:[%s10671 + $0x84] sm:$0xf]
        %v10706 = vld [vmem:[%s10671 + $0x88] sm:$0xf]
        %v10707 = vld [vmem:[%s10671 + $0x8c] sm:$0xf]
        %v10708 = vld [vmem:[%s10671 + $0x90] sm:$0xf]
        %v10709 = vld [vmem:[%s10671 + $0x94] sm:$0xf]
        %v10710 = vld [vmem:[%s10671 + $0x98] sm:$0xf]
        %v10711 = vld [vmem:[%s10671 + $0x9c] sm:$0xf]
        %v10712 = vld [vmem:[%s10671 + $0xa0] sm:$0xf]
        %v10713 = vld [vmem:[%s10671 + $0xa4] sm:$0xf]
        %v10714 = vld [vmem:[%s10671 + $0xa8] sm:$0xf]
        %v10715 = vld [vmem:[%s10671 + $0xac] sm:$0xf]
        %v10716 = vld [vmem:[%s10671 + $0xb0] sm:$0xf]
        %v10717 = vld [vmem:[%s10671 + $0xb4] sm:$0xf]
        %v10718 = vld [vmem:[%s10671 + $0xb8] sm:$0xf]
        %v10719 = vld [vmem:[%s10671 + $0xbc] sm:$0xf]
        %v10720 = vld [vmem:[%s10671 + $0xc0] sm:$0xf]
        %v10721 = vld [vmem:[%s10671 + $0xc4] sm:$0xf]
        %v10722 = vld [vmem:[%s10671 + $0xc8] sm:$0xf]
        %v10723 = vld [vmem:[%s10671 + $0xcc] sm:$0xf]
        %v10724 = vld [vmem:[%s10671 + $0xd0] sm:$0xf]
        %v10725 = vld [vmem:[%s10671 + $0xd4] sm:$0xf]
        %v10726 = vld [vmem:[%s10671 + $0xd8] sm:$0xf]
        %v10727 = vld [vmem:[%s10671 + $0xdc] sm:$0xf]
        %v10728 = vld [vmem:[%s10671 + $0xe0] sm:$0xf]
        %v10729 = vld [vmem:[%s10671 + $0xe4] sm:$0xf]
        %v10730 = vld [vmem:[%s10671 + $0xe8] sm:$0xf]
        %v10731 = vld [vmem:[%s10671 + $0xec] sm:$0xf]
        %v10732 = vld [vmem:[%s10671 + $0xf0] sm:$0xf]
        %v10733 = vld [vmem:[%s10671 + $0xf4] sm:$0xf]
        %v10734 = vld [vmem:[%s10671 + $0xf8] sm:$0xf]
        %v10735 = vld [vmem:[%s10671 + $0xfc] sm:$0xf]
        %v10736 = vld [vmem:[%s10671 + $0x100] sm:$0xf]
        %v10737 = vld [vmem:[%s10671 + $0x104] sm:$0xf]
        %v10738 = vld [vmem:[%s10671 + $0x108] sm:$0xf]
        %v10739 = vld [vmem:[%s10671 + $0x10c] sm:$0xf]
        %v10740 = vld [vmem:[%s10671 + $0x110] sm:$0xf]
        %v10741 = vld [vmem:[%s10671 + $0x114] sm:$0xf]
        %v10742 = vld [vmem:[%s10671 + $0x118] sm:$0xf]
        %v10743 = vld [vmem:[%s10671 + $0x11c] sm:$0xf]
        %v10744 = vld [vmem:[%s10671 + $0x120] sm:$0xf]
        %v10745 = vld [vmem:[%s10671 + $0x124] sm:$0xf]
        %v10746 = vld [vmem:[%s10671 + $0x128] sm:$0xf]
        %v10747 = vld [vmem:[%s10671 + $0x12c] sm:$0xf]
        %v10748 = vld [vmem:[%s10671 + $0x130] sm:$0xf]
        %v10749 = vld [vmem:[%s10671 + $0x134] sm:$0xf]
        %v10750 = vld [vmem:[%s10671 + $0x138] sm:$0xf]
        %v10751 = vld [vmem:[%s10671 + $0x13c] sm:$0xf]
        %v10752 = vld [vmem:[%s10671 + $0x140] sm:$0xf]
        %v10753 = vld [vmem:[%s10671 + $0x144] sm:$0xf]
        %v10754 = vld [vmem:[%s10671 + $0x148] sm:$0xf]
        %v10755 = vld [vmem:[%s10671 + $0x14c] sm:$0xf]
        %v10756 = vld [vmem:[%s10671 + $0x150] sm:$0xf]
        %v10757 = vld [vmem:[%s10671 + $0x154] sm:$0xf]
        %v10758 = vld [vmem:[%s10671 + $0x158] sm:$0xf]
        %v10759 = vld [vmem:[%s10671 + $0x15c] sm:$0xf]
        %v10760 = vld [vmem:[%s10671 + $0x160] sm:$0xf]
        %v10761 = vld [vmem:[%s10671 + $0x164] sm:$0xf]
        %v10762 = vld [vmem:[%s10671 + $0x168] sm:$0xf]
        %v10763 = vld [vmem:[%s10671 + $0x16c] sm:$0xf]
        %v10764 = vld [vmem:[%s10671 + $0x170] sm:$0xf]
        %v10765 = vld [vmem:[%s10671 + $0x174] sm:$0xf]
        %v10766 = vld [vmem:[%s10671 + $0x178] sm:$0xf]
        %v10767 = vld [vmem:[%s10671 + $0x17c] sm:$0xf]
        %v10768 = vld [vmem:[%s10671 + $0x180] sm:$0xf]
        %v10769 = vld [vmem:[%s10671 + $0x184] sm:$0xf]
        %v10770 = vld [vmem:[%s10671 + $0x188] sm:$0xf]
        %v10771 = vld [vmem:[%s10671 + $0x18c] sm:$0xf]
        %v10772 = vld [vmem:[%s10671 + $0x190] sm:$0xf]
        %v10773 = vld [vmem:[%s10671 + $0x194] sm:$0xf]
        %v10774 = vld [vmem:[%s10671 + $0x198] sm:$0xf]
        %v10775 = vld [vmem:[%s10671 + $0x19c] sm:$0xf]
        %v10776 = vld [vmem:[%s10671 + $0x1a0] sm:$0xf]
        %v10777 = vld [vmem:[%s10671 + $0x1a4] sm:$0xf]
        %v10778 = vld [vmem:[%s10671 + $0x1a8] sm:$0xf]
        %v10779 = vld [vmem:[%s10671 + $0x1ac] sm:$0xf]
        %v10780 = vld [vmem:[%s10671 + $0x1b0] sm:$0xf]
        %v10781 = vld [vmem:[%s10671 + $0x1b4] sm:$0xf]
        %v10782 = vld [vmem:[%s10671 + $0x1b8] sm:$0xf]
        %v10783 = vld [vmem:[%s10671 + $0x1bc] sm:$0xf]
        %v10784 = vld [vmem:[%s10671 + $0x1c0] sm:$0xf]
        %v10785 = vld [vmem:[%s10671 + $0x1c4] sm:$0xf]
        %v10786 = vld [vmem:[%s10671 + $0x1c8] sm:$0xf]
        %v10787 = vld [vmem:[%s10671 + $0x1cc] sm:$0xf]
        %v10788 = vld [vmem:[%s10671 + $0x1d0] sm:$0xf]
        %v10789 = vld [vmem:[%s10671 + $0x1d4] sm:$0xf]
        %v10790 = vld [vmem:[%s10671 + $0x1d8] sm:$0xf]
        %v10791 = vld [vmem:[%s10671 + $0x1dc] sm:$0xf]
        %v10792 = vld [vmem:[%s10671 + $0x1e0] sm:$0xf]
        %v10793 = vld [vmem:[%s10671 + $0x1e4] sm:$0xf]
        %v10794 = vld [vmem:[%s10671 + $0x1e8] sm:$0xf]
        %v10795 = vld [vmem:[%s10671 + $0x1ec] sm:$0xf]
        %v10796 = vld [vmem:[%s10671 + $0x1f0] sm:$0xf]
        %v10797 = vld [vmem:[%s10671 + $0x1f4] sm:$0xf]
        %v10798 = vld [vmem:[%s10671 + $0x1f8] sm:$0xf]
        %v10799 = vld [vmem:[%s10671 + $0x1fc] sm:$0xf]
        %v10800 = vld [vmem:[%s10671 + $0x200] sm:$0xf]
        %v10801 = vld [vmem:[%s10671 + $0x204] sm:$0xf]
        %v10802 = vld [vmem:[%s10671 + $0x208] sm:$0xf]
        %v10803 = vld [vmem:[%s10671 + $0x20c] sm:$0xf]
        %v10804 = vld [vmem:[%s10671 + $0x210] sm:$0xf]
        %v10805 = vld [vmem:[%s10671 + $0x214] sm:$0xf]
        %v10806 = vld [vmem:[%s10671 + $0x218] sm:$0xf]
        %v10807 = vld [vmem:[%s10671 + $0x21c] sm:$0xf]
        %v10808 = vld [vmem:[%s10671 + $0x220] sm:$0xf]
        %v10809 = vld [vmem:[%s10671 + $0x224] sm:$0xf]
        %v10810 = vld [vmem:[%s10671 + $0x228] sm:$0xf]
        %v10811 = vld [vmem:[%s10671 + $0x22c] sm:$0xf]
        %v10812 = vld [vmem:[%s10671 + $0x230] sm:$0xf]
        %v10813 = vld [vmem:[%s10671 + $0x234] sm:$0xf]
        %v10814 = vld [vmem:[%s10671 + $0x238] sm:$0xf]
        %v10815 = vld [vmem:[%s10671 + $0x23c] sm:$0xf]
        %s10816 = scalar_lea.vmem %s2, 2
        %v10817 = vld [vmem:[%s10816] sm:$0x1]
        %v10819 = vlaneseq
        %v10820 = vshrl.u32 %v10819, 7
        %v10821 = vsub.s32 0, %v10820
        %v10822 = vrot.slane %v10817, %v10821
        %v10968 = vunpack.c.l.b16 %v10672
        %v10969 = vunpack.c.l.b16 %v10673
        %v10970 = vunpack.c.l.b16 %v10674
        %v10971 = vunpack.c.l.b16 %v10675
        %v10972 = vunpack.c.l.b16 %v10676
        %v10973 = vunpack.c.l.b16 %v10677
        %v10974 = vunpack.c.l.b16 %v10678
        %v10975 = vunpack.c.l.b16 %v10679
        %v10976 = vunpack.c.l.b16 %v10680
        %v10977 = vunpack.c.l.b16 %v10681
        %v10978 = vunpack.c.l.b16 %v10682
        %v10979 = vunpack.c.l.b16 %v10683
        %v10980 = vunpack.c.l.b16 %v10684
        %v10981 = vunpack.c.l.b16 %v10685
        %v10982 = vunpack.c.l.b16 %v10686
        %v10983 = vunpack.c.l.b16 %v10687
        %v10984 = vunpack.c.l.b16 %v10688
        %v10985 = vunpack.c.l.b16 %v10689
        %v10986 = vunpack.c.l.b16 %v10690
        %v10987 = vunpack.c.l.b16 %v10691
        %v10988 = vunpack.c.l.b16 %v10692
        %v10989 = vunpack.c.l.b16 %v10693
        %v10990 = vunpack.c.l.b16 %v10694
        %v10991 = vunpack.c.l.b16 %v10695
        %v10992 = vunpack.c.l.b16 %v10696
        %v10993 = vunpack.c.l.b16 %v10697
        %v10994 = vunpack.c.l.b16 %v10698
        %v10995 = vunpack.c.l.b16 %v10699
        %v10996 = vunpack.c.l.b16 %v10700
        %v10997 = vunpack.c.l.b16 %v10701
        %v10998 = vunpack.c.l.b16 %v10702
        %v10999 = vunpack.c.l.b16 %v10703
        %v11000 = vunpack.c.l.b16 %v10704
        %v11001 = vunpack.c.l.b16 %v10705
        %v11002 = vunpack.c.l.b16 %v10706
        %v11003 = vunpack.c.l.b16 %v10707
        %v11004 = vunpack.c.l.b16 %v10708
        %v11005 = vunpack.c.l.b16 %v10709
        %v11006 = vunpack.c.l.b16 %v10710
        %v11007 = vunpack.c.l.b16 %v10711
        %v11008 = vunpack.c.l.b16 %v10712
        %v11009 = vunpack.c.l.b16 %v10713
        %v11010 = vunpack.c.l.b16 %v10714
        %v11011 = vunpack.c.l.b16 %v10715
        %v11012 = vunpack.c.l.b16 %v10716
        %v11013 = vunpack.c.l.b16 %v10717
        %v11014 = vunpack.c.l.b16 %v10718
        %v11015 = vunpack.c.l.b16 %v10719
        %v11016 = vunpack.c.l.b16 %v10720
        %v11017 = vunpack.c.l.b16 %v10721
        %v11018 = vunpack.c.l.b16 %v10722
        %v11019 = vunpack.c.l.b16 %v10723
        %v11020 = vunpack.c.l.b16 %v10724
        %v11021 = vunpack.c.l.b16 %v10725
        %v11022 = vunpack.c.l.b16 %v10726
        %v11023 = vunpack.c.l.b16 %v10727
        %v11024 = vunpack.c.l.b16 %v10728
        %v11025 = vunpack.c.l.b16 %v10729
        %v11026 = vunpack.c.l.b16 %v10730
        %v11027 = vunpack.c.l.b16 %v10731
        %v11028 = vunpack.c.l.b16 %v10732
        %v11029 = vunpack.c.l.b16 %v10733
        %v11030 = vunpack.c.l.b16 %v10734
        %v11031 = vunpack.c.l.b16 %v10735
        %v11032 = vunpack.c.l.b16 %v10736
        %v11033 = vunpack.c.l.b16 %v10737
        %v11034 = vunpack.c.l.b16 %v10738
        %v11035 = vunpack.c.l.b16 %v10739
        %v11036 = vunpack.c.l.b16 %v10740
        %v11037 = vunpack.c.l.b16 %v10741
        %v11038 = vunpack.c.l.b16 %v10742
        %v11039 = vunpack.c.l.b16 %v10743
        %v11040 = vunpack.c.l.b16 %v10744
        %v11041 = vunpack.c.l.b16 %v10745
        %v11042 = vunpack.c.l.b16 %v10746
        %v11043 = vunpack.c.l.b16 %v10747
        %v11044 = vunpack.c.l.b16 %v10748
        %v11045 = vunpack.c.l.b16 %v10749
        %v11046 = vunpack.c.l.b16 %v10750
        %v11047 = vunpack.c.l.b16 %v10751
        %v11048 = vunpack.c.l.b16 %v10752
        %v11049 = vunpack.c.l.b16 %v10753
        %v11050 = vunpack.c.l.b16 %v10754
        %v11051 = vunpack.c.l.b16 %v10755
        %v11052 = vunpack.c.l.b16 %v10756
        %v11053 = vunpack.c.l.b16 %v10757
        %v11054 = vunpack.c.l.b16 %v10758
        %v11055 = vunpack.c.l.b16 %v10759
        %v11056 = vunpack.c.l.b16 %v10760
        %v11057 = vunpack.c.l.b16 %v10761
        %v11058 = vunpack.c.l.b16 %v10762
        %v11059 = vunpack.c.l.b16 %v10763
        %v11060 = vunpack.c.l.b16 %v10764
        %v11061 = vunpack.c.l.b16 %v10765
        %v11062 = vunpack.c.l.b16 %v10766
        %v11063 = vunpack.c.l.b16 %v10767
        %v11064 = vunpack.c.l.b16 %v10768
        %v11065 = vunpack.c.l.b16 %v10769
        %v11066 = vunpack.c.l.b16 %v10770
        %v11067 = vunpack.c.l.b16 %v10771
        %v11068 = vunpack.c.l.b16 %v10772
        %v11069 = vunpack.c.l.b16 %v10773
        %v11070 = vunpack.c.l.b16 %v10774
        %v11071 = vunpack.c.l.b16 %v10775
        %v11072 = vunpack.c.l.b16 %v10776
        %v11073 = vunpack.c.l.b16 %v10777
        %v11074 = vunpack.c.l.b16 %v10778
        %v11075 = vunpack.c.l.b16 %v10779
        %v11076 = vunpack.c.l.b16 %v10780
        %v11077 = vunpack.c.l.b16 %v10781
        %v11078 = vunpack.c.l.b16 %v10782
        %v11079 = vunpack.c.l.b16 %v10783
        %v11080 = vunpack.c.l.b16 %v10784
        %v11081 = vunpack.c.l.b16 %v10785
        %v11082 = vunpack.c.l.b16 %v10786
        %v11083 = vunpack.c.l.b16 %v10787
        %v11084 = vunpack.c.l.b16 %v10788
        %v11085 = vunpack.c.l.b16 %v10789
        %v11086 = vunpack.c.l.b16 %v10790
        %v11087 = vunpack.c.l.b16 %v10791
        %v11088 = vunpack.c.l.b16 %v10792
        %v11089 = vunpack.c.l.b16 %v10793
        %v11090 = vunpack.c.l.b16 %v10794
        %v11091 = vunpack.c.l.b16 %v10795
        %v11092 = vunpack.c.l.b16 %v10796
        %v11093 = vunpack.c.l.b16 %v10797
        %v11094 = vunpack.c.l.b16 %v10798
        %v11095 = vunpack.c.l.b16 %v10799
        %v11096 = vunpack.c.l.b16 %v10800
        %v11097 = vunpack.c.l.b16 %v10801
        %v11098 = vunpack.c.l.b16 %v10802
        %v11099 = vunpack.c.l.b16 %v10803
        %v11100 = vunpack.c.l.b16 %v10804
        %v11101 = vunpack.c.l.b16 %v10805
        %v11102 = vunpack.c.l.b16 %v10806
        %v11103 = vunpack.c.l.b16 %v10807
        %v11104 = vunpack.c.l.b16 %v10808
        %v11105 = vunpack.c.l.b16 %v10809
        %v11106 = vunpack.c.l.b16 %v10810
        %v11107 = vunpack.c.l.b16 %v10811
        %v11108 = vunpack.c.l.b16 %v10812
        %v11109 = vunpack.c.l.b16 %v10813
        %v11110 = vunpack.c.l.b16 %v10814
        %v11111 = vunpack.c.l.b16 %v10815
        %v11112 = vpack.c.b16 %v10969, %v10968
        %v11113 = vpack.c.b16 %v10971, %v10970
        %v11114 = vpack.c.b16 %v10973, %v10972
        %v11115 = vpack.c.b16 %v10975, %v10974
        %v11116 = vpack.c.b16 %v10977, %v10976
        %v11117 = vpack.c.b16 %v10979, %v10978
        %v11118 = vpack.c.b16 %v10981, %v10980
        %v11119 = vpack.c.b16 %v10983, %v10982
        %v11120 = vpack.c.b16 %v10985, %v10984
        %v11121 = vpack.c.b16 %v10987, %v10986
        %v11122 = vpack.c.b16 %v10989, %v10988
        %v11123 = vpack.c.b16 %v10991, %v10990
        %v11124 = vpack.c.b16 %v10993, %v10992
        %v11125 = vpack.c.b16 %v10995, %v10994
        %v11126 = vpack.c.b16 %v10997, %v10996
        %v11127 = vpack.c.b16 %v10999, %v10998
        %v11128 = vpack.c.b16 %v11001, %v11000
        %v11129 = vpack.c.b16 %v11003, %v11002
        %v11130 = vpack.c.b16 %v11005, %v11004
        %v11131 = vpack.c.b16 %v11007, %v11006
        %v11132 = vpack.c.b16 %v11009, %v11008
        %v11133 = vpack.c.b16 %v11011, %v11010
        %v11134 = vpack.c.b16 %v11013, %v11012
        %v11135 = vpack.c.b16 %v11015, %v11014
        %v11136 = vpack.c.b16 %v11017, %v11016
        %v11137 = vpack.c.b16 %v11019, %v11018
        %v11138 = vpack.c.b16 %v11021, %v11020
        %v11139 = vpack.c.b16 %v11023, %v11022
        %v11140 = vpack.c.b16 %v11025, %v11024
        %v11141 = vpack.c.b16 %v11027, %v11026
        %v11142 = vpack.c.b16 %v11029, %v11028
        %v11143 = vpack.c.b16 %v11031, %v11030
        %v11144 = vpack.c.b16 %v11033, %v11032
        %v11145 = vpack.c.b16 %v11035, %v11034
        %v11146 = vpack.c.b16 %v11037, %v11036
        %v11147 = vpack.c.b16 %v11039, %v11038
        %v11148 = vpack.c.b16 %v11041, %v11040
        %v11149 = vpack.c.b16 %v11043, %v11042
        %v11150 = vpack.c.b16 %v11045, %v11044
        %v11151 = vpack.c.b16 %v11047, %v11046
        %v11152 = vpack.c.b16 %v11049, %v11048
        %v11153 = vpack.c.b16 %v11051, %v11050
        %v11154 = vpack.c.b16 %v11053, %v11052
        %v11155 = vpack.c.b16 %v11055, %v11054
        %v11156 = vpack.c.b16 %v11057, %v11056
        %v11157 = vpack.c.b16 %v11059, %v11058
        %v11158 = vpack.c.b16 %v11061, %v11060
        %v11159 = vpack.c.b16 %v11063, %v11062
        %v11160 = vpack.c.b16 %v11065, %v11064
        %v11161 = vpack.c.b16 %v11067, %v11066
        %v11162 = vpack.c.b16 %v11069, %v11068
        %v11163 = vpack.c.b16 %v11071, %v11070
        %v11164 = vpack.c.b16 %v11073, %v11072
        %v11165 = vpack.c.b16 %v11075, %v11074
        %v11166 = vpack.c.b16 %v11077, %v11076
        %v11167 = vpack.c.b16 %v11079, %v11078
        %v11168 = vpack.c.b16 %v11081, %v11080
        %v11169 = vpack.c.b16 %v11083, %v11082
        %v11170 = vpack.c.b16 %v11085, %v11084
        %v11171 = vpack.c.b16 %v11087, %v11086
        %v11172 = vpack.c.b16 %v11089, %v11088
        %v11173 = vpack.c.b16 %v11091, %v11090
        %v11174 = vpack.c.b16 %v11093, %v11092
        %v11175 = vpack.c.b16 %v11095, %v11094
        %v11176 = vpack.c.b16 %v11097, %v11096
        %v11177 = vpack.c.b16 %v11099, %v11098
        %v11178 = vpack.c.b16 %v11101, %v11100
        %v11179 = vpack.c.b16 %v11103, %v11102
        %v11180 = vpack.c.b16 %v11105, %v11104
        %v11181 = vpack.c.b16 %v11107, %v11106
        %v11182 = vpack.c.b16 %v11109, %v11108
        %v11183 = vpack.c.b16 %v11111, %v11110
        %11256 = vmatprep.subr.bf16.mxu0 0
        %11257 = vmatpush1.bf16.msra.mxu0 %v11112
        %11258 = vmatprep.subr.bf16.mxu0 0
        %11259 = vmatpush1.bf16.msra.mxu0 %v11113
        %11260 = vmatprep.subr.bf16.mxu0 0
        %11261 = vmatpush1.bf16.msra.mxu0 %v11114
        %11262 = vmatprep.subr.bf16.mxu0 0
        %11263 = vmatpush1.bf16.msra.mxu0 %v11115
        %11264 = vmatprep.subr.bf16.mxu0 0
        %11265 = vmatpush1.bf16.msra.mxu0 %v11116
        %11266 = vmatprep.subr.bf16.mxu0 0
        %11267 = vmatpush1.bf16.msra.mxu0 %v11117
        %11268 = vmatprep.subr.bf16.mxu0 0
        %11269 = vmatpush1.bf16.msra.mxu0 %v11118
        %11270 = vmatprep.subr.bf16.mxu0 0
        %11271 = vmatpush1.bf16.msra.mxu0 %v11119
        %11272 = vmatprep.subr.bf16.mxu0 0
        %11273 = vmatpush1.bf16.msra.mxu0 %v11120
        %11274 = vmatprep.subr.bf16.mxu0 0
        %11275 = vmatpush1.bf16.msra.mxu0 %v11121
        %11276 = vmatprep.subr.bf16.mxu0 0
        %11277 = vmatpush1.bf16.msra.mxu0 %v11122
        %11278 = vmatprep.subr.bf16.mxu0 0
        %11279 = vmatpush1.bf16.msra.mxu0 %v11123
        %11280 = vmatprep.subr.bf16.mxu0 0
        %11281 = vmatpush1.bf16.msra.mxu0 %v11124
        %11282 = vmatprep.subr.bf16.mxu0 0
        %11283 = vmatpush1.bf16.msra.mxu0 %v11125
        %11284 = vmatprep.subr.bf16.mxu0 0
        %11285 = vmatpush1.bf16.msra.mxu0 %v11126
        %11286 = vmatprep.subr.bf16.mxu0 0
        %11287 = vmatpush1.bf16.msra.mxu0 %v11127
        %11288 = vmatprep.mubr.bf16.mxu0 %v9873
        %11289 = vmatmul.mubr.bf16.gmra.mrb[0].mxu0 %v9861
        %v11290 = vpop.f32.mrb[0].mxu0
        %v11291 = vadd.f32 %v10822, %v11290
        %v11292 = vpop.f32.mrb[0].mxu0
        %v11293 = vpop.f32.mrb[0].mxu0
        %v11294 = vadd.f32 %v10822, %v11293
        %v11295 = vpop.f32.mrb[0].mxu0
        %11296 = vmatprep.mubr.bf16.mxu0 %v9966
        %11297 = vmatmul.mubr.bf16.gmra.mrb[0].mxu0 %v9954
        %v11298 = vpop.f32.mrb[0].mxu0
        %v11299 = vadd.f32 %v10822, %v11298
        %v11300 = vpop.f32.mrb[0].mxu0
        %v11301 = vpop.f32.mrb[0].mxu0
        %v11302 = vadd.f32 %v10822, %v11301
        %v11303 = vpop.f32.mrb[0].mxu0
        %11304 = vmatprep.mubr.bf16.mxu0 %v10059
        %11305 = vmatmul.mubr.bf16.gmra.mrb[0].mxu0 %v10047
        %v11306 = vpop.f32.mrb[0].mxu0
        %v11307 = vadd.f32 %v10822, %v11306
        %v11308 = vpop.f32.mrb[0].mxu0
        %v11309 = vpop.f32.mrb[0].mxu0
        %v11310 = vadd.f32 %v10822, %v11309
        %v11311 = vpop.f32.mrb[0].mxu0
        %11312 = vmatprep.mubr.bf16.mxu0 %v10152
        %11313 = vmatmul.mubr.bf16.gmra.mrb[0].mxu0 %v10140
        %v11314 = vpop.f32.mrb[0].mxu0
        %v11315 = vadd.f32 %v10822, %v11314
        %v11316 = vpop.f32.mrb[0].mxu0
        %v11317 = vpop.f32.mrb[0].mxu0
        %v11318 = vadd.f32 %v10822, %v11317
        %v11319 = vpop.f32.mrb[0].mxu0
        %11320 = vmatprep.mubr.bf16.mxu0 %v10245
        %11321 = vmatmul.mubr.bf16.gmra.mrb[0].mxu0 %v10233
        %v11322 = vpop.f32.mrb[0].mxu0
        %v11323 = vadd.f32 %v10822, %v11322
        %v11324 = vpop.f32.mrb[0].mxu0
        %v11325 = vpop.f32.mrb[0].mxu0
        %v11326 = vadd.f32 %v10822, %v11325
        %v11327 = vpop.f32.mrb[0].mxu0
        %11328 = vmatprep.mubr.bf16.mxu0 %v10338
        %11329 = vmatmul.mubr.bf16.gmra.mrb[0].mxu0 %v10326
        %v11330 = vpop.f32.mrb[0].mxu0
        %v11331 = vadd.f32 %v10822, %v11330
        %v11332 = vpop.f32.mrb[0].mxu0
        %v11333 = vpop.f32.mrb[0].mxu0
        %v11334 = vadd.f32 %v10822, %v11333
        %v11335 = vpop.f32.mrb[0].mxu0
        %11336 = vmatprep.mubr.bf16.mxu0 %v10431
        %11337 = vmatmul.mubr.bf16.gmra.mrb[0].mxu0 %v10419
        %v11338 = vpop.f32.mrb[0].mxu0
        %v11339 = vadd.f32 %v10822, %v11338
        %v11340 = vpop.f32.mrb[0].mxu0
        %v11341 = vpop.f32.mrb[0].mxu0
        %v11342 = vadd.f32 %v10822, %v11341
        %v11343 = vpop.f32.mrb[0].mxu0
        %11344 = vmatprep.mubr.bf16.mxu0 %v10524
        %11345 = vmatmul.mubr.bf16.gmra.mrb[0].mxu0 %v10512
        %v11346 = vpop.f32.mrb[0].mxu0
        %v11347 = vadd.f32 %v10822, %v11346
        %v11348 = vpop.f32.mrb[0].mxu0
        %v11349 = vpop.f32.mrb[0].mxu0
        %v11350 = vadd.f32 %v10822, %v11349
        %v11351 = vpop.f32.mrb[0].mxu0
        %11352 = vdwg.mxu0
        %11353 = vmatprep.subr.bf16.mxu0 0
        %11354 = vmatpush1.bf16.msra.mxu0 %v11128
        %11355 = vmatprep.subr.bf16.mxu0 0
        %11356 = vmatpush1.bf16.msra.mxu0 %v11129
        %11357 = vmatprep.subr.bf16.mxu0 0
        %11358 = vmatpush1.bf16.msra.mxu0 %v11130
        %11359 = vmatprep.subr.bf16.mxu0 0
        %11360 = vmatpush1.bf16.msra.mxu0 %v11131
        %11361 = vmatprep.subr.bf16.mxu0 0
        %11362 = vmatpush1.bf16.msra.mxu0 %v11132
        %11363 = vmatprep.subr.bf16.mxu0 0
        %11364 = vmatpush1.bf16.msra.mxu0 %v11133
        %11365 = vmatprep.subr.bf16.mxu0 0
        %11366 = vmatpush1.bf16.msra.mxu0 %v11134
        %11367 = vmatprep.subr.bf16.mxu0 0
        %11368 = vmatpush1.bf16.msra.mxu0 %v11135
        %11369 = vmatprep.subr.bf16.mxu0 0
        %11370 = vmatpush1.bf16.msra.mxu0 %v11136
        %11371 = vmatprep.subr.bf16.mxu0 0
        %11372 = vmatpush1.bf16.msra.mxu0 %v11137
        %11373 = vmatprep.subr.bf16.mxu0 0
        %11374 = vmatpush1.bf16.msra.mxu0 %v11138
        %11375 = vmatprep.subr.bf16.mxu0 0
        %11376 = vmatpush1.bf16.msra.mxu0 %v11139
        %11377 = vmatprep.subr.bf16.mxu0 0
        %11378 = vmatpush1.bf16.msra.mxu0 %v11140
        %11379 = vmatprep.subr.bf16.mxu0 0
        %11380 = vmatpush1.bf16.msra.mxu0 %v11141
        %11381 = vmatprep.subr.bf16.mxu0 0
        %11382 = vmatpush1.bf16.msra.mxu0 %v11142
        %11383 = vmatprep.subr.bf16.mxu0 0
        %11384 = vmatpush1.bf16.msra.mxu0 %v11143
        %11385 = vmatprep.mubr.bf16.mxu0 %v9892
        %11386 = vmatmul.mubr.bf16.gmra.mrb[0].mxu0 %v9885
        %v11387 = vpop.f32.mrb[0].mxu0
        %v11388 = vadd.f32 %v11291, %v11387
        %v11389 = vpop.f32.mrb[0].mxu0
        %v11390 = vpop.f32.mrb[0].mxu0
        %v11391 = vadd.f32 %v11294, %v11390
        %v11392 = vpop.f32.mrb[0].mxu0
        %11393 = vmatprep.mubr.bf16.mxu0 %v9985
        %11394 = vmatmul.mubr.bf16.gmra.mrb[0].mxu0 %v9978
        %v11395 = vpop.f32.mrb[0].mxu0
        %v11396 = vadd.f32 %v11299, %v11395
        %v11397 = vpop.f32.mrb[0].mxu0
        %v11398 = vpop.f32.mrb[0].mxu0
        %v11399 = vadd.f32 %v11302, %v11398
        %v11400 = vpop.f32.mrb[0].mxu0
        %11401 = vmatprep.mubr.bf16.mxu0 %v10078
        %11402 = vmatmul.mubr.bf16.gmra.mrb[0].mxu0 %v10071
        %v11403 = vpop.f32.mrb[0].mxu0
        %v11404 = vadd.f32 %v11307, %v11403
        %v11405 = vpop.f32.mrb[0].mxu0
        %v11406 = vpop.f32.mrb[0].mxu0
        %v11407 = vadd.f32 %v11310, %v11406
        %v11408 = vpop.f32.mrb[0].mxu0
        %11409 = vmatprep.mubr.bf16.mxu0 %v10171
        %11410 = vmatmul.mubr.bf16.gmra.mrb[0].mxu0 %v10164
        %v11411 = vpop.f32.mrb[0].mxu0
        %v11412 = vadd.f32 %v11315, %v11411
        %v11413 = vpop.f32.mrb[0].mxu0
        %v11414 = vpop.f32.mrb[0].mxu0
        %v11415 = vadd.f32 %v11318, %v11414
        %v11416 = vpop.f32.mrb[0].mxu0
        %11417 = vmatprep.mubr.bf16.mxu0 %v10264
        %11418 = vmatmul.mubr.bf16.gmra.mrb[0].mxu0 %v10257
        %v11419 = vpop.f32.mrb[0].mxu0
        %v11420 = vadd.f32 %v11323, %v11419
        %v11421 = vpop.f32.mrb[0].mxu0
        %v11422 = vpop.f32.mrb[0].mxu0
        %v11423 = vadd.f32 %v11326, %v11422
        %v11424 = vpop.f32.mrb[0].mxu0
        %11425 = vmatprep.mubr.bf16.mxu0 %v10357
        %11426 = vmatmul.mubr.bf16.gmra.mrb[0].mxu0 %v10350
        %v11427 = vpop.f32.mrb[0].mxu0
        %v11428 = vadd.f32 %v11331, %v11427
        %v11429 = vpop.f32.mrb[0].mxu0
        %v11430 = vpop.f32.mrb[0].mxu0
        %v11431 = vadd.f32 %v11334, %v11430
        %v11432 = vpop.f32.mrb[0].mxu0
        %11433 = vmatprep.mubr.bf16.mxu0 %v10450
        %11434 = vmatmul.mubr.bf16.gmra.mrb[0].mxu0 %v10443
        %v11435 = vpop.f32.mrb[0].mxu0
        %v11436 = vadd.f32 %v11339, %v11435
        %v11437 = vpop.f32.mrb[0].mxu0
        %v11438 = vpop.f32.mrb[0].mxu0
        %v11439 = vadd.f32 %v11342, %v11438
        %v11440 = vpop.f32.mrb[0].mxu0
        %11441 = vmatprep.mubr.bf16.mxu0 %v10543
        %11442 = vmatmul.mubr.bf16.gmra.mrb[0].mxu0 %v10536
        %v11443 = vpop.f32.mrb[0].mxu0
        %v11444 = vadd.f32 %v11347, %v11443
        %v11445 = vpop.f32.mrb[0].mxu0
        %v11446 = vpop.f32.mrb[0].mxu0
        %v11447 = vadd.f32 %v11350, %v11446
        %v11448 = vpop.f32.mrb[0].mxu0
        %11449 = vdwg.mxu0
        %11450 = vmatprep.subr.bf16.mxu0 0
        %11451 = vmatpush1.bf16.msra.mxu0 %v11144
        %11452 = vmatprep.subr.bf16.mxu0 0
        %11453 = vmatpush1.bf16.msra.mxu0 %v11145
        %11454 = vmatprep.subr.bf16.mxu0 0
        %11455 = vmatpush1.bf16.msra.mxu0 %v11146
        %11456 = vmatprep.subr.bf16.mxu0 0
        %11457 = vmatpush1.bf16.msra.mxu0 %v11147
        %11458 = vmatprep.subr.bf16.mxu0 0
        %11459 = vmatpush1.bf16.msra.mxu0 %v11148
        %11460 = vmatprep.subr.bf16.mxu0 0
        %11461 = vmatpush1.bf16.msra.mxu0 %v11149
        %11462 = vmatprep.subr.bf16.mxu0 0
        %11463 = vmatpush1.bf16.msra.mxu0 %v11150
        %11464 = vmatprep.subr.bf16.mxu0 0
        %11465 = vmatpush1.bf16.msra.mxu0 %v11151
        %11466 = vmatprep.subr.bf16.mxu0 0
        %11467 = vmatpush1.bf16.msra.mxu0 %v11152
        %11468 = vmatprep.subr.bf16.mxu0 0
        %11469 = vmatpush1.bf16.msra.mxu0 %v11153
        %11470 = vmatprep.subr.bf16.mxu0 0
        %11471 = vmatpush1.bf16.msra.mxu0 %v11154
        %11472 = vmatprep.subr.bf16.mxu0 0
        %11473 = vmatpush1.bf16.msra.mxu0 %v11155
        %11474 = vmatprep.subr.bf16.mxu0 0
        %11475 = vmatpush1.bf16.msra.mxu0 %v11156
        %11476 = vmatprep.subr.bf16.mxu0 0
        %11477 = vmatpush1.bf16.msra.mxu0 %v11157
        %11478 = vmatprep.subr.bf16.mxu0 0
        %11479 = vmatpush1.bf16.msra.mxu0 %v11158
        %11480 = vmatprep.subr.bf16.mxu0 0
        %11481 = vmatpush1.bf16.msra.mxu0 %v11159
        %11482 = vmatprep.mubr.bf16.mxu0 %v9916
        %11483 = vmatmul.mubr.bf16.gmra.mrb[0].mxu0 %v9904
        %v11484 = vpop.f32.mrb[0].mxu0
        %v11485 = vadd.f32 %v11388, %v11484
        %v11486 = vpop.f32.mrb[0].mxu0
        %v11487 = vpop.f32.mrb[0].mxu0
        %v11488 = vadd.f32 %v11391, %v11487
        %v11489 = vpop.f32.mrb[0].mxu0
        %11490 = vmatprep.mubr.bf16.mxu0 %v10009
        %11491 = vmatmul.mubr.bf16.gmra.mrb[0].mxu0 %v9997
        %v11492 = vpop.f32.mrb[0].mxu0
        %v11493 = vadd.f32 %v11396, %v11492
        %v11494 = vpop.f32.mrb[0].mxu0
        %v11495 = vpop.f32.mrb[0].mxu0
        %v11496 = vadd.f32 %v11399, %v11495
        %v11497 = vpop.f32.mrb[0].mxu0
        %11498 = vmatprep.mubr.bf16.mxu0 %v10102
        %11499 = vmatmul.mubr.bf16.gmra.mrb[0].mxu0 %v10090
        %v11500 = vpop.f32.mrb[0].mxu0
        %v11501 = vadd.f32 %v11404, %v11500
        %v11502 = vpop.f32.mrb[0].mxu0
        %v11503 = vpop.f32.mrb[0].mxu0
        %v11504 = vadd.f32 %v11407, %v11503
        %v11505 = vpop.f32.mrb[0].mxu0
        %11506 = vmatprep.mubr.bf16.mxu0 %v10195
        %11507 = vmatmul.mubr.bf16.gmra.mrb[0].mxu0 %v10183
        %v11508 = vpop.f32.mrb[0].mxu0
        %v11509 = vadd.f32 %v11412, %v11508
        %v11510 = vpop.f32.mrb[0].mxu0
        %v11511 = vpop.f32.mrb[0].mxu0
        %v11512 = vadd.f32 %v11415, %v11511
        %v11513 = vpop.f32.mrb[0].mxu0
        %11514 = vmatprep.mubr.bf16.mxu0 %v10288
        %11515 = vmatmul.mubr.bf16.gmra.mrb[0].mxu0 %v10276
        %v11516 = vpop.f32.mrb[0].mxu0
        %v11517 = vadd.f32 %v11420, %v11516
        %v11518 = vpop.f32.mrb[0].mxu0
        %v11519 = vpop.f32.mrb[0].mxu0
        %v11520 = vadd.f32 %v11423, %v11519
        %v11521 = vpop.f32.mrb[0].mxu0
        %11522 = vmatprep.mubr.bf16.mxu0 %v10381
        %11523 = vmatmul.mubr.bf16.gmra.mrb[0].mxu0 %v10369
        %v11524 = vpop.f32.mrb[0].mxu0
        %v11525 = vadd.f32 %v11428, %v11524
        %v11526 = vpop.f32.mrb[0].mxu0
        %v11527 = vpop.f32.mrb[0].mxu0
        %v11528 = vadd.f32 %v11431, %v11527
        %v11529 = vpop.f32.mrb[0].mxu0
        %11530 = vmatprep.mubr.bf16.mxu0 %v10474
        %11531 = vmatmul.mubr.bf16.gmra.mrb[0].mxu0 %v10462
        %v11532 = vpop.f32.mrb[0].mxu0
        %v11533 = vadd.f32 %v11436, %v11532
        %v11534 = vpop.f32.mrb[0].mxu0
        %v11535 = vpop.f32.mrb[0].mxu0
        %v11536 = vadd.f32 %v11439, %v11535
        %v11537 = vpop.f32.mrb[0].mxu0
        %11538 = vmatprep.mubr.bf16.mxu0 %v10567
        %11539 = vmatmul.mubr.bf16.gmra.mrb[0].mxu0 %v10555
        %v11540 = vpop.f32.mrb[0].mxu0
        %v11541 = vadd.f32 %v11444, %v11540
        %v11542 = vpop.f32.mrb[0].mxu0
        %v11543 = vpop.f32.mrb[0].mxu0
        %v11544 = vadd.f32 %v11447, %v11543
        %v11545 = vpop.f32.mrb[0].mxu0
        %11546 = vdwg.mxu0
        %11547 = vmatprep.subr.bf16.mxu0 0
        %11548 = vmatpush1.bf16.msra.mxu0 %v11160
        %11549 = vmatprep.subr.bf16.mxu0 0
        %11550 = vmatpush1.bf16.msra.mxu0 %v11161
        %11551 = vmatprep.subr.bf16.mxu0 0
        %11552 = vmatpush1.bf16.msra.mxu0 %v11162
        %11553 = vmatprep.subr.bf16.mxu0 0
        %11554 = vmatpush1.bf16.msra.mxu0 %v11163
        %11555 = vmatprep.subr.bf16.mxu0 0
        %11556 = vmatpush1.bf16.msra.mxu0 %v11164
        %11557 = vmatprep.subr.bf16.mxu0 0
        %11558 = vmatpush1.bf16.msra.mxu0 %v11165
        %11559 = vmatprep.subr.bf16.mxu0 0
        %11560 = vmatpush1.bf16.msra.mxu0 %v11166
        %11561 = vmatprep.subr.bf16.mxu0 0
        %11562 = vmatpush1.bf16.msra.mxu0 %v11167
        %11563 = vmatprep.subr.bf16.mxu0 0
        %11564 = vmatpush1.bf16.msra.mxu0 %v11168
        %11565 = vmatprep.subr.bf16.mxu0 0
        %11566 = vmatpush1.bf16.msra.mxu0 %v11169
        %11567 = vmatprep.subr.bf16.mxu0 0
        %11568 = vmatpush1.bf16.msra.mxu0 %v11170
        %11569 = vmatprep.subr.bf16.mxu0 0
        %11570 = vmatpush1.bf16.msra.mxu0 %v11171
        %11571 = vmatprep.subr.bf16.mxu0 0
        %11572 = vmatpush1.bf16.msra.mxu0 %v11172
        %11573 = vmatprep.subr.bf16.mxu0 0
        %11574 = vmatpush1.bf16.msra.mxu0 %v11173
        %11575 = vmatprep.subr.bf16.mxu0 0
        %11576 = vmatpush1.bf16.msra.mxu0 %v11174
        %11577 = vmatprep.subr.bf16.mxu0 0
        %11578 = vmatpush1.bf16.msra.mxu0 %v11175
        %11579 = vmatprep.mubr.bf16.mxu0 %v9935
        %11580 = vmatmul.mubr.bf16.gmra.mrb[0].mxu0 %v9923
        %v11581 = vpop.f32.mrb[0].mxu0
        %v11582 = vadd.f32 %v11485, %v11581
        %v11583 = vpop.f32.mrb[0].mxu0
        %v11584 = vpop.f32.mrb[0].mxu0
        %v11585 = vadd.f32 %v11488, %v11584
        %v11586 = vpop.f32.mrb[0].mxu0
        %11587 = vmatprep.mubr.bf16.mxu0 %v10028
        %11588 = vmatmul.mubr.bf16.gmra.mrb[0].mxu0 %v10016
        %v11589 = vpop.f32.mrb[0].mxu0
        %v11590 = vadd.f32 %v11493, %v11589
        %v11591 = vpop.f32.mrb[0].mxu0
        %v11592 = vpop.f32.mrb[0].mxu0
        %v11593 = vadd.f32 %v11496, %v11592
        %v11594 = vpop.f32.mrb[0].mxu0
        %11595 = vmatprep.mubr.bf16.mxu0 %v10121
        %11596 = vmatmul.mubr.bf16.gmra.mrb[0].mxu0 %v10109
        %v11597 = vpop.f32.mrb[0].mxu0
        %v11598 = vadd.f32 %v11501, %v11597
        %v11599 = vpop.f32.mrb[0].mxu0
        %v11600 = vpop.f32.mrb[0].mxu0
        %v11601 = vadd.f32 %v11504, %v11600
        %v11602 = vpop.f32.mrb[0].mxu0
        %11603 = vmatprep.mubr.bf16.mxu0 %v10214
        %11604 = vmatmul.mubr.bf16.gmra.mrb[0].mxu0 %v10202
        %v11605 = vpop.f32.mrb[0].mxu0
        %v11606 = vadd.f32 %v11509, %v11605
        %v11607 = vpop.f32.mrb[0].mxu0
        %v11608 = vpop.f32.mrb[0].mxu0
        %v11609 = vadd.f32 %v11512, %v11608
        %v11610 = vpop.f32.mrb[0].mxu0
        %11611 = vmatprep.mubr.bf16.mxu0 %v10307
        %11612 = vmatmul.mubr.bf16.gmra.mrb[0].mxu0 %v10295
        %v11613 = vpop.f32.mrb[0].mxu0
        %v11614 = vadd.f32 %v11517, %v11613
        %v11615 = vpop.f32.mrb[0].mxu0
        %v11616 = vpop.f32.mrb[0].mxu0
        %v11617 = vadd.f32 %v11520, %v11616
        %v11618 = vpop.f32.mrb[0].mxu0
        %11619 = vmatprep.mubr.bf16.mxu0 %v10400
        %11620 = vmatmul.mubr.bf16.gmra.mrb[0].mxu0 %v10388
        %v11621 = vpop.f32.mrb[0].mxu0
        %v11622 = vadd.f32 %v11525, %v11621
        %v11623 = vpop.f32.mrb[0].mxu0
        %v11624 = vpop.f32.mrb[0].mxu0
        %v11625 = vadd.f32 %v11528, %v11624
        %v11626 = vpop.f32.mrb[0].mxu0
        %11627 = vmatprep.mubr.bf16.mxu0 %v10493
        %11628 = vmatmul.mubr.bf16.gmra.mrb[0].mxu0 %v10481
        %v11629 = vpop.f32.mrb[0].mxu0
        %v11630 = vadd.f32 %v11533, %v11629
        %v11631 = vpop.f32.mrb[0].mxu0
        %v11632 = vpop.f32.mrb[0].mxu0
        %v11633 = vadd.f32 %v11536, %v11632
        %v11634 = vpop.f32.mrb[0].mxu0
        %11635 = vmatprep.mubr.bf16.mxu0 %v10586
        %11636 = vmatmul.mubr.bf16.gmra.mrb[0].mxu0 %v10574
        %v11637 = vpop.f32.mrb[0].mxu0
        %v11638 = vadd.f32 %v11541, %v11637
        %v11639 = vpop.f32.mrb[0].mxu0
        %v11640 = vpop.f32.mrb[0].mxu0
        %v11641 = vadd.f32 %v11544, %v11640
        %v11642 = vpop.f32.mrb[0].mxu0
        %11643 = vdwg.mxu0
        %11644 = vmatprep.subr.bf16.mxu0 0
        %11645 = vmatpush1.bf16.msra.mxu0 %v11176
        %11646 = vmatprep.subr.bf16.mxu0 0
        %11647 = vmatpush1.bf16.msra.mxu0 %v11177
        %11648 = vmatprep.subr.bf16.mxu0 0
        %11649 = vmatpush1.bf16.msra.mxu0 %v11178
        %11650 = vmatprep.subr.bf16.mxu0 0
        %11651 = vmatpush1.bf16.msra.mxu0 %v11179
        %11652 = vmatprep.subr.bf16.mxu0 0
        %11653 = vmatpush1.bf16.msra.mxu0 %v11180
        %11654 = vmatprep.subr.bf16.mxu0 0
        %11655 = vmatpush1.bf16.msra.mxu0 %v11181
        %11656 = vmatprep.subr.bf16.mxu0 0
        %11657 = vmatpush1.bf16.msra.mxu0 %v11182
        %11658 = vmatprep.subr.bf16.mxu0 0
        %11659 = vmatpush1.bf16.msra.mxu0 %v11183
        %11660 = vmatprep.subr.bf16.mxu0 0
        %11661 = vmatpush1.bf16.msra.mxu0 0
        %11662 = vmatprep.subr.bf16.mxu0 0
        %11663 = vmatpush1.bf16.msra.mxu0 0
        %11664 = vmatprep.subr.bf16.mxu0 0
        %11665 = vmatpush1.bf16.msra.mxu0 0
        %11666 = vmatprep.subr.bf16.mxu0 0
        %11667 = vmatpush1.bf16.msra.mxu0 0
        %11668 = vmatprep.subr.bf16.mxu0 0
        %11669 = vmatpush1.bf16.msra.mxu0 0
        %11670 = vmatprep.subr.bf16.mxu0 0
        %11671 = vmatpush1.bf16.msra.mxu0 0
        %11672 = vmatprep.subr.bf16.mxu0 0
        %11673 = vmatpush1.bf16.msra.mxu0 0
        %11674 = vmatprep.subr.bf16.mxu0 0
        %11675 = vmatpush1.bf16.msra.mxu0 0
        %11676 = vmatprep.mubr.bf16.mxu0 0
        %11677 = vmatmul.mubr.bf16.gmra.mrb[0].mxu0 %v9947
        %v11678 = vpop.f32.mrb[0].mxu0
        %v11679 = vadd.f32 %v11582, %v11678
        %v11680 = vpop.f32.mrb[0].mxu0
        %v11681 = vpop.f32.mrb[0].mxu0
        %v11682 = vadd.f32 %v11585, %v11681
        %v11683 = vpop.f32.mrb[0].mxu0
        %11684 = vmatprep.mubr.bf16.mxu0 0
        %11685 = vmatmul.mubr.bf16.gmra.mrb[0].mxu0 %v10040
        %v11686 = vpop.f32.mrb[0].mxu0
        %v11687 = vadd.f32 %v11590, %v11686
        %v11688 = vpop.f32.mrb[0].mxu0
        %v11689 = vpop.f32.mrb[0].mxu0
        %v11690 = vadd.f32 %v11593, %v11689
        %v11691 = vpop.f32.mrb[0].mxu0
        %11692 = vmatprep.mubr.bf16.mxu0 0
        %11693 = vmatmul.mubr.bf16.gmra.mrb[0].mxu0 %v10133
        %v11694 = vpop.f32.mrb[0].mxu0
        %v11695 = vadd.f32 %v11598, %v11694
        %v11696 = vpop.f32.mrb[0].mxu0
        %v11697 = vpop.f32.mrb[0].mxu0
        %v11698 = vadd.f32 %v11601, %v11697
        %v11699 = vpop.f32.mrb[0].mxu0
        %11700 = vmatprep.mubr.bf16.mxu0 0
        %11701 = vmatmul.mubr.bf16.gmra.mrb[0].mxu0 %v10226
        %v11702 = vpop.f32.mrb[0].mxu0
        %v11703 = vadd.f32 %v11606, %v11702
        %v11704 = vpop.f32.mrb[0].mxu0
        %v11705 = vpop.f32.mrb[0].mxu0
        %v11706 = vadd.f32 %v11609, %v11705
        %v11707 = vpop.f32.mrb[0].mxu0
        %11708 = vmatprep.mubr.bf16.mxu0 0
        %11709 = vmatmul.mubr.bf16.gmra.mrb[0].mxu0 %v10319
        %v11710 = vpop.f32.mrb[0].mxu0
        %v11711 = vadd.f32 %v11614, %v11710
        %v11712 = vpop.f32.mrb[0].mxu0
        %v11713 = vpop.f32.mrb[0].mxu0
        %v11714 = vadd.f32 %v11617, %v11713
        %v11715 = vpop.f32.mrb[0].mxu0
        %11716 = vmatprep.mubr.bf16.mxu0 0
        %11717 = vmatmul.mubr.bf16.gmra.mrb[0].mxu0 %v10412
        %v11718 = vpop.f32.mrb[0].mxu0
        %v11719 = vadd.f32 %v11622, %v11718
        %v11720 = vpop.f32.mrb[0].mxu0
        %v11721 = vpop.f32.mrb[0].mxu0
        %v11722 = vadd.f32 %v11625, %v11721
        %v11723 = vpop.f32.mrb[0].mxu0
        %11724 = vmatprep.mubr.bf16.mxu0 0
        %11725 = vmatmul.mubr.bf16.gmra.mrb[0].mxu0 %v10505
        %v11726 = vpop.f32.mrb[0].mxu0
        %v11727 = vadd.f32 %v11630, %v11726
        %v11728 = vpop.f32.mrb[0].mxu0
        %v11729 = vpop.f32.mrb[0].mxu0
        %v11730 = vadd.f32 %v11633, %v11729
        %v11731 = vpop.f32.mrb[0].mxu0
        %11732 = vmatprep.mubr.bf16.mxu0 0
        %11733 = vmatmul.mubr.bf16.gmra.mrb[0].mxu0 %v10598
        %v11734 = vpop.f32.mrb[0].mxu0
        %v11735 = vadd.f32 %v11638, %v11734
        %v11736 = vpop.f32.mrb[0].mxu0
        %v11737 = vpop.f32.mrb[0].mxu0
        %v11738 = vadd.f32 %v11641, %v11737
        %v11739 = vpop.f32.mrb[0].mxu0
        %11740 = vdwg.mxu0
        %11741 = vst [vmem:[%s203] sm:$0xff] %v11679
        %11742 = vst [vmem:[%s203 + $0x8] sm:$0xff] %v11682
        %11743 = vst [vmem:[%s203 + $0x10] sm:$0xff] %v11687
        %11744 = vst [vmem:[%s203 + $0x18] sm:$0xff] %v11690
        %11745 = vst [vmem:[%s203 + $0x20] sm:$0xff] %v11695
        %11746 = vst [vmem:[%s203 + $0x28] sm:$0xff] %v11698
        %11747 = vst [vmem:[%s203 + $0x30] sm:$0xff] %v11703
        %11748 = vst [vmem:[%s203 + $0x38] sm:$0xff] %v11706
        %11749 = vst [vmem:[%s203 + $0x40] sm:$0xff] %v11711
        %11750 = vst [vmem:[%s203 + $0x48] sm:$0xff] %v11714
        %11751 = vst [vmem:[%s203 + $0x50] sm:$0xff] %v11719
        %11752 = vst [vmem:[%s203 + $0x58] sm:$0xff] %v11722
        %11753 = vst [vmem:[%s203 + $0x60] sm:$0xff] %v11727
        %11754 = vst [vmem:[%s203 + $0x68] sm:$0xff] %v11730
        %11755 = vst [vmem:[%s203 + $0x70] sm:$0xff] %v11735
        %11756 = vst [vmem:[%s203 + $0x78] sm:$0xff] %v11738
        %v11757 = vld [vmem:[%s2658] sm:$0x80]
        %v11758 = vld [vmem:[%s2658 + $0x8] sm:$0xff]
        %v11759 = vld [vmem:[%s2658 + $0x18] sm:$0x80]
        %v11760 = vld [vmem:[%s2658 + $0x20] sm:$0xff]
        %v11761 = vld [vmem:[%s2658 + $0x30] sm:$0x80]
        %v11762 = vld [vmem:[%s2658 + $0x38] sm:$0xff]
        %v11763 = vld [vmem:[%s2658 + $0x48] sm:$0x80]
        %v11764 = vld [vmem:[%s2658 + $0x50] sm:$0xff]
        %v11765 = vld [vmem:[%s2658 + $0x60] sm:$0x80]
        %v11766 = vld [vmem:[%s2658 + $0x68] sm:$0xff]
        %v11767 = vld [vmem:[%s2658 + $0x78] sm:$0x80]
        %v11768 = vld [vmem:[%s2658 + $0x80] sm:$0xff]
        %v11769 = vld [vmem:[%s2658 + $0x90] sm:$0x80]
        %v11770 = vld [vmem:[%s2658 + $0x98] sm:$0xff]
        %v11771 = vld [vmem:[%s2658 + $0xa8] sm:$0x80]
        %v11772 = vld [vmem:[%s2658 + $0xb0] sm:$0xff]
        %v11773 = vld [vmem:[%s2658 + $0x10] sm:$0x1]
        %v11774 = vld [vmem:[%s2658 + $0x28] sm:$0x1]
        %v11775 = vld [vmem:[%s2658 + $0x40] sm:$0x1]
        %v11776 = vld [vmem:[%s2658 + $0x58] sm:$0x1]
        %v11777 = vld [vmem:[%s2658 + $0x70] sm:$0x1]
        %v11778 = vld [vmem:[%s2658 + $0x88] sm:$0x1]
        %v11779 = vld [vmem:[%s2658 + $0xa0] sm:$0x1]
        %v11780 = vld [vmem:[%s2658 + $0xb8] sm:$0x1]
        %v11781 = vld [vmem:[%s2683] sm:$0x80]
        %v11782 = vld [vmem:[%s2683 + $0x8] sm:$0xff]
        %v11783 = vld [vmem:[%s2683 + $0x18] sm:$0x80]
        %v11784 = vld [vmem:[%s2683 + $0x20] sm:$0xff]
        %v11785 = vld [vmem:[%s2683 + $0x30] sm:$0x80]
        %v11786 = vld [vmem:[%s2683 + $0x38] sm:$0xff]
        %v11787 = vld [vmem:[%s2683 + $0x48] sm:$0x80]
        %v11788 = vld [vmem:[%s2683 + $0x50] sm:$0xff]
        %v11789 = vld [vmem:[%s2683 + $0x60] sm:$0x80]
        %v11790 = vld [vmem:[%s2683 + $0x68] sm:$0xff]
        %v11791 = vld [vmem:[%s2683 + $0x78] sm:$0x80]
        %v11792 = vld [vmem:[%s2683 + $0x80] sm:$0xff]
        %v11793 = vld [vmem:[%s2683 + $0x90] sm:$0x80]
        %v11794 = vld [vmem:[%s2683 + $0x98] sm:$0xff]
        %v11795 = vld [vmem:[%s2683 + $0xa8] sm:$0x80]
        %v11796 = vld [vmem:[%s2683 + $0xb0] sm:$0xff]
        %v11797 = vld [vmem:[%s2683 + $0x10] sm:$0x1]
        %v11798 = vld [vmem:[%s2683 + $0x28] sm:$0x1]
        %v11799 = vld [vmem:[%s2683 + $0x40] sm:$0x1]
        %v11800 = vld [vmem:[%s2683 + $0x58] sm:$0x1]
        %v11801 = vld [vmem:[%s2683 + $0x70] sm:$0x1]
        %v11802 = vld [vmem:[%s2683 + $0x88] sm:$0x1]
        %v11803 = vld [vmem:[%s2683 + $0xa0] sm:$0x1]
        %v11804 = vld [vmem:[%s2683 + $0xb8] sm:$0x1]
        %v11805 = vld [vmem:[%s2708] sm:$0x80]
        %v11806 = vld [vmem:[%s2708 + $0x8] sm:$0xff]
        %v11807 = vld [vmem:[%s2708 + $0x18] sm:$0x80]
        %v11808 = vld [vmem:[%s2708 + $0x20] sm:$0xff]
        %v11809 = vld [vmem:[%s2708 + $0x30] sm:$0x80]
        %v11810 = vld [vmem:[%s2708 + $0x38] sm:$0xff]
        %v11811 = vld [vmem:[%s2708 + $0x48] sm:$0x80]
        %v11812 = vld [vmem:[%s2708 + $0x50] sm:$0xff]
        %v11813 = vld [vmem:[%s2708 + $0x60] sm:$0x80]
        %v11814 = vld [vmem:[%s2708 + $0x68] sm:$0xff]
        %v11815 = vld [vmem:[%s2708 + $0x78] sm:$0x80]
        %v11816 = vld [vmem:[%s2708 + $0x80] sm:$0xff]
        %v11817 = vld [vmem:[%s2708 + $0x90] sm:$0x80]
        %v11818 = vld [vmem:[%s2708 + $0x98] sm:$0xff]
        %v11819 = vld [vmem:[%s2708 + $0xa8] sm:$0x80]
        %v11820 = vld [vmem:[%s2708 + $0xb0] sm:$0xff]
        %v11821 = vld [vmem:[%s2708 + $0x10] sm:$0x1]
        %v11822 = vld [vmem:[%s2708 + $0x28] sm:$0x1]
        %v11823 = vld [vmem:[%s2708 + $0x40] sm:$0x1]
        %v11824 = vld [vmem:[%s2708 + $0x58] sm:$0x1]
        %v11825 = vld [vmem:[%s2708 + $0x70] sm:$0x1]
        %v11826 = vld [vmem:[%s2708 + $0x88] sm:$0x1]
        %v11827 = vld [vmem:[%s2708 + $0xa0] sm:$0x1]
        %v11828 = vld [vmem:[%s2708 + $0xb8] sm:$0x1]
        %v11830 = vshll.u32 %v11758, 16
        %v11832 = vrot.slane %v11830, 1
        %v11833 = vshrl.u32 %v11758, 16
        %v11835 = vor.u32 %v11833, %v11832
        %v11837 = vshll.u32 %v11760, 16
        %v11839 = vrot.slane %v11837, 1
        %v11840 = vshrl.u32 %v11760, 16
        %v11842 = vor.u32 %v11840, %v11839
        %v11844 = vshll.u32 %v11762, 16
        %v11846 = vrot.slane %v11844, 1
        %v11847 = vshrl.u32 %v11762, 16
        %v11849 = vor.u32 %v11847, %v11846
        %v11851 = vshll.u32 %v11764, 16
        %v11853 = vrot.slane %v11851, 1
        %v11854 = vshrl.u32 %v11764, 16
        %v11856 = vor.u32 %v11854, %v11853
        %v11858 = vshll.u32 %v11766, 16
        %v11860 = vrot.slane %v11858, 1
        %v11861 = vshrl.u32 %v11766, 16
        %v11863 = vor.u32 %v11861, %v11860
        %v11865 = vshll.u32 %v11768, 16
        %v11867 = vrot.slane %v11865, 1
        %v11868 = vshrl.u32 %v11768, 16
        %v11870 = vor.u32 %v11868, %v11867
        %v11872 = vshll.u32 %v11770, 16
        %v11874 = vrot.slane %v11872, 1
        %v11875 = vshrl.u32 %v11770, 16
        %v11877 = vor.u32 %v11875, %v11874
        %v11879 = vshll.u32 %v11772, 16
        %v11881 = vrot.slane %v11879, 1
        %v11882 = vshrl.u32 %v11772, 16
        %v11884 = vor.u32 %v11882, %v11881
        %v11901 = vrot.slane %v11758, 1
        %v11902 = vrot.slane %v11773, 1
        %v11903 = vsel %vm523, %v11901, %v11902
        %v11904 = vrot.slane %v11760, 1
        %v11905 = vrot.slane %v11774, 1
        %v11906 = vsel %vm523, %v11904, %v11905
        %v11907 = vrot.slane %v11762, 1
        %v11908 = vrot.slane %v11775, 1
        %v11909 = vsel %vm523, %v11907, %v11908
        %v11910 = vrot.slane %v11764, 1
        %v11911 = vrot.slane %v11776, 1
        %v11912 = vsel %vm523, %v11910, %v11911
        %v11913 = vrot.slane %v11766, 1
        %v11914 = vrot.slane %v11777, 1
        %v11915 = vsel %vm523, %v11913, %v11914
        %v11916 = vrot.slane %v11768, 1
        %v11917 = vrot.slane %v11778, 1
        %v11918 = vsel %vm523, %v11916, %v11917
        %v11919 = vrot.slane %v11770, 1
        %v11920 = vrot.slane %v11779, 1
        %v11921 = vsel %vm523, %v11919, %v11920
        %v11922 = vrot.slane %v11772, 1
        %v11923 = vrot.slane %v11780, 1
        %v11924 = vsel %vm523, %v11922, %v11923
        %v11926 = vshll.u32 %v11782, 16
        %v11928 = vrot.slane %v11926, 1
        %v11929 = vshrl.u32 %v11782, 16
        %v11931 = vor.u32 %v11929, %v11928
        %v11933 = vshll.u32 %v11784, 16
        %v11935 = vrot.slane %v11933, 1
        %v11936 = vshrl.u32 %v11784, 16
        %v11938 = vor.u32 %v11936, %v11935
        %v11940 = vshll.u32 %v11786, 16
        %v11942 = vrot.slane %v11940, 1
        %v11943 = vshrl.u32 %v11786, 16
        %v11945 = vor.u32 %v11943, %v11942
        %v11947 = vshll.u32 %v11788, 16
        %v11949 = vrot.slane %v11947, 1
        %v11950 = vshrl.u32 %v11788, 16
        %v11952 = vor.u32 %v11950, %v11949
        %v11954 = vshll.u32 %v11790, 16
        %v11956 = vrot.slane %v11954, 1
        %v11957 = vshrl.u32 %v11790, 16
        %v11959 = vor.u32 %v11957, %v11956
        %v11961 = vshll.u32 %v11792, 16
        %v11963 = vrot.slane %v11961, 1
        %v11964 = vshrl.u32 %v11792, 16
        %v11966 = vor.u32 %v11964, %v11963
        %v11968 = vshll.u32 %v11794, 16
        %v11970 = vrot.slane %v11968, 1
        %v11971 = vshrl.u32 %v11794, 16
        %v11973 = vor.u32 %v11971, %v11970
        %v11975 = vshll.u32 %v11796, 16
        %v11977 = vrot.slane %v11975, 1
        %v11978 = vshrl.u32 %v11796, 16
        %v11980 = vor.u32 %v11978, %v11977
        %v11997 = vrot.slane %v11782, 1
        %v11998 = vrot.slane %v11797, 1
        %v11999 = vsel %vm523, %v11997, %v11998
        %v12000 = vrot.slane %v11784, 1
        %v12001 = vrot.slane %v11798, 1
        %v12002 = vsel %vm523, %v12000, %v12001
        %v12003 = vrot.slane %v11786, 1
        %v12004 = vrot.slane %v11799, 1
        %v12005 = vsel %vm523, %v12003, %v12004
        %v12006 = vrot.slane %v11788, 1
        %v12007 = vrot.slane %v11800, 1
        %v12008 = vsel %vm523, %v12006, %v12007
        %v12009 = vrot.slane %v11790, 1
        %v12010 = vrot.slane %v11801, 1
        %v12011 = vsel %vm523, %v12009, %v12010
        %v12012 = vrot.slane %v11792, 1
        %v12013 = vrot.slane %v11802, 1
        %v12014 = vsel %vm523, %v12012, %v12013
        %v12015 = vrot.slane %v11794, 1
        %v12016 = vrot.slane %v11803, 1
        %v12017 = vsel %vm523, %v12015, %v12016
        %v12018 = vrot.slane %v11796, 1
        %v12019 = vrot.slane %v11804, 1
        %v12020 = vsel %vm523, %v12018, %v12019
        %v12022 = vshll.u32 %v11806, 16
        %v12024 = vrot.slane %v12022, 1
        %v12025 = vshrl.u32 %v11806, 16
        %v12027 = vor.u32 %v12025, %v12024
        %v12029 = vshll.u32 %v11808, 16
        %v12031 = vrot.slane %v12029, 1
        %v12032 = vshrl.u32 %v11808, 16
        %v12034 = vor.u32 %v12032, %v12031
        %v12036 = vshll.u32 %v11810, 16
        %v12038 = vrot.slane %v12036, 1
        %v12039 = vshrl.u32 %v11810, 16
        %v12041 = vor.u32 %v12039, %v12038
        %v12043 = vshll.u32 %v11812, 16
        %v12045 = vrot.slane %v12043, 1
        %v12046 = vshrl.u32 %v11812, 16
        %v12048 = vor.u32 %v12046, %v12045
        %v12050 = vshll.u32 %v11814, 16
        %v12052 = vrot.slane %v12050, 1
        %v12053 = vshrl.u32 %v11814, 16
        %v12055 = vor.u32 %v12053, %v12052
        %v12057 = vshll.u32 %v11816, 16
        %v12059 = vrot.slane %v12057, 1
        %v12060 = vshrl.u32 %v11816, 16
        %v12062 = vor.u32 %v12060, %v12059
        %v12064 = vshll.u32 %v11818, 16
        %v12066 = vrot.slane %v12064, 1
        %v12067 = vshrl.u32 %v11818, 16
        %v12069 = vor.u32 %v12067, %v12066
        %v12071 = vshll.u32 %v11820, 16
        %v12073 = vrot.slane %v12071, 1
        %v12074 = vshrl.u32 %v11820, 16
        %v12076 = vor.u32 %v12074, %v12073
        %v12093 = vrot.slane %v11806, 1
        %v12094 = vrot.slane %v11821, 1
        %v12095 = vsel %vm523, %v12093, %v12094
        %v12096 = vrot.slane %v11808, 1
        %v12097 = vrot.slane %v11822, 1
        %v12098 = vsel %vm523, %v12096, %v12097
        %v12099 = vrot.slane %v11810, 1
        %v12100 = vrot.slane %v11823, 1
        %v12101 = vsel %vm523, %v12099, %v12100
        %v12102 = vrot.slane %v11812, 1
        %v12103 = vrot.slane %v11824, 1
        %v12104 = vsel %vm523, %v12102, %v12103
        %v12105 = vrot.slane %v11814, 1
        %v12106 = vrot.slane %v11825, 1
        %v12107 = vsel %vm523, %v12105, %v12106
        %v12108 = vrot.slane %v11816, 1
        %v12109 = vrot.slane %v11826, 1
        %v12110 = vsel %vm523, %v12108, %v12109
        %v12111 = vrot.slane %v11818, 1
        %v12112 = vrot.slane %v11827, 1
        %v12113 = vsel %vm523, %v12111, %v12112
        %v12114 = vrot.slane %v11820, 1
        %v12115 = vrot.slane %v11828, 1
        %v12116 = vsel %vm523, %v12114, %v12115
        %v12118 = vshrl.u32 %v11757, 16
        %v12120 = vrot.slane %v12118, 7
        %v12121 = vrot.slane %v11833, 7
        %v12122 = vor.u32 %v12121, %v11830
        %v12123 = vsel %vm740, %v12120, %v12122
        %v12125 = vshrl.u32 %v11832, 16
        %v12127 = vrot.slane %v12125, 7
        %v12129 = vshrl.u32 %v11835, 16
        %v12131 = vrot.slane %v12129, 7
        %v12132 = vshll.u32 %v11835, 16
        %v12134 = vor.u32 %v12131, %v12132
        %v12135 = vsel %vm740, %v12127, %v12134
        %v12137 = vshrl.u32 %v11901, 16
        %v12139 = vrot.slane %v12137, 7
        %v12141 = vshrl.u32 %v11903, 16
        %v12143 = vrot.slane %v12141, 7
        %v12144 = vshll.u32 %v11903, 16
        %v12146 = vor.u32 %v12143, %v12144
        %v12147 = vsel %vm740, %v12139, %v12146
        %v12149 = vshrl.u32 %v11781, 16
        %v12151 = vrot.slane %v12149, 7
        %v12152 = vrot.slane %v11929, 7
        %v12153 = vor.u32 %v12152, %v11926
        %v12154 = vsel %vm740, %v12151, %v12153
        %v12156 = vshrl.u32 %v11928, 16
        %v12158 = vrot.slane %v12156, 7
        %v12160 = vshrl.u32 %v11931, 16
        %v12162 = vrot.slane %v12160, 7
        %v12163 = vshll.u32 %v11931, 16
        %v12165 = vor.u32 %v12162, %v12163
        %v12166 = vsel %vm740, %v12158, %v12165
        %v12168 = vshrl.u32 %v11997, 16
        %v12170 = vrot.slane %v12168, 7
        %v12172 = vshrl.u32 %v11999, 16
        %v12174 = vrot.slane %v12172, 7
        %v12175 = vshll.u32 %v11999, 16
        %v12177 = vor.u32 %v12174, %v12175
        %v12178 = vsel %vm740, %v12170, %v12177
        %v12180 = vshrl.u32 %v11805, 16
        %v12182 = vrot.slane %v12180, 7
        %v12183 = vrot.slane %v12025, 7
        %v12184 = vor.u32 %v12183, %v12022
        %v12185 = vsel %vm740, %v12182, %v12184
        %v12187 = vshrl.u32 %v12024, 16
        %v12189 = vrot.slane %v12187, 7
        %v12191 = vshrl.u32 %v12027, 16
        %v12193 = vrot.slane %v12191, 7
        %v12194 = vshll.u32 %v12027, 16
        %v12196 = vor.u32 %v12193, %v12194
        %v12197 = vsel %vm740, %v12189, %v12196
        %v12199 = vshrl.u32 %v12093, 16
        %v12201 = vrot.slane %v12199, 7
        %v12203 = vshrl.u32 %v12095, 16
        %v12205 = vrot.slane %v12203, 7
        %v12206 = vshll.u32 %v12095, 16
        %v12208 = vor.u32 %v12205, %v12206
        %v12209 = vsel %vm740, %v12201, %v12208
        %v12211 = vshrl.u32 %v11759, 16
        %v12213 = vrot.slane %v12211, 7
        %v12214 = vrot.slane %v11840, 7
        %v12215 = vor.u32 %v12214, %v11837
        %v12216 = vsel %vm740, %v12213, %v12215
        %v12218 = vshrl.u32 %v11839, 16
        %v12220 = vrot.slane %v12218, 7
        %v12222 = vshrl.u32 %v11842, 16
        %v12224 = vrot.slane %v12222, 7
        %v12225 = vshll.u32 %v11842, 16
        %v12227 = vor.u32 %v12224, %v12225
        %v12228 = vsel %vm740, %v12220, %v12227
        %v12230 = vshrl.u32 %v11904, 16
        %v12232 = vrot.slane %v12230, 7
        %v12234 = vshrl.u32 %v11906, 16
        %v12236 = vrot.slane %v12234, 7
        %v12237 = vshll.u32 %v11906, 16
        %v12239 = vor.u32 %v12236, %v12237
        %v12240 = vsel %vm740, %v12232, %v12239
        %v12242 = vshrl.u32 %v11783, 16
        %v12244 = vrot.slane %v12242, 7
        %v12245 = vrot.slane %v11936, 7
        %v12246 = vor.u32 %v12245, %v11933
        %v12247 = vsel %vm740, %v12244, %v12246
        %v12249 = vshrl.u32 %v11935, 16
        %v12251 = vrot.slane %v12249, 7
        %v12253 = vshrl.u32 %v11938, 16
        %v12255 = vrot.slane %v12253, 7
        %v12256 = vshll.u32 %v11938, 16
        %v12258 = vor.u32 %v12255, %v12256
        %v12259 = vsel %vm740, %v12251, %v12258
        %v12261 = vshrl.u32 %v12000, 16
        %v12263 = vrot.slane %v12261, 7
        %v12265 = vshrl.u32 %v12002, 16
        %v12267 = vrot.slane %v12265, 7
        %v12268 = vshll.u32 %v12002, 16
        %v12270 = vor.u32 %v12267, %v12268
        %v12271 = vsel %vm740, %v12263, %v12270
        %v12273 = vshrl.u32 %v11807, 16
        %v12275 = vrot.slane %v12273, 7
        %v12276 = vrot.slane %v12032, 7
        %v12277 = vor.u32 %v12276, %v12029
        %v12278 = vsel %vm740, %v12275, %v12277
        %v12280 = vshrl.u32 %v12031, 16
        %v12282 = vrot.slane %v12280, 7
        %v12284 = vshrl.u32 %v12034, 16
        %v12286 = vrot.slane %v12284, 7
        %v12287 = vshll.u32 %v12034, 16
        %v12289 = vor.u32 %v12286, %v12287
        %v12290 = vsel %vm740, %v12282, %v12289
        %v12292 = vshrl.u32 %v12096, 16
        %v12294 = vrot.slane %v12292, 7
        %v12296 = vshrl.u32 %v12098, 16
        %v12298 = vrot.slane %v12296, 7
        %v12299 = vshll.u32 %v12098, 16
        %v12301 = vor.u32 %v12298, %v12299
        %v12302 = vsel %vm740, %v12294, %v12301
        %v12304 = vshrl.u32 %v11761, 16
        %v12306 = vrot.slane %v12304, 7
        %v12307 = vrot.slane %v11847, 7
        %v12308 = vor.u32 %v12307, %v11844
        %v12309 = vsel %vm740, %v12306, %v12308
        %v12311 = vshrl.u32 %v11846, 16
        %v12313 = vrot.slane %v12311, 7
        %v12315 = vshrl.u32 %v11849, 16
        %v12317 = vrot.slane %v12315, 7
        %v12318 = vshll.u32 %v11849, 16
        %v12320 = vor.u32 %v12317, %v12318
        %v12321 = vsel %vm740, %v12313, %v12320
        %v12323 = vshrl.u32 %v11907, 16
        %v12325 = vrot.slane %v12323, 7
        %v12327 = vshrl.u32 %v11909, 16
        %v12329 = vrot.slane %v12327, 7
        %v12330 = vshll.u32 %v11909, 16
        %v12332 = vor.u32 %v12329, %v12330
        %v12333 = vsel %vm740, %v12325, %v12332
        %v12335 = vshrl.u32 %v11785, 16
        %v12337 = vrot.slane %v12335, 7
        %v12338 = vrot.slane %v11943, 7
        %v12339 = vor.u32 %v12338, %v11940
        %v12340 = vsel %vm740, %v12337, %v12339
        %v12342 = vshrl.u32 %v11942, 16
        %v12344 = vrot.slane %v12342, 7
        %v12346 = vshrl.u32 %v11945, 16
        %v12348 = vrot.slane %v12346, 7
        %v12349 = vshll.u32 %v11945, 16
        %v12351 = vor.u32 %v12348, %v12349
        %v12352 = vsel %vm740, %v12344, %v12351
        %v12354 = vshrl.u32 %v12003, 16
        %v12356 = vrot.slane %v12354, 7
        %v12358 = vshrl.u32 %v12005, 16
        %v12360 = vrot.slane %v12358, 7
        %v12361 = vshll.u32 %v12005, 16
        %v12363 = vor.u32 %v12360, %v12361
        %v12364 = vsel %vm740, %v12356, %v12363
        %v12366 = vshrl.u32 %v11809, 16
        %v12368 = vrot.slane %v12366, 7
        %v12369 = vrot.slane %v12039, 7
        %v12370 = vor.u32 %v12369, %v12036
        %v12371 = vsel %vm740, %v12368, %v12370
        %v12373 = vshrl.u32 %v12038, 16
        %v12375 = vrot.slane %v12373, 7
        %v12377 = vshrl.u32 %v12041, 16
        %v12379 = vrot.slane %v12377, 7
        %v12380 = vshll.u32 %v12041, 16
        %v12382 = vor.u32 %v12379, %v12380
        %v12383 = vsel %vm740, %v12375, %v12382
        %v12385 = vshrl.u32 %v12099, 16
        %v12387 = vrot.slane %v12385, 7
        %v12389 = vshrl.u32 %v12101, 16
        %v12391 = vrot.slane %v12389, 7
        %v12392 = vshll.u32 %v12101, 16
        %v12394 = vor.u32 %v12391, %v12392
        %v12395 = vsel %vm740, %v12387, %v12394
        %v12397 = vshrl.u32 %v11763, 16
        %v12399 = vrot.slane %v12397, 7
        %v12400 = vrot.slane %v11854, 7
        %v12401 = vor.u32 %v12400, %v11851
        %v12402 = vsel %vm740, %v12399, %v12401
        %v12404 = vshrl.u32 %v11853, 16
        %v12406 = vrot.slane %v12404, 7
        %v12408 = vshrl.u32 %v11856, 16
        %v12410 = vrot.slane %v12408, 7
        %v12411 = vshll.u32 %v11856, 16
        %v12413 = vor.u32 %v12410, %v12411
        %v12414 = vsel %vm740, %v12406, %v12413
        %v12416 = vshrl.u32 %v11910, 16
        %v12418 = vrot.slane %v12416, 7
        %v12420 = vshrl.u32 %v11912, 16
        %v12422 = vrot.slane %v12420, 7
        %v12423 = vshll.u32 %v11912, 16
        %v12425 = vor.u32 %v12422, %v12423
        %v12426 = vsel %vm740, %v12418, %v12425
        %v12428 = vshrl.u32 %v11787, 16
        %v12430 = vrot.slane %v12428, 7
        %v12431 = vrot.slane %v11950, 7
        %v12432 = vor.u32 %v12431, %v11947
        %v12433 = vsel %vm740, %v12430, %v12432
        %v12435 = vshrl.u32 %v11949, 16
        %v12437 = vrot.slane %v12435, 7
        %v12439 = vshrl.u32 %v11952, 16
        %v12441 = vrot.slane %v12439, 7
        %v12442 = vshll.u32 %v11952, 16
        %v12444 = vor.u32 %v12441, %v12442
        %v12445 = vsel %vm740, %v12437, %v12444
        %v12447 = vshrl.u32 %v12006, 16
        %v12449 = vrot.slane %v12447, 7
        %v12451 = vshrl.u32 %v12008, 16
        %v12453 = vrot.slane %v12451, 7
        %v12454 = vshll.u32 %v12008, 16
        %v12456 = vor.u32 %v12453, %v12454
        %v12457 = vsel %vm740, %v12449, %v12456
        %v12459 = vshrl.u32 %v11811, 16
        %v12461 = vrot.slane %v12459, 7
        %v12462 = vrot.slane %v12046, 7
        %v12463 = vor.u32 %v12462, %v12043
        %v12464 = vsel %vm740, %v12461, %v12463
        %v12466 = vshrl.u32 %v12045, 16
        %v12468 = vrot.slane %v12466, 7
        %v12470 = vshrl.u32 %v12048, 16
        %v12472 = vrot.slane %v12470, 7
        %v12473 = vshll.u32 %v12048, 16
        %v12475 = vor.u32 %v12472, %v12473
        %v12476 = vsel %vm740, %v12468, %v12475
        %v12478 = vshrl.u32 %v12102, 16
        %v12480 = vrot.slane %v12478, 7
        %v12482 = vshrl.u32 %v12104, 16
        %v12484 = vrot.slane %v12482, 7
        %v12485 = vshll.u32 %v12104, 16
        %v12487 = vor.u32 %v12484, %v12485
        %v12488 = vsel %vm740, %v12480, %v12487
        %v12490 = vshrl.u32 %v11765, 16
        %v12492 = vrot.slane %v12490, 7
        %v12493 = vrot.slane %v11861, 7
        %v12494 = vor.u32 %v12493, %v11858
        %v12495 = vsel %vm740, %v12492, %v12494
        %v12497 = vshrl.u32 %v11860, 16
        %v12499 = vrot.slane %v12497, 7
        %v12501 = vshrl.u32 %v11863, 16
        %v12503 = vrot.slane %v12501, 7
        %v12504 = vshll.u32 %v11863, 16
        %v12506 = vor.u32 %v12503, %v12504
        %v12507 = vsel %vm740, %v12499, %v12506
        %v12509 = vshrl.u32 %v11913, 16
        %v12511 = vrot.slane %v12509, 7
        %v12513 = vshrl.u32 %v11915, 16
        %v12515 = vrot.slane %v12513, 7
        %v12516 = vshll.u32 %v11915, 16
        %v12518 = vor.u32 %v12515, %v12516
        %v12519 = vsel %vm740, %v12511, %v12518
        %v12521 = vshrl.u32 %v11789, 16
        %v12523 = vrot.slane %v12521, 7
        %v12524 = vrot.slane %v11957, 7
        %v12525 = vor.u32 %v12524, %v11954
        %v12526 = vsel %vm740, %v12523, %v12525
        %v12528 = vshrl.u32 %v11956, 16
        %v12530 = vrot.slane %v12528, 7
        %v12532 = vshrl.u32 %v11959, 16
        %v12534 = vrot.slane %v12532, 7
        %v12535 = vshll.u32 %v11959, 16
        %v12537 = vor.u32 %v12534, %v12535
        %v12538 = vsel %vm740, %v12530, %v12537
        %v12540 = vshrl.u32 %v12009, 16
        %v12542 = vrot.slane %v12540, 7
        %v12544 = vshrl.u32 %v12011, 16
        %v12546 = vrot.slane %v12544, 7
        %v12547 = vshll.u32 %v12011, 16
        %v12549 = vor.u32 %v12546, %v12547
        %v12550 = vsel %vm740, %v12542, %v12549
        %v12552 = vshrl.u32 %v11813, 16
        %v12554 = vrot.slane %v12552, 7
        %v12555 = vrot.slane %v12053, 7
        %v12556 = vor.u32 %v12555, %v12050
        %v12557 = vsel %vm740, %v12554, %v12556
        %v12559 = vshrl.u32 %v12052, 16
        %v12561 = vrot.slane %v12559, 7
        %v12563 = vshrl.u32 %v12055, 16
        %v12565 = vrot.slane %v12563, 7
        %v12566 = vshll.u32 %v12055, 16
        %v12568 = vor.u32 %v12565, %v12566
        %v12569 = vsel %vm740, %v12561, %v12568
        %v12571 = vshrl.u32 %v12105, 16
        %v12573 = vrot.slane %v12571, 7
        %v12575 = vshrl.u32 %v12107, 16
        %v12577 = vrot.slane %v12575, 7
        %v12578 = vshll.u32 %v12107, 16
        %v12580 = vor.u32 %v12577, %v12578
        %v12581 = vsel %vm740, %v12573, %v12580
        %v12583 = vshrl.u32 %v11767, 16
        %v12585 = vrot.slane %v12583, 7
        %v12586 = vrot.slane %v11868, 7
        %v12587 = vor.u32 %v12586, %v11865
        %v12588 = vsel %vm740, %v12585, %v12587
        %v12590 = vshrl.u32 %v11867, 16
        %v12592 = vrot.slane %v12590, 7
        %v12594 = vshrl.u32 %v11870, 16
        %v12596 = vrot.slane %v12594, 7
        %v12597 = vshll.u32 %v11870, 16
        %v12599 = vor.u32 %v12596, %v12597
        %v12600 = vsel %vm740, %v12592, %v12599
        %v12602 = vshrl.u32 %v11916, 16
        %v12604 = vrot.slane %v12602, 7
        %v12606 = vshrl.u32 %v11918, 16
        %v12608 = vrot.slane %v12606, 7
        %v12609 = vshll.u32 %v11918, 16
        %v12611 = vor.u32 %v12608, %v12609
        %v12612 = vsel %vm740, %v12604, %v12611
        %v12614 = vshrl.u32 %v11791, 16
        %v12616 = vrot.slane %v12614, 7
        %v12617 = vrot.slane %v11964, 7
        %v12618 = vor.u32 %v12617, %v11961
        %v12619 = vsel %vm740, %v12616, %v12618
        %v12621 = vshrl.u32 %v11963, 16
        %v12623 = vrot.slane %v12621, 7
        %v12625 = vshrl.u32 %v11966, 16
        %v12627 = vrot.slane %v12625, 7
        %v12628 = vshll.u32 %v11966, 16
        %v12630 = vor.u32 %v12627, %v12628
        %v12631 = vsel %vm740, %v12623, %v12630
        %v12633 = vshrl.u32 %v12012, 16
        %v12635 = vrot.slane %v12633, 7
        %v12637 = vshrl.u32 %v12014, 16
        %v12639 = vrot.slane %v12637, 7
        %v12640 = vshll.u32 %v12014, 16
        %v12642 = vor.u32 %v12639, %v12640
        %v12643 = vsel %vm740, %v12635, %v12642
        %v12645 = vshrl.u32 %v11815, 16
        %v12647 = vrot.slane %v12645, 7
        %v12648 = vrot.slane %v12060, 7
        %v12649 = vor.u32 %v12648, %v12057
        %v12650 = vsel %vm740, %v12647, %v12649
        %v12652 = vshrl.u32 %v12059, 16
        %v12654 = vrot.slane %v12652, 7
        %v12656 = vshrl.u32 %v12062, 16
        %v12658 = vrot.slane %v12656, 7
        %v12659 = vshll.u32 %v12062, 16
        %v12661 = vor.u32 %v12658, %v12659
        %v12662 = vsel %vm740, %v12654, %v12661
        %v12664 = vshrl.u32 %v12108, 16
        %v12666 = vrot.slane %v12664, 7
        %v12668 = vshrl.u32 %v12110, 16
        %v12670 = vrot.slane %v12668, 7
        %v12671 = vshll.u32 %v12110, 16
        %v12673 = vor.u32 %v12670, %v12671
        %v12674 = vsel %vm740, %v12666, %v12673
        %v12676 = vshrl.u32 %v11769, 16
        %v12678 = vrot.slane %v12676, 7
        %v12679 = vrot.slane %v11875, 7
        %v12680 = vor.u32 %v12679, %v11872
        %v12681 = vsel %vm740, %v12678, %v12680
        %v12683 = vshrl.u32 %v11874, 16
        %v12685 = vrot.slane %v12683, 7
        %v12687 = vshrl.u32 %v11877, 16
        %v12689 = vrot.slane %v12687, 7
        %v12690 = vshll.u32 %v11877, 16
        %v12692 = vor.u32 %v12689, %v12690
        %v12693 = vsel %vm740, %v12685, %v12692
        %v12695 = vshrl.u32 %v11919, 16
        %v12697 = vrot.slane %v12695, 7
        %v12699 = vshrl.u32 %v11921, 16
        %v12701 = vrot.slane %v12699, 7
        %v12702 = vshll.u32 %v11921, 16
        %v12704 = vor.u32 %v12701, %v12702
        %v12705 = vsel %vm740, %v12697, %v12704
        %v12707 = vshrl.u32 %v11793, 16
        %v12709 = vrot.slane %v12707, 7
        %v12710 = vrot.slane %v11971, 7
        %v12711 = vor.u32 %v12710, %v11968
        %v12712 = vsel %vm740, %v12709, %v12711
        %v12714 = vshrl.u32 %v11970, 16
        %v12716 = vrot.slane %v12714, 7
        %v12718 = vshrl.u32 %v11973, 16
        %v12720 = vrot.slane %v12718, 7
        %v12721 = vshll.u32 %v11973, 16
        %v12723 = vor.u32 %v12720, %v12721
        %v12724 = vsel %vm740, %v12716, %v12723
        %v12726 = vshrl.u32 %v12015, 16
        %v12728 = vrot.slane %v12726, 7
        %v12730 = vshrl.u32 %v12017, 16
        %v12732 = vrot.slane %v12730, 7
        %v12733 = vshll.u32 %v12017, 16
        %v12735 = vor.u32 %v12732, %v12733
        %v12736 = vsel %vm740, %v12728, %v12735
        %v12738 = vshrl.u32 %v11817, 16
        %v12740 = vrot.slane %v12738, 7
        %v12741 = vrot.slane %v12067, 7
        %v12742 = vor.u32 %v12741, %v12064
        %v12743 = vsel %vm740, %v12740, %v12742
        %v12745 = vshrl.u32 %v12066, 16
        %v12747 = vrot.slane %v12745, 7
        %v12749 = vshrl.u32 %v12069, 16
        %v12751 = vrot.slane %v12749, 7
        %v12752 = vshll.u32 %v12069, 16
        %v12754 = vor.u32 %v12751, %v12752
        %v12755 = vsel %vm740, %v12747, %v12754
        %v12757 = vshrl.u32 %v12111, 16
        %v12759 = vrot.slane %v12757, 7
        %v12761 = vshrl.u32 %v12113, 16
        %v12763 = vrot.slane %v12761, 7
        %v12764 = vshll.u32 %v12113, 16
        %v12766 = vor.u32 %v12763, %v12764
        %v12767 = vsel %vm740, %v12759, %v12766
        %v12769 = vshrl.u32 %v11771, 16
        %v12771 = vrot.slane %v12769, 7
        %v12772 = vrot.slane %v11882, 7
        %v12773 = vor.u32 %v12772, %v11879
        %v12774 = vsel %vm740, %v12771, %v12773
        %v12776 = vshrl.u32 %v11881, 16
        %v12778 = vrot.slane %v12776, 7
        %v12780 = vshrl.u32 %v11884, 16
        %v12782 = vrot.slane %v12780, 7
        %v12783 = vshll.u32 %v11884, 16
        %v12785 = vor.u32 %v12782, %v12783
        %v12786 = vsel %vm740, %v12778, %v12785
        %v12788 = vshrl.u32 %v11922, 16
        %v12790 = vrot.slane %v12788, 7
        %v12792 = vshrl.u32 %v11924, 16
        %v12794 = vrot.slane %v12792, 7
        %v12795 = vshll.u32 %v11924, 16
        %v12797 = vor.u32 %v12794, %v12795
        %v12798 = vsel %vm740, %v12790, %v12797
        %v12800 = vshrl.u32 %v11795, 16
        %v12802 = vrot.slane %v12800, 7
        %v12803 = vrot.slane %v11978, 7
        %v12804 = vor.u32 %v12803, %v11975
        %v12805 = vsel %vm740, %v12802, %v12804
        %v12807 = vshrl.u32 %v11977, 16
        %v12809 = vrot.slane %v12807, 7
        %v12811 = vshrl.u32 %v11980, 16
        %v12813 = vrot.slane %v12811, 7
        %v12814 = vshll.u32 %v11980, 16
        %v12816 = vor.u32 %v12813, %v12814
        %v12817 = vsel %vm740, %v12809, %v12816
        %v12819 = vshrl.u32 %v12018, 16
        %v12821 = vrot.slane %v12819, 7
        %v12823 = vshrl.u32 %v12020, 16
        %v12825 = vrot.slane %v12823, 7
        %v12826 = vshll.u32 %v12020, 16
        %v12828 = vor.u32 %v12825, %v12826
        %v12829 = vsel %vm740, %v12821, %v12828
        %v12831 = vshrl.u32 %v11819, 16
        %v12833 = vrot.slane %v12831, 7
        %v12834 = vrot.slane %v12074, 7
        %v12835 = vor.u32 %v12834, %v12071
        %v12836 = vsel %vm740, %v12833, %v12835
        %v12838 = vshrl.u32 %v12073, 16
        %v12840 = vrot.slane %v12838, 7
        %v12842 = vshrl.u32 %v12076, 16
        %v12844 = vrot.slane %v12842, 7
        %v12845 = vshll.u32 %v12076, 16
        %v12847 = vor.u32 %v12844, %v12845
        %v12848 = vsel %vm740, %v12840, %v12847
        %v12850 = vshrl.u32 %v12114, 16
        %v12852 = vrot.slane %v12850, 7
        %v12854 = vshrl.u32 %v12116, 16
        %v12856 = vrot.slane %v12854, 7
        %v12857 = vshll.u32 %v12116, 16
        %v12859 = vor.u32 %v12856, %v12857
        %v12860 = vsel %vm740, %v12852, %v12859
        %v12933 = vld [vmem:[%s10671] sm:$0xf]
        %v12934 = vld [vmem:[%s10671 + $0x4] sm:$0xf]
        %v12935 = vld [vmem:[%s10671 + $0x8] sm:$0xf]
        %v12936 = vld [vmem:[%s10671 + $0xc] sm:$0xf]
        %v12937 = vld [vmem:[%s10671 + $0x10] sm:$0xf]
        %v12938 = vld [vmem:[%s10671 + $0x14] sm:$0xf]
        %v12939 = vld [vmem:[%s10671 + $0x18] sm:$0xf]
        %v12940 = vld [vmem:[%s10671 + $0x1c] sm:$0xf]
        %v12941 = vld [vmem:[%s10671 + $0x20] sm:$0xf]
        %v12942 = vld [vmem:[%s10671 + $0x24] sm:$0xf]
        %v12943 = vld [vmem:[%s10671 + $0x28] sm:$0xf]
        %v12944 = vld [vmem:[%s10671 + $0x2c] sm:$0xf]
        %v12945 = vld [vmem:[%s10671 + $0x30] sm:$0xf]
        %v12946 = vld [vmem:[%s10671 + $0x34] sm:$0xf]
        %v12947 = vld [vmem:[%s10671 + $0x38] sm:$0xf]
        %v12948 = vld [vmem:[%s10671 + $0x3c] sm:$0xf]
        %v12949 = vld [vmem:[%s10671 + $0x40] sm:$0xf]
        %v12950 = vld [vmem:[%s10671 + $0x44] sm:$0xf]
        %v12951 = vld [vmem:[%s10671 + $0x48] sm:$0xf]
        %v12952 = vld [vmem:[%s10671 + $0x4c] sm:$0xf]
        %v12953 = vld [vmem:[%s10671 + $0x50] sm:$0xf]
        %v12954 = vld [vmem:[%s10671 + $0x54] sm:$0xf]
        %v12955 = vld [vmem:[%s10671 + $0x58] sm:$0xf]
        %v12956 = vld [vmem:[%s10671 + $0x5c] sm:$0xf]
        %v12957 = vld [vmem:[%s10671 + $0x60] sm:$0xf]
        %v12958 = vld [vmem:[%s10671 + $0x64] sm:$0xf]
        %v12959 = vld [vmem:[%s10671 + $0x68] sm:$0xf]
        %v12960 = vld [vmem:[%s10671 + $0x6c] sm:$0xf]
        %v12961 = vld [vmem:[%s10671 + $0x70] sm:$0xf]
        %v12962 = vld [vmem:[%s10671 + $0x74] sm:$0xf]
        %v12963 = vld [vmem:[%s10671 + $0x78] sm:$0xf]
        %v12964 = vld [vmem:[%s10671 + $0x7c] sm:$0xf]
        %v12965 = vld [vmem:[%s10671 + $0x80] sm:$0xf]
        %v12966 = vld [vmem:[%s10671 + $0x84] sm:$0xf]
        %v12967 = vld [vmem:[%s10671 + $0x88] sm:$0xf]
        %v12968 = vld [vmem:[%s10671 + $0x8c] sm:$0xf]
        %v12969 = vld [vmem:[%s10671 + $0x90] sm:$0xf]
        %v12970 = vld [vmem:[%s10671 + $0x94] sm:$0xf]
        %v12971 = vld [vmem:[%s10671 + $0x98] sm:$0xf]
        %v12972 = vld [vmem:[%s10671 + $0x9c] sm:$0xf]
        %v12973 = vld [vmem:[%s10671 + $0xa0] sm:$0xf]
        %v12974 = vld [vmem:[%s10671 + $0xa4] sm:$0xf]
        %v12975 = vld [vmem:[%s10671 + $0xa8] sm:$0xf]
        %v12976 = vld [vmem:[%s10671 + $0xac] sm:$0xf]
        %v12977 = vld [vmem:[%s10671 + $0xb0] sm:$0xf]
        %v12978 = vld [vmem:[%s10671 + $0xb4] sm:$0xf]
        %v12979 = vld [vmem:[%s10671 + $0xb8] sm:$0xf]
        %v12980 = vld [vmem:[%s10671 + $0xbc] sm:$0xf]
        %v12981 = vld [vmem:[%s10671 + $0xc0] sm:$0xf]
        %v12982 = vld [vmem:[%s10671 + $0xc4] sm:$0xf]
        %v12983 = vld [vmem:[%s10671 + $0xc8] sm:$0xf]
        %v12984 = vld [vmem:[%s10671 + $0xcc] sm:$0xf]
        %v12985 = vld [vmem:[%s10671 + $0xd0] sm:$0xf]
        %v12986 = vld [vmem:[%s10671 + $0xd4] sm:$0xf]
        %v12987 = vld [vmem:[%s10671 + $0xd8] sm:$0xf]
        %v12988 = vld [vmem:[%s10671 + $0xdc] sm:$0xf]
        %v12989 = vld [vmem:[%s10671 + $0xe0] sm:$0xf]
        %v12990 = vld [vmem:[%s10671 + $0xe4] sm:$0xf]
        %v12991 = vld [vmem:[%s10671 + $0xe8] sm:$0xf]
        %v12992 = vld [vmem:[%s10671 + $0xec] sm:$0xf]
        %v12993 = vld [vmem:[%s10671 + $0xf0] sm:$0xf]
        %v12994 = vld [vmem:[%s10671 + $0xf4] sm:$0xf]
        %v12995 = vld [vmem:[%s10671 + $0xf8] sm:$0xf]
        %v12996 = vld [vmem:[%s10671 + $0xfc] sm:$0xf]
        %v12997 = vld [vmem:[%s10671 + $0x100] sm:$0xf]
        %v12998 = vld [vmem:[%s10671 + $0x104] sm:$0xf]
        %v12999 = vld [vmem:[%s10671 + $0x108] sm:$0xf]
        %v13000 = vld [vmem:[%s10671 + $0x10c] sm:$0xf]
        %v13001 = vld [vmem:[%s10671 + $0x110] sm:$0xf]
        %v13002 = vld [vmem:[%s10671 + $0x114] sm:$0xf]
        %v13003 = vld [vmem:[%s10671 + $0x118] sm:$0xf]
        %v13004 = vld [vmem:[%s10671 + $0x11c] sm:$0xf]
        %v13005 = vld [vmem:[%s10671 + $0x120] sm:$0xf]
        %v13006 = vld [vmem:[%s10671 + $0x124] sm:$0xf]
        %v13007 = vld [vmem:[%s10671 + $0x128] sm:$0xf]
        %v13008 = vld [vmem:[%s10671 + $0x12c] sm:$0xf]
        %v13009 = vld [vmem:[%s10671 + $0x130] sm:$0xf]
        %v13010 = vld [vmem:[%s10671 + $0x134] sm:$0xf]
        %v13011 = vld [vmem:[%s10671 + $0x138] sm:$0xf]
        %v13012 = vld [vmem:[%s10671 + $0x13c] sm:$0xf]
        %v13013 = vld [vmem:[%s10671 + $0x140] sm:$0xf]
        %v13014 = vld [vmem:[%s10671 + $0x144] sm:$0xf]
        %v13015 = vld [vmem:[%s10671 + $0x148] sm:$0xf]
        %v13016 = vld [vmem:[%s10671 + $0x14c] sm:$0xf]
        %v13017 = vld [vmem:[%s10671 + $0x150] sm:$0xf]
        %v13018 = vld [vmem:[%s10671 + $0x154] sm:$0xf]
        %v13019 = vld [vmem:[%s10671 + $0x158] sm:$0xf]
        %v13020 = vld [vmem:[%s10671 + $0x15c] sm:$0xf]
        %v13021 = vld [vmem:[%s10671 + $0x160] sm:$0xf]
        %v13022 = vld [vmem:[%s10671 + $0x164] sm:$0xf]
        %v13023 = vld [vmem:[%s10671 + $0x168] sm:$0xf]
        %v13024 = vld [vmem:[%s10671 + $0x16c] sm:$0xf]
        %v13025 = vld [vmem:[%s10671 + $0x170] sm:$0xf]
        %v13026 = vld [vmem:[%s10671 + $0x174] sm:$0xf]
        %v13027 = vld [vmem:[%s10671 + $0x178] sm:$0xf]
        %v13028 = vld [vmem:[%s10671 + $0x17c] sm:$0xf]
        %v13029 = vld [vmem:[%s10671 + $0x180] sm:$0xf]
        %v13030 = vld [vmem:[%s10671 + $0x184] sm:$0xf]
        %v13031 = vld [vmem:[%s10671 + $0x188] sm:$0xf]
        %v13032 = vld [vmem:[%s10671 + $0x18c] sm:$0xf]
        %v13033 = vld [vmem:[%s10671 + $0x190] sm:$0xf]
        %v13034 = vld [vmem:[%s10671 + $0x194] sm:$0xf]
        %v13035 = vld [vmem:[%s10671 + $0x198] sm:$0xf]
        %v13036 = vld [vmem:[%s10671 + $0x19c] sm:$0xf]
        %v13037 = vld [vmem:[%s10671 + $0x1a0] sm:$0xf]
        %v13038 = vld [vmem:[%s10671 + $0x1a4] sm:$0xf]
        %v13039 = vld [vmem:[%s10671 + $0x1a8] sm:$0xf]
        %v13040 = vld [vmem:[%s10671 + $0x1ac] sm:$0xf]
        %v13041 = vld [vmem:[%s10671 + $0x1b0] sm:$0xf]
        %v13042 = vld [vmem:[%s10671 + $0x1b4] sm:$0xf]
        %v13043 = vld [vmem:[%s10671 + $0x1b8] sm:$0xf]
        %v13044 = vld [vmem:[%s10671 + $0x1bc] sm:$0xf]
        %v13045 = vld [vmem:[%s10671 + $0x1c0] sm:$0xf]
        %v13046 = vld [vmem:[%s10671 + $0x1c4] sm:$0xf]
        %v13047 = vld [vmem:[%s10671 + $0x1c8] sm:$0xf]
        %v13048 = vld [vmem:[%s10671 + $0x1cc] sm:$0xf]
        %v13049 = vld [vmem:[%s10671 + $0x1d0] sm:$0xf]
        %v13050 = vld [vmem:[%s10671 + $0x1d4] sm:$0xf]
        %v13051 = vld [vmem:[%s10671 + $0x1d8] sm:$0xf]
        %v13052 = vld [vmem:[%s10671 + $0x1dc] sm:$0xf]
        %v13053 = vld [vmem:[%s10671 + $0x1e0] sm:$0xf]
        %v13054 = vld [vmem:[%s10671 + $0x1e4] sm:$0xf]
        %v13055 = vld [vmem:[%s10671 + $0x1e8] sm:$0xf]
        %v13056 = vld [vmem:[%s10671 + $0x1ec] sm:$0xf]
        %v13057 = vld [vmem:[%s10671 + $0x1f0] sm:$0xf]
        %v13058 = vld [vmem:[%s10671 + $0x1f4] sm:$0xf]
        %v13059 = vld [vmem:[%s10671 + $0x1f8] sm:$0xf]
        %v13060 = vld [vmem:[%s10671 + $0x1fc] sm:$0xf]
        %v13061 = vld [vmem:[%s10671 + $0x200] sm:$0xf]
        %v13062 = vld [vmem:[%s10671 + $0x204] sm:$0xf]
        %v13063 = vld [vmem:[%s10671 + $0x208] sm:$0xf]
        %v13064 = vld [vmem:[%s10671 + $0x20c] sm:$0xf]
        %v13065 = vld [vmem:[%s10671 + $0x210] sm:$0xf]
        %v13066 = vld [vmem:[%s10671 + $0x214] sm:$0xf]
        %v13067 = vld [vmem:[%s10671 + $0x218] sm:$0xf]
        %v13068 = vld [vmem:[%s10671 + $0x21c] sm:$0xf]
        %v13069 = vld [vmem:[%s10671 + $0x220] sm:$0xf]
        %v13070 = vld [vmem:[%s10671 + $0x224] sm:$0xf]
        %v13071 = vld [vmem:[%s10671 + $0x228] sm:$0xf]
        %v13072 = vld [vmem:[%s10671 + $0x22c] sm:$0xf]
        %v13073 = vld [vmem:[%s10671 + $0x230] sm:$0xf]
        %v13074 = vld [vmem:[%s10671 + $0x234] sm:$0xf]
        %v13075 = vld [vmem:[%s10671 + $0x238] sm:$0xf]
        %v13076 = vld [vmem:[%s10671 + $0x23c] sm:$0xf]
        %v13077 = vld [vmem:[%s10816] sm:$0x1]
        %v13079 = vlaneseq
        %v13080 = vshrl.u32 %v13079, 7
        %v13081 = vsub.s32 0, %v13080
        %v13082 = vrot.slane %v13077, %v13081
        %v13228 = vunpack.c.l.b16 %v12933
        %v13229 = vunpack.c.l.b16 %v12934
        %v13230 = vunpack.c.l.b16 %v12935
        %v13231 = vunpack.c.l.b16 %v12936
        %v13232 = vunpack.c.l.b16 %v12937
        %v13233 = vunpack.c.l.b16 %v12938
        %v13234 = vunpack.c.l.b16 %v12939
        %v13235 = vunpack.c.l.b16 %v12940
        %v13236 = vunpack.c.l.b16 %v12941
        %v13237 = vunpack.c.l.b16 %v12942
        %v13238 = vunpack.c.l.b16 %v12943
        %v13239 = vunpack.c.l.b16 %v12944
        %v13240 = vunpack.c.l.b16 %v12945
        %v13241 = vunpack.c.l.b16 %v12946
        %v13242 = vunpack.c.l.b16 %v12947
        %v13243 = vunpack.c.l.b16 %v12948
        %v13244 = vunpack.c.l.b16 %v12949
        %v13245 = vunpack.c.l.b16 %v12950
        %v13246 = vunpack.c.l.b16 %v12951
        %v13247 = vunpack.c.l.b16 %v12952
        %v13248 = vunpack.c.l.b16 %v12953
        %v13249 = vunpack.c.l.b16 %v12954
        %v13250 = vunpack.c.l.b16 %v12955
        %v13251 = vunpack.c.l.b16 %v12956
        %v13252 = vunpack.c.l.b16 %v12957
        %v13253 = vunpack.c.l.b16 %v12958
        %v13254 = vunpack.c.l.b16 %v12959
        %v13255 = vunpack.c.l.b16 %v12960
        %v13256 = vunpack.c.l.b16 %v12961
        %v13257 = vunpack.c.l.b16 %v12962
        %v13258 = vunpack.c.l.b16 %v12963
        %v13259 = vunpack.c.l.b16 %v12964
        %v13260 = vunpack.c.l.b16 %v12965
        %v13261 = vunpack.c.l.b16 %v12966
        %v13262 = vunpack.c.l.b16 %v12967
        %v13263 = vunpack.c.l.b16 %v12968
        %v13264 = vunpack.c.l.b16 %v12969
        %v13265 = vunpack.c.l.b16 %v12970
        %v13266 = vunpack.c.l.b16 %v12971
        %v13267 = vunpack.c.l.b16 %v12972
        %v13268 = vunpack.c.l.b16 %v12973
        %v13269 = vunpack.c.l.b16 %v12974
        %v13270 = vunpack.c.l.b16 %v12975
        %v13271 = vunpack.c.l.b16 %v12976
        %v13272 = vunpack.c.l.b16 %v12977
        %v13273 = vunpack.c.l.b16 %v12978
        %v13274 = vunpack.c.l.b16 %v12979
        %v13275 = vunpack.c.l.b16 %v12980
        %v13276 = vunpack.c.l.b16 %v12981
        %v13277 = vunpack.c.l.b16 %v12982
        %v13278 = vunpack.c.l.b16 %v12983
        %v13279 = vunpack.c.l.b16 %v12984
        %v13280 = vunpack.c.l.b16 %v12985
        %v13281 = vunpack.c.l.b16 %v12986
        %v13282 = vunpack.c.l.b16 %v12987
        %v13283 = vunpack.c.l.b16 %v12988
        %v13284 = vunpack.c.l.b16 %v12989
        %v13285 = vunpack.c.l.b16 %v12990
        %v13286 = vunpack.c.l.b16 %v12991
        %v13287 = vunpack.c.l.b16 %v12992
        %v13288 = vunpack.c.l.b16 %v12993
        %v13289 = vunpack.c.l.b16 %v12994
        %v13290 = vunpack.c.l.b16 %v12995
        %v13291 = vunpack.c.l.b16 %v12996
        %v13292 = vunpack.c.l.b16 %v12997
        %v13293 = vunpack.c.l.b16 %v12998
        %v13294 = vunpack.c.l.b16 %v12999
        %v13295 = vunpack.c.l.b16 %v13000
        %v13296 = vunpack.c.l.b16 %v13001
        %v13297 = vunpack.c.l.b16 %v13002
        %v13298 = vunpack.c.l.b16 %v13003
        %v13299 = vunpack.c.l.b16 %v13004
        %v13300 = vunpack.c.l.b16 %v13005
        %v13301 = vunpack.c.l.b16 %v13006
        %v13302 = vunpack.c.l.b16 %v13007
        %v13303 = vunpack.c.l.b16 %v13008
        %v13304 = vunpack.c.l.b16 %v13009
        %v13305 = vunpack.c.l.b16 %v13010
        %v13306 = vunpack.c.l.b16 %v13011
        %v13307 = vunpack.c.l.b16 %v13012
        %v13308 = vunpack.c.l.b16 %v13013
        %v13309 = vunpack.c.l.b16 %v13014
        %v13310 = vunpack.c.l.b16 %v13015
        %v13311 = vunpack.c.l.b16 %v13016
        %v13312 = vunpack.c.l.b16 %v13017
        %v13313 = vunpack.c.l.b16 %v13018
        %v13314 = vunpack.c.l.b16 %v13019
        %v13315 = vunpack.c.l.b16 %v13020
        %v13316 = vunpack.c.l.b16 %v13021
        %v13317 = vunpack.c.l.b16 %v13022
        %v13318 = vunpack.c.l.b16 %v13023
        %v13319 = vunpack.c.l.b16 %v13024
        %v13320 = vunpack.c.l.b16 %v13025
        %v13321 = vunpack.c.l.b16 %v13026
        %v13322 = vunpack.c.l.b16 %v13027
        %v13323 = vunpack.c.l.b16 %v13028
        %v13324 = vunpack.c.l.b16 %v13029
        %v13325 = vunpack.c.l.b16 %v13030
        %v13326 = vunpack.c.l.b16 %v13031
        %v13327 = vunpack.c.l.b16 %v13032
        %v13328 = vunpack.c.l.b16 %v13033
        %v13329 = vunpack.c.l.b16 %v13034
        %v13330 = vunpack.c.l.b16 %v13035
        %v13331 = vunpack.c.l.b16 %v13036
        %v13332 = vunpack.c.l.b16 %v13037
        %v13333 = vunpack.c.l.b16 %v13038
        %v13334 = vunpack.c.l.b16 %v13039
        %v13335 = vunpack.c.l.b16 %v13040
        %v13336 = vunpack.c.l.b16 %v13041
        %v13337 = vunpack.c.l.b16 %v13042
        %v13338 = vunpack.c.l.b16 %v13043
        %v13339 = vunpack.c.l.b16 %v13044
        %v13340 = vunpack.c.l.b16 %v13045
        %v13341 = vunpack.c.l.b16 %v13046
        %v13342 = vunpack.c.l.b16 %v13047
        %v13343 = vunpack.c.l.b16 %v13048
        %v13344 = vunpack.c.l.b16 %v13049
        %v13345 = vunpack.c.l.b16 %v13050
        %v13346 = vunpack.c.l.b16 %v13051
        %v13347 = vunpack.c.l.b16 %v13052
        %v13348 = vunpack.c.l.b16 %v13053
        %v13349 = vunpack.c.l.b16 %v13054
        %v13350 = vunpack.c.l.b16 %v13055
        %v13351 = vunpack.c.l.b16 %v13056
        %v13352 = vunpack.c.l.b16 %v13057
        %v13353 = vunpack.c.l.b16 %v13058
        %v13354 = vunpack.c.l.b16 %v13059
        %v13355 = vunpack.c.l.b16 %v13060
        %v13356 = vunpack.c.l.b16 %v13061
        %v13357 = vunpack.c.l.b16 %v13062
        %v13358 = vunpack.c.l.b16 %v13063
        %v13359 = vunpack.c.l.b16 %v13064
        %v13360 = vunpack.c.l.b16 %v13065
        %v13361 = vunpack.c.l.b16 %v13066
        %v13362 = vunpack.c.l.b16 %v13067
        %v13363 = vunpack.c.l.b16 %v13068
        %v13364 = vunpack.c.l.b16 %v13069
        %v13365 = vunpack.c.l.b16 %v13070
        %v13366 = vunpack.c.l.b16 %v13071
        %v13367 = vunpack.c.l.b16 %v13072
        %v13368 = vunpack.c.l.b16 %v13073
        %v13369 = vunpack.c.l.b16 %v13074
        %v13370 = vunpack.c.l.b16 %v13075
        %v13371 = vunpack.c.l.b16 %v13076
        %v13372 = vpack.c.b16 %v13229, %v13228
        %v13373 = vpack.c.b16 %v13231, %v13230
        %v13374 = vpack.c.b16 %v13233, %v13232
        %v13375 = vpack.c.b16 %v13235, %v13234
        %v13376 = vpack.c.b16 %v13237, %v13236
        %v13377 = vpack.c.b16 %v13239, %v13238
        %v13378 = vpack.c.b16 %v13241, %v13240
        %v13379 = vpack.c.b16 %v13243, %v13242
        %v13380 = vpack.c.b16 %v13245, %v13244
        %v13381 = vpack.c.b16 %v13247, %v13246
        %v13382 = vpack.c.b16 %v13249, %v13248
        %v13383 = vpack.c.b16 %v13251, %v13250
        %v13384 = vpack.c.b16 %v13253, %v13252
        %v13385 = vpack.c.b16 %v13255, %v13254
        %v13386 = vpack.c.b16 %v13257, %v13256
        %v13387 = vpack.c.b16 %v13259, %v13258
        %v13388 = vpack.c.b16 %v13261, %v13260
        %v13389 = vpack.c.b16 %v13263, %v13262
        %v13390 = vpack.c.b16 %v13265, %v13264
        %v13391 = vpack.c.b16 %v13267, %v13266
        %v13392 = vpack.c.b16 %v13269, %v13268
        %v13393 = vpack.c.b16 %v13271, %v13270
        %v13394 = vpack.c.b16 %v13273, %v13272
        %v13395 = vpack.c.b16 %v13275, %v13274
        %v13396 = vpack.c.b16 %v13277, %v13276
        %v13397 = vpack.c.b16 %v13279, %v13278
        %v13398 = vpack.c.b16 %v13281, %v13280
        %v13399 = vpack.c.b16 %v13283, %v13282
        %v13400 = vpack.c.b16 %v13285, %v13284
        %v13401 = vpack.c.b16 %v13287, %v13286
        %v13402 = vpack.c.b16 %v13289, %v13288
        %v13403 = vpack.c.b16 %v13291, %v13290
        %v13404 = vpack.c.b16 %v13293, %v13292
        %v13405 = vpack.c.b16 %v13295, %v13294
        %v13406 = vpack.c.b16 %v13297, %v13296
        %v13407 = vpack.c.b16 %v13299, %v13298
        %v13408 = vpack.c.b16 %v13301, %v13300
        %v13409 = vpack.c.b16 %v13303, %v13302
        %v13410 = vpack.c.b16 %v13305, %v13304
        %v13411 = vpack.c.b16 %v13307, %v13306
        %v13412 = vpack.c.b16 %v13309, %v13308
        %v13413 = vpack.c.b16 %v13311, %v13310
        %v13414 = vpack.c.b16 %v13313, %v13312
        %v13415 = vpack.c.b16 %v13315, %v13314
        %v13416 = vpack.c.b16 %v13317, %v13316
        %v13417 = vpack.c.b16 %v13319, %v13318
        %v13418 = vpack.c.b16 %v13321, %v13320
        %v13419 = vpack.c.b16 %v13323, %v13322
        %v13420 = vpack.c.b16 %v13325, %v13324
        %v13421 = vpack.c.b16 %v13327, %v13326
        %v13422 = vpack.c.b16 %v13329, %v13328
        %v13423 = vpack.c.b16 %v13331, %v13330
        %v13424 = vpack.c.b16 %v13333, %v13332
        %v13425 = vpack.c.b16 %v13335, %v13334
        %v13426 = vpack.c.b16 %v13337, %v13336
        %v13427 = vpack.c.b16 %v13339, %v13338
        %v13428 = vpack.c.b16 %v13341, %v13340
        %v13429 = vpack.c.b16 %v13343, %v13342
        %v13430 = vpack.c.b16 %v13345, %v13344
        %v13431 = vpack.c.b16 %v13347, %v13346
        %v13432 = vpack.c.b16 %v13349, %v13348
        %v13433 = vpack.c.b16 %v13351, %v13350
        %v13434 = vpack.c.b16 %v13353, %v13352
        %v13435 = vpack.c.b16 %v13355, %v13354
        %v13436 = vpack.c.b16 %v13357, %v13356
        %v13437 = vpack.c.b16 %v13359, %v13358
        %v13438 = vpack.c.b16 %v13361, %v13360
        %v13439 = vpack.c.b16 %v13363, %v13362
        %v13440 = vpack.c.b16 %v13365, %v13364
        %v13441 = vpack.c.b16 %v13367, %v13366
        %v13442 = vpack.c.b16 %v13369, %v13368
        %v13443 = vpack.c.b16 %v13371, %v13370
        %13516 = vmatprep.subr.bf16.mxu0 0
        %13517 = vmatpush1.bf16.msra.mxu0 %v13372
        %13518 = vmatprep.subr.bf16.mxu0 0
        %13519 = vmatpush1.bf16.msra.mxu0 %v13373
        %13520 = vmatprep.subr.bf16.mxu0 0
        %13521 = vmatpush1.bf16.msra.mxu0 %v13374
        %13522 = vmatprep.subr.bf16.mxu0 0
        %13523 = vmatpush1.bf16.msra.mxu0 %v13375
        %13524 = vmatprep.subr.bf16.mxu0 0
        %13525 = vmatpush1.bf16.msra.mxu0 %v13376
        %13526 = vmatprep.subr.bf16.mxu0 0
        %13527 = vmatpush1.bf16.msra.mxu0 %v13377
        %13528 = vmatprep.subr.bf16.mxu0 0
        %13529 = vmatpush1.bf16.msra.mxu0 %v13378
        %13530 = vmatprep.subr.bf16.mxu0 0
        %13531 = vmatpush1.bf16.msra.mxu0 %v13379
        %13532 = vmatprep.subr.bf16.mxu0 0
        %13533 = vmatpush1.bf16.msra.mxu0 %v13380
        %13534 = vmatprep.subr.bf16.mxu0 0
        %13535 = vmatpush1.bf16.msra.mxu0 %v13381
        %13536 = vmatprep.subr.bf16.mxu0 0
        %13537 = vmatpush1.bf16.msra.mxu0 %v13382
        %13538 = vmatprep.subr.bf16.mxu0 0
        %13539 = vmatpush1.bf16.msra.mxu0 %v13383
        %13540 = vmatprep.subr.bf16.mxu0 0
        %13541 = vmatpush1.bf16.msra.mxu0 %v13384
        %13542 = vmatprep.subr.bf16.mxu0 0
        %13543 = vmatpush1.bf16.msra.mxu0 %v13385
        %13544 = vmatprep.subr.bf16.mxu0 0
        %13545 = vmatpush1.bf16.msra.mxu0 %v13386
        %13546 = vmatprep.subr.bf16.mxu0 0
        %13547 = vmatpush1.bf16.msra.mxu0 %v13387
        %13548 = vmatprep.mubr.bf16.mxu0 %v12135
        %13549 = vmatmul.mubr.bf16.gmra.mrb[0].mxu0 %v12123
        %v13550 = vpop.f32.mrb[0].mxu0
        %v13551 = vadd.f32 %v13082, %v13550
        %v13552 = vpop.f32.mrb[0].mxu0
        %v13553 = vpop.f32.mrb[0].mxu0
        %v13554 = vadd.f32 %v13082, %v13553
        %v13555 = vpop.f32.mrb[0].mxu0
        %13556 = vmatprep.mubr.bf16.mxu0 %v12228
        %13557 = vmatmul.mubr.bf16.gmra.mrb[0].mxu0 %v12216
        %v13558 = vpop.f32.mrb[0].mxu0
        %v13559 = vadd.f32 %v13082, %v13558
        %v13560 = vpop.f32.mrb[0].mxu0
        %v13561 = vpop.f32.mrb[0].mxu0
        %v13562 = vadd.f32 %v13082, %v13561
        %v13563 = vpop.f32.mrb[0].mxu0
        %13564 = vmatprep.mubr.bf16.mxu0 %v12321
        %13565 = vmatmul.mubr.bf16.gmra.mrb[0].mxu0 %v12309
        %v13566 = vpop.f32.mrb[0].mxu0
        %v13567 = vadd.f32 %v13082, %v13566
        %v13568 = vpop.f32.mrb[0].mxu0
        %v13569 = vpop.f32.mrb[0].mxu0
        %v13570 = vadd.f32 %v13082, %v13569
        %v13571 = vpop.f32.mrb[0].mxu0
        %13572 = vmatprep.mubr.bf16.mxu0 %v12414
        %13573 = vmatmul.mubr.bf16.gmra.mrb[0].mxu0 %v12402
        %v13574 = vpop.f32.mrb[0].mxu0
        %v13575 = vadd.f32 %v13082, %v13574
        %v13576 = vpop.f32.mrb[0].mxu0
        %v13577 = vpop.f32.mrb[0].mxu0
        %v13578 = vadd.f32 %v13082, %v13577
        %v13579 = vpop.f32.mrb[0].mxu0
        %13580 = vmatprep.mubr.bf16.mxu0 %v12507
        %13581 = vmatmul.mubr.bf16.gmra.mrb[0].mxu0 %v12495
        %v13582 = vpop.f32.mrb[0].mxu0
        %v13583 = vadd.f32 %v13082, %v13582
        %v13584 = vpop.f32.mrb[0].mxu0
        %v13585 = vpop.f32.mrb[0].mxu0
        %v13586 = vadd.f32 %v13082, %v13585
        %v13587 = vpop.f32.mrb[0].mxu0
        %13588 = vmatprep.mubr.bf16.mxu0 %v12600
        %13589 = vmatmul.mubr.bf16.gmra.mrb[0].mxu0 %v12588
        %v13590 = vpop.f32.mrb[0].mxu0
        %v13591 = vadd.f32 %v13082, %v13590
        %v13592 = vpop.f32.mrb[0].mxu0
        %v13593 = vpop.f32.mrb[0].mxu0
        %v13594 = vadd.f32 %v13082, %v13593
        %v13595 = vpop.f32.mrb[0].mxu0
        %13596 = vmatprep.mubr.bf16.mxu0 %v12693
        %13597 = vmatmul.mubr.bf16.gmra.mrb[0].mxu0 %v12681
        %v13598 = vpop.f32.mrb[0].mxu0
        %v13599 = vadd.f32 %v13082, %v13598
        %v13600 = vpop.f32.mrb[0].mxu0
        %v13601 = vpop.f32.mrb[0].mxu0
        %v13602 = vadd.f32 %v13082, %v13601
        %v13603 = vpop.f32.mrb[0].mxu0
        %13604 = vmatprep.mubr.bf16.mxu0 %v12786
        %13605 = vmatmul.mubr.bf16.gmra.mrb[0].mxu0 %v12774
        %v13606 = vpop.f32.mrb[0].mxu0
        %v13607 = vadd.f32 %v13082, %v13606
        %v13608 = vpop.f32.mrb[0].mxu0
        %v13609 = vpop.f32.mrb[0].mxu0
        %v13610 = vadd.f32 %v13082, %v13609
        %v13611 = vpop.f32.mrb[0].mxu0
        %13612 = vdwg.mxu0
        %13613 = vmatprep.subr.bf16.mxu0 0
        %13614 = vmatpush1.bf16.msra.mxu0 %v13388
        %13615 = vmatprep.subr.bf16.mxu0 0
        %13616 = vmatpush1.bf16.msra.mxu0 %v13389
        %13617 = vmatprep.subr.bf16.mxu0 0
        %13618 = vmatpush1.bf16.msra.mxu0 %v13390
        %13619 = vmatprep.subr.bf16.mxu0 0
        %13620 = vmatpush1.bf16.msra.mxu0 %v13391
        %13621 = vmatprep.subr.bf16.mxu0 0
        %13622 = vmatpush1.bf16.msra.mxu0 %v13392
        %13623 = vmatprep.subr.bf16.mxu0 0
        %13624 = vmatpush1.bf16.msra.mxu0 %v13393
        %13625 = vmatprep.subr.bf16.mxu0 0
        %13626 = vmatpush1.bf16.msra.mxu0 %v13394
        %13627 = vmatprep.subr.bf16.mxu0 0
        %13628 = vmatpush1.bf16.msra.mxu0 %v13395
        %13629 = vmatprep.subr.bf16.mxu0 0
        %13630 = vmatpush1.bf16.msra.mxu0 %v13396
        %13631 = vmatprep.subr.bf16.mxu0 0
        %13632 = vmatpush1.bf16.msra.mxu0 %v13397
        %13633 = vmatprep.subr.bf16.mxu0 0
        %13634 = vmatpush1.bf16.msra.mxu0 %v13398
        %13635 = vmatprep.subr.bf16.mxu0 0
        %13636 = vmatpush1.bf16.msra.mxu0 %v13399
        %13637 = vmatprep.subr.bf16.mxu0 0
        %13638 = vmatpush1.bf16.msra.mxu0 %v13400
        %13639 = vmatprep.subr.bf16.mxu0 0
        %13640 = vmatpush1.bf16.msra.mxu0 %v13401
        %13641 = vmatprep.subr.bf16.mxu0 0
        %13642 = vmatpush1.bf16.msra.mxu0 %v13402
        %13643 = vmatprep.subr.bf16.mxu0 0
        %13644 = vmatpush1.bf16.msra.mxu0 %v13403
        %13645 = vmatprep.mubr.bf16.mxu0 %v12154
        %13646 = vmatmul.mubr.bf16.gmra.mrb[0].mxu0 %v12147
        %v13647 = vpop.f32.mrb[0].mxu0
        %v13648 = vadd.f32 %v13551, %v13647
        %v13649 = vpop.f32.mrb[0].mxu0
        %v13650 = vpop.f32.mrb[0].mxu0
        %v13651 = vadd.f32 %v13554, %v13650
        %v13652 = vpop.f32.mrb[0].mxu0
        %13653 = vmatprep.mubr.bf16.mxu0 %v12247
        %13654 = vmatmul.mubr.bf16.gmra.mrb[0].mxu0 %v12240
        %v13655 = vpop.f32.mrb[0].mxu0
        %v13656 = vadd.f32 %v13559, %v13655
        %v13657 = vpop.f32.mrb[0].mxu0
        %v13658 = vpop.f32.mrb[0].mxu0
        %v13659 = vadd.f32 %v13562, %v13658
        %v13660 = vpop.f32.mrb[0].mxu0
        %13661 = vmatprep.mubr.bf16.mxu0 %v12340
        %13662 = vmatmul.mubr.bf16.gmra.mrb[0].mxu0 %v12333
        %v13663 = vpop.f32.mrb[0].mxu0
        %v13664 = vadd.f32 %v13567, %v13663
        %v13665 = vpop.f32.mrb[0].mxu0
        %v13666 = vpop.f32.mrb[0].mxu0
        %v13667 = vadd.f32 %v13570, %v13666
        %v13668 = vpop.f32.mrb[0].mxu0
        %13669 = vmatprep.mubr.bf16.mxu0 %v12433
        %13670 = vmatmul.mubr.bf16.gmra.mrb[0].mxu0 %v12426
        %v13671 = vpop.f32.mrb[0].mxu0
        %v13672 = vadd.f32 %v13575, %v13671
        %v13673 = vpop.f32.mrb[0].mxu0
        %v13674 = vpop.f32.mrb[0].mxu0
        %v13675 = vadd.f32 %v13578, %v13674
        %v13676 = vpop.f32.mrb[0].mxu0
        %13677 = vmatprep.mubr.bf16.mxu0 %v12526
        %13678 = vmatmul.mubr.bf16.gmra.mrb[0].mxu0 %v12519
        %v13679 = vpop.f32.mrb[0].mxu0
        %v13680 = vadd.f32 %v13583, %v13679
        %v13681 = vpop.f32.mrb[0].mxu0
        %v13682 = vpop.f32.mrb[0].mxu0
        %v13683 = vadd.f32 %v13586, %v13682
        %v13684 = vpop.f32.mrb[0].mxu0
        %13685 = vmatprep.mubr.bf16.mxu0 %v12619
        %13686 = vmatmul.mubr.bf16.gmra.mrb[0].mxu0 %v12612
        %v13687 = vpop.f32.mrb[0].mxu0
        %v13688 = vadd.f32 %v13591, %v13687
        %v13689 = vpop.f32.mrb[0].mxu0
        %v13690 = vpop.f32.mrb[0].mxu0
        %v13691 = vadd.f32 %v13594, %v13690
        %v13692 = vpop.f32.mrb[0].mxu0
        %13693 = vmatprep.mubr.bf16.mxu0 %v12712
        %13694 = vmatmul.mubr.bf16.gmra.mrb[0].mxu0 %v12705
        %v13695 = vpop.f32.mrb[0].mxu0
        %v13696 = vadd.f32 %v13599, %v13695
        %v13697 = vpop.f32.mrb[0].mxu0
        %v13698 = vpop.f32.mrb[0].mxu0
        %v13699 = vadd.f32 %v13602, %v13698
        %v13700 = vpop.f32.mrb[0].mxu0
        %13701 = vmatprep.mubr.bf16.mxu0 %v12805
        %13702 = vmatmul.mubr.bf16.gmra.mrb[0].mxu0 %v12798
        %v13703 = vpop.f32.mrb[0].mxu0
        %v13704 = vadd.f32 %v13607, %v13703
        %v13705 = vpop.f32.mrb[0].mxu0
        %v13706 = vpop.f32.mrb[0].mxu0
        %v13707 = vadd.f32 %v13610, %v13706
        %v13708 = vpop.f32.mrb[0].mxu0
        %13709 = vdwg.mxu0
        %13710 = vmatprep.subr.bf16.mxu0 0
        %13711 = vmatpush1.bf16.msra.mxu0 %v13404
        %13712 = vmatprep.subr.bf16.mxu0 0
        %13713 = vmatpush1.bf16.msra.mxu0 %v13405
        %13714 = vmatprep.subr.bf16.mxu0 0
        %13715 = vmatpush1.bf16.msra.mxu0 %v13406
        %13716 = vmatprep.subr.bf16.mxu0 0
        %13717 = vmatpush1.bf16.msra.mxu0 %v13407
        %13718 = vmatprep.subr.bf16.mxu0 0
        %13719 = vmatpush1.bf16.msra.mxu0 %v13408
        %13720 = vmatprep.subr.bf16.mxu0 0
        %13721 = vmatpush1.bf16.msra.mxu0 %v13409
        %13722 = vmatprep.subr.bf16.mxu0 0
        %13723 = vmatpush1.bf16.msra.mxu0 %v13410
        %13724 = vmatprep.subr.bf16.mxu0 0
        %13725 = vmatpush1.bf16.msra.mxu0 %v13411
        %13726 = vmatprep.subr.bf16.mxu0 0
        %13727 = vmatpush1.bf16.msra.mxu0 %v13412
        %13728 = vmatprep.subr.bf16.mxu0 0
        %13729 = vmatpush1.bf16.msra.mxu0 %v13413
        %13730 = vmatprep.subr.bf16.mxu0 0
        %13731 = vmatpush1.bf16.msra.mxu0 %v13414
        %13732 = vmatprep.subr.bf16.mxu0 0
        %13733 = vmatpush1.bf16.msra.mxu0 %v13415
        %13734 = vmatprep.subr.bf16.mxu0 0
        %13735 = vmatpush1.bf16.msra.mxu0 %v13416
        %13736 = vmatprep.subr.bf16.mxu0 0
        %13737 = vmatpush1.bf16.msra.mxu0 %v13417
        %13738 = vmatprep.subr.bf16.mxu0 0
        %13739 = vmatpush1.bf16.msra.mxu0 %v13418
        %13740 = vmatprep.subr.bf16.mxu0 0
        %13741 = vmatpush1.bf16.msra.mxu0 %v13419
        %13742 = vmatprep.mubr.bf16.mxu0 %v12178
        %13743 = vmatmul.mubr.bf16.gmra.mrb[0].mxu0 %v12166
        %v13744 = vpop.f32.mrb[0].mxu0
        %v13745 = vadd.f32 %v13648, %v13744
        %v13746 = vpop.f32.mrb[0].mxu0
        %v13747 = vpop.f32.mrb[0].mxu0
        %v13748 = vadd.f32 %v13651, %v13747
        %v13749 = vpop.f32.mrb[0].mxu0
        %13750 = vmatprep.mubr.bf16.mxu0 %v12271
        %13751 = vmatmul.mubr.bf16.gmra.mrb[0].mxu0 %v12259
        %v13752 = vpop.f32.mrb[0].mxu0
        %v13753 = vadd.f32 %v13656, %v13752
        %v13754 = vpop.f32.mrb[0].mxu0
        %v13755 = vpop.f32.mrb[0].mxu0
        %v13756 = vadd.f32 %v13659, %v13755
        %v13757 = vpop.f32.mrb[0].mxu0
        %13758 = vmatprep.mubr.bf16.mxu0 %v12364
        %13759 = vmatmul.mubr.bf16.gmra.mrb[0].mxu0 %v12352
        %v13760 = vpop.f32.mrb[0].mxu0
        %v13761 = vadd.f32 %v13664, %v13760
        %v13762 = vpop.f32.mrb[0].mxu0
        %v13763 = vpop.f32.mrb[0].mxu0
        %v13764 = vadd.f32 %v13667, %v13763
        %v13765 = vpop.f32.mrb[0].mxu0
        %13766 = vmatprep.mubr.bf16.mxu0 %v12457
        %13767 = vmatmul.mubr.bf16.gmra.mrb[0].mxu0 %v12445
        %v13768 = vpop.f32.mrb[0].mxu0
        %v13769 = vadd.f32 %v13672, %v13768
        %v13770 = vpop.f32.mrb[0].mxu0
        %v13771 = vpop.f32.mrb[0].mxu0
        %v13772 = vadd.f32 %v13675, %v13771
        %v13773 = vpop.f32.mrb[0].mxu0
        %13774 = vmatprep.mubr.bf16.mxu0 %v12550
        %13775 = vmatmul.mubr.bf16.gmra.mrb[0].mxu0 %v12538
        %v13776 = vpop.f32.mrb[0].mxu0
        %v13777 = vadd.f32 %v13680, %v13776
        %v13778 = vpop.f32.mrb[0].mxu0
        %v13779 = vpop.f32.mrb[0].mxu0
        %v13780 = vadd.f32 %v13683, %v13779
        %v13781 = vpop.f32.mrb[0].mxu0
        %13782 = vmatprep.mubr.bf16.mxu0 %v12643
        %13783 = vmatmul.mubr.bf16.gmra.mrb[0].mxu0 %v12631
        %v13784 = vpop.f32.mrb[0].mxu0
        %v13785 = vadd.f32 %v13688, %v13784
        %v13786 = vpop.f32.mrb[0].mxu0
        %v13787 = vpop.f32.mrb[0].mxu0
        %v13788 = vadd.f32 %v13691, %v13787
        %v13789 = vpop.f32.mrb[0].mxu0
        %13790 = vmatprep.mubr.bf16.mxu0 %v12736
        %13791 = vmatmul.mubr.bf16.gmra.mrb[0].mxu0 %v12724
        %v13792 = vpop.f32.mrb[0].mxu0
        %v13793 = vadd.f32 %v13696, %v13792
        %v13794 = vpop.f32.mrb[0].mxu0
        %v13795 = vpop.f32.mrb[0].mxu0
        %v13796 = vadd.f32 %v13699, %v13795
        %v13797 = vpop.f32.mrb[0].mxu0
        %13798 = vmatprep.mubr.bf16.mxu0 %v12829
        %13799 = vmatmul.mubr.bf16.gmra.mrb[0].mxu0 %v12817
        %v13800 = vpop.f32.mrb[0].mxu0
        %v13801 = vadd.f32 %v13704, %v13800
        %v13802 = vpop.f32.mrb[0].mxu0
        %v13803 = vpop.f32.mrb[0].mxu0
        %v13804 = vadd.f32 %v13707, %v13803
        %v13805 = vpop.f32.mrb[0].mxu0
        %13806 = vdwg.mxu0
        %13807 = vmatprep.subr.bf16.mxu0 0
        %13808 = vmatpush1.bf16.msra.mxu0 %v13420
        %13809 = vmatprep.subr.bf16.mxu0 0
        %13810 = vmatpush1.bf16.msra.mxu0 %v13421
        %13811 = vmatprep.subr.bf16.mxu0 0
        %13812 = vmatpush1.bf16.msra.mxu0 %v13422
        %13813 = vmatprep.subr.bf16.mxu0 0
        %13814 = vmatpush1.bf16.msra.mxu0 %v13423
        %13815 = vmatprep.subr.bf16.mxu0 0
        %13816 = vmatpush1.bf16.msra.mxu0 %v13424
        %13817 = vmatprep.subr.bf16.mxu0 0
        %13818 = vmatpush1.bf16.msra.mxu0 %v13425
        %13819 = vmatprep.subr.bf16.mxu0 0
        %13820 = vmatpush1.bf16.msra.mxu0 %v13426
        %13821 = vmatprep.subr.bf16.mxu0 0
        %13822 = vmatpush1.bf16.msra.mxu0 %v13427
        %13823 = vmatprep.subr.bf16.mxu0 0
        %13824 = vmatpush1.bf16.msra.mxu0 %v13428
        %13825 = vmatprep.subr.bf16.mxu0 0
        %13826 = vmatpush1.bf16.msra.mxu0 %v13429
        %13827 = vmatprep.subr.bf16.mxu0 0
        %13828 = vmatpush1.bf16.msra.mxu0 %v13430
        %13829 = vmatprep.subr.bf16.mxu0 0
        %13830 = vmatpush1.bf16.msra.mxu0 %v13431
        %13831 = vmatprep.subr.bf16.mxu0 0
        %13832 = vmatpush1.bf16.msra.mxu0 %v13432
        %13833 = vmatprep.subr.bf16.mxu0 0
        %13834 = vmatpush1.bf16.msra.mxu0 %v13433
        %13835 = vmatprep.subr.bf16.mxu0 0
        %13836 = vmatpush1.bf16.msra.mxu0 %v13434
        %13837 = vmatprep.subr.bf16.mxu0 0
        %13838 = vmatpush1.bf16.msra.mxu0 %v13435
        %13839 = vmatprep.mubr.bf16.mxu0 %v12197
        %13840 = vmatmul.mubr.bf16.gmra.mrb[0].mxu0 %v12185
        %v13841 = vpop.f32.mrb[0].mxu0
        %v13842 = vadd.f32 %v13745, %v13841
        %v13843 = vpop.f32.mrb[0].mxu0
        %v13844 = vpop.f32.mrb[0].mxu0
        %v13845 = vadd.f32 %v13748, %v13844
        %v13846 = vpop.f32.mrb[0].mxu0
        %13847 = vmatprep.mubr.bf16.mxu0 %v12290
        %13848 = vmatmul.mubr.bf16.gmra.mrb[0].mxu0 %v12278
        %v13849 = vpop.f32.mrb[0].mxu0
        %v13850 = vadd.f32 %v13753, %v13849
        %v13851 = vpop.f32.mrb[0].mxu0
        %v13852 = vpop.f32.mrb[0].mxu0
        %v13853 = vadd.f32 %v13756, %v13852
        %v13854 = vpop.f32.mrb[0].mxu0
        %13855 = vmatprep.mubr.bf16.mxu0 %v12383
        %13856 = vmatmul.mubr.bf16.gmra.mrb[0].mxu0 %v12371
        %v13857 = vpop.f32.mrb[0].mxu0
        %v13858 = vadd.f32 %v13761, %v13857
        %v13859 = vpop.f32.mrb[0].mxu0
        %v13860 = vpop.f32.mrb[0].mxu0
        %v13861 = vadd.f32 %v13764, %v13860
        %v13862 = vpop.f32.mrb[0].mxu0
        %13863 = vmatprep.mubr.bf16.mxu0 %v12476
        %13864 = vmatmul.mubr.bf16.gmra.mrb[0].mxu0 %v12464
        %v13865 = vpop.f32.mrb[0].mxu0
        %v13866 = vadd.f32 %v13769, %v13865
        %v13867 = vpop.f32.mrb[0].mxu0
        %v13868 = vpop.f32.mrb[0].mxu0
        %v13869 = vadd.f32 %v13772, %v13868
        %v13870 = vpop.f32.mrb[0].mxu0
        %13871 = vmatprep.mubr.bf16.mxu0 %v12569
        %13872 = vmatmul.mubr.bf16.gmra.mrb[0].mxu0 %v12557
        %v13873 = vpop.f32.mrb[0].mxu0
        %v13874 = vadd.f32 %v13777, %v13873
        %v13875 = vpop.f32.mrb[0].mxu0
        %v13876 = vpop.f32.mrb[0].mxu0
        %v13877 = vadd.f32 %v13780, %v13876
        %v13878 = vpop.f32.mrb[0].mxu0
        %13879 = vmatprep.mubr.bf16.mxu0 %v12662
        %13880 = vmatmul.mubr.bf16.gmra.mrb[0].mxu0 %v12650
        %v13881 = vpop.f32.mrb[0].mxu0
        %v13882 = vadd.f32 %v13785, %v13881
        %v13883 = vpop.f32.mrb[0].mxu0
        %v13884 = vpop.f32.mrb[0].mxu0
        %v13885 = vadd.f32 %v13788, %v13884
        %v13886 = vpop.f32.mrb[0].mxu0
        %13887 = vmatprep.mubr.bf16.mxu0 %v12755
        %13888 = vmatmul.mubr.bf16.gmra.mrb[0].mxu0 %v12743
        %v13889 = vpop.f32.mrb[0].mxu0
        %v13890 = vadd.f32 %v13793, %v13889
        %v13891 = vpop.f32.mrb[0].mxu0
        %v13892 = vpop.f32.mrb[0].mxu0
        %v13893 = vadd.f32 %v13796, %v13892
        %v13894 = vpop.f32.mrb[0].mxu0
        %13895 = vmatprep.mubr.bf16.mxu0 %v12848
        %13896 = vmatmul.mubr.bf16.gmra.mrb[0].mxu0 %v12836
        %v13897 = vpop.f32.mrb[0].mxu0
        %v13898 = vadd.f32 %v13801, %v13897
        %v13899 = vpop.f32.mrb[0].mxu0
        %v13900 = vpop.f32.mrb[0].mxu0
        %v13901 = vadd.f32 %v13804, %v13900
        %v13902 = vpop.f32.mrb[0].mxu0
        %13903 = vdwg.mxu0
        %13904 = vmatprep.subr.bf16.mxu0 0
        %13905 = vmatpush1.bf16.msra.mxu0 %v13436
        %13906 = vmatprep.subr.bf16.mxu0 0
        %13907 = vmatpush1.bf16.msra.mxu0 %v13437
        %13908 = vmatprep.subr.bf16.mxu0 0
        %13909 = vmatpush1.bf16.msra.mxu0 %v13438
        %13910 = vmatprep.subr.bf16.mxu0 0
        %13911 = vmatpush1.bf16.msra.mxu0 %v13439
        %13912 = vmatprep.subr.bf16.mxu0 0
        %13913 = vmatpush1.bf16.msra.mxu0 %v13440
        %13914 = vmatprep.subr.bf16.mxu0 0
        %13915 = vmatpush1.bf16.msra.mxu0 %v13441
        %13916 = vmatprep.subr.bf16.mxu0 0
        %13917 = vmatpush1.bf16.msra.mxu0 %v13442
        %13918 = vmatprep.subr.bf16.mxu0 0
        %13919 = vmatpush1.bf16.msra.mxu0 %v13443
        %13920 = vmatprep.subr.bf16.mxu0 0
        %13921 = vmatpush1.bf16.msra.mxu0 0
        %13922 = vmatprep.subr.bf16.mxu0 0
        %13923 = vmatpush1.bf16.msra.mxu0 0
        %13924 = vmatprep.subr.bf16.mxu0 0
        %13925 = vmatpush1.bf16.msra.mxu0 0
        %13926 = vmatprep.subr.bf16.mxu0 0
        %13927 = vmatpush1.bf16.msra.mxu0 0
        %13928 = vmatprep.subr.bf16.mxu0 0
        %13929 = vmatpush1.bf16.msra.mxu0 0
        %13930 = vmatprep.subr.bf16.mxu0 0
        %13931 = vmatpush1.bf16.msra.mxu0 0
        %13932 = vmatprep.subr.bf16.mxu0 0
        %13933 = vmatpush1.bf16.msra.mxu0 0
        %13934 = vmatprep.subr.bf16.mxu0 0
        %13935 = vmatpush1.bf16.msra.mxu0 0
        %13936 = vmatprep.mubr.bf16.mxu0 0
        %13937 = vmatmul.mubr.bf16.gmra.mrb[0].mxu0 %v12209
        %v13938 = vpop.f32.mrb[0].mxu0
        %v13939 = vadd.f32 %v13842, %v13938
        %v13940 = vpop.f32.mrb[0].mxu0
        %v13941 = vpop.f32.mrb[0].mxu0
        %v13942 = vadd.f32 %v13845, %v13941
        %v13943 = vpop.f32.mrb[0].mxu0
        %13944 = vmatprep.mubr.bf16.mxu0 0
        %13945 = vmatmul.mubr.bf16.gmra.mrb[0].mxu0 %v12302
        %v13946 = vpop.f32.mrb[0].mxu0
        %v13947 = vadd.f32 %v13850, %v13946
        %v13948 = vpop.f32.mrb[0].mxu0
        %v13949 = vpop.f32.mrb[0].mxu0
        %v13950 = vadd.f32 %v13853, %v13949
        %v13951 = vpop.f32.mrb[0].mxu0
        %13952 = vmatprep.mubr.bf16.mxu0 0
        %13953 = vmatmul.mubr.bf16.gmra.mrb[0].mxu0 %v12395
        %v13954 = vpop.f32.mrb[0].mxu0
        %v13955 = vadd.f32 %v13858, %v13954
        %v13956 = vpop.f32.mrb[0].mxu0
        %v13957 = vpop.f32.mrb[0].mxu0
        %v13958 = vadd.f32 %v13861, %v13957
        %v13959 = vpop.f32.mrb[0].mxu0
        %13960 = vmatprep.mubr.bf16.mxu0 0
        %13961 = vmatmul.mubr.bf16.gmra.mrb[0].mxu0 %v12488
        %v13962 = vpop.f32.mrb[0].mxu0
        %v13963 = vadd.f32 %v13866, %v13962
        %v13964 = vpop.f32.mrb[0].mxu0
        %v13965 = vpop.f32.mrb[0].mxu0
        %v13966 = vadd.f32 %v13869, %v13965
        %v13967 = vpop.f32.mrb[0].mxu0
        %13968 = vmatprep.mubr.bf16.mxu0 0
        %13969 = vmatmul.mubr.bf16.gmra.mrb[0].mxu0 %v12581
        %v13970 = vpop.f32.mrb[0].mxu0
        %v13971 = vadd.f32 %v13874, %v13970
        %v13972 = vpop.f32.mrb[0].mxu0
        %v13973 = vpop.f32.mrb[0].mxu0
        %v13974 = vadd.f32 %v13877, %v13973
        %v13975 = vpop.f32.mrb[0].mxu0
        %13976 = vmatprep.mubr.bf16.mxu0 0
        %13977 = vmatmul.mubr.bf16.gmra.mrb[0].mxu0 %v12674
        %v13978 = vpop.f32.mrb[0].mxu0
        %v13979 = vadd.f32 %v13882, %v13978
        %v13980 = vpop.f32.mrb[0].mxu0
        %v13981 = vpop.f32.mrb[0].mxu0
        %v13982 = vadd.f32 %v13885, %v13981
        %v13983 = vpop.f32.mrb[0].mxu0
        %13984 = vmatprep.mubr.bf16.mxu0 0
        %13985 = vmatmul.mubr.bf16.gmra.mrb[0].mxu0 %v12767
        %v13986 = vpop.f32.mrb[0].mxu0
        %v13987 = vadd.f32 %v13890, %v13986
        %v13988 = vpop.f32.mrb[0].mxu0
        %v13989 = vpop.f32.mrb[0].mxu0
        %v13990 = vadd.f32 %v13893, %v13989
        %v13991 = vpop.f32.mrb[0].mxu0
        %13992 = vmatprep.mubr.bf16.mxu0 0
        %13993 = vmatmul.mubr.bf16.gmra.mrb[0].mxu0 %v12860
        %v13994 = vpop.f32.mrb[0].mxu0
        %v13995 = vadd.f32 %v13898, %v13994
        %v13996 = vpop.f32.mrb[0].mxu0
        %v13997 = vpop.f32.mrb[0].mxu0
        %v13998 = vadd.f32 %v13901, %v13997
        %v13999 = vpop.f32.mrb[0].mxu0
        %14000 = vdwg.mxu0
        %s14001 = scalar_lea.vmem %s203, 128 [#allocation9]
        %14002 = vst [vmem:[%s14001] sm:$0xff] %v13939
        %14003 = vst [vmem:[%s14001 + $0x8] sm:$0xff] %v13942
        %14004 = vst [vmem:[%s14001 + $0x10] sm:$0xff] %v13947
        %14005 = vst [vmem:[%s14001 + $0x18] sm:$0xff] %v13950
        %14006 = vst [vmem:[%s14001 + $0x20] sm:$0xff] %v13955
        %14007 = vst [vmem:[%s14001 + $0x28] sm:$0xff] %v13958
        %14008 = vst [vmem:[%s14001 + $0x30] sm:$0xff] %v13963
        %14009 = vst [vmem:[%s14001 + $0x38] sm:$0xff] %v13966
        %14010 = vst [vmem:[%s14001 + $0x40] sm:$0xff] %v13971
        %14011 = vst [vmem:[%s14001 + $0x48] sm:$0xff] %v13974
        %14012 = vst [vmem:[%s14001 + $0x50] sm:$0xff] %v13979
        %14013 = vst [vmem:[%s14001 + $0x58] sm:$0xff] %v13982
        %14014 = vst [vmem:[%s14001 + $0x60] sm:$0xff] %v13987
        %14015 = vst [vmem:[%s14001 + $0x68] sm:$0xff] %v13990
        %14016 = vst [vmem:[%s14001 + $0x70] sm:$0xff] %v13995
        %14017 = vst [vmem:[%s14001 + $0x78] sm:$0xff] %v13998
        %s14018 = sand.u32 %s97, 1
        %s14019 = scalar_lea.sflag [#allocation6], %s14018
        %s14020 = sand.u32 %s97, 1
        %s14021 = smul.addr %s14020, 256
        %s14022 = scalar_lea.vmem [#allocation9], %s14021
        // Predicated region
        $region41: #{tpu_custom_call.1} parent=31 // pred_check
          %p14023 = pneg %p107
        $region42: #{tpu_custom_call.1} parent=31 // pred_check_branch
          %14025 = sbr.rel (%p14023) target = $region44
        $region43: #{tpu_custom_call.1} parent=31 // pred_region
          %s14027 = ssub.s32 4096, 4096
          %14028 = vsyncadd %s14019, %s14027
          %s14029 = smul.addr %s21, 32
          %s14030 = smul.addr %s14029, 128
          %s14031 = scalar_lea.hbm %s3, %s14030
          %s14032 = sshll.u32 %s14022, 4
          %s14033 = int_to_ptr.vmem [resolvable:$true] %s14032
          %14038 = dma.vmem_to_hbm [thread:$0]  %s14033, 4096, %s14031, %s14019, 128, 128, 8
        $region44: #{tpu_custom_call.1} parent=31 // pred_fallthru
          _
      $region32: #{tpu_custom_call.1} parent=5 // pred_fallthru
        _
      %p14039 = scmp.le.s32.totalorder 2, %s16
      // Predicated region
      $region45: #{tpu_custom_call.1} parent=5 // pred_check
        %p14040 = pneg %p14039
      $region46: #{tpu_custom_call.1} parent=5 // pred_check_branch
        %14042 = sbr.rel (%p14040) target = $region48
      $region47: #{tpu_custom_call.1} parent=5 // pred_region
        %s14043 = ssub.s32 %s16, 2
        // Predicated region
        $region49: #{tpu_custom_call.1} parent=47 // pred_check
          %p14044 = pneg %p113
        $region50: #{tpu_custom_call.1} parent=47 // pred_check_branch
          %14046 = sbr.rel (%p14044) target = $region52
        $region51: #{tpu_custom_call.1} parent=47 // pred_region
          %s14047 = sand.u32 %s98, 1
          %s14048 = scalar_lea.sflag [#allocation6], %s14047
          %s14049 = sand.u32 %s98, 1
          %s14050 = smul.addr %s14049, 256
          %s14051 = scalar_lea.vmem [#allocation9], %s14050
          %14052 = dma.done %s14048, 4096
        $region52: #{tpu_custom_call.1} parent=47 // pred_fallthru
          _
      $region48: #{tpu_custom_call.1} parent=5 // pred_fallthru
        _
    $region6: #{tpu_custom_call.1} parent=1 // loop_footer
      %s20 = sadd.s32 1, %s16
    $region7: #{tpu_custom_call.1} parent=1 // loop_footer_branch
      %15 = sbr.rel target = $region3
    $region8: #{tpu_custom_call.1} parent=1 // loop_exit
      _
    %14053 = vsyncpa [#allocation5], 1
    %s14054 = scalar_lea.sflag [#allocation5], 1
    %14055 = vsyncpa %s14054, 1
    %14056 = vsyncpa [#allocation8], 1
    %14057 = vsyncpa [#allocation6], 1
    %s14058 = scalar_lea.sflag [#allocation6], 1
    %14059 = vsyncpa %s14058, 1

</llo_original>
